<compile_context>
chip_gen: v7x
topology: tpu7x:2x2x1
jax: 0.10.0
libtpu: 0.0.40
codegen_flags: <defaults>
</compile_context>

<pallas_src>
import jax
import jax.numpy as jnp
from jax.experimental import pallas as pl
from jax.experimental.pallas import tpu as pltpu


# ---------------------------------------------------------------------------
# Kernels
# ---------------------------------------------------------------------------

def _conv_down_kernel(xe_ref, xo_ref, w_ref, b_ref, o_ref):
    """Conv1d(kernel=5, stride=2, padding=2) + ReLU for one batch element.

    xe_ref: (1, C_in, Lout+2)  even input phase, zero-padded by 1 each side
    xo_ref: (1, C_in, Lout+2)  odd  input phase, zero-padded by 1 each side
    w_ref:  (5, C_out, C_in)   per-tap weight slabs W[:, :, t]
    b_ref:  (C_out, 1)
    o_ref:  (1, C_out, Lout)
    """
    lout = o_ref.shape[2]
    xe = xe_ref[0]                     # (C_in, Lout+2)
    xo = xo_ref[0]                     # (C_in, Lout+2)

    # out[:, j] = sum_t W_t @ x[2j - 2 + t]; taps 0,2,4 hit the even phase at
    # offsets j-1, j, j+1 and taps 1,3 hit the odd phase at offsets j-1, j.
    acc = jnp.dot(w_ref[0], xe[:, 0:lout], preferred_element_type=jnp.float32)
    acc += jnp.dot(w_ref[1], xo[:, 0:lout], preferred_element_type=jnp.float32)
    acc += jnp.dot(w_ref[2], xe[:, 1:lout + 1], preferred_element_type=jnp.float32)
    acc += jnp.dot(w_ref[3], xo[:, 1:lout + 1], preferred_element_type=jnp.float32)
    acc += jnp.dot(w_ref[4], xe[:, 2:lout + 2], preferred_element_type=jnp.float32)
    acc += b_ref[...]                  # (C_out, 1) broadcast along lanes
    o_ref[0] = jnp.maximum(acc, 0.0).astype(o_ref.dtype)


def _conv_up_kernel(x_ref, w_ref, b_ref, o_ref):
    """ConvTranspose1d(kernel=5, stride=2, padding=2, output_padding=1) + ReLU.

    x_ref: (1, C_in, Lin+2)   input, zero-padded by 1 each side
    w_ref: (5, C_out, C_in)   per-tap transposed weight slabs W[:, :, t]^T
    b_ref: (C_out, 1)
    o_ref: (1, 2, C_out, Lin) even/odd output phases (interleaved in wrapper)
    """
    lin = o_ref.shape[3]
    xp = x_ref[0]                      # (C_in, Lin+2)
    x_m1 = xp[:, 0:lin]                # x[u-1]
    x_0 = xp[:, 1:lin + 1]             # x[u]
    x_p1 = xp[:, 2:lin + 2]            # x[u+1]

    # y[:, 2u]   = W0^T x[u+1] + W2^T x[u] + W4^T x[u-1]
    # y[:, 2u+1] = W1^T x[u+1] + W3^T x[u]
    y_even = jnp.dot(w_ref[0], x_p1, preferred_element_type=jnp.float32)
    y_even += jnp.dot(w_ref[2], x_0, preferred_element_type=jnp.float32)
    y_even += jnp.dot(w_ref[4], x_m1, preferred_element_type=jnp.float32)
    y_odd = jnp.dot(w_ref[1], x_p1, preferred_element_type=jnp.float32)
    y_odd += jnp.dot(w_ref[3], x_0, preferred_element_type=jnp.float32)

    bias = b_ref[...]                  # (C_out, 1)
    o_ref[0, 0] = jnp.maximum(y_even + bias, 0.0).astype(o_ref.dtype)
    o_ref[0, 1] = jnp.maximum(y_odd + bias, 0.0).astype(o_ref.dtype)


# ---------------------------------------------------------------------------
# Per-layer wrappers (layout plumbing only; all FLOPs live in the kernels)
# ---------------------------------------------------------------------------

def conv1d_down_relu(x, weight, bias):
    """x: (B, C_in, L); weight: (C_out, C_in, 5); bias: (C_out,)."""
    B, C_in, L = x.shape
    C_out = weight.shape[0]
    Lout = (L + 1) // 2
    if L % 2 == 1:                      # pad to even length (lands in the conv's own pad zone)
        x = jnp.pad(x, ((0, 0), (0, 0), (0, 1)))
    xe = jnp.pad(x[:, :, 0::2], ((0, 0), (0, 0), (1, 1)))   # (B, C_in, Lout+2)
    xo = jnp.pad(x[:, :, 1::2], ((0, 0), (0, 0), (1, 1)))   # (B, C_in, Lout+2)
    w_t = jnp.transpose(weight, (2, 0, 1))                  # (5, C_out, C_in)
    b_r = bias.reshape(C_out, 1)

    return pl.pallas_call(
        _conv_down_kernel,
        out_shape=jax.ShapeDtypeStruct((B, C_out, Lout), x.dtype),
        grid=(B,),
        in_specs=[
            pl.BlockSpec((1, C_in, Lout + 2), lambda b: (b, 0, 0)),
            pl.BlockSpec((1, C_in, Lout + 2), lambda b: (b, 0, 0)),
            pl.BlockSpec((5, C_out, C_in), lambda b: (0, 0, 0)),
            pl.BlockSpec((C_out, 1), lambda b: (0, 0)),
        ],
        out_specs=pl.BlockSpec((1, C_out, Lout), lambda b: (b, 0, 0)),
        compiler_params=pltpu.CompilerParams(dimension_semantics=("parallel",)),
    )(xe, xo, w_t, b_r)


def convtranspose1d_up_relu(x, weight, bias):
    """x: (B, C_in, L); weight: (C_in, C_out, 5); bias: (C_out,)."""
    B, C_in, L = x.shape
    C_out = weight.shape[1]
    xp = jnp.pad(x, ((0, 0), (0, 0), (1, 1)))               # (B, C_in, L+2)
    w_t = jnp.transpose(weight, (2, 1, 0))                  # (5, C_out, C_in)
    b_r = bias.reshape(C_out, 1)

    out = pl.pallas_call(
        _conv_up_kernel,
        out_shape=jax.ShapeDtypeStruct((B, 2, C_out, L), x.dtype),
        grid=(B,),
        in_specs=[
            pl.BlockSpec((1, C_in, L + 2), lambda b: (b, 0, 0)),
            pl.BlockSpec((5, C_out, C_in), lambda b: (0, 0, 0)),
            pl.BlockSpec((C_out, 1), lambda b: (0, 0)),
        ],
        out_specs=pl.BlockSpec((1, 2, C_out, L), lambda b: (b, 0, 0, 0)),
        compiler_params=pltpu.CompilerParams(dimension_semantics=("parallel",)),
    )(xp, w_t, b_r)
    # Interleave even/odd output phases along the length axis (layout plumbing).
    return jnp.transpose(out, (0, 2, 3, 1)).reshape(B, C_out, 2 * L)


def pad_concat(t1, t2):
    """Channel concat; reflect-pad the shorter activation along length (dim 2)."""
    n1, n2 = t1.shape[2], t2.shape[2]
    if n1 > n2:
        p = n1 - n2
        t2 = jnp.pad(t2, ((0, 0), (0, 0), (p // 2, p - p // 2)), mode="reflect")
    elif n2 > n1:
        p = n2 - n1
        t1 = jnp.pad(t1, ((0, 0), (0, 0), (p // 2, p - p // 2)), mode="reflect")
    return jnp.concatenate([t1, t2], axis=1)


# ---------------------------------------------------------------------------
# Full UNet forward (Pallas)
# ---------------------------------------------------------------------------

def unet_forward(x, params):
    (p1, p2, p3, p4, p5, p6, p7, p8, p9, p10, p11, p12) = params
    h1 = conv1d_down_relu(x, *p1)
    h2 = conv1d_down_relu(h1, *p2)
    h3 = conv1d_down_relu(h2, *p3)
    h4 = conv1d_down_relu(h3, *p4)
    h5 = conv1d_down_relu(h4, *p5)
    h6 = conv1d_down_relu(h5, *p6)
    h7 = pad_concat(h5, convtranspose1d_up_relu(h6, *p7))
    h8 = pad_concat(h4, convtranspose1d_up_relu(h7, *p8))
    h9 = pad_concat(h3, convtranspose1d_up_relu(h8, *p9))
    h10 = pad_concat(h2, convtranspose1d_up_relu(h9, *p10))
    h11 = pad_concat(h1, convtranspose1d_up_relu(h10, *p11))
    h12 = convtranspose1d_up_relu(h11, *p12)
    return pad_concat(x, h12)


# ---------------------------------------------------------------------------
# Pure-JAX reference (transcription of the PyTorch forward) for verification
# ---------------------------------------------------------------------------

def _conv_ref(x, w, b):
    out = jax.lax.conv_general_dilated(
        x, w, window_strides=(2,), padding=[(2, 2)],
        dimension_numbers=("NCH", "OIH", "NCH"),
        precision=jax.lax.Precision.HIGHEST)
    return jax.nn.relu(out + b[None, :, None])


def _deconv_ref(x, w, b):
    # ConvTranspose1d(k=5, s=2, p=2, output_padding=1) == lhs-dilated conv with
    # flipped, channel-transposed kernel and padding (k-1-p, k-1-p+op) = (2, 3).
    w_oih = jnp.transpose(jnp.flip(w, axis=2), (1, 0, 2))
    out = jax.lax.conv_general_dilated(
        x, w_oih, window_strides=(1,), padding=[(2, 3)], lhs_dilation=(2,),
        dimension_numbers=("NCH", "OIH", "NCH"),
        precision=jax.lax.Precision.HIGHEST)
    return jax.nn.relu(out + b[None, :, None])


def unet_forward_reference(x, params):
    (p1, p2, p3, p4, p5, p6, p7, p8, p9, p10, p11, p12) = params
    h1 = _conv_ref(x, *p1)
    h2 = _conv_ref(h1, *p2)
    h3 = _conv_ref(h2, *p3)
    h4 = _conv_ref(h3, *p4)
    h5 = _conv_ref(h4, *p5)
    h6 = _conv_ref(h5, *p6)
    h7 = pad_concat(h5, _deconv_ref(h6, *p7))
    h8 = pad_concat(h4, _deconv_ref(h7, *p8))
    h9 = pad_concat(h3, _deconv_ref(h8, *p9))
    h10 = pad_concat(h2, _deconv_ref(h9, *p10))
    h11 = pad_concat(h1, _deconv_ref(h10, *p11))
    h12 = _deconv_ref(h11, *p12)
    return pad_concat(x, h12)


# ---------------------------------------------------------------------------
# Parameter init (Xavier-normal weights, bias = 0.001, matching the module)
# ---------------------------------------------------------------------------

def init_unet_params(key, in_channels=8):
    c = in_channels
    K = 5
    conv_specs = [(c, c), (c, 2 * c), (2 * c, 2 * c),
                  (2 * c, 4 * c), (4 * c, 4 * c), (4 * c, 8 * c)]
    deconv_specs = [(8 * c, 4 * c), (8 * c, 4 * c), (8 * c, 2 * c),
                    (4 * c, 2 * c), (4 * c, c), (2 * c, c)]
    keys = jax.random.split(key, 12)
    params = []
    for i, (ci, co) in enumerate(conv_specs):           # Conv1d: (C_out, C_in, K)
        std = (2.0 / ((ci + co) * K)) ** 0.5
        w = std * jax.random.normal(keys[i], (co, ci, K), jnp.float32)
        params.append((w, jnp.full((co,), 0.001, jnp.float32)))
    for i, (ci, co) in enumerate(deconv_specs):         # ConvTranspose1d: (C_in, C_out, K)
        std = (2.0 / ((ci + co) * K)) ** 0.5
        w = std * jax.random.normal(keys[6 + i], (ci, co, K), jnp.float32)
        params.append((w, jnp.full((co,), 0.001, jnp.float32)))
    return params


if __name__ == "__main__":
    B, C_in, L = 2, 8, 128          # L divisible by 2**6 so skip lengths align
    key = jax.random.PRNGKey(0)
    kx, kp = jax.random.split(key)
    x = jax.random.normal(kx, (B, C_in, L), jnp.float32)
    params = init_unet_params(kp, in_channels=C_in)

    out = jax.block_until_ready(jax.jit(unet_forward)(x, params))
    ref = jax.block_until_ready(jax.jit(unet_forward_reference)(x, params))

    assert out.shape == (B, 2 * C_in, L), out.shape
    # Loose-ish tolerance: 12 stacked conv layers accumulate MXU / XLA-conv
    # default-precision pass rounding; structural errors would be O(1).
    assert jnp.allclose(out, ref, rtol=2e-2, atol=2e-2), float(
        jnp.max(jnp.abs(out - ref)))
    print("KERNEL_OK")
</pallas_src>

<mosaic_0001>
module attributes {stable_mosaic.version = 11 : i64} {
  func.func @_conv_down_kernel(%arg0: i32, %arg1: memref<1x8x66xf32, #tpu.memory_space<vmem>>, %arg2: memref<1x8x66xf32, #tpu.memory_space<vmem>>, %arg3: memref<5x8x8xf32, #tpu.memory_space<vmem>>, %arg4: memref<8x1xf32, #tpu.memory_space<vmem>>, %arg5: memref<1x8x64xf32, #tpu.memory_space<vmem>>) attributes {dimension_semantics = [#tpu.dimension_semantics<parallel>], iteration_bounds = array<i64: 2>, scalar_prefetch = 0 : i64, scratch_operands = 0 : i64, tpu.core_type = #tpu.core_type<tc>, window_params = [{transform_indices = @transform_0, window_bounds = array<i64: 1, 8, 66>}, {transform_indices = @transform_1, window_bounds = array<i64: 1, 8, 66>}, {pipeline_mode = #tpu.pipeline_mode<synchronous>, transform_indices = @transform_2, window_bounds = array<i64: 5, 8, 8>}, {pipeline_mode = #tpu.pipeline_mode<synchronous>, transform_indices = @transform_3, window_bounds = array<i64: 8, 1>}, {transform_indices = @transform_4, window_bounds = array<i64: 1, 8, 64>}]} {
    %c0 = arith.constant 0 : index
    %c0_0 = arith.constant 0 : index
    %c0_1 = arith.constant 0 : index
    %0 = vector.load %arg1[%c0, %c0_0, %c0_1] : memref<1x8x66xf32, #tpu.memory_space<vmem>>, vector<1x8x66xf32>
    %1 = vector.shape_cast %0 : vector<1x8x66xf32> to vector<8x66xf32>
    %c0_2 = arith.constant 0 : index
    %c0_3 = arith.constant 0 : index
    %c0_4 = arith.constant 0 : index
    %2 = vector.load %arg2[%c0_2, %c0_3, %c0_4] : memref<1x8x66xf32, #tpu.memory_space<vmem>>, vector<1x8x66xf32>
    %3 = vector.shape_cast %2 : vector<1x8x66xf32> to vector<8x66xf32>
    %c0_5 = arith.constant 0 : index
    %c0_6 = arith.constant 0 : index
    %c0_7 = arith.constant 0 : index
    %4 = vector.load %arg3[%c0_5, %c0_6, %c0_7] : memref<5x8x8xf32, #tpu.memory_space<vmem>>, vector<1x8x8xf32>
    %5 = vector.shape_cast %4 : vector<1x8x8xf32> to vector<8x8xf32>
    %6 = vector.extract_strided_slice %1 {offsets = [0, 0], sizes = [8, 64], strides = [1, 1]} : vector<8x66xf32> to vector<8x64xf32>
    %cst = arith.constant dense<0.000000e+00> : vector<8x64xf32>
    %7 = tpu.matmul %5, %6, %cst {dimension_numbers = #tpu.dot_dimension_numbers<[1], [0], [0], [1], [0, 0, 1, 1], [], []>} : vector<8x8xf32>, vector<8x64xf32>, vector<8x64xf32> -> vector<8x64xf32>
    %c1 = arith.constant 1 : index
    %c0_8 = arith.constant 0 : index
    %c0_9 = arith.constant 0 : index
    %8 = vector.load %arg3[%c1, %c0_8, %c0_9] : memref<5x8x8xf32, #tpu.memory_space<vmem>>, vector<1x8x8xf32>
    %9 = vector.shape_cast %8 : vector<1x8x8xf32> to vector<8x8xf32>
    %10 = vector.extract_strided_slice %3 {offsets = [0, 0], sizes = [8, 64], strides = [1, 1]} : vector<8x66xf32> to vector<8x64xf32>
    %cst_10 = arith.constant dense<0.000000e+00> : vector<8x64xf32>
    %11 = tpu.matmul %9, %10, %cst_10 {dimension_numbers = #tpu.dot_dimension_numbers<[1], [0], [0], [1], [0, 0, 1, 1], [], []>} : vector<8x8xf32>, vector<8x64xf32>, vector<8x64xf32> -> vector<8x64xf32>
    %12 = arith.addf %7, %11 : vector<8x64xf32>
    %c2 = arith.constant 2 : index
    %c0_11 = arith.constant 0 : index
    %c0_12 = arith.constant 0 : index
    %13 = vector.load %arg3[%c2, %c0_11, %c0_12] : memref<5x8x8xf32, #tpu.memory_space<vmem>>, vector<1x8x8xf32>
    %14 = vector.shape_cast %13 : vector<1x8x8xf32> to vector<8x8xf32>
    %15 = vector.extract_strided_slice %1 {offsets = [0, 1], sizes = [8, 64], strides = [1, 1]} : vector<8x66xf32> to vector<8x64xf32>
    %cst_13 = arith.constant dense<0.000000e+00> : vector<8x64xf32>
    %16 = tpu.matmul %14, %15, %cst_13 {dimension_numbers = #tpu.dot_dimension_numbers<[1], [0], [0], [1], [0, 0, 1, 1], [], []>} : vector<8x8xf32>, vector<8x64xf32>, vector<8x64xf32> -> vector<8x64xf32>
    %17 = arith.addf %12, %16 : vector<8x64xf32>
    %c3 = arith.constant 3 : index
    %c0_14 = arith.constant 0 : index
    %c0_15 = arith.constant 0 : index
    %18 = vector.load %arg3[%c3, %c0_14, %c0_15] : memref<5x8x8xf32, #tpu.memory_space<vmem>>, vector<1x8x8xf32>
    %19 = vector.shape_cast %18 : vector<1x8x8xf32> to vector<8x8xf32>
    %20 = vector.extract_strided_slice %3 {offsets = [0, 1], sizes = [8, 64], strides = [1, 1]} : vector<8x66xf32> to vector<8x64xf32>
    %cst_16 = arith.constant dense<0.000000e+00> : vector<8x64xf32>
    %21 = tpu.matmul %19, %20, %cst_16 {dimension_numbers = #tpu.dot_dimension_numbers<[1], [0], [0], [1], [0, 0, 1, 1], [], []>} : vector<8x8xf32>, vector<8x64xf32>, vector<8x64xf32> -> vector<8x64xf32>
    %22 = arith.addf %17, %21 : vector<8x64xf32>
    %c4 = arith.constant 4 : index
    %c0_17 = arith.constant 0 : index
    %c0_18 = arith.constant 0 : index
    %23 = vector.load %arg3[%c4, %c0_17, %c0_18] : memref<5x8x8xf32, #tpu.memory_space<vmem>>, vector<1x8x8xf32>
    %24 = vector.shape_cast %23 : vector<1x8x8xf32> to vector<8x8xf32>
    %25 = vector.extract_strided_slice %1 {offsets = [0, 2], sizes = [8, 64], strides = [1, 1]} : vector<8x66xf32> to vector<8x64xf32>
    %cst_19 = arith.constant dense<0.000000e+00> : vector<8x64xf32>
    %26 = tpu.matmul %24, %25, %cst_19 {dimension_numbers = #tpu.dot_dimension_numbers<[1], [0], [0], [1], [0, 0, 1, 1], [], []>} : vector<8x8xf32>, vector<8x64xf32>, vector<8x64xf32> -> vector<8x64xf32>
    %27 = arith.addf %22, %26 : vector<8x64xf32>
    %c0_20 = arith.constant 0 : index
    %c0_21 = arith.constant 0 : index
    %28 = vector.load %arg4[%c0_20, %c0_21] : memref<8x1xf32, #tpu.memory_space<vmem>>, vector<8x1xf32>
    %29 = vector.broadcast %28 : vector<8x1xf32> to vector<8x64xf32>
    %30 = arith.addf %27, %29 : vector<8x64xf32>
    %cst_22 = arith.constant 0.000000e+00 : f32
    %31 = vector.broadcast %cst_22 : f32 to vector<8x64xf32>
    %32 = arith.maximumf %30, %31 : vector<8x64xf32>
    %c0_23 = arith.constant 0 : index
    %c0_24 = arith.constant 0 : index
    %c0_25 = arith.constant 0 : index
    %33 = vector.load %arg5[%c0_23, %c0_24, %c0_25] : memref<1x8x64xf32, #tpu.memory_space<vmem>>, vector<1x8x64xf32>
    %34 = vector.shape_cast %33 : vector<1x8x64xf32> to vector<8x64xf32>
    %35 = vector.shape_cast %32 : vector<8x64xf32> to vector<1x8x64xf32>
    tpu.vector_store %arg5[%c0_23, %c0_24, %c0_25], %35 {strides = array<i32>} : memref<1x8x64xf32, #tpu.memory_space<vmem>>, vector<1x8x64xf32>,
    return
  }
  func.func @transform_0(%arg0: i32) -> (i32, i32, i32) {
    %c0_i32 = arith.constant 0 : i32
    %c0_i32_0 = arith.constant 0 : i32
    %c0_i32_1 = arith.constant 0 : i32
    return %arg0, %c0_i32, %c0_i32_0 : i32, i32, i32
  }
  func.func @transform_1(%arg0: i32) -> (i32, i32, i32) {
    %c0_i32 = arith.constant 0 : i32
    %c0_i32_0 = arith.constant 0 : i32
    %c0_i32_1 = arith.constant 0 : i32
    return %arg0, %c0_i32, %c0_i32_0 : i32, i32, i32
  }
  func.func @transform_2(%arg0: i32) -> (i32, i32, i32) {
    %c0_i32 = arith.constant 0 : i32
    %c0_i32_0 = arith.constant 0 : i32
    %c0_i32_1 = arith.constant 0 : i32
    %c0_i32_2 = arith.constant 0 : i32
    return %c0_i32, %c0_i32_0, %c0_i32_1 : i32, i32, i32
  }
  func.func @transform_3(%arg0: i32) -> (i32, i32) {
    %c0_i32 = arith.constant 0 : i32
    %c0_i32_0 = arith.constant 0 : i32
    %c0_i32_1 = arith.constant 0 : i32
    return %c0_i32, %c0_i32_0 : i32, i32
  }
  func.func @transform_4(%arg0: i32) -> (i32, i32, i32) {
    %c0_i32 = arith.constant 0 : i32
    %c0_i32_0 = arith.constant 0 : i32
    %c0_i32_1 = arith.constant 0 : i32
    return %arg0, %c0_i32, %c0_i32_0 : i32, i32, i32
  }
}

module attributes {stable_mosaic.version = 11 : i64} {
  func.func @_conv_down_kernel(%arg0: i32, %arg1: memref<1x8x34xf32, #tpu.memory_space<vmem>>, %arg2: memref<1x8x34xf32, #tpu.memory_space<vmem>>, %arg3: memref<5x16x8xf32, #tpu.memory_space<vmem>>, %arg4: memref<16x1xf32, #tpu.memory_space<vmem>>, %arg5: memref<1x16x32xf32, #tpu.memory_space<vmem>>) attributes {dimension_semantics = [#tpu.dimension_semantics<parallel>], iteration_bounds = array<i64: 2>, scalar_prefetch = 0 : i64, scratch_operands = 0 : i64, tpu.core_type = #tpu.core_type<tc>, window_params = [{transform_indices = @transform_0, window_bounds = array<i64: 1, 8, 34>}, {transform_indices = @transform_1, window_bounds = array<i64: 1, 8, 34>}, {pipeline_mode = #tpu.pipeline_mode<synchronous>, transform_indices = @transform_2, window_bounds = array<i64: 5, 16, 8>}, {pipeline_mode = #tpu.pipeline_mode<synchronous>, transform_indices = @transform_3, window_bounds = array<i64: 16, 1>}, {transform_indices = @transform_4, window_bounds = array<i64: 1, 16, 32>}]} {
    %c0 = arith.constant 0 : index
    %c0_0 = arith.constant 0 : index
    %c0_1 = arith.constant 0 : index
    %0 = vector.load %arg1[%c0, %c0_0, %c0_1] : memref<1x8x34xf32, #tpu.memory_space<vmem>>, vector<1x8x34xf32>
    %1 = vector.shape_cast %0 : vector<1x8x34xf32> to vector<8x34xf32>
    %c0_2 = arith.constant 0 : index
    %c0_3 = arith.constant 0 : index
    %c0_4 = arith.constant 0 : index
    %2 = vector.load %arg2[%c0_2, %c0_3, %c0_4] : memref<1x8x34xf32, #tpu.memory_space<vmem>>, vector<1x8x34xf32>
    %3 = vector.shape_cast %2 : vector<1x8x34xf32> to vector<8x34xf32>
    %c0_5 = arith.constant 0 : index
    %c0_6 = arith.constant 0 : index
    %c0_7 = arith.constant 0 : index
    %4 = vector.load %arg3[%c0_5, %c0_6, %c0_7] : memref<5x16x8xf32, #tpu.memory_space<vmem>>, vector<1x16x8xf32>
    %5 = vector.shape_cast %4 : vector<1x16x8xf32> to vector<16x8xf32>
    %6 = vector.extract_strided_slice %1 {offsets = [0, 0], sizes = [8, 32], strides = [1, 1]} : vector<8x34xf32> to vector<8x32xf32>
    %cst = arith.constant dense<0.000000e+00> : vector<16x32xf32>
    %7 = tpu.matmul %5, %6, %cst {dimension_numbers = #tpu.dot_dimension_numbers<[1], [0], [0], [1], [0, 0, 1, 1], [], []>} : vector<16x8xf32>, vector<8x32xf32>, vector<16x32xf32> -> vector<16x32xf32>
    %c1 = arith.constant 1 : index
    %c0_8 = arith.constant 0 : index
    %c0_9 = arith.constant 0 : index
    %8 = vector.load %arg3[%c1, %c0_8, %c0_9] : memref<5x16x8xf32, #tpu.memory_space<vmem>>, vector<1x16x8xf32>
    %9 = vector.shape_cast %8 : vector<1x16x8xf32> to vector<16x8xf32>
    %10 = vector.extract_strided_slice %3 {offsets = [0, 0], sizes = [8, 32], strides = [1, 1]} : vector<8x34xf32> to vector<8x32xf32>
    %cst_10 = arith.constant dense<0.000000e+00> : vector<16x32xf32>
    %11 = tpu.matmul %9, %10, %cst_10 {dimension_numbers = #tpu.dot_dimension_numbers<[1], [0], [0], [1], [0, 0, 1, 1], [], []>} : vector<16x8xf32>, vector<8x32xf32>, vector<16x32xf32> -> vector<16x32xf32>
    %12 = arith.addf %7, %11 : vector<16x32xf32>
    %c2 = arith.constant 2 : index
    %c0_11 = arith.constant 0 : index
    %c0_12 = arith.constant 0 : index
    %13 = vector.load %arg3[%c2, %c0_11, %c0_12] : memref<5x16x8xf32, #tpu.memory_space<vmem>>, vector<1x16x8xf32>
    %14 = vector.shape_cast %13 : vector<1x16x8xf32> to vector<16x8xf32>
    %15 = vector.extract_strided_slice %1 {offsets = [0, 1], sizes = [8, 32], strides = [1, 1]} : vector<8x34xf32> to vector<8x32xf32>
    %cst_13 = arith.constant dense<0.000000e+00> : vector<16x32xf32>
    %16 = tpu.matmul %14, %15, %cst_13 {dimension_numbers = #tpu.dot_dimension_numbers<[1], [0], [0], [1], [0, 0, 1, 1], [], []>} : vector<16x8xf32>, vector<8x32xf32>, vector<16x32xf32> -> vector<16x32xf32>
    %17 = arith.addf %12, %16 : vector<16x32xf32>
    %c3 = arith.constant 3 : index
    %c0_14 = arith.constant 0 : index
    %c0_15 = arith.constant 0 : index
    %18 = vector.load %arg3[%c3, %c0_14, %c0_15] : memref<5x16x8xf32, #tpu.memory_space<vmem>>, vector<1x16x8xf32>
    %19 = vector.shape_cast %18 : vector<1x16x8xf32> to vector<16x8xf32>
    %20 = vector.extract_strided_slice %3 {offsets = [0, 1], sizes = [8, 32], strides = [1, 1]} : vector<8x34xf32> to vector<8x32xf32>
    %cst_16 = arith.constant dense<0.000000e+00> : vector<16x32xf32>
    %21 = tpu.matmul %19, %20, %cst_16 {dimension_numbers = #tpu.dot_dimension_numbers<[1], [0], [0], [1], [0, 0, 1, 1], [], []>} : vector<16x8xf32>, vector<8x32xf32>, vector<16x32xf32> -> vector<16x32xf32>
    %22 = arith.addf %17, %21 : vector<16x32xf32>
    %c4 = arith.constant 4 : index
    %c0_17 = arith.constant 0 : index
    %c0_18 = arith.constant 0 : index
    %23 = vector.load %arg3[%c4, %c0_17, %c0_18] : memref<5x16x8xf32, #tpu.memory_space<vmem>>, vector<1x16x8xf32>
    %24 = vector.shape_cast %23 : vector<1x16x8xf32> to vector<16x8xf32>
    %25 = vector.extract_strided_slice %1 {offsets = [0, 2], sizes = [8, 32], strides = [1, 1]} : vector<8x34xf32> to vector<8x32xf32>
    %cst_19 = arith.constant dense<0.000000e+00> : vector<16x32xf32>
    %26 = tpu.matmul %24, %25, %cst_19 {dimension_numbers = #tpu.dot_dimension_numbers<[1], [0], [0], [1], [0, 0, 1, 1], [], []>} : vector<16x8xf32>, vector<8x32xf32>, vector<16x32xf32> -> vector<16x32xf32>
    %27 = arith.addf %22, %26 : vector<16x32xf32>
    %c0_20 = arith.constant 0 : index
    %c0_21 = arith.constant 0 : index
    %28 = vector.load %arg4[%c0_20, %c0_21] : memref<16x1xf32, #tpu.memory_space<vmem>>, vector<16x1xf32>
    %29 = vector.broadcast %28 : vector<16x1xf32> to vector<16x32xf32>
    %30 = arith.addf %27, %29 : vector<16x32xf32>
    %cst_22 = arith.constant 0.000000e+00 : f32
    %31 = vector.broadcast %cst_22 : f32 to vector<16x32xf32>
    %32 = arith.maximumf %30, %31 : vector<16x32xf32>
    %c0_23 = arith.constant 0 : index
    %c0_24 = arith.constant 0 : index
    %c0_25 = arith.constant 0 : index
    %33 = vector.load %arg5[%c0_23, %c0_24, %c0_25] : memref<1x16x32xf32, #tpu.memory_space<vmem>>, vector<1x16x32xf32>
    %34 = vector.shape_cast %33 : vector<1x16x32xf32> to vector<16x32xf32>
    %35 = vector.shape_cast %32 : vector<16x32xf32> to vector<1x16x32xf32>
    tpu.vector_store %arg5[%c0_23, %c0_24, %c0_25], %35 {strides = array<i32>} : memref<1x16x32xf32, #tpu.memory_space<vmem>>, vector<1x16x32xf32>,
    return
  }
  func.func @transform_0(%arg0: i32) -> (i32, i32, i32) {
    %c0_i32 = arith.constant 0 : i32
    %c0_i32_0 = arith.constant 0 : i32
    %c0_i32_1 = arith.constant 0 : i32
    return %arg0, %c0_i32, %c0_i32_0 : i32, i32, i32
  }
  func.func @transform_1(%arg0: i32) -> (i32, i32, i32) {
    %c0_i32 = arith.constant 0 : i32
    %c0_i32_0 = arith.constant 0 : i32
    %c0_i32_1 = arith.constant 0 : i32
    return %arg0, %c0_i32, %c0_i32_0 : i32, i32, i32
  }
  func.func @transform_2(%arg0: i32) -> (i32, i32, i32) {
    %c0_i32 = arith.constant 0 : i32
    %c0_i32_0 = arith.constant 0 : i32
    %c0_i32_1 = arith.constant 0 : i32
    %c0_i32_2 = arith.constant 0 : i32
    return %c0_i32, %c0_i32_0, %c0_i32_1 : i32, i32, i32
  }
  func.func @transform_3(%arg0: i32) -> (i32, i32) {
    %c0_i32 = arith.constant 0 : i32
    %c0_i32_0 = arith.constant 0 : i32
    %c0_i32_1 = arith.constant 0 : i32
    return %c0_i32, %c0_i32_0 : i32, i32
  }
  func.func @transform_4(%arg0: i32) -> (i32, i32, i32) {
    %c0_i32 = arith.constant 0 : i32
    %c0_i32_0 = arith.constant 0 : i32
    %c0_i32_1 = arith.constant 0 : i32
    return %arg0, %c0_i32, %c0_i32_0 : i32, i32, i32
  }
}

module attributes {stable_mosaic.version = 11 : i64} {
  func.func @_conv_down_kernel(%arg0: i32, %arg1: memref<1x16x18xf32, #tpu.memory_space<vmem>>, %arg2: memref<1x16x18xf32, #tpu.memory_space<vmem>>, %arg3: memref<5x16x16xf32, #tpu.memory_space<vmem>>, %arg4: memref<16x1xf32, #tpu.memory_space<vmem>>, %arg5: memref<1x16x16xf32, #tpu.memory_space<vmem>>) attributes {dimension_semantics = [#tpu.dimension_semantics<parallel>], iteration_bounds = array<i64: 2>, scalar_prefetch = 0 : i64, scratch_operands = 0 : i64, tpu.core_type = #tpu.core_type<tc>, window_params = [{transform_indices = @transform_0, window_bounds = array<i64: 1, 16, 18>}, {transform_indices = @transform_1, window_bounds = array<i64: 1, 16, 18>}, {pipeline_mode = #tpu.pipeline_mode<synchronous>, transform_indices = @transform_2, window_bounds = array<i64: 5, 16, 16>}, {pipeline_mode = #tpu.pipeline_mode<synchronous>, transform_indices = @transform_3, window_bounds = array<i64: 16, 1>}, {transform_indices = @transform_4, window_bounds = array<i64: 1, 16, 16>}]} {
    %c0 = arith.constant 0 : index
    %c0_0 = arith.constant 0 : index
    %c0_1 = arith.constant 0 : index
    %0 = vector.load %arg1[%c0, %c0_0, %c0_1] : memref<1x16x18xf32, #tpu.memory_space<vmem>>, vector<1x16x18xf32>
    %1 = vector.shape_cast %0 : vector<1x16x18xf32> to vector<16x18xf32>
    %c0_2 = arith.constant 0 : index
    %c0_3 = arith.constant 0 : index
    %c0_4 = arith.constant 0 : index
    %2 = vector.load %arg2[%c0_2, %c0_3, %c0_4] : memref<1x16x18xf32, #tpu.memory_space<vmem>>, vector<1x16x18xf32>
    %3 = vector.shape_cast %2 : vector<1x16x18xf32> to vector<16x18xf32>
    %c0_5 = arith.constant 0 : index
    %c0_6 = arith.constant 0 : index
    %c0_7 = arith.constant 0 : index
    %4 = vector.load %arg3[%c0_5, %c0_6, %c0_7] : memref<5x16x16xf32, #tpu.memory_space<vmem>>, vector<1x16x16xf32>
    %5 = vector.shape_cast %4 : vector<1x16x16xf32> to vector<16x16xf32>
    %6 = vector.extract_strided_slice %1 {offsets = [0, 0], sizes = [16, 16], strides = [1, 1]} : vector<16x18xf32> to vector<16x16xf32>
    %cst = arith.constant dense<0.000000e+00> : vector<16x16xf32>
    %7 = tpu.matmul %5, %6, %cst {dimension_numbers = #tpu.dot_dimension_numbers<[1], [0], [0], [1], [0, 0, 1, 1], [], []>} : vector<16x16xf32>, vector<16x16xf32>, vector<16x16xf32> -> vector<16x16xf32>
    %c1 = arith.constant 1 : index
    %c0_8 = arith.constant 0 : index
    %c0_9 = arith.constant 0 : index
    %8 = vector.load %arg3[%c1, %c0_8, %c0_9] : memref<5x16x16xf32, #tpu.memory_space<vmem>>, vector<1x16x16xf32>
    %9 = vector.shape_cast %8 : vector<1x16x16xf32> to vector<16x16xf32>
    %10 = vector.extract_strided_slice %3 {offsets = [0, 0], sizes = [16, 16], strides = [1, 1]} : vector<16x18xf32> to vector<16x16xf32>
    %cst_10 = arith.constant dense<0.000000e+00> : vector<16x16xf32>
    %11 = tpu.matmul %9, %10, %cst_10 {dimension_numbers = #tpu.dot_dimension_numbers<[1], [0], [0], [1], [0, 0, 1, 1], [], []>} : vector<16x16xf32>, vector<16x16xf32>, vector<16x16xf32> -> vector<16x16xf32>
    %12 = arith.addf %7, %11 : vector<16x16xf32>
    %c2 = arith.constant 2 : index
    %c0_11 = arith.constant 0 : index
    %c0_12 = arith.constant 0 : index
    %13 = vector.load %arg3[%c2, %c0_11, %c0_12] : memref<5x16x16xf32, #tpu.memory_space<vmem>>, vector<1x16x16xf32>
    %14 = vector.shape_cast %13 : vector<1x16x16xf32> to vector<16x16xf32>
    %15 = vector.extract_strided_slice %1 {offsets = [0, 1], sizes = [16, 16], strides = [1, 1]} : vector<16x18xf32> to vector<16x16xf32>
    %cst_13 = arith.constant dense<0.000000e+00> : vector<16x16xf32>
    %16 = tpu.matmul %14, %15, %cst_13 {dimension_numbers = #tpu.dot_dimension_numbers<[1], [0], [0], [1], [0, 0, 1, 1], [], []>} : vector<16x16xf32>, vector<16x16xf32>, vector<16x16xf32> -> vector<16x16xf32>
    %17 = arith.addf %12, %16 : vector<16x16xf32>
    %c3 = arith.constant 3 : index
    %c0_14 = arith.constant 0 : index
    %c0_15 = arith.constant 0 : index
    %18 = vector.load %arg3[%c3, %c0_14, %c0_15] : memref<5x16x16xf32, #tpu.memory_space<vmem>>, vector<1x16x16xf32>
    %19 = vector.shape_cast %18 : vector<1x16x16xf32> to vector<16x16xf32>
    %20 = vector.extract_strided_slice %3 {offsets = [0, 1], sizes = [16, 16], strides = [1, 1]} : vector<16x18xf32> to vector<16x16xf32>
    %cst_16 = arith.constant dense<0.000000e+00> : vector<16x16xf32>
    %21 = tpu.matmul %19, %20, %cst_16 {dimension_numbers = #tpu.dot_dimension_numbers<[1], [0], [0], [1], [0, 0, 1, 1], [], []>} : vector<16x16xf32>, vector<16x16xf32>, vector<16x16xf32> -> vector<16x16xf32>
    %22 = arith.addf %17, %21 : vector<16x16xf32>
    %c4 = arith.constant 4 : index
    %c0_17 = arith.constant 0 : index
    %c0_18 = arith.constant 0 : index
    %23 = vector.load %arg3[%c4, %c0_17, %c0_18] : memref<5x16x16xf32, #tpu.memory_space<vmem>>, vector<1x16x16xf32>
    %24 = vector.shape_cast %23 : vector<1x16x16xf32> to vector<16x16xf32>
    %25 = vector.extract_strided_slice %1 {offsets = [0, 2], sizes = [16, 16], strides = [1, 1]} : vector<16x18xf32> to vector<16x16xf32>
    %cst_19 = arith.constant dense<0.000000e+00> : vector<16x16xf32>
    %26 = tpu.matmul %24, %25, %cst_19 {dimension_numbers = #tpu.dot_dimension_numbers<[1], [0], [0], [1], [0, 0, 1, 1], [], []>} : vector<16x16xf32>, vector<16x16xf32>, vector<16x16xf32> -> vector<16x16xf32>
    %27 = arith.addf %22, %26 : vector<16x16xf32>
    %c0_20 = arith.constant 0 : index
    %c0_21 = arith.constant 0 : index
    %28 = vector.load %arg4[%c0_20, %c0_21] : memref<16x1xf32, #tpu.memory_space<vmem>>, vector<16x1xf32>
    %29 = vector.broadcast %28 : vector<16x1xf32> to vector<16x16xf32>
    %30 = arith.addf %27, %29 : vector<16x16xf32>
    %cst_22 = arith.constant 0.000000e+00 : f32
    %31 = vector.broadcast %cst_22 : f32 to vector<16x16xf32>
    %32 = arith.maximumf %30, %31 : vector<16x16xf32>
    %c0_23 = arith.constant 0 : index
    %c0_24 = arith.constant 0 : index
    %c0_25 = arith.constant 0 : index
    %33 = vector.load %arg5[%c0_23, %c0_24, %c0_25] : memref<1x16x16xf32, #tpu.memory_space<vmem>>, vector<1x16x16xf32>
    %34 = vector.shape_cast %33 : vector<1x16x16xf32> to vector<16x16xf32>
    %35 = vector.shape_cast %32 : vector<16x16xf32> to vector<1x16x16xf32>
    tpu.vector_store %arg5[%c0_23, %c0_24, %c0_25], %35 {strides = array<i32>} : memref<1x16x16xf32, #tpu.memory_space<vmem>>, vector<1x16x16xf32>,
    return
  }
  func.func @transform_0(%arg0: i32) -> (i32, i32, i32) {
    %c0_i32 = arith.constant 0 : i32
    %c0_i32_0 = arith.constant 0 : i32
    %c0_i32_1 = arith.constant 0 : i32
    return %arg0, %c0_i32, %c0_i32_0 : i32, i32, i32
  }
  func.func @transform_1(%arg0: i32) -> (i32, i32, i32) {
    %c0_i32 = arith.constant 0 : i32
    %c0_i32_0 = arith.constant 0 : i32
    %c0_i32_1 = arith.constant 0 : i32
    return %arg0, %c0_i32, %c0_i32_0 : i32, i32, i32
  }
  func.func @transform_2(%arg0: i32) -> (i32, i32, i32) {
    %c0_i32 = arith.constant 0 : i32
    %c0_i32_0 = arith.constant 0 : i32
    %c0_i32_1 = arith.constant 0 : i32
    %c0_i32_2 = arith.constant 0 : i32
    return %c0_i32, %c0_i32_0, %c0_i32_1 : i32, i32, i32
  }
  func.func @transform_3(%arg0: i32) -> (i32, i32) {
    %c0_i32 = arith.constant 0 : i32
    %c0_i32_0 = arith.constant 0 : i32
    %c0_i32_1 = arith.constant 0 : i32
    return %c0_i32, %c0_i32_0 : i32, i32
  }
  func.func @transform_4(%arg0: i32) -> (i32, i32, i32) {
    %c0_i32 = arith.constant 0 : i32
    %c0_i32_0 = arith.constant 0 : i32
    %c0_i32_1 = arith.constant 0 : i32
    return %arg0, %c0_i32, %c0_i32_0 : i32, i32, i32
  }
}

module attributes {stable_mosaic.version = 11 : i64} {
  func.func @_conv_down_kernel(%arg0: i32, %arg1: memref<1x32x6xf32, #tpu.memory_space<vmem>>, %arg2: memref<1x32x6xf32, #tpu.memory_space<vmem>>, %arg3: memref<5x32x32xf32, #tpu.memory_space<vmem>>, %arg4: memref<32x1xf32, #tpu.memory_space<vmem>>, %arg5: memref<1x32x4xf32, #tpu.memory_space<vmem>>) attributes {dimension_semantics = [#tpu.dimension_semantics<parallel>], iteration_bounds = array<i64: 2>, scalar_prefetch = 0 : i64, scratch_operands = 0 : i64, tpu.core_type = #tpu.core_type<tc>, window_params = [{transform_indices = @transform_0, window_bounds = array<i64: 1, 32, 6>}, {transform_indices = @transform_1, window_bounds = array<i64: 1, 32, 6>}, {pipeline_mode = #tpu.pipeline_mode<synchronous>, transform_indices = @transform_2, window_bounds = array<i64: 5, 32, 32>}, {pipeline_mode = #tpu.pipeline_mode<synchronous>, transform_indices = @transform_3, window_bounds = array<i64: 32, 1>}, {transform_indices = @transform_4, window_bounds = array<i64: 1, 32, 4>}]} {
    %c0 = arith.constant 0 : index
    %c0_0 = arith.constant 0 : index
    %c0_1 = arith.constant 0 : index
    %0 = vector.load %arg1[%c0, %c0_0, %c0_1] : memref<1x32x6xf32, #tpu.memory_space<vmem>>, vector<1x32x6xf32>
    %1 = vector.shape_cast %0 : vector<1x32x6xf32> to vector<32x6xf32>
    %c0_2 = arith.constant 0 : index
    %c0_3 = arith.constant 0 : index
    %c0_4 = arith.constant 0 : index
    %2 = vector.load %arg2[%c0_2, %c0_3, %c0_4] : memref<1x32x6xf32, #tpu.memory_space<vmem>>, vector<1x32x6xf32>
    %3 = vector.shape_cast %2 : vector<1x32x6xf32> to vector<32x6xf32>
    %c0_5 = arith.constant 0 : index
    %c0_6 = arith.constant 0 : index
    %c0_7 = arith.constant 0 : index
    %4 = vector.load %arg3[%c0_5, %c0_6, %c0_7] : memref<5x32x32xf32, #tpu.memory_space<vmem>>, vector<1x32x32xf32>
    %5 = vector.shape_cast %4 : vector<1x32x32xf32> to vector<32x32xf32>
    %6 = vector.extract_strided_slice %1 {offsets = [0, 0], sizes = [32, 4], strides = [1, 1]} : vector<32x6xf32> to vector<32x4xf32>
    %cst = arith.constant dense<0.000000e+00> : vector<32x4xf32>
    %7 = tpu.matmul %5, %6, %cst {dimension_numbers = #tpu.dot_dimension_numbers<[1], [0], [0], [1], [0, 0, 1, 1], [], []>} : vector<32x32xf32>, vector<32x4xf32>, vector<32x4xf32> -> vector<32x4xf32>
    %c1 = arith.constant 1 : index
    %c0_8 = arith.constant 0 : index
    %c0_9 = arith.constant 0 : index
    %8 = vector.load %arg3[%c1, %c0_8, %c0_9] : memref<5x32x32xf32, #tpu.memory_space<vmem>>, vector<1x32x32xf32>
    %9 = vector.shape_cast %8 : vector<1x32x32xf32> to vector<32x32xf32>
    %10 = vector.extract_strided_slice %3 {offsets = [0, 0], sizes = [32, 4], strides = [1, 1]} : vector<32x6xf32> to vector<32x4xf32>
    %cst_10 = arith.constant dense<0.000000e+00> : vector<32x4xf32>
    %11 = tpu.matmul %9, %10, %cst_10 {dimension_numbers = #tpu.dot_dimension_numbers<[1], [0], [0], [1], [0, 0, 1, 1], [], []>} : vector<32x32xf32>, vector<32x4xf32>, vector<32x4xf32> -> vector<32x4xf32>
    %12 = arith.addf %7, %11 : vector<32x4xf32>
    %c2 = arith.constant 2 : index
    %c0_11 = arith.constant 0 : index
    %c0_12 = arith.constant 0 : index
    %13 = vector.load %arg3[%c2, %c0_11, %c0_12] : memref<5x32x32xf32, #tpu.memory_space<vmem>>, vector<1x32x32xf32>
    %14 = vector.shape_cast %13 : vector<1x32x32xf32> to vector<32x32xf32>
    %15 = vector.extract_strided_slice %1 {offsets = [0, 1], sizes = [32, 4], strides = [1, 1]} : vector<32x6xf32> to vector<32x4xf32>
    %cst_13 = arith.constant dense<0.000000e+00> : vector<32x4xf32>
    %16 = tpu.matmul %14, %15, %cst_13 {dimension_numbers = #tpu.dot_dimension_numbers<[1], [0], [0], [1], [0, 0, 1, 1], [], []>} : vector<32x32xf32>, vector<32x4xf32>, vector<32x4xf32> -> vector<32x4xf32>
    %17 = arith.addf %12, %16 : vector<32x4xf32>
    %c3 = arith.constant 3 : index
    %c0_14 = arith.constant 0 : index
    %c0_15 = arith.constant 0 : index
    %18 = vector.load %arg3[%c3, %c0_14, %c0_15] : memref<5x32x32xf32, #tpu.memory_space<vmem>>, vector<1x32x32xf32>
    %19 = vector.shape_cast %18 : vector<1x32x32xf32> to vector<32x32xf32>
    %20 = vector.extract_strided_slice %3 {offsets = [0, 1], sizes = [32, 4], strides = [1, 1]} : vector<32x6xf32> to vector<32x4xf32>
    %cst_16 = arith.constant dense<0.000000e+00> : vector<32x4xf32>
    %21 = tpu.matmul %19, %20, %cst_16 {dimension_numbers = #tpu.dot_dimension_numbers<[1], [0], [0], [1], [0, 0, 1, 1], [], []>} : vector<32x32xf32>, vector<32x4xf32>, vector<32x4xf32> -> vector<32x4xf32>
    %22 = arith.addf %17, %21 : vector<32x4xf32>
    %c4 = arith.constant 4 : index
    %c0_17 = arith.constant 0 : index
    %c0_18 = arith.constant 0 : index
    %23 = vector.load %arg3[%c4, %c0_17, %c0_18] : memref<5x32x32xf32, #tpu.memory_space<vmem>>, vector<1x32x32xf32>
    %24 = vector.shape_cast %23 : vector<1x32x32xf32> to vector<32x32xf32>
    %25 = vector.extract_strided_slice %1 {offsets = [0, 2], sizes = [32, 4], strides = [1, 1]} : vector<32x6xf32> to vector<32x4xf32>
    %cst_19 = arith.constant dense<0.000000e+00> : vector<32x4xf32>
    %26 = tpu.matmul %24, %25, %cst_19 {dimension_numbers = #tpu.dot_dimension_numbers<[1], [0], [0], [1], [0, 0, 1, 1], [], []>} : vector<32x32xf32>, vector<32x4xf32>, vector<32x4xf32> -> vector<32x4xf32>
    %27 = arith.addf %22, %26 : vector<32x4xf32>
    %c0_20 = arith.constant 0 : index
    %c0_21 = arith.constant 0 : index
    %28 = vector.load %arg4[%c0_20, %c0_21] : memref<32x1xf32, #tpu.memory_space<vmem>>, vector<32x1xf32>
    %29 = vector.broadcast %28 : vector<32x1xf32> to vector<32x4xf32>
    %30 = arith.addf %27, %29 : vector<32x4xf32>
    %cst_22 = arith.constant 0.000000e+00 : f32
    %31 = vector.broadcast %cst_22 : f32 to vector<32x4xf32>
    %32 = arith.maximumf %30, %31 : vector<32x4xf32>
    %c0_23 = arith.constant 0 : index
    %c0_24 = arith.constant 0 : index
    %c0_25 = arith.constant 0 : index
    %33 = vector.load %arg5[%c0_23, %c0_24, %c0_25] : memref<1x32x4xf32, #tpu.memory_space<vmem>>, vector<1x32x4xf32>
    %34 = vector.shape_cast %33 : vector<1x32x4xf32> to vector<32x4xf32>
    %35 = vector.shape_cast %32 : vector<32x4xf32> to vector<1x32x4xf32>
    tpu.vector_store %arg5[%c0_23, %c0_24, %c0_25], %35 {strides = array<i32>} : memref<1x32x4xf32, #tpu.memory_space<vmem>>, vector<1x32x4xf32>,
    return
  }
  func.func @transform_0(%arg0: i32) -> (i32, i32, i32) {
    %c0_i32 = arith.constant 0 : i32
    %c0_i32_0 = arith.constant 0 : i32
    %c0_i32_1 = arith.constant 0 : i32
    return %arg0, %c0_i32, %c0_i32_0 : i32, i32, i32
  }
  func.func @transform_1(%arg0: i32) -> (i32, i32, i32) {
    %c0_i32 = arith.constant 0 : i32
    %c0_i32_0 = arith.constant 0 : i32
    %c0_i32_1 = arith.constant 0 : i32
    return %arg0, %c0_i32, %c0_i32_0 : i32, i32, i32
  }
  func.func @transform_2(%arg0: i32) -> (i32, i32, i32) {
    %c0_i32 = arith.constant 0 : i32
    %c0_i32_0 = arith.constant 0 : i32
    %c0_i32_1 = arith.constant 0 : i32
    %c0_i32_2 = arith.constant 0 : i32
    return %c0_i32, %c0_i32_0, %c0_i32_1 : i32, i32, i32
  }
  func.func @transform_3(%arg0: i32) -> (i32, i32) {
    %c0_i32 = arith.constant 0 : i32
    %c0_i32_0 = arith.constant 0 : i32
    %c0_i32_1 = arith.constant 0 : i32
    return %c0_i32, %c0_i32_0 : i32, i32
  }
  func.func @transform_4(%arg0: i32) -> (i32, i32, i32) {
    %c0_i32 = arith.constant 0 : i32
    %c0_i32_0 = arith.constant 0 : i32
    %c0_i32_1 = arith.constant 0 : i32
    return %arg0, %c0_i32, %c0_i32_0 : i32, i32, i32
  }
}

module attributes {stable_mosaic.version = 11 : i64} {
  func.func @_conv_down_kernel(%arg0: i32, %arg1: memref<1x16x10xf32, #tpu.memory_space<vmem>>, %arg2: memref<1x16x10xf32, #tpu.memory_space<vmem>>, %arg3: memref<5x32x16xf32, #tpu.memory_space<vmem>>, %arg4: memref<32x1xf32, #tpu.memory_space<vmem>>, %arg5: memref<1x32x8xf32, #tpu.memory_space<vmem>>) attributes {dimension_semantics = [#tpu.dimension_semantics<parallel>], iteration_bounds = array<i64: 2>, scalar_prefetch = 0 : i64, scratch_operands = 0 : i64, tpu.core_type = #tpu.core_type<tc>, window_params = [{transform_indices = @transform_0, window_bounds = array<i64: 1, 16, 10>}, {transform_indices = @transform_1, window_bounds = array<i64: 1, 16, 10>}, {pipeline_mode = #tpu.pipeline_mode<synchronous>, transform_indices = @transform_2, window_bounds = array<i64: 5, 32, 16>}, {pipeline_mode = #tpu.pipeline_mode<synchronous>, transform_indices = @transform_3, window_bounds = array<i64: 32, 1>}, {transform_indices = @transform_4, window_bounds = array<i64: 1, 32, 8>}]} {
    %c0 = arith.constant 0 : index
    %c0_0 = arith.constant 0 : index
    %c0_1 = arith.constant 0 : index
    %0 = vector.load %arg1[%c0, %c0_0, %c0_1] : memref<1x16x10xf32, #tpu.memory_space<vmem>>, vector<1x16x10xf32>
    %1 = vector.shape_cast %0 : vector<1x16x10xf32> to vector<16x10xf32>
    %c0_2 = arith.constant 0 : index
    %c0_3 = arith.constant 0 : index
    %c0_4 = arith.constant 0 : index
    %2 = vector.load %arg2[%c0_2, %c0_3, %c0_4] : memref<1x16x10xf32, #tpu.memory_space<vmem>>, vector<1x16x10xf32>
    %3 = vector.shape_cast %2 : vector<1x16x10xf32> to vector<16x10xf32>
    %c0_5 = arith.constant 0 : index
    %c0_6 = arith.constant 0 : index
    %c0_7 = arith.constant 0 : index
    %4 = vector.load %arg3[%c0_5, %c0_6, %c0_7] : memref<5x32x16xf32, #tpu.memory_space<vmem>>, vector<1x32x16xf32>
    %5 = vector.shape_cast %4 : vector<1x32x16xf32> to vector<32x16xf32>
    %6 = vector.extract_strided_slice %1 {offsets = [0, 0], sizes = [16, 8], strides = [1, 1]} : vector<16x10xf32> to vector<16x8xf32>
    %cst = arith.constant dense<0.000000e+00> : vector<32x8xf32>
    %7 = tpu.matmul %5, %6, %cst {dimension_numbers = #tpu.dot_dimension_numbers<[1], [0], [0], [1], [0, 0, 1, 1], [], []>} : vector<32x16xf32>, vector<16x8xf32>, vector<32x8xf32> -> vector<32x8xf32>
    %c1 = arith.constant 1 : index
    %c0_8 = arith.constant 0 : index
    %c0_9 = arith.constant 0 : index
    %8 = vector.load %arg3[%c1, %c0_8, %c0_9] : memref<5x32x16xf32, #tpu.memory_space<vmem>>, vector<1x32x16xf32>
    %9 = vector.shape_cast %8 : vector<1x32x16xf32> to vector<32x16xf32>
    %10 = vector.extract_strided_slice %3 {offsets = [0, 0], sizes = [16, 8], strides = [1, 1]} : vector<16x10xf32> to vector<16x8xf32>
    %cst_10 = arith.constant dense<0.000000e+00> : vector<32x8xf32>
    %11 = tpu.matmul %9, %10, %cst_10 {dimension_numbers = #tpu.dot_dimension_numbers<[1], [0], [0], [1], [0, 0, 1, 1], [], []>} : vector<32x16xf32>, vector<16x8xf32>, vector<32x8xf32> -> vector<32x8xf32>
    %12 = arith.addf %7, %11 : vector<32x8xf32>
    %c2 = arith.constant 2 : index
    %c0_11 = arith.constant 0 : index
    %c0_12 = arith.constant 0 : index
    %13 = vector.load %arg3[%c2, %c0_11, %c0_12] : memref<5x32x16xf32, #tpu.memory_space<vmem>>, vector<1x32x16xf32>
    %14 = vector.shape_cast %13 : vector<1x32x16xf32> to vector<32x16xf32>
    %15 = vector.extract_strided_slice %1 {offsets = [0, 1], sizes = [16, 8], strides = [1, 1]} : vector<16x10xf32> to vector<16x8xf32>
    %cst_13 = arith.constant dense<0.000000e+00> : vector<32x8xf32>
    %16 = tpu.matmul %14, %15, %cst_13 {dimension_numbers = #tpu.dot_dimension_numbers<[1], [0], [0], [1], [0, 0, 1, 1], [], []>} : vector<32x16xf32>, vector<16x8xf32>, vector<32x8xf32> -> vector<32x8xf32>
    %17 = arith.addf %12, %16 : vector<32x8xf32>
    %c3 = arith.constant 3 : index
    %c0_14 = arith.constant 0 : index
    %c0_15 = arith.constant 0 : index
    %18 = vector.load %arg3[%c3, %c0_14, %c0_15] : memref<5x32x16xf32, #tpu.memory_space<vmem>>, vector<1x32x16xf32>
    %19 = vector.shape_cast %18 : vector<1x32x16xf32> to vector<32x16xf32>
    %20 = vector.extract_strided_slice %3 {offsets = [0, 1], sizes = [16, 8], strides = [1, 1]} : vector<16x10xf32> to vector<16x8xf32>
    %cst_16 = arith.constant dense<0.000000e+00> : vector<32x8xf32>
    %21 = tpu.matmul %19, %20, %cst_16 {dimension_numbers = #tpu.dot_dimension_numbers<[1], [0], [0], [1], [0, 0, 1, 1], [], []>} : vector<32x16xf32>, vector<16x8xf32>, vector<32x8xf32> -> vector<32x8xf32>
    %22 = arith.addf %17, %21 : vector<32x8xf32>
    %c4 = arith.constant 4 : index
    %c0_17 = arith.constant 0 : index
    %c0_18 = arith.constant 0 : index
    %23 = vector.load %arg3[%c4, %c0_17, %c0_18] : memref<5x32x16xf32, #tpu.memory_space<vmem>>, vector<1x32x16xf32>
    %24 = vector.shape_cast %23 : vector<1x32x16xf32> to vector<32x16xf32>
    %25 = vector.extract_strided_slice %1 {offsets = [0, 2], sizes = [16, 8], strides = [1, 1]} : vector<16x10xf32> to vector<16x8xf32>
    %cst_19 = arith.constant dense<0.000000e+00> : vector<32x8xf32>
    %26 = tpu.matmul %24, %25, %cst_19 {dimension_numbers = #tpu.dot_dimension_numbers<[1], [0], [0], [1], [0, 0, 1, 1], [], []>} : vector<32x16xf32>, vector<16x8xf32>, vector<32x8xf32> -> vector<32x8xf32>
    %27 = arith.addf %22, %26 : vector<32x8xf32>
    %c0_20 = arith.constant 0 : index
    %c0_21 = arith.constant 0 : index
    %28 = vector.load %arg4[%c0_20, %c0_21] : memref<32x1xf32, #tpu.memory_space<vmem>>, vector<32x1xf32>
    %29 = vector.broadcast %28 : vector<32x1xf32> to vector<32x8xf32>
    %30 = arith.addf %27, %29 : vector<32x8xf32>
    %cst_22 = arith.constant 0.000000e+00 : f32
    %31 = vector.broadcast %cst_22 : f32 to vector<32x8xf32>
    %32 = arith.maximumf %30, %31 : vector<32x8xf32>
    %c0_23 = arith.constant 0 : index
    %c0_24 = arith.constant 0 : index
    %c0_25 = arith.constant 0 : index
    %33 = vector.load %arg5[%c0_23, %c0_24, %c0_25] : memref<1x32x8xf32, #tpu.memory_space<vmem>>, vector<1x32x8xf32>
    %34 = vector.shape_cast %33 : vector<1x32x8xf32> to vector<32x8xf32>
    %35 = vector.shape_cast %32 : vector<32x8xf32> to vector<1x32x8xf32>
    tpu.vector_store %arg5[%c0_23, %c0_24, %c0_25], %35 {strides = array<i32>} : memref<1x32x8xf32, #tpu.memory_space<vmem>>, vector<1x32x8xf32>,
    return
  }
  func.func @transform_0(%arg0: i32) -> (i32, i32, i32) {
    %c0_i32 = arith.constant 0 : i32
    %c0_i32_0 = arith.constant 0 : i32
    %c0_i32_1 = arith.constant 0 : i32
    return %arg0, %c0_i32, %c0_i32_0 : i32, i32, i32
  }
  func.func @transform_1(%arg0: i32) -> (i32, i32, i32) {
    %c0_i32 = arith.constant 0 : i32
    %c0_i32_0 = arith.constant 0 : i32
    %c0_i32_1 = arith.constant 0 : i32
    return %arg0, %c0_i32, %c0_i32_0 : i32, i32, i32
  }
  func.func @transform_2(%arg0: i32) -> (i32, i32, i32) {
    %c0_i32 = arith.constant 0 : i32
    %c0_i32_0 = arith.constant 0 : i32
    %c0_i32_1 = arith.constant 0 : i32
    %c0_i32_2 = arith.constant 0 : i32
    return %c0_i32, %c0_i32_0, %c0_i32_1 : i32, i32, i32
  }
  func.func @transform_3(%arg0: i32) -> (i32, i32) {
    %c0_i32 = arith.constant 0 : i32
    %c0_i32_0 = arith.constant 0 : i32
    %c0_i32_1 = arith.constant 0 : i32
    return %c0_i32, %c0_i32_0 : i32, i32
  }
  func.func @transform_4(%arg0: i32) -> (i32, i32, i32) {
    %c0_i32 = arith.constant 0 : i32
    %c0_i32_0 = arith.constant 0 : i32
    %c0_i32_1 = arith.constant 0 : i32
    return %arg0, %c0_i32, %c0_i32_0 : i32, i32, i32
  }
}

module attributes {stable_mosaic.version = 11 : i64} {
  func.func @_conv_up_kernel(%arg0: i32, %arg1: memref<1x64x4xf32, #tpu.memory_space<vmem>>, %arg2: memref<5x32x64xf32, #tpu.memory_space<vmem>>, %arg3: memref<32x1xf32, #tpu.memory_space<vmem>>, %arg4: memref<1x2x32x2xf32, #tpu.memory_space<vmem>>) attributes {dimension_semantics = [#tpu.dimension_semantics<parallel>], iteration_bounds = array<i64: 2>, scalar_prefetch = 0 : i64, scratch_operands = 0 : i64, tpu.core_type = #tpu.core_type<tc>, window_params = [{transform_indices = @transform_0, window_bounds = array<i64: 1, 64, 4>}, {pipeline_mode = #tpu.pipeline_mode<synchronous>, transform_indices = @transform_1, window_bounds = array<i64: 5, 32, 64>}, {pipeline_mode = #tpu.pipeline_mode<synchronous>, transform_indices = @transform_2, window_bounds = array<i64: 32, 1>}, {transform_indices = @transform_3, window_bounds = array<i64: 1, 2, 32, 2>}]} {
    %c0 = arith.constant 0 : index
    %c0_0 = arith.constant 0 : index
    %c0_1 = arith.constant 0 : index
    %0 = vector.load %arg1[%c0, %c0_0, %c0_1] : memref<1x64x4xf32, #tpu.memory_space<vmem>>, vector<1x64x4xf32>
    %1 = vector.shape_cast %0 : vector<1x64x4xf32> to vector<64x4xf32>
    %2 = vector.extract_strided_slice %1 {offsets = [0, 0], sizes = [64, 2], strides = [1, 1]} : vector<64x4xf32> to vector<64x2xf32>
    %3 = vector.extract_strided_slice %1 {offsets = [0, 1], sizes = [64, 2], strides = [1, 1]} : vector<64x4xf32> to vector<64x2xf32>
    %4 = vector.extract_strided_slice %1 {offsets = [0, 2], sizes = [64, 2], strides = [1, 1]} : vector<64x4xf32> to vector<64x2xf32>
    %c0_2 = arith.constant 0 : index
    %c0_3 = arith.constant 0 : index
    %c0_4 = arith.constant 0 : index
    %5 = vector.load %arg2[%c0_2, %c0_3, %c0_4] : memref<5x32x64xf32, #tpu.memory_space<vmem>>, vector<1x32x64xf32>
    %6 = vector.shape_cast %5 : vector<1x32x64xf32> to vector<32x64xf32>
    %cst = arith.constant dense<0.000000e+00> : vector<32x2xf32>
    %7 = tpu.matmul %6, %4, %cst {dimension_numbers = #tpu.dot_dimension_numbers<[1], [0], [0], [1], [0, 0, 1, 1], [], []>} : vector<32x64xf32>, vector<64x2xf32>, vector<32x2xf32> -> vector<32x2xf32>
    %c2 = arith.constant 2 : index
    %c0_5 = arith.constant 0 : index
    %c0_6 = arith.constant 0 : index
    %8 = vector.load %arg2[%c2, %c0_5, %c0_6] : memref<5x32x64xf32, #tpu.memory_space<vmem>>, vector<1x32x64xf32>
    %9 = vector.shape_cast %8 : vector<1x32x64xf32> to vector<32x64xf32>
    %cst_7 = arith.constant dense<0.000000e+00> : vector<32x2xf32>
    %10 = tpu.matmul %9, %3, %cst_7 {dimension_numbers = #tpu.dot_dimension_numbers<[1], [0], [0], [1], [0, 0, 1, 1], [], []>} : vector<32x64xf32>, vector<64x2xf32>, vector<32x2xf32> -> vector<32x2xf32>
    %11 = arith.addf %7, %10 : vector<32x2xf32>
    %c4 = arith.constant 4 : index
    %c0_8 = arith.constant 0 : index
    %c0_9 = arith.constant 0 : index
    %12 = vector.load %arg2[%c4, %c0_8, %c0_9] : memref<5x32x64xf32, #tpu.memory_space<vmem>>, vector<1x32x64xf32>
    %13 = vector.shape_cast %12 : vector<1x32x64xf32> to vector<32x64xf32>
    %cst_10 = arith.constant dense<0.000000e+00> : vector<32x2xf32>
    %14 = tpu.matmul %13, %2, %cst_10 {dimension_numbers = #tpu.dot_dimension_numbers<[1], [0], [0], [1], [0, 0, 1, 1], [], []>} : vector<32x64xf32>, vector<64x2xf32>, vector<32x2xf32> -> vector<32x2xf32>
    %15 = arith.addf %11, %14 : vector<32x2xf32>
    %c1 = arith.constant 1 : index
    %c0_11 = arith.constant 0 : index
    %c0_12 = arith.constant 0 : index
    %16 = vector.load %arg2[%c1, %c0_11, %c0_12] : memref<5x32x64xf32, #tpu.memory_space<vmem>>, vector<1x32x64xf32>
    %17 = vector.shape_cast %16 : vector<1x32x64xf32> to vector<32x64xf32>
    %cst_13 = arith.constant dense<0.000000e+00> : vector<32x2xf32>
    %18 = tpu.matmul %17, %4, %cst_13 {dimension_numbers = #tpu.dot_dimension_numbers<[1], [0], [0], [1], [0, 0, 1, 1], [], []>} : vector<32x64xf32>, vector<64x2xf32>, vector<32x2xf32> -> vector<32x2xf32>
    %c3 = arith.constant 3 : index
    %c0_14 = arith.constant 0 : index
    %c0_15 = arith.constant 0 : index
    %19 = vector.load %arg2[%c3, %c0_14, %c0_15] : memref<5x32x64xf32, #tpu.memory_space<vmem>>, vector<1x32x64xf32>
    %20 = vector.shape_cast %19 : vector<1x32x64xf32> to vector<32x64xf32>
    %cst_16 = arith.constant dense<0.000000e+00> : vector<32x2xf32>
    %21 = tpu.matmul %20, %3, %cst_16 {dimension_numbers = #tpu.dot_dimension_numbers<[1], [0], [0], [1], [0, 0, 1, 1], [], []>} : vector<32x64xf32>, vector<64x2xf32>, vector<32x2xf32> -> vector<32x2xf32>
    %22 = arith.addf %18, %21 : vector<32x2xf32>
    %c0_17 = arith.constant 0 : index
    %c0_18 = arith.constant 0 : index
    %23 = vector.load %arg3[%c0_17, %c0_18] : memref<32x1xf32, #tpu.memory_space<vmem>>, vector<32x1xf32>
    %24 = vector.broadcast %23 : vector<32x1xf32> to vector<32x2xf32>
    %25 = arith.addf %15, %24 : vector<32x2xf32>
    %cst_19 = arith.constant 0.000000e+00 : f32
    %26 = vector.broadcast %cst_19 : f32 to vector<32x2xf32>
    %27 = arith.maximumf %25, %26 : vector<32x2xf32>
    %c0_20 = arith.constant 0 : index
    %c0_21 = arith.constant 0 : index
    %c0_22 = arith.constant 0 : index
    %c0_23 = arith.constant 0 : index
    %28 = vector.load %arg4[%c0_20, %c0_21, %c0_22, %c0_23] : memref<1x2x32x2xf32, #tpu.memory_space<vmem>>, vector<1x1x32x2xf32>
    %29 = vector.shape_cast %28 : vector<1x1x32x2xf32> to vector<32x2xf32>
    %30 = vector.shape_cast %27 : vector<32x2xf32> to vector<1x1x32x2xf32>
    tpu.vector_store %arg4[%c0_20, %c0_21, %c0_22, %c0_23], %30 {strides = array<i32>} : memref<1x2x32x2xf32, #tpu.memory_space<vmem>>, vector<1x1x32x2xf32>,
    %31 = vector.broadcast %23 : vector<32x1xf32> to vector<32x2xf32>
    %32 = arith.addf %22, %31 : vector<32x2xf32>
    %cst_24 = arith.constant 0.000000e+00 : f32
    %33 = vector.broadcast %cst_24 : f32 to vector<32x2xf32>
    %34 = arith.maximumf %32, %33 : vector<32x2xf32>
    %c0_25 = arith.constant 0 : index
    %c1_26 = arith.constant 1 : index
    %c0_27 = arith.constant 0 : index
    %c0_28 = arith.constant 0 : index
    %35 = vector.load %arg4[%c0_25, %c1_26, %c0_27, %c0_28] : memref<1x2x32x2xf32, #tpu.memory_space<vmem>>, vector<1x1x32x2xf32>
    %36 = vector.shape_cast %35 : vector<1x1x32x2xf32> to vector<32x2xf32>
    %37 = vector.shape_cast %34 : vector<32x2xf32> to vector<1x1x32x2xf32>
    tpu.vector_store %arg4[%c0_25, %c1_26, %c0_27, %c0_28], %37 {strides = array<i32>} : memref<1x2x32x2xf32, #tpu.memory_space<vmem>>, vector<1x1x32x2xf32>,
    return
  }
  func.func @transform_0(%arg0: i32) -> (i32, i32, i32) {
    %c0_i32 = arith.constant 0 : i32
    %c0_i32_0 = arith.constant 0 : i32
    %c0_i32_1 = arith.constant 0 : i32
    return %arg0, %c0_i32, %c0_i32_0 : i32, i32, i32
  }
  func.func @transform_1(%arg0: i32) -> (i32, i32, i32) {
    %c0_i32 = arith.constant 0 : i32
    %c0_i32_0 = arith.constant 0 : i32
    %c0_i32_1 = arith.constant 0 : i32
    %c0_i32_2 = arith.constant 0 : i32
    return %c0_i32, %c0_i32_0, %c0_i32_1 : i32, i32, i32
  }
  func.func @transform_2(%arg0: i32) -> (i32, i32) {
    %c0_i32 = arith.constant 0 : i32
    %c0_i32_0 = arith.constant 0 : i32
    %c0_i32_1 = arith.constant 0 : i32
    return %c0_i32, %c0_i32_0 : i32, i32
  }
  func.func @transform_3(%arg0: i32) -> (i32, i32, i32, i32) {
    %c0_i32 = arith.constant 0 : i32
    %c0_i32_0 = arith.constant 0 : i32
    %c0_i32_1 = arith.constant 0 : i32
    %c0_i32_2 = arith.constant 0 : i32
    return %arg0, %c0_i32, %c0_i32_0, %c0_i32_1 : i32, i32, i32, i32
  }
}

module attributes {stable_mosaic.version = 11 : i64} {
  func.func @_conv_down_kernel(%arg0: i32, %arg1: memref<1x32x4xf32, #tpu.memory_space<vmem>>, %arg2: memref<1x32x4xf32, #tpu.memory_space<vmem>>, %arg3: memref<5x64x32xf32, #tpu.memory_space<vmem>>, %arg4: memref<64x1xf32, #tpu.memory_space<vmem>>, %arg5: memref<1x64x2xf32, #tpu.memory_space<vmem>>) attributes {dimension_semantics = [#tpu.dimension_semantics<parallel>], iteration_bounds = array<i64: 2>, scalar_prefetch = 0 : i64, scratch_operands = 0 : i64, tpu.core_type = #tpu.core_type<tc>, window_params = [{transform_indices = @transform_0, window_bounds = array<i64: 1, 32, 4>}, {transform_indices = @transform_1, window_bounds = array<i64: 1, 32, 4>}, {pipeline_mode = #tpu.pipeline_mode<synchronous>, transform_indices = @transform_2, window_bounds = array<i64: 5, 64, 32>}, {pipeline_mode = #tpu.pipeline_mode<synchronous>, transform_indices = @transform_3, window_bounds = array<i64: 64, 1>}, {transform_indices = @transform_4, window_bounds = array<i64: 1, 64, 2>}]} {
    %c0 = arith.constant 0 : index
    %c0_0 = arith.constant 0 : index
    %c0_1 = arith.constant 0 : index
    %0 = vector.load %arg1[%c0, %c0_0, %c0_1] : memref<1x32x4xf32, #tpu.memory_space<vmem>>, vector<1x32x4xf32>
    %1 = vector.shape_cast %0 : vector<1x32x4xf32> to vector<32x4xf32>
    %c0_2 = arith.constant 0 : index
    %c0_3 = arith.constant 0 : index
    %c0_4 = arith.constant 0 : index
    %2 = vector.load %arg2[%c0_2, %c0_3, %c0_4] : memref<1x32x4xf32, #tpu.memory_space<vmem>>, vector<1x32x4xf32>
    %3 = vector.shape_cast %2 : vector<1x32x4xf32> to vector<32x4xf32>
    %c0_5 = arith.constant 0 : index
    %c0_6 = arith.constant 0 : index
    %c0_7 = arith.constant 0 : index
    %4 = vector.load %arg3[%c0_5, %c0_6, %c0_7] : memref<5x64x32xf32, #tpu.memory_space<vmem>>, vector<1x64x32xf32>
    %5 = vector.shape_cast %4 : vector<1x64x32xf32> to vector<64x32xf32>
    %6 = vector.extract_strided_slice %1 {offsets = [0, 0], sizes = [32, 2], strides = [1, 1]} : vector<32x4xf32> to vector<32x2xf32>
    %cst = arith.constant dense<0.000000e+00> : vector<64x2xf32>
    %7 = tpu.matmul %5, %6, %cst {dimension_numbers = #tpu.dot_dimension_numbers<[1], [0], [0], [1], [0, 0, 1, 1], [], []>} : vector<64x32xf32>, vector<32x2xf32>, vector<64x2xf32> -> vector<64x2xf32>
    %c1 = arith.constant 1 : index
    %c0_8 = arith.constant 0 : index
    %c0_9 = arith.constant 0 : index
    %8 = vector.load %arg3[%c1, %c0_8, %c0_9] : memref<5x64x32xf32, #tpu.memory_space<vmem>>, vector<1x64x32xf32>
    %9 = vector.shape_cast %8 : vector<1x64x32xf32> to vector<64x32xf32>
    %10 = vector.extract_strided_slice %3 {offsets = [0, 0], sizes = [32, 2], strides = [1, 1]} : vector<32x4xf32> to vector<32x2xf32>
    %cst_10 = arith.constant dense<0.000000e+00> : vector<64x2xf32>
    %11 = tpu.matmul %9, %10, %cst_10 {dimension_numbers = #tpu.dot_dimension_numbers<[1], [0], [0], [1], [0, 0, 1, 1], [], []>} : vector<64x32xf32>, vector<32x2xf32>, vector<64x2xf32> -> vector<64x2xf32>
    %12 = arith.addf %7, %11 : vector<64x2xf32>
    %c2 = arith.constant 2 : index
    %c0_11 = arith.constant 0 : index
    %c0_12 = arith.constant 0 : index
    %13 = vector.load %arg3[%c2, %c0_11, %c0_12] : memref<5x64x32xf32, #tpu.memory_space<vmem>>, vector<1x64x32xf32>
    %14 = vector.shape_cast %13 : vector<1x64x32xf32> to vector<64x32xf32>
    %15 = vector.extract_strided_slice %1 {offsets = [0, 1], sizes = [32, 2], strides = [1, 1]} : vector<32x4xf32> to vector<32x2xf32>
    %cst_13 = arith.constant dense<0.000000e+00> : vector<64x2xf32>
    %16 = tpu.matmul %14, %15, %cst_13 {dimension_numbers = #tpu.dot_dimension_numbers<[1], [0], [0], [1], [0, 0, 1, 1], [], []>} : vector<64x32xf32>, vector<32x2xf32>, vector<64x2xf32> -> vector<64x2xf32>
    %17 = arith.addf %12, %16 : vector<64x2xf32>
    %c3 = arith.constant 3 : index
    %c0_14 = arith.constant 0 : index
    %c0_15 = arith.constant 0 : index
    %18 = vector.load %arg3[%c3, %c0_14, %c0_15] : memref<5x64x32xf32, #tpu.memory_space<vmem>>, vector<1x64x32xf32>
    %19 = vector.shape_cast %18 : vector<1x64x32xf32> to vector<64x32xf32>
    %20 = vector.extract_strided_slice %3 {offsets = [0, 1], sizes = [32, 2], strides = [1, 1]} : vector<32x4xf32> to vector<32x2xf32>
    %cst_16 = arith.constant dense<0.000000e+00> : vector<64x2xf32>
    %21 = tpu.matmul %19, %20, %cst_16 {dimension_numbers = #tpu.dot_dimension_numbers<[1], [0], [0], [1], [0, 0, 1, 1], [], []>} : vector<64x32xf32>, vector<32x2xf32>, vector<64x2xf32> -> vector<64x2xf32>
    %22 = arith.addf %17, %21 : vector<64x2xf32>
    %c4 = arith.constant 4 : index
    %c0_17 = arith.constant 0 : index
    %c0_18 = arith.constant 0 : index
    %23 = vector.load %arg3[%c4, %c0_17, %c0_18] : memref<5x64x32xf32, #tpu.memory_space<vmem>>, vector<1x64x32xf32>
    %24 = vector.shape_cast %23 : vector<1x64x32xf32> to vector<64x32xf32>
    %25 = vector.extract_strided_slice %1 {offsets = [0, 2], sizes = [32, 2], strides = [1, 1]} : vector<32x4xf32> to vector<32x2xf32>
    %cst_19 = arith.constant dense<0.000000e+00> : vector<64x2xf32>
    %26 = tpu.matmul %24, %25, %cst_19 {dimension_numbers = #tpu.dot_dimension_numbers<[1], [0], [0], [1], [0, 0, 1, 1], [], []>} : vector<64x32xf32>, vector<32x2xf32>, vector<64x2xf32> -> vector<64x2xf32>
    %27 = arith.addf %22, %26 : vector<64x2xf32>
    %c0_20 = arith.constant 0 : index
    %c0_21 = arith.constant 0 : index
    %28 = vector.load %arg4[%c0_20, %c0_21] : memref<64x1xf32, #tpu.memory_space<vmem>>, vector<64x1xf32>
    %29 = vector.broadcast %28 : vector<64x1xf32> to vector<64x2xf32>
    %30 = arith.addf %27, %29 : vector<64x2xf32>
    %cst_22 = arith.constant 0.000000e+00 : f32
    %31 = vector.broadcast %cst_22 : f32 to vector<64x2xf32>
    %32 = arith.maximumf %30, %31 : vector<64x2xf32>
    %c0_23 = arith.constant 0 : index
    %c0_24 = arith.constant 0 : index
    %c0_25 = arith.constant 0 : index
    %33 = vector.load %arg5[%c0_23, %c0_24, %c0_25] : memref<1x64x2xf32, #tpu.memory_space<vmem>>, vector<1x64x2xf32>
    %34 = vector.shape_cast %33 : vector<1x64x2xf32> to vector<64x2xf32>
    %35 = vector.shape_cast %32 : vector<64x2xf32> to vector<1x64x2xf32>
    tpu.vector_store %arg5[%c0_23, %c0_24, %c0_25], %35 {strides = array<i32>} : memref<1x64x2xf32, #tpu.memory_space<vmem>>, vector<1x64x2xf32>,
    return
  }
  func.func @transform_0(%arg0: i32) -> (i32, i32, i32) {
    %c0_i32 = arith.constant 0 : i32
    %c0_i32_0 = arith.constant 0 : i32
    %c0_i32_1 = arith.constant 0 : i32
    return %arg0, %c0_i32, %c0_i32_0 : i32, i32, i32
  }
  func.func @transform_1(%arg0: i32) -> (i32, i32, i32) {
    %c0_i32 = arith.constant 0 : i32
    %c0_i32_0 = arith.constant 0 : i32
    %c0_i32_1 = arith.constant 0 : i32
    return %arg0, %c0_i32, %c0_i32_0 : i32, i32, i32
  }
  func.func @transform_2(%arg0: i32) -> (i32, i32, i32) {
    %c0_i32 = arith.constant 0 : i32
    %c0_i32_0 = arith.constant 0 : i32
    %c0_i32_1 = arith.constant 0 : i32
    %c0_i32_2 = arith.constant 0 : i32
    return %c0_i32, %c0_i32_0, %c0_i32_1 : i32, i32, i32
  }
  func.func @transform_3(%arg0: i32) -> (i32, i32) {
    %c0_i32 = arith.constant 0 : i32
    %c0_i32_0 = arith.constant 0 : i32
    %c0_i32_1 = arith.constant 0 : i32
    return %c0_i32, %c0_i32_0 : i32, i32
  }
  func.func @transform_4(%arg0: i32) -> (i32, i32, i32) {
    %c0_i32 = arith.constant 0 : i32
    %c0_i32_0 = arith.constant 0 : i32
    %c0_i32_1 = arith.constant 0 : i32
    return %arg0, %c0_i32, %c0_i32_0 : i32, i32, i32
  }
}

module attributes {stable_mosaic.version = 11 : i64} {
  func.func @_conv_up_kernel(%arg0: i32, %arg1: memref<1x64x6xf32, #tpu.memory_space<vmem>>, %arg2: memref<5x32x64xf32, #tpu.memory_space<vmem>>, %arg3: memref<32x1xf32, #tpu.memory_space<vmem>>, %arg4: memref<1x2x32x4xf32, #tpu.memory_space<vmem>>) attributes {dimension_semantics = [#tpu.dimension_semantics<parallel>], iteration_bounds = array<i64: 2>, scalar_prefetch = 0 : i64, scratch_operands = 0 : i64, tpu.core_type = #tpu.core_type<tc>, window_params = [{transform_indices = @transform_0, window_bounds = array<i64: 1, 64, 6>}, {pipeline_mode = #tpu.pipeline_mode<synchronous>, transform_indices = @transform_1, window_bounds = array<i64: 5, 32, 64>}, {pipeline_mode = #tpu.pipeline_mode<synchronous>, transform_indices = @transform_2, window_bounds = array<i64: 32, 1>}, {transform_indices = @transform_3, window_bounds = array<i64: 1, 2, 32, 4>}]} {
    %c0 = arith.constant 0 : index
    %c0_0 = arith.constant 0 : index
    %c0_1 = arith.constant 0 : index
    %0 = vector.load %arg1[%c0, %c0_0, %c0_1] : memref<1x64x6xf32, #tpu.memory_space<vmem>>, vector<1x64x6xf32>
    %1 = vector.shape_cast %0 : vector<1x64x6xf32> to vector<64x6xf32>
    %2 = vector.extract_strided_slice %1 {offsets = [0, 0], sizes = [64, 4], strides = [1, 1]} : vector<64x6xf32> to vector<64x4xf32>
    %3 = vector.extract_strided_slice %1 {offsets = [0, 1], sizes = [64, 4], strides = [1, 1]} : vector<64x6xf32> to vector<64x4xf32>
    %4 = vector.extract_strided_slice %1 {offsets = [0, 2], sizes = [64, 4], strides = [1, 1]} : vector<64x6xf32> to vector<64x4xf32>
    %c0_2 = arith.constant 0 : index
    %c0_3 = arith.constant 0 : index
    %c0_4 = arith.constant 0 : index
    %5 = vector.load %arg2[%c0_2, %c0_3, %c0_4] : memref<5x32x64xf32, #tpu.memory_space<vmem>>, vector<1x32x64xf32>
    %6 = vector.shape_cast %5 : vector<1x32x64xf32> to vector<32x64xf32>
    %cst = arith.constant dense<0.000000e+00> : vector<32x4xf32>
    %7 = tpu.matmul %6, %4, %cst {dimension_numbers = #tpu.dot_dimension_numbers<[1], [0], [0], [1], [0, 0, 1, 1], [], []>} : vector<32x64xf32>, vector<64x4xf32>, vector<32x4xf32> -> vector<32x4xf32>
    %c2 = arith.constant 2 : index
    %c0_5 = arith.constant 0 : index
    %c0_6 = arith.constant 0 : index
    %8 = vector.load %arg2[%c2, %c0_5, %c0_6] : memref<5x32x64xf32, #tpu.memory_space<vmem>>, vector<1x32x64xf32>
    %9 = vector.shape_cast %8 : vector<1x32x64xf32> to vector<32x64xf32>
    %cst_7 = arith.constant dense<0.000000e+00> : vector<32x4xf32>
    %10 = tpu.matmul %9, %3, %cst_7 {dimension_numbers = #tpu.dot_dimension_numbers<[1], [0], [0], [1], [0, 0, 1, 1], [], []>} : vector<32x64xf32>, vector<64x4xf32>, vector<32x4xf32> -> vector<32x4xf32>
    %11 = arith.addf %7, %10 : vector<32x4xf32>
    %c4 = arith.constant 4 : index
    %c0_8 = arith.constant 0 : index
    %c0_9 = arith.constant 0 : index
    %12 = vector.load %arg2[%c4, %c0_8, %c0_9] : memref<5x32x64xf32, #tpu.memory_space<vmem>>, vector<1x32x64xf32>
    %13 = vector.shape_cast %12 : vector<1x32x64xf32> to vector<32x64xf32>
    %cst_10 = arith.constant dense<0.000000e+00> : vector<32x4xf32>
    %14 = tpu.matmul %13, %2, %cst_10 {dimension_numbers = #tpu.dot_dimension_numbers<[1], [0], [0], [1], [0, 0, 1, 1], [], []>} : vector<32x64xf32>, vector<64x4xf32>, vector<32x4xf32> -> vector<32x4xf32>
    %15 = arith.addf %11, %14 : vector<32x4xf32>
    %c1 = arith.constant 1 : index
    %c0_11 = arith.constant 0 : index
    %c0_12 = arith.constant 0 : index
    %16 = vector.load %arg2[%c1, %c0_11, %c0_12] : memref<5x32x64xf32, #tpu.memory_space<vmem>>, vector<1x32x64xf32>
    %17 = vector.shape_cast %16 : vector<1x32x64xf32> to vector<32x64xf32>
    %cst_13 = arith.constant dense<0.000000e+00> : vector<32x4xf32>
    %18 = tpu.matmul %17, %4, %cst_13 {dimension_numbers = #tpu.dot_dimension_numbers<[1], [0], [0], [1], [0, 0, 1, 1], [], []>} : vector<32x64xf32>, vector<64x4xf32>, vector<32x4xf32> -> vector<32x4xf32>
    %c3 = arith.constant 3 : index
    %c0_14 = arith.constant 0 : index
    %c0_15 = arith.constant 0 : index
    %19 = vector.load %arg2[%c3, %c0_14, %c0_15] : memref<5x32x64xf32, #tpu.memory_space<vmem>>, vector<1x32x64xf32>
    %20 = vector.shape_cast %19 : vector<1x32x64xf32> to vector<32x64xf32>
    %cst_16 = arith.constant dense<0.000000e+00> : vector<32x4xf32>
    %21 = tpu.matmul %20, %3, %cst_16 {dimension_numbers = #tpu.dot_dimension_numbers<[1], [0], [0], [1], [0, 0, 1, 1], [], []>} : vector<32x64xf32>, vector<64x4xf32>, vector<32x4xf32> -> vector<32x4xf32>
    %22 = arith.addf %18, %21 : vector<32x4xf32>
    %c0_17 = arith.constant 0 : index
    %c0_18 = arith.constant 0 : index
    %23 = vector.load %arg3[%c0_17, %c0_18] : memref<32x1xf32, #tpu.memory_space<vmem>>, vector<32x1xf32>
    %24 = vector.broadcast %23 : vector<32x1xf32> to vector<32x4xf32>
    %25 = arith.addf %15, %24 : vector<32x4xf32>
    %cst_19 = arith.constant 0.000000e+00 : f32
    %26 = vector.broadcast %cst_19 : f32 to vector<32x4xf32>
    %27 = arith.maximumf %25, %26 : vector<32x4xf32>
    %c0_20 = arith.constant 0 : index
    %c0_21 = arith.constant 0 : index
    %c0_22 = arith.constant 0 : index
    %c0_23 = arith.constant 0 : index
    %28 = vector.load %arg4[%c0_20, %c0_21, %c0_22, %c0_23] : memref<1x2x32x4xf32, #tpu.memory_space<vmem>>, vector<1x1x32x4xf32>
    %29 = vector.shape_cast %28 : vector<1x1x32x4xf32> to vector<32x4xf32>
    %30 = vector.shape_cast %27 : vector<32x4xf32> to vector<1x1x32x4xf32>
    tpu.vector_store %arg4[%c0_20, %c0_21, %c0_22, %c0_23], %30 {strides = array<i32>} : memref<1x2x32x4xf32, #tpu.memory_space<vmem>>, vector<1x1x32x4xf32>,
    %31 = vector.broadcast %23 : vector<32x1xf32> to vector<32x4xf32>
    %32 = arith.addf %22, %31 : vector<32x4xf32>
    %cst_24 = arith.constant 0.000000e+00 : f32
    %33 = vector.broadcast %cst_24 : f32 to vector<32x4xf32>
    %34 = arith.maximumf %32, %33 : vector<32x4xf32>
    %c0_25 = arith.constant 0 : index
    %c1_26 = arith.constant 1 : index
    %c0_27 = arith.constant 0 : index
    %c0_28 = arith.constant 0 : index
    %35 = vector.load %arg4[%c0_25, %c1_26, %c0_27, %c0_28] : memref<1x2x32x4xf32, #tpu.memory_space<vmem>>, vector<1x1x32x4xf32>
    %36 = vector.shape_cast %35 : vector<1x1x32x4xf32> to vector<32x4xf32>
    %37 = vector.shape_cast %34 : vector<32x4xf32> to vector<1x1x32x4xf32>
    tpu.vector_store %arg4[%c0_25, %c1_26, %c0_27, %c0_28], %37 {strides = array<i32>} : memref<1x2x32x4xf32, #tpu.memory_space<vmem>>, vector<1x1x32x4xf32>,
    return
  }
  func.func @transform_0(%arg0: i32) -> (i32, i32, i32) {
    %c0_i32 = arith.constant 0 : i32
    %c0_i32_0 = arith.constant 0 : i32
    %c0_i32_1 = arith.constant 0 : i32
    return %arg0, %c0_i32, %c0_i32_0 : i32, i32, i32
  }
  func.func @transform_1(%arg0: i32) -> (i32, i32, i32) {
    %c0_i32 = arith.constant 0 : i32
    %c0_i32_0 = arith.constant 0 : i32
    %c0_i32_1 = arith.constant 0 : i32
    %c0_i32_2 = arith.constant 0 : i32
    return %c0_i32, %c0_i32_0, %c0_i32_1 : i32, i32, i32
  }
  func.func @transform_2(%arg0: i32) -> (i32, i32) {
    %c0_i32 = arith.constant 0 : i32
    %c0_i32_0 = arith.constant 0 : i32
    %c0_i32_1 = arith.constant 0 : i32
    return %c0_i32, %c0_i32_0 : i32, i32
  }
  func.func @transform_3(%arg0: i32) -> (i32, i32, i32, i32) {
    %c0_i32 = arith.constant 0 : i32
    %c0_i32_0 = arith.constant 0 : i32
    %c0_i32_1 = arith.constant 0 : i32
    %c0_i32_2 = arith.constant 0 : i32
    return %arg0, %c0_i32, %c0_i32_0, %c0_i32_1 : i32, i32, i32, i32
  }
}

module attributes {stable_mosaic.version = 11 : i64} {
  func.func @_conv_up_kernel(%arg0: i32, %arg1: memref<1x64x10xf32, #tpu.memory_space<vmem>>, %arg2: memref<5x16x64xf32, #tpu.memory_space<vmem>>, %arg3: memref<16x1xf32, #tpu.memory_space<vmem>>, %arg4: memref<1x2x16x8xf32, #tpu.memory_space<vmem>>) attributes {dimension_semantics = [#tpu.dimension_semantics<parallel>], iteration_bounds = array<i64: 2>, scalar_prefetch = 0 : i64, scratch_operands = 0 : i64, tpu.core_type = #tpu.core_type<tc>, window_params = [{transform_indices = @transform_0, window_bounds = array<i64: 1, 64, 10>}, {pipeline_mode = #tpu.pipeline_mode<synchronous>, transform_indices = @transform_1, window_bounds = array<i64: 5, 16, 64>}, {pipeline_mode = #tpu.pipeline_mode<synchronous>, transform_indices = @transform_2, window_bounds = array<i64: 16, 1>}, {transform_indices = @transform_3, window_bounds = array<i64: 1, 2, 16, 8>}]} {
    %c0 = arith.constant 0 : index
    %c0_0 = arith.constant 0 : index
    %c0_1 = arith.constant 0 : index
    %0 = vector.load %arg1[%c0, %c0_0, %c0_1] : memref<1x64x10xf32, #tpu.memory_space<vmem>>, vector<1x64x10xf32>
    %1 = vector.shape_cast %0 : vector<1x64x10xf32> to vector<64x10xf32>
    %2 = vector.extract_strided_slice %1 {offsets = [0, 0], sizes = [64, 8], strides = [1, 1]} : vector<64x10xf32> to vector<64x8xf32>
    %3 = vector.extract_strided_slice %1 {offsets = [0, 1], sizes = [64, 8], strides = [1, 1]} : vector<64x10xf32> to vector<64x8xf32>
    %4 = vector.extract_strided_slice %1 {offsets = [0, 2], sizes = [64, 8], strides = [1, 1]} : vector<64x10xf32> to vector<64x8xf32>
    %c0_2 = arith.constant 0 : index
    %c0_3 = arith.constant 0 : index
    %c0_4 = arith.constant 0 : index
    %5 = vector.load %arg2[%c0_2, %c0_3, %c0_4] : memref<5x16x64xf32, #tpu.memory_space<vmem>>, vector<1x16x64xf32>
    %6 = vector.shape_cast %5 : vector<1x16x64xf32> to vector<16x64xf32>
    %cst = arith.constant dense<0.000000e+00> : vector<16x8xf32>
    %7 = tpu.matmul %6, %4, %cst {dimension_numbers = #tpu.dot_dimension_numbers<[1], [0], [0], [1], [0, 0, 1, 1], [], []>} : vector<16x64xf32>, vector<64x8xf32>, vector<16x8xf32> -> vector<16x8xf32>
    %c2 = arith.constant 2 : index
    %c0_5 = arith.constant 0 : index
    %c0_6 = arith.constant 0 : index
    %8 = vector.load %arg2[%c2, %c0_5, %c0_6] : memref<5x16x64xf32, #tpu.memory_space<vmem>>, vector<1x16x64xf32>
    %9 = vector.shape_cast %8 : vector<1x16x64xf32> to vector<16x64xf32>
    %cst_7 = arith.constant dense<0.000000e+00> : vector<16x8xf32>
    %10 = tpu.matmul %9, %3, %cst_7 {dimension_numbers = #tpu.dot_dimension_numbers<[1], [0], [0], [1], [0, 0, 1, 1], [], []>} : vector<16x64xf32>, vector<64x8xf32>, vector<16x8xf32> -> vector<16x8xf32>
    %11 = arith.addf %7, %10 : vector<16x8xf32>
    %c4 = arith.constant 4 : index
    %c0_8 = arith.constant 0 : index
    %c0_9 = arith.constant 0 : index
    %12 = vector.load %arg2[%c4, %c0_8, %c0_9] : memref<5x16x64xf32, #tpu.memory_space<vmem>>, vector<1x16x64xf32>
    %13 = vector.shape_cast %12 : vector<1x16x64xf32> to vector<16x64xf32>
    %cst_10 = arith.constant dense<0.000000e+00> : vector<16x8xf32>
    %14 = tpu.matmul %13, %2, %cst_10 {dimension_numbers = #tpu.dot_dimension_numbers<[1], [0], [0], [1], [0, 0, 1, 1], [], []>} : vector<16x64xf32>, vector<64x8xf32>, vector<16x8xf32> -> vector<16x8xf32>
    %15 = arith.addf %11, %14 : vector<16x8xf32>
    %c1 = arith.constant 1 : index
    %c0_11 = arith.constant 0 : index
    %c0_12 = arith.constant 0 : index
    %16 = vector.load %arg2[%c1, %c0_11, %c0_12] : memref<5x16x64xf32, #tpu.memory_space<vmem>>, vector<1x16x64xf32>
    %17 = vector.shape_cast %16 : vector<1x16x64xf32> to vector<16x64xf32>
    %cst_13 = arith.constant dense<0.000000e+00> : vector<16x8xf32>
    %18 = tpu.matmul %17, %4, %cst_13 {dimension_numbers = #tpu.dot_dimension_numbers<[1], [0], [0], [1], [0, 0, 1, 1], [], []>} : vector<16x64xf32>, vector<64x8xf32>, vector<16x8xf32> -> vector<16x8xf32>
    %c3 = arith.constant 3 : index
    %c0_14 = arith.constant 0 : index
    %c0_15 = arith.constant 0 : index
    %19 = vector.load %arg2[%c3, %c0_14, %c0_15] : memref<5x16x64xf32, #tpu.memory_space<vmem>>, vector<1x16x64xf32>
    %20 = vector.shape_cast %19 : vector<1x16x64xf32> to vector<16x64xf32>
    %cst_16 = arith.constant dense<0.000000e+00> : vector<16x8xf32>
    %21 = tpu.matmul %20, %3, %cst_16 {dimension_numbers = #tpu.dot_dimension_numbers<[1], [0], [0], [1], [0, 0, 1, 1], [], []>} : vector<16x64xf32>, vector<64x8xf32>, vector<16x8xf32> -> vector<16x8xf32>
    %22 = arith.addf %18, %21 : vector<16x8xf32>
    %c0_17 = arith.constant 0 : index
    %c0_18 = arith.constant 0 : index
    %23 = vector.load %arg3[%c0_17, %c0_18] : memref<16x1xf32, #tpu.memory_space<vmem>>, vector<16x1xf32>
    %24 = vector.broadcast %23 : vector<16x1xf32> to vector<16x8xf32>
    %25 = arith.addf %15, %24 : vector<16x8xf32>
    %cst_19 = arith.constant 0.000000e+00 : f32
    %26 = vector.broadcast %cst_19 : f32 to vector<16x8xf32>
    %27 = arith.maximumf %25, %26 : vector<16x8xf32>
    %c0_20 = arith.constant 0 : index
    %c0_21 = arith.constant 0 : index
    %c0_22 = arith.constant 0 : index
    %c0_23 = arith.constant 0 : index
    %28 = vector.load %arg4[%c0_20, %c0_21, %c0_22, %c0_23] : memref<1x2x16x8xf32, #tpu.memory_space<vmem>>, vector<1x1x16x8xf32>
    %29 = vector.shape_cast %28 : vector<1x1x16x8xf32> to vector<16x8xf32>
    %30 = vector.shape_cast %27 : vector<16x8xf32> to vector<1x1x16x8xf32>
    tpu.vector_store %arg4[%c0_20, %c0_21, %c0_22, %c0_23], %30 {strides = array<i32>} : memref<1x2x16x8xf32, #tpu.memory_space<vmem>>, vector<1x1x16x8xf32>,
    %31 = vector.broadcast %23 : vector<16x1xf32> to vector<16x8xf32>
    %32 = arith.addf %22, %31 : vector<16x8xf32>
    %cst_24 = arith.constant 0.000000e+00 : f32
    %33 = vector.broadcast %cst_24 : f32 to vector<16x8xf32>
    %34 = arith.maximumf %32, %33 : vector<16x8xf32>
    %c0_25 = arith.constant 0 : index
    %c1_26 = arith.constant 1 : index
    %c0_27 = arith.constant 0 : index
    %c0_28 = arith.constant 0 : index
    %35 = vector.load %arg4[%c0_25, %c1_26, %c0_27, %c0_28] : memref<1x2x16x8xf32, #tpu.memory_space<vmem>>, vector<1x1x16x8xf32>
    %36 = vector.shape_cast %35 : vector<1x1x16x8xf32> to vector<16x8xf32>
    %37 = vector.shape_cast %34 : vector<16x8xf32> to vector<1x1x16x8xf32>
    tpu.vector_store %arg4[%c0_25, %c1_26, %c0_27, %c0_28], %37 {strides = array<i32>} : memref<1x2x16x8xf32, #tpu.memory_space<vmem>>, vector<1x1x16x8xf32>,
    return
  }
  func.func @transform_0(%arg0: i32) -> (i32, i32, i32) {
    %c0_i32 = arith.constant 0 : i32
    %c0_i32_0 = arith.constant 0 : i32
    %c0_i32_1 = arith.constant 0 : i32
    return %arg0, %c0_i32, %c0_i32_0 : i32, i32, i32
  }
  func.func @transform_1(%arg0: i32) -> (i32, i32, i32) {
    %c0_i32 = arith.constant 0 : i32
    %c0_i32_0 = arith.constant 0 : i32
    %c0_i32_1 = arith.constant 0 : i32
    %c0_i32_2 = arith.constant 0 : i32
    return %c0_i32, %c0_i32_0, %c0_i32_1 : i32, i32, i32
  }
  func.func @transform_2(%arg0: i32) -> (i32, i32) {
    %c0_i32 = arith.constant 0 : i32
    %c0_i32_0 = arith.constant 0 : i32
    %c0_i32_1 = arith.constant 0 : i32
    return %c0_i32, %c0_i32_0 : i32, i32
  }
  func.func @transform_3(%arg0: i32) -> (i32, i32, i32, i32) {
    %c0_i32 = arith.constant 0 : i32
    %c0_i32_0 = arith.constant 0 : i32
    %c0_i32_1 = arith.constant 0 : i32
    %c0_i32_2 = arith.constant 0 : i32
    return %arg0, %c0_i32, %c0_i32_0, %c0_i32_1 : i32, i32, i32, i32
  }
}

module attributes {stable_mosaic.version = 11 : i64} {
  func.func @_conv_up_kernel(%arg0: i32, %arg1: memref<1x32x18xf32, #tpu.memory_space<vmem>>, %arg2: memref<5x16x32xf32, #tpu.memory_space<vmem>>, %arg3: memref<16x1xf32, #tpu.memory_space<vmem>>, %arg4: memref<1x2x16x16xf32, #tpu.memory_space<vmem>>) attributes {dimension_semantics = [#tpu.dimension_semantics<parallel>], iteration_bounds = array<i64: 2>, scalar_prefetch = 0 : i64, scratch_operands = 0 : i64, tpu.core_type = #tpu.core_type<tc>, window_params = [{transform_indices = @transform_0, window_bounds = array<i64: 1, 32, 18>}, {pipeline_mode = #tpu.pipeline_mode<synchronous>, transform_indices = @transform_1, window_bounds = array<i64: 5, 16, 32>}, {pipeline_mode = #tpu.pipeline_mode<synchronous>, transform_indices = @transform_2, window_bounds = array<i64: 16, 1>}, {transform_indices = @transform_3, window_bounds = array<i64: 1, 2, 16, 16>}]} {
    %c0 = arith.constant 0 : index
    %c0_0 = arith.constant 0 : index
    %c0_1 = arith.constant 0 : index
    %0 = vector.load %arg1[%c0, %c0_0, %c0_1] : memref<1x32x18xf32, #tpu.memory_space<vmem>>, vector<1x32x18xf32>
    %1 = vector.shape_cast %0 : vector<1x32x18xf32> to vector<32x18xf32>
    %2 = vector.extract_strided_slice %1 {offsets = [0, 0], sizes = [32, 16], strides = [1, 1]} : vector<32x18xf32> to vector<32x16xf32>
    %3 = vector.extract_strided_slice %1 {offsets = [0, 1], sizes = [32, 16], strides = [1, 1]} : vector<32x18xf32> to vector<32x16xf32>
    %4 = vector.extract_strided_slice %1 {offsets = [0, 2], sizes = [32, 16], strides = [1, 1]} : vector<32x18xf32> to vector<32x16xf32>
    %c0_2 = arith.constant 0 : index
    %c0_3 = arith.constant 0 : index
    %c0_4 = arith.constant 0 : index
    %5 = vector.load %arg2[%c0_2, %c0_3, %c0_4] : memref<5x16x32xf32, #tpu.memory_space<vmem>>, vector<1x16x32xf32>
    %6 = vector.shape_cast %5 : vector<1x16x32xf32> to vector<16x32xf32>
    %cst = arith.constant dense<0.000000e+00> : vector<16x16xf32>
    %7 = tpu.matmul %6, %4, %cst {dimension_numbers = #tpu.dot_dimension_numbers<[1], [0], [0], [1], [0, 0, 1, 1], [], []>} : vector<16x32xf32>, vector<32x16xf32>, vector<16x16xf32> -> vector<16x16xf32>
    %c2 = arith.constant 2 : index
    %c0_5 = arith.constant 0 : index
    %c0_6 = arith.constant 0 : index
    %8 = vector.load %arg2[%c2, %c0_5, %c0_6] : memref<5x16x32xf32, #tpu.memory_space<vmem>>, vector<1x16x32xf32>
    %9 = vector.shape_cast %8 : vector<1x16x32xf32> to vector<16x32xf32>
    %cst_7 = arith.constant dense<0.000000e+00> : vector<16x16xf32>
    %10 = tpu.matmul %9, %3, %cst_7 {dimension_numbers = #tpu.dot_dimension_numbers<[1], [0], [0], [1], [0, 0, 1, 1], [], []>} : vector<16x32xf32>, vector<32x16xf32>, vector<16x16xf32> -> vector<16x16xf32>
    %11 = arith.addf %7, %10 : vector<16x16xf32>
    %c4 = arith.constant 4 : index
    %c0_8 = arith.constant 0 : index
    %c0_9 = arith.constant 0 : index
    %12 = vector.load %arg2[%c4, %c0_8, %c0_9] : memref<5x16x32xf32, #tpu.memory_space<vmem>>, vector<1x16x32xf32>
    %13 = vector.shape_cast %12 : vector<1x16x32xf32> to vector<16x32xf32>
    %cst_10 = arith.constant dense<0.000000e+00> : vector<16x16xf32>
    %14 = tpu.matmul %13, %2, %cst_10 {dimension_numbers = #tpu.dot_dimension_numbers<[1], [0], [0], [1], [0, 0, 1, 1], [], []>} : vector<16x32xf32>, vector<32x16xf32>, vector<16x16xf32> -> vector<16x16xf32>
    %15 = arith.addf %11, %14 : vector<16x16xf32>
    %c1 = arith.constant 1 : index
    %c0_11 = arith.constant 0 : index
    %c0_12 = arith.constant 0 : index
    %16 = vector.load %arg2[%c1, %c0_11, %c0_12] : memref<5x16x32xf32, #tpu.memory_space<vmem>>, vector<1x16x32xf32>
    %17 = vector.shape_cast %16 : vector<1x16x32xf32> to vector<16x32xf32>
    %cst_13 = arith.constant dense<0.000000e+00> : vector<16x16xf32>
    %18 = tpu.matmul %17, %4, %cst_13 {dimension_numbers = #tpu.dot_dimension_numbers<[1], [0], [0], [1], [0, 0, 1, 1], [], []>} : vector<16x32xf32>, vector<32x16xf32>, vector<16x16xf32> -> vector<16x16xf32>
    %c3 = arith.constant 3 : index
    %c0_14 = arith.constant 0 : index
    %c0_15 = arith.constant 0 : index
    %19 = vector.load %arg2[%c3, %c0_14, %c0_15] : memref<5x16x32xf32, #tpu.memory_space<vmem>>, vector<1x16x32xf32>
    %20 = vector.shape_cast %19 : vector<1x16x32xf32> to vector<16x32xf32>
    %cst_16 = arith.constant dense<0.000000e+00> : vector<16x16xf32>
    %21 = tpu.matmul %20, %3, %cst_16 {dimension_numbers = #tpu.dot_dimension_numbers<[1], [0], [0], [1], [0, 0, 1, 1], [], []>} : vector<16x32xf32>, vector<32x16xf32>, vector<16x16xf32> -> vector<16x16xf32>
    %22 = arith.addf %18, %21 : vector<16x16xf32>
    %c0_17 = arith.constant 0 : index
    %c0_18 = arith.constant 0 : index
    %23 = vector.load %arg3[%c0_17, %c0_18] : memref<16x1xf32, #tpu.memory_space<vmem>>, vector<16x1xf32>
    %24 = vector.broadcast %23 : vector<16x1xf32> to vector<16x16xf32>
    %25 = arith.addf %15, %24 : vector<16x16xf32>
    %cst_19 = arith.constant 0.000000e+00 : f32
    %26 = vector.broadcast %cst_19 : f32 to vector<16x16xf32>
    %27 = arith.maximumf %25, %26 : vector<16x16xf32>
    %c0_20 = arith.constant 0 : index
    %c0_21 = arith.constant 0 : index
    %c0_22 = arith.constant 0 : index
    %c0_23 = arith.constant 0 : index
    %28 = vector.load %arg4[%c0_20, %c0_21, %c0_22, %c0_23] : memref<1x2x16x16xf32, #tpu.memory_space<vmem>>, vector<1x1x16x16xf32>
    %29 = vector.shape_cast %28 : vector<1x1x16x16xf32> to vector<16x16xf32>
    %30 = vector.shape_cast %27 : vector<16x16xf32> to vector<1x1x16x16xf32>
    tpu.vector_store %arg4[%c0_20, %c0_21, %c0_22, %c0_23], %30 {strides = array<i32>} : memref<1x2x16x16xf32, #tpu.memory_space<vmem>>, vector<1x1x16x16xf32>,
    %31 = vector.broadcast %23 : vector<16x1xf32> to vector<16x16xf32>
    %32 = arith.addf %22, %31 : vector<16x16xf32>
    %cst_24 = arith.constant 0.000000e+00 : f32
    %33 = vector.broadcast %cst_24 : f32 to vector<16x16xf32>
    %34 = arith.maximumf %32, %33 : vector<16x16xf32>
    %c0_25 = arith.constant 0 : index
    %c1_26 = arith.constant 1 : index
    %c0_27 = arith.constant 0 : index
    %c0_28 = arith.constant 0 : index
    %35 = vector.load %arg4[%c0_25, %c1_26, %c0_27, %c0_28] : memref<1x2x16x16xf32, #tpu.memory_space<vmem>>, vector<1x1x16x16xf32>
    %36 = vector.shape_cast %35 : vector<1x1x16x16xf32> to vector<16x16xf32>
    %37 = vector.shape_cast %34 : vector<16x16xf32> to vector<1x1x16x16xf32>
    tpu.vector_store %arg4[%c0_25, %c1_26, %c0_27, %c0_28], %37 {strides = array<i32>} : memref<1x2x16x16xf32, #tpu.memory_space<vmem>>, vector<1x1x16x16xf32>,
    return
  }
  func.func @transform_0(%arg0: i32) -> (i32, i32, i32) {
    %c0_i32 = arith.constant 0 : i32
    %c0_i32_0 = arith.constant 0 : i32
    %c0_i32_1 = arith.constant 0 : i32
    return %arg0, %c0_i32, %c0_i32_0 : i32, i32, i32
  }
  func.func @transform_1(%arg0: i32) -> (i32, i32, i32) {
    %c0_i32 = arith.constant 0 : i32
    %c0_i32_0 = arith.constant 0 : i32
    %c0_i32_1 = arith.constant 0 : i32
    %c0_i32_2 = arith.constant 0 : i32
    return %c0_i32, %c0_i32_0, %c0_i32_1 : i32, i32, i32
  }
  func.func @transform_2(%arg0: i32) -> (i32, i32) {
    %c0_i32 = arith.constant 0 : i32
    %c0_i32_0 = arith.constant 0 : i32
    %c0_i32_1 = arith.constant 0 : i32
    return %c0_i32, %c0_i32_0 : i32, i32
  }
  func.func @transform_3(%arg0: i32) -> (i32, i32, i32, i32) {
    %c0_i32 = arith.constant 0 : i32
    %c0_i32_0 = arith.constant 0 : i32
    %c0_i32_1 = arith.constant 0 : i32
    %c0_i32_2 = arith.constant 0 : i32
    return %arg0, %c0_i32, %c0_i32_0, %c0_i32_1 : i32, i32, i32, i32
  }
}

module attributes {stable_mosaic.version = 11 : i64} {
  func.func @_conv_up_kernel(%arg0: i32, %arg1: memref<1x32x34xf32, #tpu.memory_space<vmem>>, %arg2: memref<5x8x32xf32, #tpu.memory_space<vmem>>, %arg3: memref<8x1xf32, #tpu.memory_space<vmem>>, %arg4: memref<1x2x8x32xf32, #tpu.memory_space<vmem>>) attributes {dimension_semantics = [#tpu.dimension_semantics<parallel>], iteration_bounds = array<i64: 2>, scalar_prefetch = 0 : i64, scratch_operands = 0 : i64, tpu.core_type = #tpu.core_type<tc>, window_params = [{transform_indices = @transform_0, window_bounds = array<i64: 1, 32, 34>}, {pipeline_mode = #tpu.pipeline_mode<synchronous>, transform_indices = @transform_1, window_bounds = array<i64: 5, 8, 32>}, {pipeline_mode = #tpu.pipeline_mode<synchronous>, transform_indices = @transform_2, window_bounds = array<i64: 8, 1>}, {transform_indices = @transform_3, window_bounds = array<i64: 1, 2, 8, 32>}]} {
    %c0 = arith.constant 0 : index
    %c0_0 = arith.constant 0 : index
    %c0_1 = arith.constant 0 : index
    %0 = vector.load %arg1[%c0, %c0_0, %c0_1] : memref<1x32x34xf32, #tpu.memory_space<vmem>>, vector<1x32x34xf32>
    %1 = vector.shape_cast %0 : vector<1x32x34xf32> to vector<32x34xf32>
    %2 = vector.extract_strided_slice %1 {offsets = [0, 0], sizes = [32, 32], strides = [1, 1]} : vector<32x34xf32> to vector<32x32xf32>
    %3 = vector.extract_strided_slice %1 {offsets = [0, 1], sizes = [32, 32], strides = [1, 1]} : vector<32x34xf32> to vector<32x32xf32>
    %4 = vector.extract_strided_slice %1 {offsets = [0, 2], sizes = [32, 32], strides = [1, 1]} : vector<32x34xf32> to vector<32x32xf32>
    %c0_2 = arith.constant 0 : index
    %c0_3 = arith.constant 0 : index
    %c0_4 = arith.constant 0 : index
    %5 = vector.load %arg2[%c0_2, %c0_3, %c0_4] : memref<5x8x32xf32, #tpu.memory_space<vmem>>, vector<1x8x32xf32>
    %6 = vector.shape_cast %5 : vector<1x8x32xf32> to vector<8x32xf32>
    %cst = arith.constant dense<0.000000e+00> : vector<8x32xf32>
    %7 = tpu.matmul %6, %4, %cst {dimension_numbers = #tpu.dot_dimension_numbers<[1], [0], [0], [1], [0, 0, 1, 1], [], []>} : vector<8x32xf32>, vector<32x32xf32>, vector<8x32xf32> -> vector<8x32xf32>
    %c2 = arith.constant 2 : index
    %c0_5 = arith.constant 0 : index
    %c0_6 = arith.constant 0 : index
    %8 = vector.load %arg2[%c2, %c0_5, %c0_6] : memref<5x8x32xf32, #tpu.memory_space<vmem>>, vector<1x8x32xf32>
    %9 = vector.shape_cast %8 : vector<1x8x32xf32> to vector<8x32xf32>
    %cst_7 = arith.constant dense<0.000000e+00> : vector<8x32xf32>
    %10 = tpu.matmul %9, %3, %cst_7 {dimension_numbers = #tpu.dot_dimension_numbers<[1], [0], [0], [1], [0, 0, 1, 1], [], []>} : vector<8x32xf32>, vector<32x32xf32>, vector<8x32xf32> -> vector<8x32xf32>
    %11 = arith.addf %7, %10 : vector<8x32xf32>
    %c4 = arith.constant 4 : index
    %c0_8 = arith.constant 0 : index
    %c0_9 = arith.constant 0 : index
    %12 = vector.load %arg2[%c4, %c0_8, %c0_9] : memref<5x8x32xf32, #tpu.memory_space<vmem>>, vector<1x8x32xf32>
    %13 = vector.shape_cast %12 : vector<1x8x32xf32> to vector<8x32xf32>
    %cst_10 = arith.constant dense<0.000000e+00> : vector<8x32xf32>
    %14 = tpu.matmul %13, %2, %cst_10 {dimension_numbers = #tpu.dot_dimension_numbers<[1], [0], [0], [1], [0, 0, 1, 1], [], []>} : vector<8x32xf32>, vector<32x32xf32>, vector<8x32xf32> -> vector<8x32xf32>
    %15 = arith.addf %11, %14 : vector<8x32xf32>
    %c1 = arith.constant 1 : index
    %c0_11 = arith.constant 0 : index
    %c0_12 = arith.constant 0 : index
    %16 = vector.load %arg2[%c1, %c0_11, %c0_12] : memref<5x8x32xf32, #tpu.memory_space<vmem>>, vector<1x8x32xf32>
    %17 = vector.shape_cast %16 : vector<1x8x32xf32> to vector<8x32xf32>
    %cst_13 = arith.constant dense<0.000000e+00> : vector<8x32xf32>
    %18 = tpu.matmul %17, %4, %cst_13 {dimension_numbers = #tpu.dot_dimension_numbers<[1], [0], [0], [1], [0, 0, 1, 1], [], []>} : vector<8x32xf32>, vector<32x32xf32>, vector<8x32xf32> -> vector<8x32xf32>
    %c3 = arith.constant 3 : index
    %c0_14 = arith.constant 0 : index
    %c0_15 = arith.constant 0 : index
    %19 = vector.load %arg2[%c3, %c0_14, %c0_15] : memref<5x8x32xf32, #tpu.memory_space<vmem>>, vector<1x8x32xf32>
    %20 = vector.shape_cast %19 : vector<1x8x32xf32> to vector<8x32xf32>
    %cst_16 = arith.constant dense<0.000000e+00> : vector<8x32xf32>
    %21 = tpu.matmul %20, %3, %cst_16 {dimension_numbers = #tpu.dot_dimension_numbers<[1], [0], [0], [1], [0, 0, 1, 1], [], []>} : vector<8x32xf32>, vector<32x32xf32>, vector<8x32xf32> -> vector<8x32xf32>
    %22 = arith.addf %18, %21 : vector<8x32xf32>
    %c0_17 = arith.constant 0 : index
    %c0_18 = arith.constant 0 : index
    %23 = vector.load %arg3[%c0_17, %c0_18] : memref<8x1xf32, #tpu.memory_space<vmem>>, vector<8x1xf32>
    %24 = vector.broadcast %23 : vector<8x1xf32> to vector<8x32xf32>
    %25 = arith.addf %15, %24 : vector<8x32xf32>
    %cst_19 = arith.constant 0.000000e+00 : f32
    %26 = vector.broadcast %cst_19 : f32 to vector<8x32xf32>
    %27 = arith.maximumf %25, %26 : vector<8x32xf32>
    %c0_20 = arith.constant 0 : index
    %c0_21 = arith.constant 0 : index
    %c0_22 = arith.constant 0 : index
    %c0_23 = arith.constant 0 : index
    %28 = vector.load %arg4[%c0_20, %c0_21, %c0_22, %c0_23] : memref<1x2x8x32xf32, #tpu.memory_space<vmem>>, vector<1x1x8x32xf32>
    %29 = vector.shape_cast %28 : vector<1x1x8x32xf32> to vector<8x32xf32>
    %30 = vector.shape_cast %27 : vector<8x32xf32> to vector<1x1x8x32xf32>
    tpu.vector_store %arg4[%c0_20, %c0_21, %c0_22, %c0_23], %30 {strides = array<i32>} : memref<1x2x8x32xf32, #tpu.memory_space<vmem>>, vector<1x1x8x32xf32>,
    %31 = vector.broadcast %23 : vector<8x1xf32> to vector<8x32xf32>
    %32 = arith.addf %22, %31 : vector<8x32xf32>
    %cst_24 = arith.constant 0.000000e+00 : f32
    %33 = vector.broadcast %cst_24 : f32 to vector<8x32xf32>
    %34 = arith.maximumf %32, %33 : vector<8x32xf32>
    %c0_25 = arith.constant 0 : index
    %c1_26 = arith.constant 1 : index
    %c0_27 = arith.constant 0 : index
    %c0_28 = arith.constant 0 : index
    %35 = vector.load %arg4[%c0_25, %c1_26, %c0_27, %c0_28] : memref<1x2x8x32xf32, #tpu.memory_space<vmem>>, vector<1x1x8x32xf32>
    %36 = vector.shape_cast %35 : vector<1x1x8x32xf32> to vector<8x32xf32>
    %37 = vector.shape_cast %34 : vector<8x32xf32> to vector<1x1x8x32xf32>
    tpu.vector_store %arg4[%c0_25, %c1_26, %c0_27, %c0_28], %37 {strides = array<i32>} : memref<1x2x8x32xf32, #tpu.memory_space<vmem>>, vector<1x1x8x32xf32>,
    return
  }
  func.func @transform_0(%arg0: i32) -> (i32, i32, i32) {
    %c0_i32 = arith.constant 0 : i32
    %c0_i32_0 = arith.constant 0 : i32
    %c0_i32_1 = arith.constant 0 : i32
    return %arg0, %c0_i32, %c0_i32_0 : i32, i32, i32
  }
  func.func @transform_1(%arg0: i32) -> (i32, i32, i32) {
    %c0_i32 = arith.constant 0 : i32
    %c0_i32_0 = arith.constant 0 : i32
    %c0_i32_1 = arith.constant 0 : i32
    %c0_i32_2 = arith.constant 0 : i32
    return %c0_i32, %c0_i32_0, %c0_i32_1 : i32, i32, i32
  }
  func.func @transform_2(%arg0: i32) -> (i32, i32) {
    %c0_i32 = arith.constant 0 : i32
    %c0_i32_0 = arith.constant 0 : i32
    %c0_i32_1 = arith.constant 0 : i32
    return %c0_i32, %c0_i32_0 : i32, i32
  }
  func.func @transform_3(%arg0: i32) -> (i32, i32, i32, i32) {
    %c0_i32 = arith.constant 0 : i32
    %c0_i32_0 = arith.constant 0 : i32
    %c0_i32_1 = arith.constant 0 : i32
    %c0_i32_2 = arith.constant 0 : i32
    return %arg0, %c0_i32, %c0_i32_0, %c0_i32_1 : i32, i32, i32, i32
  }
}

module attributes {stable_mosaic.version = 11 : i64} {
  func.func @_conv_up_kernel(%arg0: i32, %arg1: memref<1x16x66xf32, #tpu.memory_space<vmem>>, %arg2: memref<5x8x16xf32, #tpu.memory_space<vmem>>, %arg3: memref<8x1xf32, #tpu.memory_space<vmem>>, %arg4: memref<1x2x8x64xf32, #tpu.memory_space<vmem>>) attributes {dimension_semantics = [#tpu.dimension_semantics<parallel>], iteration_bounds = array<i64: 2>, scalar_prefetch = 0 : i64, scratch_operands = 0 : i64, tpu.core_type = #tpu.core_type<tc>, window_params = [{transform_indices = @transform_0, window_bounds = array<i64: 1, 16, 66>}, {pipeline_mode = #tpu.pipeline_mode<synchronous>, transform_indices = @transform_1, window_bounds = array<i64: 5, 8, 16>}, {pipeline_mode = #tpu.pipeline_mode<synchronous>, transform_indices = @transform_2, window_bounds = array<i64: 8, 1>}, {transform_indices = @transform_3, window_bounds = array<i64: 1, 2, 8, 64>}]} {
    %c0 = arith.constant 0 : index
    %c0_0 = arith.constant 0 : index
    %c0_1 = arith.constant 0 : index
    %0 = vector.load %arg1[%c0, %c0_0, %c0_1] : memref<1x16x66xf32, #tpu.memory_space<vmem>>, vector<1x16x66xf32>
    %1 = vector.shape_cast %0 : vector<1x16x66xf32> to vector<16x66xf32>
    %2 = vector.extract_strided_slice %1 {offsets = [0, 0], sizes = [16, 64], strides = [1, 1]} : vector<16x66xf32> to vector<16x64xf32>
    %3 = vector.extract_strided_slice %1 {offsets = [0, 1], sizes = [16, 64], strides = [1, 1]} : vector<16x66xf32> to vector<16x64xf32>
    %4 = vector.extract_strided_slice %1 {offsets = [0, 2], sizes = [16, 64], strides = [1, 1]} : vector<16x66xf32> to vector<16x64xf32>
    %c0_2 = arith.constant 0 : index
    %c0_3 = arith.constant 0 : index
    %c0_4 = arith.constant 0 : index
    %5 = vector.load %arg2[%c0_2, %c0_3, %c0_4] : memref<5x8x16xf32, #tpu.memory_space<vmem>>, vector<1x8x16xf32>
    %6 = vector.shape_cast %5 : vector<1x8x16xf32> to vector<8x16xf32>
    %cst = arith.constant dense<0.000000e+00> : vector<8x64xf32>
    %7 = tpu.matmul %6, %4, %cst {dimension_numbers = #tpu.dot_dimension_numbers<[1], [0], [0], [1], [0, 0, 1, 1], [], []>} : vector<8x16xf32>, vector<16x64xf32>, vector<8x64xf32> -> vector<8x64xf32>
    %c2 = arith.constant 2 : index
    %c0_5 = arith.constant 0 : index
    %c0_6 = arith.constant 0 : index
    %8 = vector.load %arg2[%c2, %c0_5, %c0_6] : memref<5x8x16xf32, #tpu.memory_space<vmem>>, vector<1x8x16xf32>
    %9 = vector.shape_cast %8 : vector<1x8x16xf32> to vector<8x16xf32>
    %cst_7 = arith.constant dense<0.000000e+00> : vector<8x64xf32>
    %10 = tpu.matmul %9, %3, %cst_7 {dimension_numbers = #tpu.dot_dimension_numbers<[1], [0], [0], [1], [0, 0, 1, 1], [], []>} : vector<8x16xf32>, vector<16x64xf32>, vector<8x64xf32> -> vector<8x64xf32>
    %11 = arith.addf %7, %10 : vector<8x64xf32>
    %c4 = arith.constant 4 : index
    %c0_8 = arith.constant 0 : index
    %c0_9 = arith.constant 0 : index
    %12 = vector.load %arg2[%c4, %c0_8, %c0_9] : memref<5x8x16xf32, #tpu.memory_space<vmem>>, vector<1x8x16xf32>
    %13 = vector.shape_cast %12 : vector<1x8x16xf32> to vector<8x16xf32>
    %cst_10 = arith.constant dense<0.000000e+00> : vector<8x64xf32>
    %14 = tpu.matmul %13, %2, %cst_10 {dimension_numbers = #tpu.dot_dimension_numbers<[1], [0], [0], [1], [0, 0, 1, 1], [], []>} : vector<8x16xf32>, vector<16x64xf32>, vector<8x64xf32> -> vector<8x64xf32>
    %15 = arith.addf %11, %14 : vector<8x64xf32>
    %c1 = arith.constant 1 : index
    %c0_11 = arith.constant 0 : index
    %c0_12 = arith.constant 0 : index
    %16 = vector.load %arg2[%c1, %c0_11, %c0_12] : memref<5x8x16xf32, #tpu.memory_space<vmem>>, vector<1x8x16xf32>
    %17 = vector.shape_cast %16 : vector<1x8x16xf32> to vector<8x16xf32>
    %cst_13 = arith.constant dense<0.000000e+00> : vector<8x64xf32>
    %18 = tpu.matmul %17, %4, %cst_13 {dimension_numbers = #tpu.dot_dimension_numbers<[1], [0], [0], [1], [0, 0, 1, 1], [], []>} : vector<8x16xf32>, vector<16x64xf32>, vector<8x64xf32> -> vector<8x64xf32>
    %c3 = arith.constant 3 : index
    %c0_14 = arith.constant 0 : index
    %c0_15 = arith.constant 0 : index
    %19 = vector.load %arg2[%c3, %c0_14, %c0_15] : memref<5x8x16xf32, #tpu.memory_space<vmem>>, vector<1x8x16xf32>
    %20 = vector.shape_cast %19 : vector<1x8x16xf32> to vector<8x16xf32>
    %cst_16 = arith.constant dense<0.000000e+00> : vector<8x64xf32>
    %21 = tpu.matmul %20, %3, %cst_16 {dimension_numbers = #tpu.dot_dimension_numbers<[1], [0], [0], [1], [0, 0, 1, 1], [], []>} : vector<8x16xf32>, vector<16x64xf32>, vector<8x64xf32> -> vector<8x64xf32>
    %22 = arith.addf %18, %21 : vector<8x64xf32>
    %c0_17 = arith.constant 0 : index
    %c0_18 = arith.constant 0 : index
    %23 = vector.load %arg3[%c0_17, %c0_18] : memref<8x1xf32, #tpu.memory_space<vmem>>, vector<8x1xf32>
    %24 = vector.broadcast %23 : vector<8x1xf32> to vector<8x64xf32>
    %25 = arith.addf %15, %24 : vector<8x64xf32>
    %cst_19 = arith.constant 0.000000e+00 : f32
    %26 = vector.broadcast %cst_19 : f32 to vector<8x64xf32>
    %27 = arith.maximumf %25, %26 : vector<8x64xf32>
    %c0_20 = arith.constant 0 : index
    %c0_21 = arith.constant 0 : index
    %c0_22 = arith.constant 0 : index
    %c0_23 = arith.constant 0 : index
    %28 = vector.load %arg4[%c0_20, %c0_21, %c0_22, %c0_23] : memref<1x2x8x64xf32, #tpu.memory_space<vmem>>, vector<1x1x8x64xf32>
    %29 = vector.shape_cast %28 : vector<1x1x8x64xf32> to vector<8x64xf32>
    %30 = vector.shape_cast %27 : vector<8x64xf32> to vector<1x1x8x64xf32>
    tpu.vector_store %arg4[%c0_20, %c0_21, %c0_22, %c0_23], %30 {strides = array<i32>} : memref<1x2x8x64xf32, #tpu.memory_space<vmem>>, vector<1x1x8x64xf32>,
    %31 = vector.broadcast %23 : vector<8x1xf32> to vector<8x64xf32>
    %32 = arith.addf %22, %31 : vector<8x64xf32>
    %cst_24 = arith.constant 0.000000e+00 : f32
    %33 = vector.broadcast %cst_24 : f32 to vector<8x64xf32>
    %34 = arith.maximumf %32, %33 : vector<8x64xf32>
    %c0_25 = arith.constant 0 : index
    %c1_26 = arith.constant 1 : index
    %c0_27 = arith.constant 0 : index
    %c0_28 = arith.constant 0 : index
    %35 = vector.load %arg4[%c0_25, %c1_26, %c0_27, %c0_28] : memref<1x2x8x64xf32, #tpu.memory_space<vmem>>, vector<1x1x8x64xf32>
    %36 = vector.shape_cast %35 : vector<1x1x8x64xf32> to vector<8x64xf32>
    %37 = vector.shape_cast %34 : vector<8x64xf32> to vector<1x1x8x64xf32>
    tpu.vector_store %arg4[%c0_25, %c1_26, %c0_27, %c0_28], %37 {strides = array<i32>} : memref<1x2x8x64xf32, #tpu.memory_space<vmem>>, vector<1x1x8x64xf32>,
    return
  }
  func.func @transform_0(%arg0: i32) -> (i32, i32, i32) {
    %c0_i32 = arith.constant 0 : i32
    %c0_i32_0 = arith.constant 0 : i32
    %c0_i32_1 = arith.constant 0 : i32
    return %arg0, %c0_i32, %c0_i32_0 : i32, i32, i32
  }
  func.func @transform_1(%arg0: i32) -> (i32, i32, i32) {
    %c0_i32 = arith.constant 0 : i32
    %c0_i32_0 = arith.constant 0 : i32
    %c0_i32_1 = arith.constant 0 : i32
    %c0_i32_2 = arith.constant 0 : i32
    return %c0_i32, %c0_i32_0, %c0_i32_1 : i32, i32, i32
  }
  func.func @transform_2(%arg0: i32) -> (i32, i32) {
    %c0_i32 = arith.constant 0 : i32
    %c0_i32_0 = arith.constant 0 : i32
    %c0_i32_1 = arith.constant 0 : i32
    return %c0_i32, %c0_i32_0 : i32, i32
  }
  func.func @transform_3(%arg0: i32) -> (i32, i32, i32, i32) {
    %c0_i32 = arith.constant 0 : i32
    %c0_i32_0 = arith.constant 0 : i32
    %c0_i32_1 = arith.constant 0 : i32
    %c0_i32_2 = arith.constant 0 : i32
    return %arg0, %c0_i32, %c0_i32_0, %c0_i32_1 : i32, i32, i32, i32
  }
}

</mosaic_0001>

<llo_original>
// kernel: unet_forward.12
$region0: #{unet_forward.12}
  #allocation0 [shape = 'u32[]', space=smem, size = 0x4, offset = 0x4, fixed_abs, tag = 'smem constant byte address 0x4 - core index']
  #allocation1 [shape = 'u32[144,128]{1,0:T(1,128)}', space=vmem, size = 0x12000, scoped, tag = 'internal scratch']
  %s0 = inlined_call_operand.vmem [shape: f32[2,8,66], index: 0, kind: input, shape index: {}]
  %s1 = inlined_call_operand.vmem [shape: f32[2,8,66], index: 1, kind: input, shape index: {}]
  %s2 = inlined_call_operand.vmem [shape: f32[5,8,8], index: 2, kind: input, shape index: {}]
  %s3 = inlined_call_operand.vmem [shape: f32[8,1], index: 3, kind: input, shape index: {}]
  %s4 = inlined_call_operand.vmem [shape: f32[2,8,64], index: 4, kind: output, shape index: {}]
  %s5 = sld [smem:[#allocation0]]
  $region49: #{unet_forward.12} parent=0
    _
  %s7 = ssub.s32 1, %s5
  %s8 = scalar_select 0, %s7, %s5
  loop: start=0, step=1, limit=4
  $region2: #{unet_forward.12} parent=0 // loop_pre_header
    _
  $region3: #{unet_forward.12} parent=0 // loop_header
    %s10 = sphi 0, %s14
    %p11 = scmp.ge.s32.totalorder %s10, 4
    %s20 = sphi 0, %s22
    %s23 = sphi 0, %s20
    %s24 = sphi 0, %s23
    %s40 = sphi 0, %s24
    %s46 = sphi 0, %s48
    %s49 = sphi 0, %s46
    %s50 = sphi 0, %s49
    %s66 = sphi 0, %s50
    %s70 = sphi 0, %s70
    %s72 = sphi 0, %s70
    %s73 = sphi 0, %s72
    %s87 = sphi 0, %s73
    %s91 = sphi 0, %s91
    %s93 = sphi 0, %s91
    %s94 = sphi 0, %s93
    %s108 = sphi 0, %s94
    %s114 = sphi 0, %s116
    %s117 = sphi 0, %s114
    %s118 = sphi 0, %s117
    %s134 = sphi 0, %s118
  $region4: #{unet_forward.12} parent=0 // loop_header_branch
    %13 = sbr.rel (%p11) target = $region8
  $region5: #{unet_forward.12} parent=0 // loop_body
    %s15 = ssub.s32 %s10, 1
    %s16 = ssub.s32 %s10, 2
    %s17 = sadd.s32 %s10, 1
    %s18 = ssub.s32 %s10, %s17
    %p19 = scmp.eq.s32.totalorder %s18, 0
    %s21 = sadd.s32 %s20, 1
    %s22 = scalar_select %p19, %s20, %s21
    %p25 = pneg %p19
    %p26 = scmp.eq.s32.totalorder %s10, 1
    %p27 = por %p25, %p26
    %p28 = scmp.ne.s32.totalorder %s20, %s23
    %p29 = scmp.eq.s32.totalorder %s10, 0
    %p30 = por %p28, %p29
    %p31 = scmp.ne.s32.totalorder %s20, %s23
    %p32 = scmp.eq.s32.totalorder %s15, 1
    %p33 = por %p31, %p32
    %p34 = scmp.ne.s32.totalorder %s23, %s24
    %p35 = scmp.eq.s32.totalorder %s15, 0
    %p36 = por %p34, %p35
    %p37 = scmp.ne.s32.totalorder %s23, %s24
    %p38 = scmp.eq.s32.totalorder %s16, 1
    %p39 = por %p37, %p38
    %p41 = scmp.ne.s32.totalorder %s24, %s40
    %p42 = scmp.eq.s32.totalorder %s16, 0
    %p43 = por %p41, %p42
    %s44 = ssub.s32 %s10, %s17
    %p45 = scmp.eq.s32.totalorder %s44, 0
    %s47 = sadd.s32 %s46, 1
    %s48 = scalar_select %p45, %s46, %s47
    %p51 = pneg %p45
    %p52 = scmp.eq.s32.totalorder %s10, 1
    %p53 = por %p51, %p52
    %p54 = scmp.ne.s32.totalorder %s46, %s49
    %p55 = scmp.eq.s32.totalorder %s10, 0
    %p56 = por %p54, %p55
    %p57 = scmp.ne.s32.totalorder %s46, %s49
    %p58 = scmp.eq.s32.totalorder %s15, 1
    %p59 = por %p57, %p58
    %p60 = scmp.ne.s32.totalorder %s49, %s50
    %p61 = scmp.eq.s32.totalorder %s15, 0
    %p62 = por %p60, %p61
    %p63 = scmp.ne.s32.totalorder %s49, %s50
    %p64 = scmp.eq.s32.totalorder %s16, 1
    %p65 = por %p63, %p64
    %p67 = scmp.ne.s32.totalorder %s50, %s66
    %p68 = scmp.eq.s32.totalorder %s16, 0
    %p69 = por %p67, %p68
    %s71 = sadd.s32 %s70, 1
    %p74 = scmp.eq.s32.totalorder %s10, 1
    %p75 = scmp.ne.s32.totalorder %s70, %s72
    %p76 = scmp.eq.s32.totalorder %s10, 0
    %p77 = por %p75, %p76
    %p78 = scmp.ne.s32.totalorder %s70, %s72
    %p79 = scmp.eq.s32.totalorder %s15, 1
    %p80 = por %p78, %p79
    %p81 = scmp.ne.s32.totalorder %s72, %s73
    %p82 = scmp.eq.s32.totalorder %s15, 0
    %p83 = por %p81, %p82
    %p84 = scmp.ne.s32.totalorder %s72, %s73
    %p85 = scmp.eq.s32.totalorder %s16, 1
    %p86 = por %p84, %p85
    %p88 = scmp.ne.s32.totalorder %s73, %s87
    %p89 = scmp.eq.s32.totalorder %s16, 0
    %p90 = por %p88, %p89
    %s92 = sadd.s32 %s91, 1
    %p95 = scmp.eq.s32.totalorder %s10, 1
    %p96 = scmp.ne.s32.totalorder %s91, %s93
    %p97 = scmp.eq.s32.totalorder %s10, 0
    %p98 = por %p96, %p97
    %p99 = scmp.ne.s32.totalorder %s91, %s93
    %p100 = scmp.eq.s32.totalorder %s15, 1
    %p101 = por %p99, %p100
    %p102 = scmp.ne.s32.totalorder %s93, %s94
    %p103 = scmp.eq.s32.totalorder %s15, 0
    %p104 = por %p102, %p103
    %p105 = scmp.ne.s32.totalorder %s93, %s94
    %p106 = scmp.eq.s32.totalorder %s16, 1
    %p107 = por %p105, %p106
    %p109 = scmp.ne.s32.totalorder %s94, %s108
    %p110 = scmp.eq.s32.totalorder %s16, 0
    %p111 = por %p109, %p110
    %s112 = ssub.s32 %s10, %s17
    %p113 = scmp.eq.s32.totalorder %s112, 0
    %s115 = sadd.s32 %s114, 1
    %s116 = scalar_select %p113, %s114, %s115
    %p119 = pneg %p113
    %p120 = scmp.eq.s32.totalorder %s10, 1
    %p121 = por %p119, %p120
    %p122 = scmp.ne.s32.totalorder %s114, %s117
    %p123 = scmp.eq.s32.totalorder %s10, 0
    %p124 = por %p122, %p123
    %p125 = scmp.ne.s32.totalorder %s114, %s117
    %p126 = scmp.eq.s32.totalorder %s15, 1
    %p127 = por %p125, %p126
    %p128 = scmp.ne.s32.totalorder %s117, %s118
    %p129 = scmp.eq.s32.totalorder %s15, 0
    %p130 = por %p128, %p129
    %p131 = scmp.ne.s32.totalorder %s117, %s118
    %p132 = scmp.eq.s32.totalorder %s16, 1
    %p133 = por %p131, %p132
    %p135 = scmp.ne.s32.totalorder %s118, %s134
    %p136 = scmp.eq.s32.totalorder %s16, 0
    %p137 = por %p135, %p136
    %p138 = scmp.le.s32.totalorder 1, %s10
    %p139 = scmp.lt.s32.totalorder %s10, 3
    %p140 = pnand %p138, %p139
    %p141 = pneg %p140
    // Predicated region
    $region9: #{unet_forward.12} parent=5 // pred_check
      _
    $region10: #{unet_forward.12} parent=5 // pred_check_branch
      %143 = sbr.rel (%p140) target = $region12
    $region11: #{unet_forward.12} parent=5 // pred_region
      %s144 = ssub.s32 %s10, 1
      // Predicated region
      $region13: #{unet_forward.12} parent=11 // pred_check
        %p145 = pneg %p83
      $region14: #{unet_forward.12} parent=11 // pred_check_branch
        %147 = sbr.rel (%p145) target = $region16
      $region15: #{unet_forward.12} parent=11 // pred_region
        _
      $region16: #{unet_forward.12} parent=11 // pred_fallthru
        _
      // Predicated region
      $region17: #{unet_forward.12} parent=11 // pred_check
        %p148 = pneg %p104
      $region18: #{unet_forward.12} parent=11 // pred_check_branch
        %150 = sbr.rel (%p148) target = $region20
      $region19: #{unet_forward.12} parent=11 // pred_region
        _
      $region20: #{unet_forward.12} parent=11 // pred_fallthru
        _
    $region12: #{unet_forward.12} parent=5 // pred_fallthru
      _
    %p151 = scmp.lt.s32.totalorder %s10, 2
    // Predicated region
    $region21: #{unet_forward.12} parent=5 // pred_check
      %p152 = pneg %p151
    $region22: #{unet_forward.12} parent=5 // pred_check_branch
      %154 = sbr.rel (%p152) target = $region24
    $region23: #{unet_forward.12} parent=5 // pred_region
      // Predicated region
      $region25: #{unet_forward.12} parent=23 // pred_check
        %p155 = pneg %p30
      $region26: #{unet_forward.12} parent=23 // pred_check_branch
        %157 = sbr.rel (%p155) target = $region28
      $region27: #{unet_forward.12} parent=23 // pred_region
        %p158 = scmp.lt.s32.totalorder %s10, 1
        %s159 = scalar_select %p158, %s10, 1
        %s160 = smul.addr %s159, 8
        %s161 = scalar_lea.vmem %s0, %s160
      $region28: #{unet_forward.12} parent=23 // pred_fallthru
        _
      // Predicated region
      $region29: #{unet_forward.12} parent=23 // pred_check
        %p162 = pneg %p56
      $region30: #{unet_forward.12} parent=23 // pred_check_branch
        %164 = sbr.rel (%p162) target = $region32
      $region31: #{unet_forward.12} parent=23 // pred_region
        %p165 = scmp.lt.s32.totalorder %s10, 1
        %s166 = scalar_select %p165, %s10, 1
        %s167 = smul.addr %s166, 8
        %s168 = scalar_lea.vmem %s1, %s167
      $region32: #{unet_forward.12} parent=23 // pred_fallthru
        _
    $region24: #{unet_forward.12} parent=5 // pred_fallthru
      _
    %p169 = scmp.le.s32.totalorder 1, %s10
    %p170 = scmp.lt.s32.totalorder %s10, 3
    %p171 = pnand %p169, %p170
    %p172 = pneg %p171
    // Predicated region
    $region33: #{unet_forward.12} parent=5 // pred_check
      _
    $region34: #{unet_forward.12} parent=5 // pred_check_branch
      %174 = sbr.rel (%p171) target = $region36
    $region35: #{unet_forward.12} parent=5 // pred_region
      %s175 = ssub.s32 %s10, 1
      %p176 = scmp.lt.s32.totalorder %s15, 1
      %s177 = scalar_select %p176, %s15, 1
      %s178 = smul.addr %s177, 8
      %s179 = scalar_lea.vmem %s0, %s178
      %p180 = pneg %p36
      %p181 = pneg %p33
      %p182 = scmp.lt.s32.totalorder %s15, 1
      %s183 = scalar_select %p182, %s15, 1
      %s184 = smul.addr %s183, 8
      %s185 = scalar_lea.vmem %s1, %s184
      %p186 = pneg %p62
      %p187 = pneg %p59
      %p188 = pneg %p83
      %p189 = pneg %p80
      %p190 = pneg %p104
      %p191 = pneg %p101
      %p192 = pneg %p130
      %p193 = pneg %p127
      %p194 = scmp.lt.s32.totalorder %s15, 1
      %s195 = scalar_select %p194, %s15, 1
      %s196 = smul.addr %s195, 8
      %s197 = scalar_lea.vmem %s4, %s196
      %p198 = scmp.lt.s32.totalorder %s15, 1
      %s199 = scalar_select %p198, %s15, 1
      %s200 = smul.addr %s199, 8
      %s201 = scalar_lea.vmem %s0, %s200
      %p202 = scmp.lt.s32.totalorder %s15, 1
      %s203 = scalar_select %p202, %s15, 1
      %s204 = smul.addr %s203, 8
      %s205 = scalar_lea.vmem %s1, %s204
      %p206 = scmp.lt.s32.totalorder %s15, 1
      %s207 = scalar_select %p206, %s15, 1
      %s208 = smul.addr %s207, 8
      %s209 = scalar_lea.vmem %s4, %s208
      %v210 = vld [vmem:[%s201] sm:$0xff]
      %v211 = vld [vmem:[%s205] sm:$0xff]
      %v212 = vld [vmem:[%s2] sm:$0xff]
      %s213 = scalar_lea.vmem %s2, 8
      %v214 = vld [vmem:[%s213] sm:$0xff]
      %vm215 = vcmask 64512
      %v217 = vsel %vm215, %v214, 0
      %219 = vmatprep.subr.mxu0 0.0
      %220 = vmatpush1.msra.mxu0 %v211
      %221 = vmatprep.subr.mxu0 0.0
      %222 = vmatpush1.msra.mxu0 0.0
      %223 = vmatprep.subr.mxu0 0.0
      %224 = vmatpush1.msra.mxu0 0.0
      %225 = vmatprep.subr.mxu0 0.0
      %226 = vmatpush1.msra.mxu0 0.0
      %227 = vmatprep.subr.mxu0 0.0
      %228 = vmatpush1.msra.mxu0 0.0
      %229 = vmatprep.subr.mxu0 0.0
      %230 = vmatpush1.msra.mxu0 0.0
      %231 = vmatprep.subr.mxu0 0.0
      %232 = vmatpush1.msra.mxu0 0.0
      %233 = vmatprep.subr.mxu0 0.0
      %234 = vmatpush1.msra.mxu0 0.0
      %235 = vmatprep.subr.mxu0 0.0
      %236 = vmatpush1.msra.mxu0 0.0
      %237 = vmatprep.subr.mxu0 0.0
      %238 = vmatpush1.msra.mxu0 0.0
      %239 = vmatprep.subr.mxu0 0.0
      %240 = vmatpush1.msra.mxu0 0.0
      %241 = vmatprep.subr.mxu0 0.0
      %242 = vmatpush1.msra.mxu0 0.0
      %243 = vmatprep.subr.mxu0 0.0
      %244 = vmatpush1.msra.mxu0 0.0
      %245 = vmatprep.subr.mxu0 0.0
      %246 = vmatpush1.msra.mxu0 0.0
      %247 = vmatprep.subr.mxu0 0.0
      %248 = vmatpush1.msra.mxu0 0.0
      %249 = vmatprep.subr.mxu0 0.0
      %250 = vmatpush1.msra.mxu0 0.0
      %251 = vmatprep.subr.mxu0 0.0
      %252 = vmatpush1.msra.mxu0 0.0
      %253 = vmatprep.subr.mxu0 0.0
      %254 = vmatpush1.msra.mxu0 0.0
      %255 = vmatprep.subr.mxu0 0.0
      %256 = vmatpush1.msra.mxu0 0.0
      %257 = vmatprep.subr.mxu0 0.0
      %258 = vmatpush1.msra.mxu0 0.0
      %259 = vmatprep.subr.mxu0 0.0
      %260 = vmatpush1.msra.mxu0 0.0
      %261 = vmatprep.subr.mxu0 0.0
      %262 = vmatpush1.msra.mxu0 0.0
      %263 = vmatprep.subr.mxu0 0.0
      %264 = vmatpush1.msra.mxu0 0.0
      %265 = vmatprep.subr.mxu0 0.0
      %266 = vmatpush1.msra.mxu0 0.0
      %267 = vmatprep.subr.mxu0 0.0
      %268 = vmatpush1.msra.mxu0 0.0
      %269 = vmatprep.subr.mxu0 0.0
      %270 = vmatpush1.msra.mxu0 0.0
      %271 = vmatprep.subr.mxu0 0.0
      %272 = vmatpush1.msra.mxu0 0.0
      %273 = vmatprep.subr.mxu0 0.0
      %274 = vmatpush1.msra.mxu0 0.0
      %275 = vmatprep.subr.mxu0 0.0
      %276 = vmatpush1.msra.mxu0 0.0
      %277 = vmatprep.subr.mxu0 0.0
      %278 = vmatpush1.msra.mxu0 0.0
      %279 = vmatprep.subr.mxu0 0.0
      %280 = vmatpush1.msra.mxu0 0.0
      %281 = vmatprep.subr.mxu0 0.0
      %282 = vmatpush1.msra.mxu0 0.0
      %283 = vmatprep.mubr.f32.mxu0 0.0
      %284 = vmatmul.mubr.f32.gmra.mrb[0].mxu0 %v217
      %v285 = vpop.f32.mrb[0].mxu0
      %v286 = vadd.f32 0.0, %v285
      %v287 = vpop.f32.mrb[0].mxu0
      %288 = vdwg.mxu0
      %v290 = vsel %vm215, %v212, 0
      %292 = vmatprep.subr.mxu0 0.0
      %293 = vmatpush1.msra.mxu0 %v210
      %294 = vmatprep.subr.mxu0 0.0
      %295 = vmatpush1.msra.mxu0 0.0
      %296 = vmatprep.subr.mxu0 0.0
      %297 = vmatpush1.msra.mxu0 0.0
      %298 = vmatprep.subr.mxu0 0.0
      %299 = vmatpush1.msra.mxu0 0.0
      %300 = vmatprep.subr.mxu0 0.0
      %301 = vmatpush1.msra.mxu0 0.0
      %302 = vmatprep.subr.mxu0 0.0
      %303 = vmatpush1.msra.mxu0 0.0
      %304 = vmatprep.subr.mxu0 0.0
      %305 = vmatpush1.msra.mxu0 0.0
      %306 = vmatprep.subr.mxu0 0.0
      %307 = vmatpush1.msra.mxu0 0.0
      %308 = vmatprep.subr.mxu0 0.0
      %309 = vmatpush1.msra.mxu0 0.0
      %310 = vmatprep.subr.mxu0 0.0
      %311 = vmatpush1.msra.mxu0 0.0
      %312 = vmatprep.subr.mxu0 0.0
      %313 = vmatpush1.msra.mxu0 0.0
      %314 = vmatprep.subr.mxu0 0.0
      %315 = vmatpush1.msra.mxu0 0.0
      %316 = vmatprep.subr.mxu0 0.0
      %317 = vmatpush1.msra.mxu0 0.0
      %318 = vmatprep.subr.mxu0 0.0
      %319 = vmatpush1.msra.mxu0 0.0
      %320 = vmatprep.subr.mxu0 0.0
      %321 = vmatpush1.msra.mxu0 0.0
      %322 = vmatprep.subr.mxu0 0.0
      %323 = vmatpush1.msra.mxu0 0.0
      %324 = vmatprep.subr.mxu0 0.0
      %325 = vmatpush1.msra.mxu0 0.0
      %326 = vmatprep.subr.mxu0 0.0
      %327 = vmatpush1.msra.mxu0 0.0
      %328 = vmatprep.subr.mxu0 0.0
      %329 = vmatpush1.msra.mxu0 0.0
      %330 = vmatprep.subr.mxu0 0.0
      %331 = vmatpush1.msra.mxu0 0.0
      %332 = vmatprep.subr.mxu0 0.0
      %333 = vmatpush1.msra.mxu0 0.0
      %334 = vmatprep.subr.mxu0 0.0
      %335 = vmatpush1.msra.mxu0 0.0
      %336 = vmatprep.subr.mxu0 0.0
      %337 = vmatpush1.msra.mxu0 0.0
      %338 = vmatprep.subr.mxu0 0.0
      %339 = vmatpush1.msra.mxu0 0.0
      %340 = vmatprep.subr.mxu0 0.0
      %341 = vmatpush1.msra.mxu0 0.0
      %342 = vmatprep.subr.mxu0 0.0
      %343 = vmatpush1.msra.mxu0 0.0
      %344 = vmatprep.subr.mxu0 0.0
      %345 = vmatpush1.msra.mxu0 0.0
      %346 = vmatprep.subr.mxu0 0.0
      %347 = vmatpush1.msra.mxu0 0.0
      %348 = vmatprep.subr.mxu0 0.0
      %349 = vmatpush1.msra.mxu0 0.0
      %350 = vmatprep.subr.mxu0 0.0
      %351 = vmatpush1.msra.mxu0 0.0
      %352 = vmatprep.subr.mxu0 0.0
      %353 = vmatpush1.msra.mxu0 0.0
      %354 = vmatprep.subr.mxu0 0.0
      %355 = vmatpush1.msra.mxu0 0.0
      %356 = vmatprep.mubr.f32.mxu0 0.0
      %357 = vmatmul.mubr.f32.gmra.mrb[0].mxu0 %v290
      %v358 = vpop.f32.mrb[0].mxu0
      %v359 = vadd.f32 %v286, %v358
      %v360 = vpop.f32.mrb[0].mxu0
      %361 = vdwg.mxu0
      %s362 = scalar_lea.vmem %s2, 16
      %v363 = vld [vmem:[%s362] sm:$0xff]
      %365 = vrot.lane.b32.xlu0 %v210, 127
      %v366 = vpop.permute.xlu0 %365
      %v369 = vsel %vm215, %v363, 0
      %371 = vmatprep.subr.mxu0 0.0
      %372 = vmatpush1.msra.mxu0 %v366
      %373 = vmatprep.subr.mxu0 0.0
      %374 = vmatpush1.msra.mxu0 0.0
      %375 = vmatprep.subr.mxu0 0.0
      %376 = vmatpush1.msra.mxu0 0.0
      %377 = vmatprep.subr.mxu0 0.0
      %378 = vmatpush1.msra.mxu0 0.0
      %379 = vmatprep.subr.mxu0 0.0
      %380 = vmatpush1.msra.mxu0 0.0
      %381 = vmatprep.subr.mxu0 0.0
      %382 = vmatpush1.msra.mxu0 0.0
      %383 = vmatprep.subr.mxu0 0.0
      %384 = vmatpush1.msra.mxu0 0.0
      %385 = vmatprep.subr.mxu0 0.0
      %386 = vmatpush1.msra.mxu0 0.0
      %387 = vmatprep.subr.mxu0 0.0
      %388 = vmatpush1.msra.mxu0 0.0
      %389 = vmatprep.subr.mxu0 0.0
      %390 = vmatpush1.msra.mxu0 0.0
      %391 = vmatprep.subr.mxu0 0.0
      %392 = vmatpush1.msra.mxu0 0.0
      %393 = vmatprep.subr.mxu0 0.0
      %394 = vmatpush1.msra.mxu0 0.0
      %395 = vmatprep.subr.mxu0 0.0
      %396 = vmatpush1.msra.mxu0 0.0
      %397 = vmatprep.subr.mxu0 0.0
      %398 = vmatpush1.msra.mxu0 0.0
      %399 = vmatprep.subr.mxu0 0.0
      %400 = vmatpush1.msra.mxu0 0.0
      %401 = vmatprep.subr.mxu0 0.0
      %402 = vmatpush1.msra.mxu0 0.0
      %403 = vmatprep.subr.mxu0 0.0
      %404 = vmatpush1.msra.mxu0 0.0
      %405 = vmatprep.subr.mxu0 0.0
      %406 = vmatpush1.msra.mxu0 0.0
      %407 = vmatprep.subr.mxu0 0.0
      %408 = vmatpush1.msra.mxu0 0.0
      %409 = vmatprep.subr.mxu0 0.0
      %410 = vmatpush1.msra.mxu0 0.0
      %411 = vmatprep.subr.mxu0 0.0
      %412 = vmatpush1.msra.mxu0 0.0
      %413 = vmatprep.subr.mxu0 0.0
      %414 = vmatpush1.msra.mxu0 0.0
      %415 = vmatprep.subr.mxu0 0.0
      %416 = vmatpush1.msra.mxu0 0.0
      %417 = vmatprep.subr.mxu0 0.0
      %418 = vmatpush1.msra.mxu0 0.0
      %419 = vmatprep.subr.mxu0 0.0
      %420 = vmatpush1.msra.mxu0 0.0
      %421 = vmatprep.subr.mxu0 0.0
      %422 = vmatpush1.msra.mxu0 0.0
      %423 = vmatprep.subr.mxu0 0.0
      %424 = vmatpush1.msra.mxu0 0.0
      %425 = vmatprep.subr.mxu0 0.0
      %426 = vmatpush1.msra.mxu0 0.0
      %427 = vmatprep.subr.mxu0 0.0
      %428 = vmatpush1.msra.mxu0 0.0
      %429 = vmatprep.subr.mxu0 0.0
      %430 = vmatpush1.msra.mxu0 0.0
      %431 = vmatprep.subr.mxu0 0.0
      %432 = vmatpush1.msra.mxu0 0.0
      %433 = vmatprep.subr.mxu0 0.0
      %434 = vmatpush1.msra.mxu0 0.0
      %435 = vmatprep.mubr.f32.mxu0 0.0
      %436 = vmatmul.mubr.f32.gmra.mrb[0].mxu0 %v369
      %v437 = vpop.f32.mrb[0].mxu0
      %v438 = vadd.f32 0.0, %v437
      %v439 = vpop.f32.mrb[0].mxu0
      %440 = vdwg.mxu0
      %v441 = vadd.f32 %v359, %v438
      %s442 = scalar_lea.vmem %s2, 24
      %v443 = vld [vmem:[%s442] sm:$0xff]
      %445 = vrot.lane.b32.xlu0 %v211, 127
      %v446 = vpop.permute.xlu0 %445
      %v449 = vsel %vm215, %v443, 0
      %451 = vmatprep.subr.mxu0 0.0
      %452 = vmatpush1.msra.mxu0 %v446
      %453 = vmatprep.subr.mxu0 0.0
      %454 = vmatpush1.msra.mxu0 0.0
      %455 = vmatprep.subr.mxu0 0.0
      %456 = vmatpush1.msra.mxu0 0.0
      %457 = vmatprep.subr.mxu0 0.0
      %458 = vmatpush1.msra.mxu0 0.0
      %459 = vmatprep.subr.mxu0 0.0
      %460 = vmatpush1.msra.mxu0 0.0
      %461 = vmatprep.subr.mxu0 0.0
      %462 = vmatpush1.msra.mxu0 0.0
      %463 = vmatprep.subr.mxu0 0.0
      %464 = vmatpush1.msra.mxu0 0.0
      %465 = vmatprep.subr.mxu0 0.0
      %466 = vmatpush1.msra.mxu0 0.0
      %467 = vmatprep.subr.mxu0 0.0
      %468 = vmatpush1.msra.mxu0 0.0
      %469 = vmatprep.subr.mxu0 0.0
      %470 = vmatpush1.msra.mxu0 0.0
      %471 = vmatprep.subr.mxu0 0.0
      %472 = vmatpush1.msra.mxu0 0.0
      %473 = vmatprep.subr.mxu0 0.0
      %474 = vmatpush1.msra.mxu0 0.0
      %475 = vmatprep.subr.mxu0 0.0
      %476 = vmatpush1.msra.mxu0 0.0
      %477 = vmatprep.subr.mxu0 0.0
      %478 = vmatpush1.msra.mxu0 0.0
      %479 = vmatprep.subr.mxu0 0.0
      %480 = vmatpush1.msra.mxu0 0.0
      %481 = vmatprep.subr.mxu0 0.0
      %482 = vmatpush1.msra.mxu0 0.0
      %483 = vmatprep.subr.mxu0 0.0
      %484 = vmatpush1.msra.mxu0 0.0
      %485 = vmatprep.subr.mxu0 0.0
      %486 = vmatpush1.msra.mxu0 0.0
      %487 = vmatprep.subr.mxu0 0.0
      %488 = vmatpush1.msra.mxu0 0.0
      %489 = vmatprep.subr.mxu0 0.0
      %490 = vmatpush1.msra.mxu0 0.0
      %491 = vmatprep.subr.mxu0 0.0
      %492 = vmatpush1.msra.mxu0 0.0
      %493 = vmatprep.subr.mxu0 0.0
      %494 = vmatpush1.msra.mxu0 0.0
      %495 = vmatprep.subr.mxu0 0.0
      %496 = vmatpush1.msra.mxu0 0.0
      %497 = vmatprep.subr.mxu0 0.0
      %498 = vmatpush1.msra.mxu0 0.0
      %499 = vmatprep.subr.mxu0 0.0
      %500 = vmatpush1.msra.mxu0 0.0
      %501 = vmatprep.subr.mxu0 0.0
      %502 = vmatpush1.msra.mxu0 0.0
      %503 = vmatprep.subr.mxu0 0.0
      %504 = vmatpush1.msra.mxu0 0.0
      %505 = vmatprep.subr.mxu0 0.0
      %506 = vmatpush1.msra.mxu0 0.0
      %507 = vmatprep.subr.mxu0 0.0
      %508 = vmatpush1.msra.mxu0 0.0
      %509 = vmatprep.subr.mxu0 0.0
      %510 = vmatpush1.msra.mxu0 0.0
      %511 = vmatprep.subr.mxu0 0.0
      %512 = vmatpush1.msra.mxu0 0.0
      %513 = vmatprep.subr.mxu0 0.0
      %514 = vmatpush1.msra.mxu0 0.0
      %515 = vmatprep.mubr.f32.mxu0 0.0
      %516 = vmatmul.mubr.f32.gmra.mrb[0].mxu0 %v449
      %v517 = vpop.f32.mrb[0].mxu0
      %v518 = vadd.f32 0.0, %v517
      %v519 = vpop.f32.mrb[0].mxu0
      %520 = vdwg.mxu0
      %v521 = vadd.f32 %v441, %v518
      %s522 = scalar_lea.vmem %s2, 32
      %v523 = vld [vmem:[%s522] sm:$0xff]
      %524 = vrot.lane.b32.xlu0 %v210, 126
      %v525 = vpop.permute.xlu0 %524
      %v528 = vsel %vm215, %v523, 0
      %530 = vmatprep.subr.mxu0 0.0
      %531 = vmatpush1.msra.mxu0 %v525
      %532 = vmatprep.subr.mxu0 0.0
      %533 = vmatpush1.msra.mxu0 0.0
      %534 = vmatprep.subr.mxu0 0.0
      %535 = vmatpush1.msra.mxu0 0.0
      %536 = vmatprep.subr.mxu0 0.0
      %537 = vmatpush1.msra.mxu0 0.0
      %538 = vmatprep.subr.mxu0 0.0
      %539 = vmatpush1.msra.mxu0 0.0
      %540 = vmatprep.subr.mxu0 0.0
      %541 = vmatpush1.msra.mxu0 0.0
      %542 = vmatprep.subr.mxu0 0.0
      %543 = vmatpush1.msra.mxu0 0.0
      %544 = vmatprep.subr.mxu0 0.0
      %545 = vmatpush1.msra.mxu0 0.0
      %546 = vmatprep.subr.mxu0 0.0
      %547 = vmatpush1.msra.mxu0 0.0
      %548 = vmatprep.subr.mxu0 0.0
      %549 = vmatpush1.msra.mxu0 0.0
      %550 = vmatprep.subr.mxu0 0.0
      %551 = vmatpush1.msra.mxu0 0.0
      %552 = vmatprep.subr.mxu0 0.0
      %553 = vmatpush1.msra.mxu0 0.0
      %554 = vmatprep.subr.mxu0 0.0
      %555 = vmatpush1.msra.mxu0 0.0
      %556 = vmatprep.subr.mxu0 0.0
      %557 = vmatpush1.msra.mxu0 0.0
      %558 = vmatprep.subr.mxu0 0.0
      %559 = vmatpush1.msra.mxu0 0.0
      %560 = vmatprep.subr.mxu0 0.0
      %561 = vmatpush1.msra.mxu0 0.0
      %562 = vmatprep.subr.mxu0 0.0
      %563 = vmatpush1.msra.mxu0 0.0
      %564 = vmatprep.subr.mxu0 0.0
      %565 = vmatpush1.msra.mxu0 0.0
      %566 = vmatprep.subr.mxu0 0.0
      %567 = vmatpush1.msra.mxu0 0.0
      %568 = vmatprep.subr.mxu0 0.0
      %569 = vmatpush1.msra.mxu0 0.0
      %570 = vmatprep.subr.mxu0 0.0
      %571 = vmatpush1.msra.mxu0 0.0
      %572 = vmatprep.subr.mxu0 0.0
      %573 = vmatpush1.msra.mxu0 0.0
      %574 = vmatprep.subr.mxu0 0.0
      %575 = vmatpush1.msra.mxu0 0.0
      %576 = vmatprep.subr.mxu0 0.0
      %577 = vmatpush1.msra.mxu0 0.0
      %578 = vmatprep.subr.mxu0 0.0
      %579 = vmatpush1.msra.mxu0 0.0
      %580 = vmatprep.subr.mxu0 0.0
      %581 = vmatpush1.msra.mxu0 0.0
      %582 = vmatprep.subr.mxu0 0.0
      %583 = vmatpush1.msra.mxu0 0.0
      %584 = vmatprep.subr.mxu0 0.0
      %585 = vmatpush1.msra.mxu0 0.0
      %586 = vmatprep.subr.mxu0 0.0
      %587 = vmatpush1.msra.mxu0 0.0
      %588 = vmatprep.subr.mxu0 0.0
      %589 = vmatpush1.msra.mxu0 0.0
      %590 = vmatprep.subr.mxu0 0.0
      %591 = vmatpush1.msra.mxu0 0.0
      %592 = vmatprep.subr.mxu0 0.0
      %593 = vmatpush1.msra.mxu0 0.0
      %594 = vmatprep.mubr.f32.mxu0 0.0
      %595 = vmatmul.mubr.f32.gmra.mrb[0].mxu0 %v528
      %v596 = vpop.f32.mrb[0].mxu0
      %v597 = vadd.f32 0.0, %v596
      %v598 = vpop.f32.mrb[0].mxu0
      %599 = vdwg.mxu0
      %v600 = vadd.f32 %v521, %v597
      %v601 = vld [vmem:[%s3] sm:$0xff]
      %603 = vset.pattern.permute.xlu0 0
      %604 = vperm.xlu0 %603, %v601
      %v605 = vpop.permute.xlu0 %604
      %v607 = vadd.f32 %v600, %v605
      %v608 = vmax.f32 %v607, 0.0
      %vm609 = vcmask 523264
      %610 = vst.msk [vmem:[%s209] sm:$0xff] %vm609, %v608
      %p611 = scmp.lt.s32.totalorder %s15, 1
      %s612 = scalar_select %p611, %s15, 1
      %s613 = smul.addr %s612, 8
      %s614 = scalar_lea.vmem %s4, %s613
      // Predicated region
      $region37: #{unet_forward.12} parent=35 // pred_check
        %p615 = pneg %p127
      $region38: #{unet_forward.12} parent=35 // pred_check_branch
        %617 = sbr.rel (%p615) target = $region40
      $region39: #{unet_forward.12} parent=35 // pred_region
        _
      $region40: #{unet_forward.12} parent=35 // pred_fallthru
        _
    $region36: #{unet_forward.12} parent=5 // pred_fallthru
      _
    %p618 = scmp.le.s32.totalorder 2, %s10
    // Predicated region
    $region41: #{unet_forward.12} parent=5 // pred_check
      %p619 = pneg %p618
    $region42: #{unet_forward.12} parent=5 // pred_check_branch
      %621 = sbr.rel (%p619) target = $region44
    $region43: #{unet_forward.12} parent=5 // pred_region
      %s622 = ssub.s32 %s10, 2
      // Predicated region
      $region45: #{unet_forward.12} parent=43 // pred_check
        %p623 = pneg %p133
      $region46: #{unet_forward.12} parent=43 // pred_check_branch
        %625 = sbr.rel (%p623) target = $region48
      $region47: #{unet_forward.12} parent=43 // pred_region
        %p626 = scmp.lt.s32.totalorder %s16, 1
        %s627 = scalar_select %p626, %s16, 1
        %s628 = smul.addr %s627, 8
        %s629 = scalar_lea.vmem %s4, %s628
      $region48: #{unet_forward.12} parent=43 // pred_fallthru
        _
    $region44: #{unet_forward.12} parent=5 // pred_fallthru
      _
  $region6: #{unet_forward.12} parent=0 // loop_footer
    %s14 = sadd.s32 1, %s10
  $region7: #{unet_forward.12} parent=0 // loop_footer_branch
    %9 = sbr.rel target = $region3
  $region8: #{unet_forward.12} parent=0 // loop_exit
    _

// kernel: unet_forward.13
$region0: #{unet_forward.13}
  #allocation0 [shape = 'u32[]', space=smem, size = 0x4, offset = 0x4, fixed_abs, tag = 'smem constant byte address 0x4 - core index']
  #allocation1 [shape = 'u32[144,128]{1,0:T(1,128)}', space=vmem, size = 0x12000, scoped, tag = 'internal scratch']
  %s0 = inlined_call_operand.vmem [shape: f32[2,8,34], index: 0, kind: input, shape index: {}]
  %s1 = inlined_call_operand.vmem [shape: f32[2,8,34], index: 1, kind: input, shape index: {}]
  %s2 = inlined_call_operand.vmem [shape: f32[5,16,8], index: 2, kind: input, shape index: {}]
  %s3 = inlined_call_operand.vmem [shape: f32[16,1], index: 3, kind: input, shape index: {}]
  %s4 = inlined_call_operand.vmem [shape: f32[2,16,32], index: 4, kind: output, shape index: {}]
  %s5 = sld [smem:[#allocation0]]
  $region49: #{unet_forward.13} parent=0
    _
  %s7 = ssub.s32 1, %s5
  %s8 = scalar_select 0, %s7, %s5
  loop: start=0, step=1, limit=4
  $region2: #{unet_forward.13} parent=0 // loop_pre_header
    _
  $region3: #{unet_forward.13} parent=0 // loop_header
    %s10 = sphi 0, %s14
    %p11 = scmp.ge.s32.totalorder %s10, 4
    %s20 = sphi 0, %s22
    %s23 = sphi 0, %s20
    %s24 = sphi 0, %s23
    %s40 = sphi 0, %s24
    %s46 = sphi 0, %s48
    %s49 = sphi 0, %s46
    %s50 = sphi 0, %s49
    %s66 = sphi 0, %s50
    %s70 = sphi 0, %s70
    %s72 = sphi 0, %s70
    %s73 = sphi 0, %s72
    %s87 = sphi 0, %s73
    %s91 = sphi 0, %s91
    %s93 = sphi 0, %s91
    %s94 = sphi 0, %s93
    %s108 = sphi 0, %s94
    %s114 = sphi 0, %s116
    %s117 = sphi 0, %s114
    %s118 = sphi 0, %s117
    %s134 = sphi 0, %s118
  $region4: #{unet_forward.13} parent=0 // loop_header_branch
    %13 = sbr.rel (%p11) target = $region8
  $region5: #{unet_forward.13} parent=0 // loop_body
    %s15 = ssub.s32 %s10, 1
    %s16 = ssub.s32 %s10, 2
    %s17 = sadd.s32 %s10, 1
    %s18 = ssub.s32 %s10, %s17
    %p19 = scmp.eq.s32.totalorder %s18, 0
    %s21 = sadd.s32 %s20, 1
    %s22 = scalar_select %p19, %s20, %s21
    %p25 = pneg %p19
    %p26 = scmp.eq.s32.totalorder %s10, 1
    %p27 = por %p25, %p26
    %p28 = scmp.ne.s32.totalorder %s20, %s23
    %p29 = scmp.eq.s32.totalorder %s10, 0
    %p30 = por %p28, %p29
    %p31 = scmp.ne.s32.totalorder %s20, %s23
    %p32 = scmp.eq.s32.totalorder %s15, 1
    %p33 = por %p31, %p32
    %p34 = scmp.ne.s32.totalorder %s23, %s24
    %p35 = scmp.eq.s32.totalorder %s15, 0
    %p36 = por %p34, %p35
    %p37 = scmp.ne.s32.totalorder %s23, %s24
    %p38 = scmp.eq.s32.totalorder %s16, 1
    %p39 = por %p37, %p38
    %p41 = scmp.ne.s32.totalorder %s24, %s40
    %p42 = scmp.eq.s32.totalorder %s16, 0
    %p43 = por %p41, %p42
    %s44 = ssub.s32 %s10, %s17
    %p45 = scmp.eq.s32.totalorder %s44, 0
    %s47 = sadd.s32 %s46, 1
    %s48 = scalar_select %p45, %s46, %s47
    %p51 = pneg %p45
    %p52 = scmp.eq.s32.totalorder %s10, 1
    %p53 = por %p51, %p52
    %p54 = scmp.ne.s32.totalorder %s46, %s49
    %p55 = scmp.eq.s32.totalorder %s10, 0
    %p56 = por %p54, %p55
    %p57 = scmp.ne.s32.totalorder %s46, %s49
    %p58 = scmp.eq.s32.totalorder %s15, 1
    %p59 = por %p57, %p58
    %p60 = scmp.ne.s32.totalorder %s49, %s50
    %p61 = scmp.eq.s32.totalorder %s15, 0
    %p62 = por %p60, %p61
    %p63 = scmp.ne.s32.totalorder %s49, %s50
    %p64 = scmp.eq.s32.totalorder %s16, 1
    %p65 = por %p63, %p64
    %p67 = scmp.ne.s32.totalorder %s50, %s66
    %p68 = scmp.eq.s32.totalorder %s16, 0
    %p69 = por %p67, %p68
    %s71 = sadd.s32 %s70, 1
    %p74 = scmp.eq.s32.totalorder %s10, 1
    %p75 = scmp.ne.s32.totalorder %s70, %s72
    %p76 = scmp.eq.s32.totalorder %s10, 0
    %p77 = por %p75, %p76
    %p78 = scmp.ne.s32.totalorder %s70, %s72
    %p79 = scmp.eq.s32.totalorder %s15, 1
    %p80 = por %p78, %p79
    %p81 = scmp.ne.s32.totalorder %s72, %s73
    %p82 = scmp.eq.s32.totalorder %s15, 0
    %p83 = por %p81, %p82
    %p84 = scmp.ne.s32.totalorder %s72, %s73
    %p85 = scmp.eq.s32.totalorder %s16, 1
    %p86 = por %p84, %p85
    %p88 = scmp.ne.s32.totalorder %s73, %s87
    %p89 = scmp.eq.s32.totalorder %s16, 0
    %p90 = por %p88, %p89
    %s92 = sadd.s32 %s91, 1
    %p95 = scmp.eq.s32.totalorder %s10, 1
    %p96 = scmp.ne.s32.totalorder %s91, %s93
    %p97 = scmp.eq.s32.totalorder %s10, 0
    %p98 = por %p96, %p97
    %p99 = scmp.ne.s32.totalorder %s91, %s93
    %p100 = scmp.eq.s32.totalorder %s15, 1
    %p101 = por %p99, %p100
    %p102 = scmp.ne.s32.totalorder %s93, %s94
    %p103 = scmp.eq.s32.totalorder %s15, 0
    %p104 = por %p102, %p103
    %p105 = scmp.ne.s32.totalorder %s93, %s94
    %p106 = scmp.eq.s32.totalorder %s16, 1
    %p107 = por %p105, %p106
    %p109 = scmp.ne.s32.totalorder %s94, %s108
    %p110 = scmp.eq.s32.totalorder %s16, 0
    %p111 = por %p109, %p110
    %s112 = ssub.s32 %s10, %s17
    %p113 = scmp.eq.s32.totalorder %s112, 0
    %s115 = sadd.s32 %s114, 1
    %s116 = scalar_select %p113, %s114, %s115
    %p119 = pneg %p113
    %p120 = scmp.eq.s32.totalorder %s10, 1
    %p121 = por %p119, %p120
    %p122 = scmp.ne.s32.totalorder %s114, %s117
    %p123 = scmp.eq.s32.totalorder %s10, 0
    %p124 = por %p122, %p123
    %p125 = scmp.ne.s32.totalorder %s114, %s117
    %p126 = scmp.eq.s32.totalorder %s15, 1
    %p127 = por %p125, %p126
    %p128 = scmp.ne.s32.totalorder %s117, %s118
    %p129 = scmp.eq.s32.totalorder %s15, 0
    %p130 = por %p128, %p129
    %p131 = scmp.ne.s32.totalorder %s117, %s118
    %p132 = scmp.eq.s32.totalorder %s16, 1
    %p133 = por %p131, %p132
    %p135 = scmp.ne.s32.totalorder %s118, %s134
    %p136 = scmp.eq.s32.totalorder %s16, 0
    %p137 = por %p135, %p136
    %p138 = scmp.le.s32.totalorder 1, %s10
    %p139 = scmp.lt.s32.totalorder %s10, 3
    %p140 = pnand %p138, %p139
    %p141 = pneg %p140
    // Predicated region
    $region9: #{unet_forward.13} parent=5 // pred_check
      _
    $region10: #{unet_forward.13} parent=5 // pred_check_branch
      %143 = sbr.rel (%p140) target = $region12
    $region11: #{unet_forward.13} parent=5 // pred_region
      %s144 = ssub.s32 %s10, 1
      // Predicated region
      $region13: #{unet_forward.13} parent=11 // pred_check
        %p145 = pneg %p83
      $region14: #{unet_forward.13} parent=11 // pred_check_branch
        %147 = sbr.rel (%p145) target = $region16
      $region15: #{unet_forward.13} parent=11 // pred_region
        _
      $region16: #{unet_forward.13} parent=11 // pred_fallthru
        _
      // Predicated region
      $region17: #{unet_forward.13} parent=11 // pred_check
        %p148 = pneg %p104
      $region18: #{unet_forward.13} parent=11 // pred_check_branch
        %150 = sbr.rel (%p148) target = $region20
      $region19: #{unet_forward.13} parent=11 // pred_region
        _
      $region20: #{unet_forward.13} parent=11 // pred_fallthru
        _
    $region12: #{unet_forward.13} parent=5 // pred_fallthru
      _
    %p151 = scmp.lt.s32.totalorder %s10, 2
    // Predicated region
    $region21: #{unet_forward.13} parent=5 // pred_check
      %p152 = pneg %p151
    $region22: #{unet_forward.13} parent=5 // pred_check_branch
      %154 = sbr.rel (%p152) target = $region24
    $region23: #{unet_forward.13} parent=5 // pred_region
      // Predicated region
      $region25: #{unet_forward.13} parent=23 // pred_check
        %p155 = pneg %p30
      $region26: #{unet_forward.13} parent=23 // pred_check_branch
        %157 = sbr.rel (%p155) target = $region28
      $region27: #{unet_forward.13} parent=23 // pred_region
        %p158 = scmp.lt.s32.totalorder %s10, 1
        %s159 = scalar_select %p158, %s10, 1
        %s160 = smul.addr %s159, 8
        %s161 = scalar_lea.vmem %s0, %s160
      $region28: #{unet_forward.13} parent=23 // pred_fallthru
        _
      // Predicated region
      $region29: #{unet_forward.13} parent=23 // pred_check
        %p162 = pneg %p56
      $region30: #{unet_forward.13} parent=23 // pred_check_branch
        %164 = sbr.rel (%p162) target = $region32
      $region31: #{unet_forward.13} parent=23 // pred_region
        %p165 = scmp.lt.s32.totalorder %s10, 1
        %s166 = scalar_select %p165, %s10, 1
        %s167 = smul.addr %s166, 8
        %s168 = scalar_lea.vmem %s1, %s167
      $region32: #{unet_forward.13} parent=23 // pred_fallthru
        _
    $region24: #{unet_forward.13} parent=5 // pred_fallthru
      _
    %p169 = scmp.le.s32.totalorder 1, %s10
    %p170 = scmp.lt.s32.totalorder %s10, 3
    %p171 = pnand %p169, %p170
    %p172 = pneg %p171
    // Predicated region
    $region33: #{unet_forward.13} parent=5 // pred_check
      _
    $region34: #{unet_forward.13} parent=5 // pred_check_branch
      %174 = sbr.rel (%p171) target = $region36
    $region35: #{unet_forward.13} parent=5 // pred_region
      %s175 = ssub.s32 %s10, 1
      %p176 = scmp.lt.s32.totalorder %s15, 1
      %s177 = scalar_select %p176, %s15, 1
      %s178 = smul.addr %s177, 8
      %s179 = scalar_lea.vmem %s0, %s178
      %p180 = pneg %p36
      %p181 = pneg %p33
      %p182 = scmp.lt.s32.totalorder %s15, 1
      %s183 = scalar_select %p182, %s15, 1
      %s184 = smul.addr %s183, 8
      %s185 = scalar_lea.vmem %s1, %s184
      %p186 = pneg %p62
      %p187 = pneg %p59
      %p188 = pneg %p83
      %p189 = pneg %p80
      %p190 = pneg %p104
      %p191 = pneg %p101
      %p192 = pneg %p130
      %p193 = pneg %p127
      %p194 = scmp.lt.s32.totalorder %s15, 1
      %s195 = scalar_select %p194, %s15, 1
      %s196 = smul.addr %s195, 2
      %s197 = smul.addr %s196, 8
      %s198 = scalar_lea.vmem %s4, %s197
      %p199 = scmp.lt.s32.totalorder %s15, 1
      %s200 = scalar_select %p199, %s15, 1
      %s201 = smul.addr %s200, 8
      %s202 = scalar_lea.vmem %s0, %s201
      %p203 = scmp.lt.s32.totalorder %s15, 1
      %s204 = scalar_select %p203, %s15, 1
      %s205 = smul.addr %s204, 8
      %s206 = scalar_lea.vmem %s1, %s205
      %p207 = scmp.lt.s32.totalorder %s15, 1
      %s208 = scalar_select %p207, %s15, 1
      %s209 = smul.addr %s208, 2
      %s210 = smul.addr %s209, 8
      %s211 = scalar_lea.vmem %s4, %s210
      %v212 = vld [vmem:[%s202] sm:$0xff]
      %v213 = vld [vmem:[%s206] sm:$0xff]
      %v214 = vld [vmem:[%s2] sm:$0xff]
      %v215 = vld [vmem:[%s2 + $0x8] sm:$0xff]
      %s216 = scalar_lea.vmem %s2, 16
      %v217 = vld [vmem:[%s216] sm:$0xff]
      %v218 = vld [vmem:[%s216 + $0x8] sm:$0xff]
      %vm219 = vcmask 64512
      %v221 = vsel %vm219, %v217, 0
      %v224 = vsel %vm219, %v218, 0
      %226 = vmatprep.subr.mxu0 0.0
      %227 = vmatpush1.msra.mxu0 %v213
      %228 = vmatprep.subr.mxu0 0.0
      %229 = vmatpush1.msra.mxu0 0.0
      %230 = vmatprep.subr.mxu0 0.0
      %231 = vmatpush1.msra.mxu0 0.0
      %232 = vmatprep.subr.mxu0 0.0
      %233 = vmatpush1.msra.mxu0 0.0
      %234 = vmatprep.subr.mxu0 0.0
      %235 = vmatpush1.msra.mxu0 0.0
      %236 = vmatprep.subr.mxu0 0.0
      %237 = vmatpush1.msra.mxu0 0.0
      %238 = vmatprep.subr.mxu0 0.0
      %239 = vmatpush1.msra.mxu0 0.0
      %240 = vmatprep.subr.mxu0 0.0
      %241 = vmatpush1.msra.mxu0 0.0
      %242 = vmatprep.subr.mxu0 0.0
      %243 = vmatpush1.msra.mxu0 0.0
      %244 = vmatprep.subr.mxu0 0.0
      %245 = vmatpush1.msra.mxu0 0.0
      %246 = vmatprep.subr.mxu0 0.0
      %247 = vmatpush1.msra.mxu0 0.0
      %248 = vmatprep.subr.mxu0 0.0
      %249 = vmatpush1.msra.mxu0 0.0
      %250 = vmatprep.subr.mxu0 0.0
      %251 = vmatpush1.msra.mxu0 0.0
      %252 = vmatprep.subr.mxu0 0.0
      %253 = vmatpush1.msra.mxu0 0.0
      %254 = vmatprep.subr.mxu0 0.0
      %255 = vmatpush1.msra.mxu0 0.0
      %256 = vmatprep.subr.mxu0 0.0
      %257 = vmatpush1.msra.mxu0 0.0
      %258 = vmatprep.subr.mxu0 0.0
      %259 = vmatpush1.msra.mxu0 0.0
      %260 = vmatprep.subr.mxu0 0.0
      %261 = vmatpush1.msra.mxu0 0.0
      %262 = vmatprep.subr.mxu0 0.0
      %263 = vmatpush1.msra.mxu0 0.0
      %264 = vmatprep.subr.mxu0 0.0
      %265 = vmatpush1.msra.mxu0 0.0
      %266 = vmatprep.subr.mxu0 0.0
      %267 = vmatpush1.msra.mxu0 0.0
      %268 = vmatprep.subr.mxu0 0.0
      %269 = vmatpush1.msra.mxu0 0.0
      %270 = vmatprep.subr.mxu0 0.0
      %271 = vmatpush1.msra.mxu0 0.0
      %272 = vmatprep.subr.mxu0 0.0
      %273 = vmatpush1.msra.mxu0 0.0
      %274 = vmatprep.subr.mxu0 0.0
      %275 = vmatpush1.msra.mxu0 0.0
      %276 = vmatprep.subr.mxu0 0.0
      %277 = vmatpush1.msra.mxu0 0.0
      %278 = vmatprep.subr.mxu0 0.0
      %279 = vmatpush1.msra.mxu0 0.0
      %280 = vmatprep.subr.mxu0 0.0
      %281 = vmatpush1.msra.mxu0 0.0
      %282 = vmatprep.subr.mxu0 0.0
      %283 = vmatpush1.msra.mxu0 0.0
      %284 = vmatprep.subr.mxu0 0.0
      %285 = vmatpush1.msra.mxu0 0.0
      %286 = vmatprep.subr.mxu0 0.0
      %287 = vmatpush1.msra.mxu0 0.0
      %288 = vmatprep.subr.mxu0 0.0
      %289 = vmatpush1.msra.mxu0 0.0
      %290 = vmatprep.mubr.f32.mxu0 0.0
      %291 = vmatmul.mubr.f32.gmra.mrb[0].mxu0 %v221
      %v292 = vpop.f32.mrb[0].mxu0
      %v293 = vadd.f32 0.0, %v292
      %v294 = vpop.f32.mrb[0].mxu0
      %295 = vmatprep.mubr.f32.mxu0 0.0
      %296 = vmatmul.mubr.f32.gmra.mrb[0].mxu0 %v224
      %v297 = vpop.f32.mrb[0].mxu0
      %v298 = vadd.f32 0.0, %v297
      %v299 = vpop.f32.mrb[0].mxu0
      %300 = vdwg.mxu0
      %v302 = vsel %vm219, %v214, 0
      %v305 = vsel %vm219, %v215, 0
      %307 = vmatprep.subr.mxu0 0.0
      %308 = vmatpush1.msra.mxu0 %v212
      %309 = vmatprep.subr.mxu0 0.0
      %310 = vmatpush1.msra.mxu0 0.0
      %311 = vmatprep.subr.mxu0 0.0
      %312 = vmatpush1.msra.mxu0 0.0
      %313 = vmatprep.subr.mxu0 0.0
      %314 = vmatpush1.msra.mxu0 0.0
      %315 = vmatprep.subr.mxu0 0.0
      %316 = vmatpush1.msra.mxu0 0.0
      %317 = vmatprep.subr.mxu0 0.0
      %318 = vmatpush1.msra.mxu0 0.0
      %319 = vmatprep.subr.mxu0 0.0
      %320 = vmatpush1.msra.mxu0 0.0
      %321 = vmatprep.subr.mxu0 0.0
      %322 = vmatpush1.msra.mxu0 0.0
      %323 = vmatprep.subr.mxu0 0.0
      %324 = vmatpush1.msra.mxu0 0.0
      %325 = vmatprep.subr.mxu0 0.0
      %326 = vmatpush1.msra.mxu0 0.0
      %327 = vmatprep.subr.mxu0 0.0
      %328 = vmatpush1.msra.mxu0 0.0
      %329 = vmatprep.subr.mxu0 0.0
      %330 = vmatpush1.msra.mxu0 0.0
      %331 = vmatprep.subr.mxu0 0.0
      %332 = vmatpush1.msra.mxu0 0.0
      %333 = vmatprep.subr.mxu0 0.0
      %334 = vmatpush1.msra.mxu0 0.0
      %335 = vmatprep.subr.mxu0 0.0
      %336 = vmatpush1.msra.mxu0 0.0
      %337 = vmatprep.subr.mxu0 0.0
      %338 = vmatpush1.msra.mxu0 0.0
      %339 = vmatprep.subr.mxu0 0.0
      %340 = vmatpush1.msra.mxu0 0.0
      %341 = vmatprep.subr.mxu0 0.0
      %342 = vmatpush1.msra.mxu0 0.0
      %343 = vmatprep.subr.mxu0 0.0
      %344 = vmatpush1.msra.mxu0 0.0
      %345 = vmatprep.subr.mxu0 0.0
      %346 = vmatpush1.msra.mxu0 0.0
      %347 = vmatprep.subr.mxu0 0.0
      %348 = vmatpush1.msra.mxu0 0.0
      %349 = vmatprep.subr.mxu0 0.0
      %350 = vmatpush1.msra.mxu0 0.0
      %351 = vmatprep.subr.mxu0 0.0
      %352 = vmatpush1.msra.mxu0 0.0
      %353 = vmatprep.subr.mxu0 0.0
      %354 = vmatpush1.msra.mxu0 0.0
      %355 = vmatprep.subr.mxu0 0.0
      %356 = vmatpush1.msra.mxu0 0.0
      %357 = vmatprep.subr.mxu0 0.0
      %358 = vmatpush1.msra.mxu0 0.0
      %359 = vmatprep.subr.mxu0 0.0
      %360 = vmatpush1.msra.mxu0 0.0
      %361 = vmatprep.subr.mxu0 0.0
      %362 = vmatpush1.msra.mxu0 0.0
      %363 = vmatprep.subr.mxu0 0.0
      %364 = vmatpush1.msra.mxu0 0.0
      %365 = vmatprep.subr.mxu0 0.0
      %366 = vmatpush1.msra.mxu0 0.0
      %367 = vmatprep.subr.mxu0 0.0
      %368 = vmatpush1.msra.mxu0 0.0
      %369 = vmatprep.subr.mxu0 0.0
      %370 = vmatpush1.msra.mxu0 0.0
      %371 = vmatprep.mubr.f32.mxu0 0.0
      %372 = vmatmul.mubr.f32.gmra.mrb[0].mxu0 %v302
      %v373 = vpop.f32.mrb[0].mxu0
      %v374 = vadd.f32 %v293, %v373
      %v375 = vpop.f32.mrb[0].mxu0
      %376 = vmatprep.mubr.f32.mxu0 0.0
      %377 = vmatmul.mubr.f32.gmra.mrb[0].mxu0 %v305
      %v378 = vpop.f32.mrb[0].mxu0
      %v379 = vadd.f32 %v298, %v378
      %v380 = vpop.f32.mrb[0].mxu0
      %381 = vdwg.mxu0
      %s382 = scalar_lea.vmem %s2, 32
      %v383 = vld [vmem:[%s382] sm:$0xff]
      %v384 = vld [vmem:[%s382 + $0x8] sm:$0xff]
      %386 = vrot.lane.b32.xlu0 %v212, 127
      %v387 = vpop.permute.xlu0 %386
      %v390 = vsel %vm219, %v383, 0
      %v393 = vsel %vm219, %v384, 0
      %395 = vmatprep.subr.mxu0 0.0
      %396 = vmatpush1.msra.mxu0 %v387
      %397 = vmatprep.subr.mxu0 0.0
      %398 = vmatpush1.msra.mxu0 0.0
      %399 = vmatprep.subr.mxu0 0.0
      %400 = vmatpush1.msra.mxu0 0.0
      %401 = vmatprep.subr.mxu0 0.0
      %402 = vmatpush1.msra.mxu0 0.0
      %403 = vmatprep.subr.mxu0 0.0
      %404 = vmatpush1.msra.mxu0 0.0
      %405 = vmatprep.subr.mxu0 0.0
      %406 = vmatpush1.msra.mxu0 0.0
      %407 = vmatprep.subr.mxu0 0.0
      %408 = vmatpush1.msra.mxu0 0.0
      %409 = vmatprep.subr.mxu0 0.0
      %410 = vmatpush1.msra.mxu0 0.0
      %411 = vmatprep.subr.mxu0 0.0
      %412 = vmatpush1.msra.mxu0 0.0
      %413 = vmatprep.subr.mxu0 0.0
      %414 = vmatpush1.msra.mxu0 0.0
      %415 = vmatprep.subr.mxu0 0.0
      %416 = vmatpush1.msra.mxu0 0.0
      %417 = vmatprep.subr.mxu0 0.0
      %418 = vmatpush1.msra.mxu0 0.0
      %419 = vmatprep.subr.mxu0 0.0
      %420 = vmatpush1.msra.mxu0 0.0
      %421 = vmatprep.subr.mxu0 0.0
      %422 = vmatpush1.msra.mxu0 0.0
      %423 = vmatprep.subr.mxu0 0.0
      %424 = vmatpush1.msra.mxu0 0.0
      %425 = vmatprep.subr.mxu0 0.0
      %426 = vmatpush1.msra.mxu0 0.0
      %427 = vmatprep.subr.mxu0 0.0
      %428 = vmatpush1.msra.mxu0 0.0
      %429 = vmatprep.subr.mxu0 0.0
      %430 = vmatpush1.msra.mxu0 0.0
      %431 = vmatprep.subr.mxu0 0.0
      %432 = vmatpush1.msra.mxu0 0.0
      %433 = vmatprep.subr.mxu0 0.0
      %434 = vmatpush1.msra.mxu0 0.0
      %435 = vmatprep.subr.mxu0 0.0
      %436 = vmatpush1.msra.mxu0 0.0
      %437 = vmatprep.subr.mxu0 0.0
      %438 = vmatpush1.msra.mxu0 0.0
      %439 = vmatprep.subr.mxu0 0.0
      %440 = vmatpush1.msra.mxu0 0.0
      %441 = vmatprep.subr.mxu0 0.0
      %442 = vmatpush1.msra.mxu0 0.0
      %443 = vmatprep.subr.mxu0 0.0
      %444 = vmatpush1.msra.mxu0 0.0
      %445 = vmatprep.subr.mxu0 0.0
      %446 = vmatpush1.msra.mxu0 0.0
      %447 = vmatprep.subr.mxu0 0.0
      %448 = vmatpush1.msra.mxu0 0.0
      %449 = vmatprep.subr.mxu0 0.0
      %450 = vmatpush1.msra.mxu0 0.0
      %451 = vmatprep.subr.mxu0 0.0
      %452 = vmatpush1.msra.mxu0 0.0
      %453 = vmatprep.subr.mxu0 0.0
      %454 = vmatpush1.msra.mxu0 0.0
      %455 = vmatprep.subr.mxu0 0.0
      %456 = vmatpush1.msra.mxu0 0.0
      %457 = vmatprep.subr.mxu0 0.0
      %458 = vmatpush1.msra.mxu0 0.0
      %459 = vmatprep.mubr.f32.mxu0 0.0
      %460 = vmatmul.mubr.f32.gmra.mrb[0].mxu0 %v390
      %v461 = vpop.f32.mrb[0].mxu0
      %v462 = vadd.f32 0.0, %v461
      %v463 = vpop.f32.mrb[0].mxu0
      %464 = vmatprep.mubr.f32.mxu0 0.0
      %465 = vmatmul.mubr.f32.gmra.mrb[0].mxu0 %v393
      %v466 = vpop.f32.mrb[0].mxu0
      %v467 = vadd.f32 0.0, %v466
      %v468 = vpop.f32.mrb[0].mxu0
      %469 = vdwg.mxu0
      %v470 = vadd.f32 %v374, %v462
      %v471 = vadd.f32 %v379, %v467
      %s472 = scalar_lea.vmem %s2, 48
      %v473 = vld [vmem:[%s472] sm:$0xff]
      %v474 = vld [vmem:[%s472 + $0x8] sm:$0xff]
      %476 = vrot.lane.b32.xlu0 %v213, 127
      %v477 = vpop.permute.xlu0 %476
      %v480 = vsel %vm219, %v473, 0
      %v483 = vsel %vm219, %v474, 0
      %485 = vmatprep.subr.mxu0 0.0
      %486 = vmatpush1.msra.mxu0 %v477
      %487 = vmatprep.subr.mxu0 0.0
      %488 = vmatpush1.msra.mxu0 0.0
      %489 = vmatprep.subr.mxu0 0.0
      %490 = vmatpush1.msra.mxu0 0.0
      %491 = vmatprep.subr.mxu0 0.0
      %492 = vmatpush1.msra.mxu0 0.0
      %493 = vmatprep.subr.mxu0 0.0
      %494 = vmatpush1.msra.mxu0 0.0
      %495 = vmatprep.subr.mxu0 0.0
      %496 = vmatpush1.msra.mxu0 0.0
      %497 = vmatprep.subr.mxu0 0.0
      %498 = vmatpush1.msra.mxu0 0.0
      %499 = vmatprep.subr.mxu0 0.0
      %500 = vmatpush1.msra.mxu0 0.0
      %501 = vmatprep.subr.mxu0 0.0
      %502 = vmatpush1.msra.mxu0 0.0
      %503 = vmatprep.subr.mxu0 0.0
      %504 = vmatpush1.msra.mxu0 0.0
      %505 = vmatprep.subr.mxu0 0.0
      %506 = vmatpush1.msra.mxu0 0.0
      %507 = vmatprep.subr.mxu0 0.0
      %508 = vmatpush1.msra.mxu0 0.0
      %509 = vmatprep.subr.mxu0 0.0
      %510 = vmatpush1.msra.mxu0 0.0
      %511 = vmatprep.subr.mxu0 0.0
      %512 = vmatpush1.msra.mxu0 0.0
      %513 = vmatprep.subr.mxu0 0.0
      %514 = vmatpush1.msra.mxu0 0.0
      %515 = vmatprep.subr.mxu0 0.0
      %516 = vmatpush1.msra.mxu0 0.0
      %517 = vmatprep.subr.mxu0 0.0
      %518 = vmatpush1.msra.mxu0 0.0
      %519 = vmatprep.subr.mxu0 0.0
      %520 = vmatpush1.msra.mxu0 0.0
      %521 = vmatprep.subr.mxu0 0.0
      %522 = vmatpush1.msra.mxu0 0.0
      %523 = vmatprep.subr.mxu0 0.0
      %524 = vmatpush1.msra.mxu0 0.0
      %525 = vmatprep.subr.mxu0 0.0
      %526 = vmatpush1.msra.mxu0 0.0
      %527 = vmatprep.subr.mxu0 0.0
      %528 = vmatpush1.msra.mxu0 0.0
      %529 = vmatprep.subr.mxu0 0.0
      %530 = vmatpush1.msra.mxu0 0.0
      %531 = vmatprep.subr.mxu0 0.0
      %532 = vmatpush1.msra.mxu0 0.0
      %533 = vmatprep.subr.mxu0 0.0
      %534 = vmatpush1.msra.mxu0 0.0
      %535 = vmatprep.subr.mxu0 0.0
      %536 = vmatpush1.msra.mxu0 0.0
      %537 = vmatprep.subr.mxu0 0.0
      %538 = vmatpush1.msra.mxu0 0.0
      %539 = vmatprep.subr.mxu0 0.0
      %540 = vmatpush1.msra.mxu0 0.0
      %541 = vmatprep.subr.mxu0 0.0
      %542 = vmatpush1.msra.mxu0 0.0
      %543 = vmatprep.subr.mxu0 0.0
      %544 = vmatpush1.msra.mxu0 0.0
      %545 = vmatprep.subr.mxu0 0.0
      %546 = vmatpush1.msra.mxu0 0.0
      %547 = vmatprep.subr.mxu0 0.0
      %548 = vmatpush1.msra.mxu0 0.0
      %549 = vmatprep.mubr.f32.mxu0 0.0
      %550 = vmatmul.mubr.f32.gmra.mrb[0].mxu0 %v480
      %v551 = vpop.f32.mrb[0].mxu0
      %v552 = vadd.f32 0.0, %v551
      %v553 = vpop.f32.mrb[0].mxu0
      %554 = vmatprep.mubr.f32.mxu0 0.0
      %555 = vmatmul.mubr.f32.gmra.mrb[0].mxu0 %v483
      %v556 = vpop.f32.mrb[0].mxu0
      %v557 = vadd.f32 0.0, %v556
      %v558 = vpop.f32.mrb[0].mxu0
      %559 = vdwg.mxu0
      %v560 = vadd.f32 %v470, %v552
      %v561 = vadd.f32 %v471, %v557
      %s562 = scalar_lea.vmem %s2, 64
      %v563 = vld [vmem:[%s562] sm:$0xff]
      %v564 = vld [vmem:[%s562 + $0x8] sm:$0xff]
      %565 = vrot.lane.b32.xlu0 %v212, 126
      %v566 = vpop.permute.xlu0 %565
      %v569 = vsel %vm219, %v563, 0
      %v572 = vsel %vm219, %v564, 0
      %574 = vmatprep.subr.mxu0 0.0
      %575 = vmatpush1.msra.mxu0 %v566
      %576 = vmatprep.subr.mxu0 0.0
      %577 = vmatpush1.msra.mxu0 0.0
      %578 = vmatprep.subr.mxu0 0.0
      %579 = vmatpush1.msra.mxu0 0.0
      %580 = vmatprep.subr.mxu0 0.0
      %581 = vmatpush1.msra.mxu0 0.0
      %582 = vmatprep.subr.mxu0 0.0
      %583 = vmatpush1.msra.mxu0 0.0
      %584 = vmatprep.subr.mxu0 0.0
      %585 = vmatpush1.msra.mxu0 0.0
      %586 = vmatprep.subr.mxu0 0.0
      %587 = vmatpush1.msra.mxu0 0.0
      %588 = vmatprep.subr.mxu0 0.0
      %589 = vmatpush1.msra.mxu0 0.0
      %590 = vmatprep.subr.mxu0 0.0
      %591 = vmatpush1.msra.mxu0 0.0
      %592 = vmatprep.subr.mxu0 0.0
      %593 = vmatpush1.msra.mxu0 0.0
      %594 = vmatprep.subr.mxu0 0.0
      %595 = vmatpush1.msra.mxu0 0.0
      %596 = vmatprep.subr.mxu0 0.0
      %597 = vmatpush1.msra.mxu0 0.0
      %598 = vmatprep.subr.mxu0 0.0
      %599 = vmatpush1.msra.mxu0 0.0
      %600 = vmatprep.subr.mxu0 0.0
      %601 = vmatpush1.msra.mxu0 0.0
      %602 = vmatprep.subr.mxu0 0.0
      %603 = vmatpush1.msra.mxu0 0.0
      %604 = vmatprep.subr.mxu0 0.0
      %605 = vmatpush1.msra.mxu0 0.0
      %606 = vmatprep.subr.mxu0 0.0
      %607 = vmatpush1.msra.mxu0 0.0
      %608 = vmatprep.subr.mxu0 0.0
      %609 = vmatpush1.msra.mxu0 0.0
      %610 = vmatprep.subr.mxu0 0.0
      %611 = vmatpush1.msra.mxu0 0.0
      %612 = vmatprep.subr.mxu0 0.0
      %613 = vmatpush1.msra.mxu0 0.0
      %614 = vmatprep.subr.mxu0 0.0
      %615 = vmatpush1.msra.mxu0 0.0
      %616 = vmatprep.subr.mxu0 0.0
      %617 = vmatpush1.msra.mxu0 0.0
      %618 = vmatprep.subr.mxu0 0.0
      %619 = vmatpush1.msra.mxu0 0.0
      %620 = vmatprep.subr.mxu0 0.0
      %621 = vmatpush1.msra.mxu0 0.0
      %622 = vmatprep.subr.mxu0 0.0
      %623 = vmatpush1.msra.mxu0 0.0
      %624 = vmatprep.subr.mxu0 0.0
      %625 = vmatpush1.msra.mxu0 0.0
      %626 = vmatprep.subr.mxu0 0.0
      %627 = vmatpush1.msra.mxu0 0.0
      %628 = vmatprep.subr.mxu0 0.0
      %629 = vmatpush1.msra.mxu0 0.0
      %630 = vmatprep.subr.mxu0 0.0
      %631 = vmatpush1.msra.mxu0 0.0
      %632 = vmatprep.subr.mxu0 0.0
      %633 = vmatpush1.msra.mxu0 0.0
      %634 = vmatprep.subr.mxu0 0.0
      %635 = vmatpush1.msra.mxu0 0.0
      %636 = vmatprep.subr.mxu0 0.0
      %637 = vmatpush1.msra.mxu0 0.0
      %638 = vmatprep.mubr.f32.mxu0 0.0
      %639 = vmatmul.mubr.f32.gmra.mrb[0].mxu0 %v569
      %v640 = vpop.f32.mrb[0].mxu0
      %v641 = vadd.f32 0.0, %v640
      %v642 = vpop.f32.mrb[0].mxu0
      %643 = vmatprep.mubr.f32.mxu0 0.0
      %644 = vmatmul.mubr.f32.gmra.mrb[0].mxu0 %v572
      %v645 = vpop.f32.mrb[0].mxu0
      %v646 = vadd.f32 0.0, %v645
      %v647 = vpop.f32.mrb[0].mxu0
      %648 = vdwg.mxu0
      %v649 = vadd.f32 %v560, %v641
      %v650 = vadd.f32 %v561, %v646
      %v651 = vld [vmem:[%s3] sm:$0xff]
      %v652 = vld [vmem:[%s3 + $0x8] sm:$0xff]
      %654 = vset.pattern.permute.xlu0 0
      %655 = vperm.xlu0 %654, %v651
      %v656 = vpop.permute.xlu0 %655
      %659 = vset.pattern.permute.xlu0 0
      %660 = vperm.xlu0 %659, %v652
      %v661 = vpop.permute.xlu0 %660
      %v663 = vadd.f32 %v649, %v656
      %v664 = vadd.f32 %v650, %v661
      %v665 = vmax.f32 %v663, 0.0
      %v666 = vmax.f32 %v664, 0.0
      %vm667 = vcmask 261120
      %668 = vst.msk [vmem:[%s211] sm:$0xff] %vm667, %v665
      %669 = vst.msk [vmem:[%s211 + $0x8] sm:$0xff] %vm667, %v666
      %p670 = scmp.lt.s32.totalorder %s15, 1
      %s671 = scalar_select %p670, %s15, 1
      %s672 = smul.addr %s671, 2
      %s673 = smul.addr %s672, 8
      %s674 = scalar_lea.vmem %s4, %s673
      // Predicated region
      $region37: #{unet_forward.13} parent=35 // pred_check
        %p675 = pneg %p127
      $region38: #{unet_forward.13} parent=35 // pred_check_branch
        %677 = sbr.rel (%p675) target = $region40
      $region39: #{unet_forward.13} parent=35 // pred_region
        _
      $region40: #{unet_forward.13} parent=35 // pred_fallthru
        _
    $region36: #{unet_forward.13} parent=5 // pred_fallthru
      _
    %p678 = scmp.le.s32.totalorder 2, %s10
    // Predicated region
    $region41: #{unet_forward.13} parent=5 // pred_check
      %p679 = pneg %p678
    $region42: #{unet_forward.13} parent=5 // pred_check_branch
      %681 = sbr.rel (%p679) target = $region44
    $region43: #{unet_forward.13} parent=5 // pred_region
      %s682 = ssub.s32 %s10, 2
      // Predicated region
      $region45: #{unet_forward.13} parent=43 // pred_check
        %p683 = pneg %p133
      $region46: #{unet_forward.13} parent=43 // pred_check_branch
        %685 = sbr.rel (%p683) target = $region48
      $region47: #{unet_forward.13} parent=43 // pred_region
        %p686 = scmp.lt.s32.totalorder %s16, 1
        %s687 = scalar_select %p686, %s16, 1
        %s688 = smul.addr %s687, 2
        %s689 = smul.addr %s688, 8
        %s690 = scalar_lea.vmem %s4, %s689
      $region48: #{unet_forward.13} parent=43 // pred_fallthru
        _
    $region44: #{unet_forward.13} parent=5 // pred_fallthru
      _
  $region6: #{unet_forward.13} parent=0 // loop_footer
    %s14 = sadd.s32 1, %s10
  $region7: #{unet_forward.13} parent=0 // loop_footer_branch
    %9 = sbr.rel target = $region3
  $region8: #{unet_forward.13} parent=0 // loop_exit
    _

// kernel: unet_forward.14
$region0: #{unet_forward.14}
  #allocation0 [shape = 'u32[]', space=smem, size = 0x4, offset = 0x4, fixed_abs, tag = 'smem constant byte address 0x4 - core index']
  #allocation1 [shape = 'u32[144,128]{1,0:T(1,128)}', space=vmem, size = 0x12000, scoped, tag = 'internal scratch']
  %s0 = inlined_call_operand.vmem [shape: f32[2,16,18], index: 0, kind: input, shape index: {}]
  %s1 = inlined_call_operand.vmem [shape: f32[2,16,18], index: 1, kind: input, shape index: {}]
  %s2 = inlined_call_operand.vmem [shape: f32[5,16,16], index: 2, kind: input, shape index: {}]
  %s3 = inlined_call_operand.vmem [shape: f32[16,1], index: 3, kind: input, shape index: {}]
  %s4 = inlined_call_operand.vmem [shape: f32[2,16,16], index: 4, kind: output, shape index: {}]
  %s5 = sld [smem:[#allocation0]]
  $region49: #{unet_forward.14} parent=0
    _
  %s7 = ssub.s32 1, %s5
  %s8 = scalar_select 0, %s7, %s5
  loop: start=0, step=1, limit=4
  $region2: #{unet_forward.14} parent=0 // loop_pre_header
    _
  $region3: #{unet_forward.14} parent=0 // loop_header
    %s10 = sphi 0, %s14
    %p11 = scmp.ge.s32.totalorder %s10, 4
    %s20 = sphi 0, %s22
    %s23 = sphi 0, %s20
    %s24 = sphi 0, %s23
    %s40 = sphi 0, %s24
    %s46 = sphi 0, %s48
    %s49 = sphi 0, %s46
    %s50 = sphi 0, %s49
    %s66 = sphi 0, %s50
    %s70 = sphi 0, %s70
    %s72 = sphi 0, %s70
    %s73 = sphi 0, %s72
    %s87 = sphi 0, %s73
    %s91 = sphi 0, %s91
    %s93 = sphi 0, %s91
    %s94 = sphi 0, %s93
    %s108 = sphi 0, %s94
    %s114 = sphi 0, %s116
    %s117 = sphi 0, %s114
    %s118 = sphi 0, %s117
    %s134 = sphi 0, %s118
  $region4: #{unet_forward.14} parent=0 // loop_header_branch
    %13 = sbr.rel (%p11) target = $region8
  $region5: #{unet_forward.14} parent=0 // loop_body
    %s15 = ssub.s32 %s10, 1
    %s16 = ssub.s32 %s10, 2
    %s17 = sadd.s32 %s10, 1
    %s18 = ssub.s32 %s10, %s17
    %p19 = scmp.eq.s32.totalorder %s18, 0
    %s21 = sadd.s32 %s20, 1
    %s22 = scalar_select %p19, %s20, %s21
    %p25 = pneg %p19
    %p26 = scmp.eq.s32.totalorder %s10, 1
    %p27 = por %p25, %p26
    %p28 = scmp.ne.s32.totalorder %s20, %s23
    %p29 = scmp.eq.s32.totalorder %s10, 0
    %p30 = por %p28, %p29
    %p31 = scmp.ne.s32.totalorder %s20, %s23
    %p32 = scmp.eq.s32.totalorder %s15, 1
    %p33 = por %p31, %p32
    %p34 = scmp.ne.s32.totalorder %s23, %s24
    %p35 = scmp.eq.s32.totalorder %s15, 0
    %p36 = por %p34, %p35
    %p37 = scmp.ne.s32.totalorder %s23, %s24
    %p38 = scmp.eq.s32.totalorder %s16, 1
    %p39 = por %p37, %p38
    %p41 = scmp.ne.s32.totalorder %s24, %s40
    %p42 = scmp.eq.s32.totalorder %s16, 0
    %p43 = por %p41, %p42
    %s44 = ssub.s32 %s10, %s17
    %p45 = scmp.eq.s32.totalorder %s44, 0
    %s47 = sadd.s32 %s46, 1
    %s48 = scalar_select %p45, %s46, %s47
    %p51 = pneg %p45
    %p52 = scmp.eq.s32.totalorder %s10, 1
    %p53 = por %p51, %p52
    %p54 = scmp.ne.s32.totalorder %s46, %s49
    %p55 = scmp.eq.s32.totalorder %s10, 0
    %p56 = por %p54, %p55
    %p57 = scmp.ne.s32.totalorder %s46, %s49
    %p58 = scmp.eq.s32.totalorder %s15, 1
    %p59 = por %p57, %p58
    %p60 = scmp.ne.s32.totalorder %s49, %s50
    %p61 = scmp.eq.s32.totalorder %s15, 0
    %p62 = por %p60, %p61
    %p63 = scmp.ne.s32.totalorder %s49, %s50
    %p64 = scmp.eq.s32.totalorder %s16, 1
    %p65 = por %p63, %p64
    %p67 = scmp.ne.s32.totalorder %s50, %s66
    %p68 = scmp.eq.s32.totalorder %s16, 0
    %p69 = por %p67, %p68
    %s71 = sadd.s32 %s70, 1
    %p74 = scmp.eq.s32.totalorder %s10, 1
    %p75 = scmp.ne.s32.totalorder %s70, %s72
    %p76 = scmp.eq.s32.totalorder %s10, 0
    %p77 = por %p75, %p76
    %p78 = scmp.ne.s32.totalorder %s70, %s72
    %p79 = scmp.eq.s32.totalorder %s15, 1
    %p80 = por %p78, %p79
    %p81 = scmp.ne.s32.totalorder %s72, %s73
    %p82 = scmp.eq.s32.totalorder %s15, 0
    %p83 = por %p81, %p82
    %p84 = scmp.ne.s32.totalorder %s72, %s73
    %p85 = scmp.eq.s32.totalorder %s16, 1
    %p86 = por %p84, %p85
    %p88 = scmp.ne.s32.totalorder %s73, %s87
    %p89 = scmp.eq.s32.totalorder %s16, 0
    %p90 = por %p88, %p89
    %s92 = sadd.s32 %s91, 1
    %p95 = scmp.eq.s32.totalorder %s10, 1
    %p96 = scmp.ne.s32.totalorder %s91, %s93
    %p97 = scmp.eq.s32.totalorder %s10, 0
    %p98 = por %p96, %p97
    %p99 = scmp.ne.s32.totalorder %s91, %s93
    %p100 = scmp.eq.s32.totalorder %s15, 1
    %p101 = por %p99, %p100
    %p102 = scmp.ne.s32.totalorder %s93, %s94
    %p103 = scmp.eq.s32.totalorder %s15, 0
    %p104 = por %p102, %p103
    %p105 = scmp.ne.s32.totalorder %s93, %s94
    %p106 = scmp.eq.s32.totalorder %s16, 1
    %p107 = por %p105, %p106
    %p109 = scmp.ne.s32.totalorder %s94, %s108
    %p110 = scmp.eq.s32.totalorder %s16, 0
    %p111 = por %p109, %p110
    %s112 = ssub.s32 %s10, %s17
    %p113 = scmp.eq.s32.totalorder %s112, 0
    %s115 = sadd.s32 %s114, 1
    %s116 = scalar_select %p113, %s114, %s115
    %p119 = pneg %p113
    %p120 = scmp.eq.s32.totalorder %s10, 1
    %p121 = por %p119, %p120
    %p122 = scmp.ne.s32.totalorder %s114, %s117
    %p123 = scmp.eq.s32.totalorder %s10, 0
    %p124 = por %p122, %p123
    %p125 = scmp.ne.s32.totalorder %s114, %s117
    %p126 = scmp.eq.s32.totalorder %s15, 1
    %p127 = por %p125, %p126
    %p128 = scmp.ne.s32.totalorder %s117, %s118
    %p129 = scmp.eq.s32.totalorder %s15, 0
    %p130 = por %p128, %p129
    %p131 = scmp.ne.s32.totalorder %s117, %s118
    %p132 = scmp.eq.s32.totalorder %s16, 1
    %p133 = por %p131, %p132
    %p135 = scmp.ne.s32.totalorder %s118, %s134
    %p136 = scmp.eq.s32.totalorder %s16, 0
    %p137 = por %p135, %p136
    %p138 = scmp.le.s32.totalorder 1, %s10
    %p139 = scmp.lt.s32.totalorder %s10, 3
    %p140 = pnand %p138, %p139
    %p141 = pneg %p140
    // Predicated region
    $region9: #{unet_forward.14} parent=5 // pred_check
      _
    $region10: #{unet_forward.14} parent=5 // pred_check_branch
      %143 = sbr.rel (%p140) target = $region12
    $region11: #{unet_forward.14} parent=5 // pred_region
      %s144 = ssub.s32 %s10, 1
      // Predicated region
      $region13: #{unet_forward.14} parent=11 // pred_check
        %p145 = pneg %p83
      $region14: #{unet_forward.14} parent=11 // pred_check_branch
        %147 = sbr.rel (%p145) target = $region16
      $region15: #{unet_forward.14} parent=11 // pred_region
        _
      $region16: #{unet_forward.14} parent=11 // pred_fallthru
        _
      // Predicated region
      $region17: #{unet_forward.14} parent=11 // pred_check
        %p148 = pneg %p104
      $region18: #{unet_forward.14} parent=11 // pred_check_branch
        %150 = sbr.rel (%p148) target = $region20
      $region19: #{unet_forward.14} parent=11 // pred_region
        _
      $region20: #{unet_forward.14} parent=11 // pred_fallthru
        _
    $region12: #{unet_forward.14} parent=5 // pred_fallthru
      _
    %p151 = scmp.lt.s32.totalorder %s10, 2
    // Predicated region
    $region21: #{unet_forward.14} parent=5 // pred_check
      %p152 = pneg %p151
    $region22: #{unet_forward.14} parent=5 // pred_check_branch
      %154 = sbr.rel (%p152) target = $region24
    $region23: #{unet_forward.14} parent=5 // pred_region
      // Predicated region
      $region25: #{unet_forward.14} parent=23 // pred_check
        %p155 = pneg %p30
      $region26: #{unet_forward.14} parent=23 // pred_check_branch
        %157 = sbr.rel (%p155) target = $region28
      $region27: #{unet_forward.14} parent=23 // pred_region
        %p158 = scmp.lt.s32.totalorder %s10, 1
        %s159 = scalar_select %p158, %s10, 1
        %s160 = smul.addr %s159, 2
        %s161 = smul.addr %s160, 8
        %s162 = scalar_lea.vmem %s0, %s161
      $region28: #{unet_forward.14} parent=23 // pred_fallthru
        _
      // Predicated region
      $region29: #{unet_forward.14} parent=23 // pred_check
        %p163 = pneg %p56
      $region30: #{unet_forward.14} parent=23 // pred_check_branch
        %165 = sbr.rel (%p163) target = $region32
      $region31: #{unet_forward.14} parent=23 // pred_region
        %p166 = scmp.lt.s32.totalorder %s10, 1
        %s167 = scalar_select %p166, %s10, 1
        %s168 = smul.addr %s167, 2
        %s169 = smul.addr %s168, 8
        %s170 = scalar_lea.vmem %s1, %s169
      $region32: #{unet_forward.14} parent=23 // pred_fallthru
        _
    $region24: #{unet_forward.14} parent=5 // pred_fallthru
      _
    %p171 = scmp.le.s32.totalorder 1, %s10
    %p172 = scmp.lt.s32.totalorder %s10, 3
    %p173 = pnand %p171, %p172
    %p174 = pneg %p173
    // Predicated region
    $region33: #{unet_forward.14} parent=5 // pred_check
      _
    $region34: #{unet_forward.14} parent=5 // pred_check_branch
      %176 = sbr.rel (%p173) target = $region36
    $region35: #{unet_forward.14} parent=5 // pred_region
      %s177 = ssub.s32 %s10, 1
      %p178 = scmp.lt.s32.totalorder %s15, 1
      %s179 = scalar_select %p178, %s15, 1
      %s180 = smul.addr %s179, 2
      %s181 = smul.addr %s180, 8
      %s182 = scalar_lea.vmem %s0, %s181
      %p183 = pneg %p36
      %p184 = pneg %p33
      %p185 = scmp.lt.s32.totalorder %s15, 1
      %s186 = scalar_select %p185, %s15, 1
      %s187 = smul.addr %s186, 2
      %s188 = smul.addr %s187, 8
      %s189 = scalar_lea.vmem %s1, %s188
      %p190 = pneg %p62
      %p191 = pneg %p59
      %p192 = pneg %p83
      %p193 = pneg %p80
      %p194 = pneg %p104
      %p195 = pneg %p101
      %p196 = pneg %p130
      %p197 = pneg %p127
      %p198 = scmp.lt.s32.totalorder %s15, 1
      %s199 = scalar_select %p198, %s15, 1
      %s200 = smul.addr %s199, 2
      %s201 = smul.addr %s200, 8
      %s202 = scalar_lea.vmem %s4, %s201
      %p203 = scmp.lt.s32.totalorder %s15, 1
      %s204 = scalar_select %p203, %s15, 1
      %s205 = smul.addr %s204, 2
      %s206 = smul.addr %s205, 8
      %s207 = scalar_lea.vmem %s0, %s206
      %p208 = scmp.lt.s32.totalorder %s15, 1
      %s209 = scalar_select %p208, %s15, 1
      %s210 = smul.addr %s209, 2
      %s211 = smul.addr %s210, 8
      %s212 = scalar_lea.vmem %s1, %s211
      %p213 = scmp.lt.s32.totalorder %s15, 1
      %s214 = scalar_select %p213, %s15, 1
      %s215 = smul.addr %s214, 2
      %s216 = smul.addr %s215, 8
      %s217 = scalar_lea.vmem %s4, %s216
      %v218 = vld [vmem:[%s207] sm:$0xff]
      %v219 = vld [vmem:[%s207 + $0x8] sm:$0xff]
      %v220 = vld [vmem:[%s212] sm:$0xff]
      %v221 = vld [vmem:[%s212 + $0x8] sm:$0xff]
      %v222 = vld [vmem:[%s2] sm:$0xff]
      %v223 = vld [vmem:[%s2 + $0x8] sm:$0xff]
      %s224 = scalar_lea.vmem %s2, 16
      %v225 = vld [vmem:[%s224] sm:$0xff]
      %v226 = vld [vmem:[%s224 + $0x8] sm:$0xff]
      %vm227 = vcmask 130048
      %v229 = vsel %vm227, %v225, 0
      %v232 = vsel %vm227, %v226, 0
      %234 = vmatprep.subr.mxu0 0.0
      %235 = vmatpush1.msra.mxu0 %v220
      %236 = vmatprep.subr.mxu0 0.0
      %237 = vmatpush1.msra.mxu0 %v221
      %238 = vmatprep.subr.mxu0 0.0
      %239 = vmatpush1.msra.mxu0 0.0
      %240 = vmatprep.subr.mxu0 0.0
      %241 = vmatpush1.msra.mxu0 0.0
      %242 = vmatprep.subr.mxu0 0.0
      %243 = vmatpush1.msra.mxu0 0.0
      %244 = vmatprep.subr.mxu0 0.0
      %245 = vmatpush1.msra.mxu0 0.0
      %246 = vmatprep.subr.mxu0 0.0
      %247 = vmatpush1.msra.mxu0 0.0
      %248 = vmatprep.subr.mxu0 0.0
      %249 = vmatpush1.msra.mxu0 0.0
      %250 = vmatprep.subr.mxu0 0.0
      %251 = vmatpush1.msra.mxu0 0.0
      %252 = vmatprep.subr.mxu0 0.0
      %253 = vmatpush1.msra.mxu0 0.0
      %254 = vmatprep.subr.mxu0 0.0
      %255 = vmatpush1.msra.mxu0 0.0
      %256 = vmatprep.subr.mxu0 0.0
      %257 = vmatpush1.msra.mxu0 0.0
      %258 = vmatprep.subr.mxu0 0.0
      %259 = vmatpush1.msra.mxu0 0.0
      %260 = vmatprep.subr.mxu0 0.0
      %261 = vmatpush1.msra.mxu0 0.0
      %262 = vmatprep.subr.mxu0 0.0
      %263 = vmatpush1.msra.mxu0 0.0
      %264 = vmatprep.subr.mxu0 0.0
      %265 = vmatpush1.msra.mxu0 0.0
      %266 = vmatprep.subr.mxu0 0.0
      %267 = vmatpush1.msra.mxu0 0.0
      %268 = vmatprep.subr.mxu0 0.0
      %269 = vmatpush1.msra.mxu0 0.0
      %270 = vmatprep.subr.mxu0 0.0
      %271 = vmatpush1.msra.mxu0 0.0
      %272 = vmatprep.subr.mxu0 0.0
      %273 = vmatpush1.msra.mxu0 0.0
      %274 = vmatprep.subr.mxu0 0.0
      %275 = vmatpush1.msra.mxu0 0.0
      %276 = vmatprep.subr.mxu0 0.0
      %277 = vmatpush1.msra.mxu0 0.0
      %278 = vmatprep.subr.mxu0 0.0
      %279 = vmatpush1.msra.mxu0 0.0
      %280 = vmatprep.subr.mxu0 0.0
      %281 = vmatpush1.msra.mxu0 0.0
      %282 = vmatprep.subr.mxu0 0.0
      %283 = vmatpush1.msra.mxu0 0.0
      %284 = vmatprep.subr.mxu0 0.0
      %285 = vmatpush1.msra.mxu0 0.0
      %286 = vmatprep.subr.mxu0 0.0
      %287 = vmatpush1.msra.mxu0 0.0
      %288 = vmatprep.subr.mxu0 0.0
      %289 = vmatpush1.msra.mxu0 0.0
      %290 = vmatprep.subr.mxu0 0.0
      %291 = vmatpush1.msra.mxu0 0.0
      %292 = vmatprep.subr.mxu0 0.0
      %293 = vmatpush1.msra.mxu0 0.0
      %294 = vmatprep.subr.mxu0 0.0
      %295 = vmatpush1.msra.mxu0 0.0
      %296 = vmatprep.subr.mxu0 0.0
      %297 = vmatpush1.msra.mxu0 0.0
      %298 = vmatprep.mubr.f32.mxu0 0.0
      %299 = vmatmul.mubr.f32.gmra.mrb[0].mxu0 %v229
      %v300 = vpop.f32.mrb[0].mxu0
      %v301 = vadd.f32 0.0, %v300
      %v302 = vpop.f32.mrb[0].mxu0
      %303 = vmatprep.mubr.f32.mxu0 0.0
      %304 = vmatmul.mubr.f32.gmra.mrb[0].mxu0 %v232
      %v305 = vpop.f32.mrb[0].mxu0
      %v306 = vadd.f32 0.0, %v305
      %v307 = vpop.f32.mrb[0].mxu0
      %308 = vdwg.mxu0
      %v310 = vsel %vm227, %v222, 0
      %v313 = vsel %vm227, %v223, 0
      %315 = vmatprep.subr.mxu0 0.0
      %316 = vmatpush1.msra.mxu0 %v218
      %317 = vmatprep.subr.mxu0 0.0
      %318 = vmatpush1.msra.mxu0 %v219
      %319 = vmatprep.subr.mxu0 0.0
      %320 = vmatpush1.msra.mxu0 0.0
      %321 = vmatprep.subr.mxu0 0.0
      %322 = vmatpush1.msra.mxu0 0.0
      %323 = vmatprep.subr.mxu0 0.0
      %324 = vmatpush1.msra.mxu0 0.0
      %325 = vmatprep.subr.mxu0 0.0
      %326 = vmatpush1.msra.mxu0 0.0
      %327 = vmatprep.subr.mxu0 0.0
      %328 = vmatpush1.msra.mxu0 0.0
      %329 = vmatprep.subr.mxu0 0.0
      %330 = vmatpush1.msra.mxu0 0.0
      %331 = vmatprep.subr.mxu0 0.0
      %332 = vmatpush1.msra.mxu0 0.0
      %333 = vmatprep.subr.mxu0 0.0
      %334 = vmatpush1.msra.mxu0 0.0
      %335 = vmatprep.subr.mxu0 0.0
      %336 = vmatpush1.msra.mxu0 0.0
      %337 = vmatprep.subr.mxu0 0.0
      %338 = vmatpush1.msra.mxu0 0.0
      %339 = vmatprep.subr.mxu0 0.0
      %340 = vmatpush1.msra.mxu0 0.0
      %341 = vmatprep.subr.mxu0 0.0
      %342 = vmatpush1.msra.mxu0 0.0
      %343 = vmatprep.subr.mxu0 0.0
      %344 = vmatpush1.msra.mxu0 0.0
      %345 = vmatprep.subr.mxu0 0.0
      %346 = vmatpush1.msra.mxu0 0.0
      %347 = vmatprep.subr.mxu0 0.0
      %348 = vmatpush1.msra.mxu0 0.0
      %349 = vmatprep.subr.mxu0 0.0
      %350 = vmatpush1.msra.mxu0 0.0
      %351 = vmatprep.subr.mxu0 0.0
      %352 = vmatpush1.msra.mxu0 0.0
      %353 = vmatprep.subr.mxu0 0.0
      %354 = vmatpush1.msra.mxu0 0.0
      %355 = vmatprep.subr.mxu0 0.0
      %356 = vmatpush1.msra.mxu0 0.0
      %357 = vmatprep.subr.mxu0 0.0
      %358 = vmatpush1.msra.mxu0 0.0
      %359 = vmatprep.subr.mxu0 0.0
      %360 = vmatpush1.msra.mxu0 0.0
      %361 = vmatprep.subr.mxu0 0.0
      %362 = vmatpush1.msra.mxu0 0.0
      %363 = vmatprep.subr.mxu0 0.0
      %364 = vmatpush1.msra.mxu0 0.0
      %365 = vmatprep.subr.mxu0 0.0
      %366 = vmatpush1.msra.mxu0 0.0
      %367 = vmatprep.subr.mxu0 0.0
      %368 = vmatpush1.msra.mxu0 0.0
      %369 = vmatprep.subr.mxu0 0.0
      %370 = vmatpush1.msra.mxu0 0.0
      %371 = vmatprep.subr.mxu0 0.0
      %372 = vmatpush1.msra.mxu0 0.0
      %373 = vmatprep.subr.mxu0 0.0
      %374 = vmatpush1.msra.mxu0 0.0
      %375 = vmatprep.subr.mxu0 0.0
      %376 = vmatpush1.msra.mxu0 0.0
      %377 = vmatprep.subr.mxu0 0.0
      %378 = vmatpush1.msra.mxu0 0.0
      %379 = vmatprep.mubr.f32.mxu0 0.0
      %380 = vmatmul.mubr.f32.gmra.mrb[0].mxu0 %v310
      %v381 = vpop.f32.mrb[0].mxu0
      %v382 = vadd.f32 %v301, %v381
      %v383 = vpop.f32.mrb[0].mxu0
      %384 = vmatprep.mubr.f32.mxu0 0.0
      %385 = vmatmul.mubr.f32.gmra.mrb[0].mxu0 %v313
      %v386 = vpop.f32.mrb[0].mxu0
      %v387 = vadd.f32 %v306, %v386
      %v388 = vpop.f32.mrb[0].mxu0
      %389 = vdwg.mxu0
      %s390 = scalar_lea.vmem %s2, 32
      %v391 = vld [vmem:[%s390] sm:$0xff]
      %v392 = vld [vmem:[%s390 + $0x8] sm:$0xff]
      %395 = vrot.lane.b32.xlu0 %v218, 127
      %v396 = vpop.permute.xlu0 %395
      %397 = vrot.lane.b32.xlu0 %v219, 127
      %v398 = vpop.permute.xlu0 %397
      %v402 = vsel %vm227, %v391, 0
      %v405 = vsel %vm227, %v392, 0
      %407 = vmatprep.subr.mxu0 0.0
      %408 = vmatpush1.msra.mxu0 %v396
      %409 = vmatprep.subr.mxu0 0.0
      %410 = vmatpush1.msra.mxu0 %v398
      %411 = vmatprep.subr.mxu0 0.0
      %412 = vmatpush1.msra.mxu0 0.0
      %413 = vmatprep.subr.mxu0 0.0
      %414 = vmatpush1.msra.mxu0 0.0
      %415 = vmatprep.subr.mxu0 0.0
      %416 = vmatpush1.msra.mxu0 0.0
      %417 = vmatprep.subr.mxu0 0.0
      %418 = vmatpush1.msra.mxu0 0.0
      %419 = vmatprep.subr.mxu0 0.0
      %420 = vmatpush1.msra.mxu0 0.0
      %421 = vmatprep.subr.mxu0 0.0
      %422 = vmatpush1.msra.mxu0 0.0
      %423 = vmatprep.subr.mxu0 0.0
      %424 = vmatpush1.msra.mxu0 0.0
      %425 = vmatprep.subr.mxu0 0.0
      %426 = vmatpush1.msra.mxu0 0.0
      %427 = vmatprep.subr.mxu0 0.0
      %428 = vmatpush1.msra.mxu0 0.0
      %429 = vmatprep.subr.mxu0 0.0
      %430 = vmatpush1.msra.mxu0 0.0
      %431 = vmatprep.subr.mxu0 0.0
      %432 = vmatpush1.msra.mxu0 0.0
      %433 = vmatprep.subr.mxu0 0.0
      %434 = vmatpush1.msra.mxu0 0.0
      %435 = vmatprep.subr.mxu0 0.0
      %436 = vmatpush1.msra.mxu0 0.0
      %437 = vmatprep.subr.mxu0 0.0
      %438 = vmatpush1.msra.mxu0 0.0
      %439 = vmatprep.subr.mxu0 0.0
      %440 = vmatpush1.msra.mxu0 0.0
      %441 = vmatprep.subr.mxu0 0.0
      %442 = vmatpush1.msra.mxu0 0.0
      %443 = vmatprep.subr.mxu0 0.0
      %444 = vmatpush1.msra.mxu0 0.0
      %445 = vmatprep.subr.mxu0 0.0
      %446 = vmatpush1.msra.mxu0 0.0
      %447 = vmatprep.subr.mxu0 0.0
      %448 = vmatpush1.msra.mxu0 0.0
      %449 = vmatprep.subr.mxu0 0.0
      %450 = vmatpush1.msra.mxu0 0.0
      %451 = vmatprep.subr.mxu0 0.0
      %452 = vmatpush1.msra.mxu0 0.0
      %453 = vmatprep.subr.mxu0 0.0
      %454 = vmatpush1.msra.mxu0 0.0
      %455 = vmatprep.subr.mxu0 0.0
      %456 = vmatpush1.msra.mxu0 0.0
      %457 = vmatprep.subr.mxu0 0.0
      %458 = vmatpush1.msra.mxu0 0.0
      %459 = vmatprep.subr.mxu0 0.0
      %460 = vmatpush1.msra.mxu0 0.0
      %461 = vmatprep.subr.mxu0 0.0
      %462 = vmatpush1.msra.mxu0 0.0
      %463 = vmatprep.subr.mxu0 0.0
      %464 = vmatpush1.msra.mxu0 0.0
      %465 = vmatprep.subr.mxu0 0.0
      %466 = vmatpush1.msra.mxu0 0.0
      %467 = vmatprep.subr.mxu0 0.0
      %468 = vmatpush1.msra.mxu0 0.0
      %469 = vmatprep.subr.mxu0 0.0
      %470 = vmatpush1.msra.mxu0 0.0
      %471 = vmatprep.mubr.f32.mxu0 0.0
      %472 = vmatmul.mubr.f32.gmra.mrb[0].mxu0 %v402
      %v473 = vpop.f32.mrb[0].mxu0
      %v474 = vadd.f32 0.0, %v473
      %v475 = vpop.f32.mrb[0].mxu0
      %476 = vmatprep.mubr.f32.mxu0 0.0
      %477 = vmatmul.mubr.f32.gmra.mrb[0].mxu0 %v405
      %v478 = vpop.f32.mrb[0].mxu0
      %v479 = vadd.f32 0.0, %v478
      %v480 = vpop.f32.mrb[0].mxu0
      %481 = vdwg.mxu0
      %v482 = vadd.f32 %v382, %v474
      %v483 = vadd.f32 %v387, %v479
      %s484 = scalar_lea.vmem %s2, 48
      %v485 = vld [vmem:[%s484] sm:$0xff]
      %v486 = vld [vmem:[%s484 + $0x8] sm:$0xff]
      %489 = vrot.lane.b32.xlu0 %v220, 127
      %v490 = vpop.permute.xlu0 %489
      %491 = vrot.lane.b32.xlu0 %v221, 127
      %v492 = vpop.permute.xlu0 %491
      %v496 = vsel %vm227, %v485, 0
      %v499 = vsel %vm227, %v486, 0
      %501 = vmatprep.subr.mxu0 0.0
      %502 = vmatpush1.msra.mxu0 %v490
      %503 = vmatprep.subr.mxu0 0.0
      %504 = vmatpush1.msra.mxu0 %v492
      %505 = vmatprep.subr.mxu0 0.0
      %506 = vmatpush1.msra.mxu0 0.0
      %507 = vmatprep.subr.mxu0 0.0
      %508 = vmatpush1.msra.mxu0 0.0
      %509 = vmatprep.subr.mxu0 0.0
      %510 = vmatpush1.msra.mxu0 0.0
      %511 = vmatprep.subr.mxu0 0.0
      %512 = vmatpush1.msra.mxu0 0.0
      %513 = vmatprep.subr.mxu0 0.0
      %514 = vmatpush1.msra.mxu0 0.0
      %515 = vmatprep.subr.mxu0 0.0
      %516 = vmatpush1.msra.mxu0 0.0
      %517 = vmatprep.subr.mxu0 0.0
      %518 = vmatpush1.msra.mxu0 0.0
      %519 = vmatprep.subr.mxu0 0.0
      %520 = vmatpush1.msra.mxu0 0.0
      %521 = vmatprep.subr.mxu0 0.0
      %522 = vmatpush1.msra.mxu0 0.0
      %523 = vmatprep.subr.mxu0 0.0
      %524 = vmatpush1.msra.mxu0 0.0
      %525 = vmatprep.subr.mxu0 0.0
      %526 = vmatpush1.msra.mxu0 0.0
      %527 = vmatprep.subr.mxu0 0.0
      %528 = vmatpush1.msra.mxu0 0.0
      %529 = vmatprep.subr.mxu0 0.0
      %530 = vmatpush1.msra.mxu0 0.0
      %531 = vmatprep.subr.mxu0 0.0
      %532 = vmatpush1.msra.mxu0 0.0
      %533 = vmatprep.subr.mxu0 0.0
      %534 = vmatpush1.msra.mxu0 0.0
      %535 = vmatprep.subr.mxu0 0.0
      %536 = vmatpush1.msra.mxu0 0.0
      %537 = vmatprep.subr.mxu0 0.0
      %538 = vmatpush1.msra.mxu0 0.0
      %539 = vmatprep.subr.mxu0 0.0
      %540 = vmatpush1.msra.mxu0 0.0
      %541 = vmatprep.subr.mxu0 0.0
      %542 = vmatpush1.msra.mxu0 0.0
      %543 = vmatprep.subr.mxu0 0.0
      %544 = vmatpush1.msra.mxu0 0.0
      %545 = vmatprep.subr.mxu0 0.0
      %546 = vmatpush1.msra.mxu0 0.0
      %547 = vmatprep.subr.mxu0 0.0
      %548 = vmatpush1.msra.mxu0 0.0
      %549 = vmatprep.subr.mxu0 0.0
      %550 = vmatpush1.msra.mxu0 0.0
      %551 = vmatprep.subr.mxu0 0.0
      %552 = vmatpush1.msra.mxu0 0.0
      %553 = vmatprep.subr.mxu0 0.0
      %554 = vmatpush1.msra.mxu0 0.0
      %555 = vmatprep.subr.mxu0 0.0
      %556 = vmatpush1.msra.mxu0 0.0
      %557 = vmatprep.subr.mxu0 0.0
      %558 = vmatpush1.msra.mxu0 0.0
      %559 = vmatprep.subr.mxu0 0.0
      %560 = vmatpush1.msra.mxu0 0.0
      %561 = vmatprep.subr.mxu0 0.0
      %562 = vmatpush1.msra.mxu0 0.0
      %563 = vmatprep.subr.mxu0 0.0
      %564 = vmatpush1.msra.mxu0 0.0
      %565 = vmatprep.mubr.f32.mxu0 0.0
      %566 = vmatmul.mubr.f32.gmra.mrb[0].mxu0 %v496
      %v567 = vpop.f32.mrb[0].mxu0
      %v568 = vadd.f32 0.0, %v567
      %v569 = vpop.f32.mrb[0].mxu0
      %570 = vmatprep.mubr.f32.mxu0 0.0
      %571 = vmatmul.mubr.f32.gmra.mrb[0].mxu0 %v499
      %v572 = vpop.f32.mrb[0].mxu0
      %v573 = vadd.f32 0.0, %v572
      %v574 = vpop.f32.mrb[0].mxu0
      %575 = vdwg.mxu0
      %v576 = vadd.f32 %v482, %v568
      %v577 = vadd.f32 %v483, %v573
      %s578 = scalar_lea.vmem %s2, 64
      %v579 = vld [vmem:[%s578] sm:$0xff]
      %v580 = vld [vmem:[%s578 + $0x8] sm:$0xff]
      %581 = vrot.lane.b32.xlu0 %v218, 126
      %v582 = vpop.permute.xlu0 %581
      %583 = vrot.lane.b32.xlu0 %v219, 126
      %v584 = vpop.permute.xlu0 %583
      %v588 = vsel %vm227, %v579, 0
      %v591 = vsel %vm227, %v580, 0
      %593 = vmatprep.subr.mxu0 0.0
      %594 = vmatpush1.msra.mxu0 %v582
      %595 = vmatprep.subr.mxu0 0.0
      %596 = vmatpush1.msra.mxu0 %v584
      %597 = vmatprep.subr.mxu0 0.0
      %598 = vmatpush1.msra.mxu0 0.0
      %599 = vmatprep.subr.mxu0 0.0
      %600 = vmatpush1.msra.mxu0 0.0
      %601 = vmatprep.subr.mxu0 0.0
      %602 = vmatpush1.msra.mxu0 0.0
      %603 = vmatprep.subr.mxu0 0.0
      %604 = vmatpush1.msra.mxu0 0.0
      %605 = vmatprep.subr.mxu0 0.0
      %606 = vmatpush1.msra.mxu0 0.0
      %607 = vmatprep.subr.mxu0 0.0
      %608 = vmatpush1.msra.mxu0 0.0
      %609 = vmatprep.subr.mxu0 0.0
      %610 = vmatpush1.msra.mxu0 0.0
      %611 = vmatprep.subr.mxu0 0.0
      %612 = vmatpush1.msra.mxu0 0.0
      %613 = vmatprep.subr.mxu0 0.0
      %614 = vmatpush1.msra.mxu0 0.0
      %615 = vmatprep.subr.mxu0 0.0
      %616 = vmatpush1.msra.mxu0 0.0
      %617 = vmatprep.subr.mxu0 0.0
      %618 = vmatpush1.msra.mxu0 0.0
      %619 = vmatprep.subr.mxu0 0.0
      %620 = vmatpush1.msra.mxu0 0.0
      %621 = vmatprep.subr.mxu0 0.0
      %622 = vmatpush1.msra.mxu0 0.0
      %623 = vmatprep.subr.mxu0 0.0
      %624 = vmatpush1.msra.mxu0 0.0
      %625 = vmatprep.subr.mxu0 0.0
      %626 = vmatpush1.msra.mxu0 0.0
      %627 = vmatprep.subr.mxu0 0.0
      %628 = vmatpush1.msra.mxu0 0.0
      %629 = vmatprep.subr.mxu0 0.0
      %630 = vmatpush1.msra.mxu0 0.0
      %631 = vmatprep.subr.mxu0 0.0
      %632 = vmatpush1.msra.mxu0 0.0
      %633 = vmatprep.subr.mxu0 0.0
      %634 = vmatpush1.msra.mxu0 0.0
      %635 = vmatprep.subr.mxu0 0.0
      %636 = vmatpush1.msra.mxu0 0.0
      %637 = vmatprep.subr.mxu0 0.0
      %638 = vmatpush1.msra.mxu0 0.0
      %639 = vmatprep.subr.mxu0 0.0
      %640 = vmatpush1.msra.mxu0 0.0
      %641 = vmatprep.subr.mxu0 0.0
      %642 = vmatpush1.msra.mxu0 0.0
      %643 = vmatprep.subr.mxu0 0.0
      %644 = vmatpush1.msra.mxu0 0.0
      %645 = vmatprep.subr.mxu0 0.0
      %646 = vmatpush1.msra.mxu0 0.0
      %647 = vmatprep.subr.mxu0 0.0
      %648 = vmatpush1.msra.mxu0 0.0
      %649 = vmatprep.subr.mxu0 0.0
      %650 = vmatpush1.msra.mxu0 0.0
      %651 = vmatprep.subr.mxu0 0.0
      %652 = vmatpush1.msra.mxu0 0.0
      %653 = vmatprep.subr.mxu0 0.0
      %654 = vmatpush1.msra.mxu0 0.0
      %655 = vmatprep.subr.mxu0 0.0
      %656 = vmatpush1.msra.mxu0 0.0
      %657 = vmatprep.mubr.f32.mxu0 0.0
      %658 = vmatmul.mubr.f32.gmra.mrb[0].mxu0 %v588
      %v659 = vpop.f32.mrb[0].mxu0
      %v660 = vadd.f32 0.0, %v659
      %v661 = vpop.f32.mrb[0].mxu0
      %662 = vmatprep.mubr.f32.mxu0 0.0
      %663 = vmatmul.mubr.f32.gmra.mrb[0].mxu0 %v591
      %v664 = vpop.f32.mrb[0].mxu0
      %v665 = vadd.f32 0.0, %v664
      %v666 = vpop.f32.mrb[0].mxu0
      %667 = vdwg.mxu0
      %v668 = vadd.f32 %v576, %v660
      %v669 = vadd.f32 %v577, %v665
      %v670 = vld [vmem:[%s3] sm:$0xff]
      %v671 = vld [vmem:[%s3 + $0x8] sm:$0xff]
      %673 = vset.pattern.permute.xlu0 0
      %674 = vperm.xlu0 %673, %v670
      %v675 = vpop.permute.xlu0 %674
      %678 = vset.pattern.permute.xlu0 0
      %679 = vperm.xlu0 %678, %v671
      %v680 = vpop.permute.xlu0 %679
      %v682 = vadd.f32 %v668, %v675
      %v683 = vadd.f32 %v669, %v680
      %v684 = vmax.f32 %v682, 0.0
      %v685 = vmax.f32 %v683, 0.0
      %686 = vst.msk [vmem:[%s217] sm:$0xff] %vm227, %v684
      %687 = vst.msk [vmem:[%s217 + $0x8] sm:$0xff] %vm227, %v685
      %p688 = scmp.lt.s32.totalorder %s15, 1
      %s689 = scalar_select %p688, %s15, 1
      %s690 = smul.addr %s689, 2
      %s691 = smul.addr %s690, 8
      %s692 = scalar_lea.vmem %s4, %s691
      // Predicated region
      $region37: #{unet_forward.14} parent=35 // pred_check
        %p693 = pneg %p127
      $region38: #{unet_forward.14} parent=35 // pred_check_branch
        %695 = sbr.rel (%p693) target = $region40
      $region39: #{unet_forward.14} parent=35 // pred_region
        _
      $region40: #{unet_forward.14} parent=35 // pred_fallthru
        _
    $region36: #{unet_forward.14} parent=5 // pred_fallthru
      _
    %p696 = scmp.le.s32.totalorder 2, %s10
    // Predicated region
    $region41: #{unet_forward.14} parent=5 // pred_check
      %p697 = pneg %p696
    $region42: #{unet_forward.14} parent=5 // pred_check_branch
      %699 = sbr.rel (%p697) target = $region44
    $region43: #{unet_forward.14} parent=5 // pred_region
      %s700 = ssub.s32 %s10, 2
      // Predicated region
      $region45: #{unet_forward.14} parent=43 // pred_check
        %p701 = pneg %p133
      $region46: #{unet_forward.14} parent=43 // pred_check_branch
        %703 = sbr.rel (%p701) target = $region48
      $region47: #{unet_forward.14} parent=43 // pred_region
        %p704 = scmp.lt.s32.totalorder %s16, 1
        %s705 = scalar_select %p704, %s16, 1
        %s706 = smul.addr %s705, 2
        %s707 = smul.addr %s706, 8
        %s708 = scalar_lea.vmem %s4, %s707
      $region48: #{unet_forward.14} parent=43 // pred_fallthru
        _
    $region44: #{unet_forward.14} parent=5 // pred_fallthru
      _
  $region6: #{unet_forward.14} parent=0 // loop_footer
    %s14 = sadd.s32 1, %s10
  $region7: #{unet_forward.14} parent=0 // loop_footer_branch
    %9 = sbr.rel target = $region3
  $region8: #{unet_forward.14} parent=0 // loop_exit
    _

// kernel: unet_forward.16
$region0: #{unet_forward.16}
  #allocation0 [shape = 'u32[]', space=smem, size = 0x4, offset = 0x4, fixed_abs, tag = 'smem constant byte address 0x4 - core index']
  #allocation1 [shape = 'u32[144,128]{1,0:T(1,128)}', space=vmem, size = 0x12000, scoped, tag = 'internal scratch']
  %s0 = inlined_call_operand.vmem [shape: f32[2,32,6], index: 0, kind: input, shape index: {}]
  %s1 = inlined_call_operand.vmem [shape: f32[2,32,6], index: 1, kind: input, shape index: {}]
  %s2 = inlined_call_operand.vmem [shape: f32[5,32,32], index: 2, kind: input, shape index: {}]
  %s3 = inlined_call_operand.vmem [shape: f32[32,1], index: 3, kind: input, shape index: {}]
  %s4 = inlined_call_operand.vmem [shape: f32[2,32,4], index: 4, kind: output, shape index: {}]
  %s5 = sld [smem:[#allocation0]]
  $region49: #{unet_forward.16} parent=0
    _
  %s7 = ssub.s32 1, %s5
  %s8 = scalar_select 0, %s7, %s5
  loop: start=0, step=1, limit=4
  $region2: #{unet_forward.16} parent=0 // loop_pre_header
    _
  $region3: #{unet_forward.16} parent=0 // loop_header
    %s10 = sphi 0, %s14
    %p11 = scmp.ge.s32.totalorder %s10, 4
    %s20 = sphi 0, %s22
    %s23 = sphi 0, %s20
    %s24 = sphi 0, %s23
    %s40 = sphi 0, %s24
    %s46 = sphi 0, %s48
    %s49 = sphi 0, %s46
    %s50 = sphi 0, %s49
    %s66 = sphi 0, %s50
    %s70 = sphi 0, %s70
    %s72 = sphi 0, %s70
    %s73 = sphi 0, %s72
    %s87 = sphi 0, %s73
    %s91 = sphi 0, %s91
    %s93 = sphi 0, %s91
    %s94 = sphi 0, %s93
    %s108 = sphi 0, %s94
    %s114 = sphi 0, %s116
    %s117 = sphi 0, %s114
    %s118 = sphi 0, %s117
    %s134 = sphi 0, %s118
  $region4: #{unet_forward.16} parent=0 // loop_header_branch
    %13 = sbr.rel (%p11) target = $region8
  $region5: #{unet_forward.16} parent=0 // loop_body
    %s15 = ssub.s32 %s10, 1
    %s16 = ssub.s32 %s10, 2
    %s17 = sadd.s32 %s10, 1
    %s18 = ssub.s32 %s10, %s17
    %p19 = scmp.eq.s32.totalorder %s18, 0
    %s21 = sadd.s32 %s20, 1
    %s22 = scalar_select %p19, %s20, %s21
    %p25 = pneg %p19
    %p26 = scmp.eq.s32.totalorder %s10, 1
    %p27 = por %p25, %p26
    %p28 = scmp.ne.s32.totalorder %s20, %s23
    %p29 = scmp.eq.s32.totalorder %s10, 0
    %p30 = por %p28, %p29
    %p31 = scmp.ne.s32.totalorder %s20, %s23
    %p32 = scmp.eq.s32.totalorder %s15, 1
    %p33 = por %p31, %p32
    %p34 = scmp.ne.s32.totalorder %s23, %s24
    %p35 = scmp.eq.s32.totalorder %s15, 0
    %p36 = por %p34, %p35
    %p37 = scmp.ne.s32.totalorder %s23, %s24
    %p38 = scmp.eq.s32.totalorder %s16, 1
    %p39 = por %p37, %p38
    %p41 = scmp.ne.s32.totalorder %s24, %s40
    %p42 = scmp.eq.s32.totalorder %s16, 0
    %p43 = por %p41, %p42
    %s44 = ssub.s32 %s10, %s17
    %p45 = scmp.eq.s32.totalorder %s44, 0
    %s47 = sadd.s32 %s46, 1
    %s48 = scalar_select %p45, %s46, %s47
    %p51 = pneg %p45
    %p52 = scmp.eq.s32.totalorder %s10, 1
    %p53 = por %p51, %p52
    %p54 = scmp.ne.s32.totalorder %s46, %s49
    %p55 = scmp.eq.s32.totalorder %s10, 0
    %p56 = por %p54, %p55
    %p57 = scmp.ne.s32.totalorder %s46, %s49
    %p58 = scmp.eq.s32.totalorder %s15, 1
    %p59 = por %p57, %p58
    %p60 = scmp.ne.s32.totalorder %s49, %s50
    %p61 = scmp.eq.s32.totalorder %s15, 0
    %p62 = por %p60, %p61
    %p63 = scmp.ne.s32.totalorder %s49, %s50
    %p64 = scmp.eq.s32.totalorder %s16, 1
    %p65 = por %p63, %p64
    %p67 = scmp.ne.s32.totalorder %s50, %s66
    %p68 = scmp.eq.s32.totalorder %s16, 0
    %p69 = por %p67, %p68
    %s71 = sadd.s32 %s70, 1
    %p74 = scmp.eq.s32.totalorder %s10, 1
    %p75 = scmp.ne.s32.totalorder %s70, %s72
    %p76 = scmp.eq.s32.totalorder %s10, 0
    %p77 = por %p75, %p76
    %p78 = scmp.ne.s32.totalorder %s70, %s72
    %p79 = scmp.eq.s32.totalorder %s15, 1
    %p80 = por %p78, %p79
    %p81 = scmp.ne.s32.totalorder %s72, %s73
    %p82 = scmp.eq.s32.totalorder %s15, 0
    %p83 = por %p81, %p82
    %p84 = scmp.ne.s32.totalorder %s72, %s73
    %p85 = scmp.eq.s32.totalorder %s16, 1
    %p86 = por %p84, %p85
    %p88 = scmp.ne.s32.totalorder %s73, %s87
    %p89 = scmp.eq.s32.totalorder %s16, 0
    %p90 = por %p88, %p89
    %s92 = sadd.s32 %s91, 1
    %p95 = scmp.eq.s32.totalorder %s10, 1
    %p96 = scmp.ne.s32.totalorder %s91, %s93
    %p97 = scmp.eq.s32.totalorder %s10, 0
    %p98 = por %p96, %p97
    %p99 = scmp.ne.s32.totalorder %s91, %s93
    %p100 = scmp.eq.s32.totalorder %s15, 1
    %p101 = por %p99, %p100
    %p102 = scmp.ne.s32.totalorder %s93, %s94
    %p103 = scmp.eq.s32.totalorder %s15, 0
    %p104 = por %p102, %p103
    %p105 = scmp.ne.s32.totalorder %s93, %s94
    %p106 = scmp.eq.s32.totalorder %s16, 1
    %p107 = por %p105, %p106
    %p109 = scmp.ne.s32.totalorder %s94, %s108
    %p110 = scmp.eq.s32.totalorder %s16, 0
    %p111 = por %p109, %p110
    %s112 = ssub.s32 %s10, %s17
    %p113 = scmp.eq.s32.totalorder %s112, 0
    %s115 = sadd.s32 %s114, 1
    %s116 = scalar_select %p113, %s114, %s115
    %p119 = pneg %p113
    %p120 = scmp.eq.s32.totalorder %s10, 1
    %p121 = por %p119, %p120
    %p122 = scmp.ne.s32.totalorder %s114, %s117
    %p123 = scmp.eq.s32.totalorder %s10, 0
    %p124 = por %p122, %p123
    %p125 = scmp.ne.s32.totalorder %s114, %s117
    %p126 = scmp.eq.s32.totalorder %s15, 1
    %p127 = por %p125, %p126
    %p128 = scmp.ne.s32.totalorder %s117, %s118
    %p129 = scmp.eq.s32.totalorder %s15, 0
    %p130 = por %p128, %p129
    %p131 = scmp.ne.s32.totalorder %s117, %s118
    %p132 = scmp.eq.s32.totalorder %s16, 1
    %p133 = por %p131, %p132
    %p135 = scmp.ne.s32.totalorder %s118, %s134
    %p136 = scmp.eq.s32.totalorder %s16, 0
    %p137 = por %p135, %p136
    %p138 = scmp.le.s32.totalorder 1, %s10
    %p139 = scmp.lt.s32.totalorder %s10, 3
    %p140 = pnand %p138, %p139
    %p141 = pneg %p140
    // Predicated region
    $region9: #{unet_forward.16} parent=5 // pred_check
      _
    $region10: #{unet_forward.16} parent=5 // pred_check_branch
      %143 = sbr.rel (%p140) target = $region12
    $region11: #{unet_forward.16} parent=5 // pred_region
      %s144 = ssub.s32 %s10, 1
      // Predicated region
      $region13: #{unet_forward.16} parent=11 // pred_check
        %p145 = pneg %p83
      $region14: #{unet_forward.16} parent=11 // pred_check_branch
        %147 = sbr.rel (%p145) target = $region16
      $region15: #{unet_forward.16} parent=11 // pred_region
        _
      $region16: #{unet_forward.16} parent=11 // pred_fallthru
        _
      // Predicated region
      $region17: #{unet_forward.16} parent=11 // pred_check
        %p148 = pneg %p104
      $region18: #{unet_forward.16} parent=11 // pred_check_branch
        %150 = sbr.rel (%p148) target = $region20
      $region19: #{unet_forward.16} parent=11 // pred_region
        _
      $region20: #{unet_forward.16} parent=11 // pred_fallthru
        _
    $region12: #{unet_forward.16} parent=5 // pred_fallthru
      _
    %p151 = scmp.lt.s32.totalorder %s10, 2
    // Predicated region
    $region21: #{unet_forward.16} parent=5 // pred_check
      %p152 = pneg %p151
    $region22: #{unet_forward.16} parent=5 // pred_check_branch
      %154 = sbr.rel (%p152) target = $region24
    $region23: #{unet_forward.16} parent=5 // pred_region
      // Predicated region
      $region25: #{unet_forward.16} parent=23 // pred_check
        %p155 = pneg %p30
      $region26: #{unet_forward.16} parent=23 // pred_check_branch
        %157 = sbr.rel (%p155) target = $region28
      $region27: #{unet_forward.16} parent=23 // pred_region
        %p158 = scmp.lt.s32.totalorder %s10, 1
        %s159 = scalar_select %p158, %s10, 1
        %s160 = smul.addr %s159, 4
        %s161 = smul.addr %s160, 8
        %s162 = scalar_lea.vmem %s0, %s161
      $region28: #{unet_forward.16} parent=23 // pred_fallthru
        _
      // Predicated region
      $region29: #{unet_forward.16} parent=23 // pred_check
        %p163 = pneg %p56
      $region30: #{unet_forward.16} parent=23 // pred_check_branch
        %165 = sbr.rel (%p163) target = $region32
      $region31: #{unet_forward.16} parent=23 // pred_region
        %p166 = scmp.lt.s32.totalorder %s10, 1
        %s167 = scalar_select %p166, %s10, 1
        %s168 = smul.addr %s167, 4
        %s169 = smul.addr %s168, 8
        %s170 = scalar_lea.vmem %s1, %s169
      $region32: #{unet_forward.16} parent=23 // pred_fallthru
        _
    $region24: #{unet_forward.16} parent=5 // pred_fallthru
      _
    %p171 = scmp.le.s32.totalorder 1, %s10
    %p172 = scmp.lt.s32.totalorder %s10, 3
    %p173 = pnand %p171, %p172
    %p174 = pneg %p173
    // Predicated region
    $region33: #{unet_forward.16} parent=5 // pred_check
      _
    $region34: #{unet_forward.16} parent=5 // pred_check_branch
      %176 = sbr.rel (%p173) target = $region36
    $region35: #{unet_forward.16} parent=5 // pred_region
      %s177 = ssub.s32 %s10, 1
      %p178 = scmp.lt.s32.totalorder %s15, 1
      %s179 = scalar_select %p178, %s15, 1
      %s180 = smul.addr %s179, 4
      %s181 = smul.addr %s180, 8
      %s182 = scalar_lea.vmem %s0, %s181
      %p183 = pneg %p36
      %p184 = pneg %p33
      %p185 = scmp.lt.s32.totalorder %s15, 1
      %s186 = scalar_select %p185, %s15, 1
      %s187 = smul.addr %s186, 4
      %s188 = smul.addr %s187, 8
      %s189 = scalar_lea.vmem %s1, %s188
      %p190 = pneg %p62
      %p191 = pneg %p59
      %p192 = pneg %p83
      %p193 = pneg %p80
      %p194 = pneg %p104
      %p195 = pneg %p101
      %p196 = pneg %p130
      %p197 = pneg %p127
      %p198 = scmp.lt.s32.totalorder %s15, 1
      %s199 = scalar_select %p198, %s15, 1
      %s200 = smul.addr %s199, 4
      %s201 = smul.addr %s200, 8
      %s202 = scalar_lea.vmem %s4, %s201
      %p203 = scmp.lt.s32.totalorder %s15, 1
      %s204 = scalar_select %p203, %s15, 1
      %s205 = smul.addr %s204, 4
      %s206 = smul.addr %s205, 8
      %s207 = scalar_lea.vmem %s0, %s206
      %p208 = scmp.lt.s32.totalorder %s15, 1
      %s209 = scalar_select %p208, %s15, 1
      %s210 = smul.addr %s209, 4
      %s211 = smul.addr %s210, 8
      %s212 = scalar_lea.vmem %s1, %s211
      %p213 = scmp.lt.s32.totalorder %s15, 1
      %s214 = scalar_select %p213, %s15, 1
      %s215 = smul.addr %s214, 4
      %s216 = smul.addr %s215, 8
      %s217 = scalar_lea.vmem %s4, %s216
      %v218 = vld [vmem:[%s207] sm:$0xff]
      %v219 = vld [vmem:[%s207 + $0x8] sm:$0xff]
      %v220 = vld [vmem:[%s207 + $0x10] sm:$0xff]
      %v221 = vld [vmem:[%s207 + $0x18] sm:$0xff]
      %v222 = vld [vmem:[%s212] sm:$0xff]
      %v223 = vld [vmem:[%s212 + $0x8] sm:$0xff]
      %v224 = vld [vmem:[%s212 + $0x10] sm:$0xff]
      %v225 = vld [vmem:[%s212 + $0x18] sm:$0xff]
      %v226 = vld [vmem:[%s2] sm:$0xff]
      %v227 = vld [vmem:[%s2 + $0x8] sm:$0xff]
      %v228 = vld [vmem:[%s2 + $0x10] sm:$0xff]
      %v229 = vld [vmem:[%s2 + $0x18] sm:$0xff]
      %s230 = scalar_lea.vmem %s2, 32
      %v231 = vld [vmem:[%s230] sm:$0xff]
      %v232 = vld [vmem:[%s230 + $0x8] sm:$0xff]
      %v233 = vld [vmem:[%s230 + $0x10] sm:$0xff]
      %v234 = vld [vmem:[%s230 + $0x18] sm:$0xff]
      %vm235 = vcmask 261120
      %v237 = vsel %vm235, %v231, 0
      %v240 = vsel %vm235, %v232, 0
      %v243 = vsel %vm235, %v233, 0
      %v246 = vsel %vm235, %v234, 0
      %248 = vmatprep.subr.mxu0 0.0
      %249 = vmatpush1.msra.mxu0 %v222
      %250 = vmatprep.subr.mxu0 0.0
      %251 = vmatpush1.msra.mxu0 %v223
      %252 = vmatprep.subr.mxu0 0.0
      %253 = vmatpush1.msra.mxu0 %v224
      %254 = vmatprep.subr.mxu0 0.0
      %255 = vmatpush1.msra.mxu0 %v225
      %256 = vmatprep.subr.mxu0 0.0
      %257 = vmatpush1.msra.mxu0 0.0
      %258 = vmatprep.subr.mxu0 0.0
      %259 = vmatpush1.msra.mxu0 0.0
      %260 = vmatprep.subr.mxu0 0.0
      %261 = vmatpush1.msra.mxu0 0.0
      %262 = vmatprep.subr.mxu0 0.0
      %263 = vmatpush1.msra.mxu0 0.0
      %264 = vmatprep.subr.mxu0 0.0
      %265 = vmatpush1.msra.mxu0 0.0
      %266 = vmatprep.subr.mxu0 0.0
      %267 = vmatpush1.msra.mxu0 0.0
      %268 = vmatprep.subr.mxu0 0.0
      %269 = vmatpush1.msra.mxu0 0.0
      %270 = vmatprep.subr.mxu0 0.0
      %271 = vmatpush1.msra.mxu0 0.0
      %272 = vmatprep.subr.mxu0 0.0
      %273 = vmatpush1.msra.mxu0 0.0
      %274 = vmatprep.subr.mxu0 0.0
      %275 = vmatpush1.msra.mxu0 0.0
      %276 = vmatprep.subr.mxu0 0.0
      %277 = vmatpush1.msra.mxu0 0.0
      %278 = vmatprep.subr.mxu0 0.0
      %279 = vmatpush1.msra.mxu0 0.0
      %280 = vmatprep.subr.mxu0 0.0
      %281 = vmatpush1.msra.mxu0 0.0
      %282 = vmatprep.subr.mxu0 0.0
      %283 = vmatpush1.msra.mxu0 0.0
      %284 = vmatprep.subr.mxu0 0.0
      %285 = vmatpush1.msra.mxu0 0.0
      %286 = vmatprep.subr.mxu0 0.0
      %287 = vmatpush1.msra.mxu0 0.0
      %288 = vmatprep.subr.mxu0 0.0
      %289 = vmatpush1.msra.mxu0 0.0
      %290 = vmatprep.subr.mxu0 0.0
      %291 = vmatpush1.msra.mxu0 0.0
      %292 = vmatprep.subr.mxu0 0.0
      %293 = vmatpush1.msra.mxu0 0.0
      %294 = vmatprep.subr.mxu0 0.0
      %295 = vmatpush1.msra.mxu0 0.0
      %296 = vmatprep.subr.mxu0 0.0
      %297 = vmatpush1.msra.mxu0 0.0
      %298 = vmatprep.subr.mxu0 0.0
      %299 = vmatpush1.msra.mxu0 0.0
      %300 = vmatprep.subr.mxu0 0.0
      %301 = vmatpush1.msra.mxu0 0.0
      %302 = vmatprep.subr.mxu0 0.0
      %303 = vmatpush1.msra.mxu0 0.0
      %304 = vmatprep.subr.mxu0 0.0
      %305 = vmatpush1.msra.mxu0 0.0
      %306 = vmatprep.subr.mxu0 0.0
      %307 = vmatpush1.msra.mxu0 0.0
      %308 = vmatprep.subr.mxu0 0.0
      %309 = vmatpush1.msra.mxu0 0.0
      %310 = vmatprep.subr.mxu0 0.0
      %311 = vmatpush1.msra.mxu0 0.0
      %312 = vmatprep.mubr.f32.mxu0 0.0
      %313 = vmatmul.mubr.f32.gmra.mrb[0].mxu0 %v237
      %v314 = vpop.f32.mrb[0].mxu0
      %v315 = vadd.f32 0.0, %v314
      %v316 = vpop.f32.mrb[0].mxu0
      %317 = vmatprep.mubr.f32.mxu0 0.0
      %318 = vmatmul.mubr.f32.gmra.mrb[0].mxu0 %v240
      %v319 = vpop.f32.mrb[0].mxu0
      %v320 = vadd.f32 0.0, %v319
      %v321 = vpop.f32.mrb[0].mxu0
      %322 = vmatprep.mubr.f32.mxu0 0.0
      %323 = vmatmul.mubr.f32.gmra.mrb[0].mxu0 %v243
      %v324 = vpop.f32.mrb[0].mxu0
      %v325 = vadd.f32 0.0, %v324
      %v326 = vpop.f32.mrb[0].mxu0
      %327 = vmatprep.mubr.f32.mxu0 0.0
      %328 = vmatmul.mubr.f32.gmra.mrb[0].mxu0 %v246
      %v329 = vpop.f32.mrb[0].mxu0
      %v330 = vadd.f32 0.0, %v329
      %v331 = vpop.f32.mrb[0].mxu0
      %332 = vdwg.mxu0
      %v334 = vsel %vm235, %v226, 0
      %v337 = vsel %vm235, %v227, 0
      %v340 = vsel %vm235, %v228, 0
      %v343 = vsel %vm235, %v229, 0
      %345 = vmatprep.subr.mxu0 0.0
      %346 = vmatpush1.msra.mxu0 %v218
      %347 = vmatprep.subr.mxu0 0.0
      %348 = vmatpush1.msra.mxu0 %v219
      %349 = vmatprep.subr.mxu0 0.0
      %350 = vmatpush1.msra.mxu0 %v220
      %351 = vmatprep.subr.mxu0 0.0
      %352 = vmatpush1.msra.mxu0 %v221
      %353 = vmatprep.subr.mxu0 0.0
      %354 = vmatpush1.msra.mxu0 0.0
      %355 = vmatprep.subr.mxu0 0.0
      %356 = vmatpush1.msra.mxu0 0.0
      %357 = vmatprep.subr.mxu0 0.0
      %358 = vmatpush1.msra.mxu0 0.0
      %359 = vmatprep.subr.mxu0 0.0
      %360 = vmatpush1.msra.mxu0 0.0
      %361 = vmatprep.subr.mxu0 0.0
      %362 = vmatpush1.msra.mxu0 0.0
      %363 = vmatprep.subr.mxu0 0.0
      %364 = vmatpush1.msra.mxu0 0.0
      %365 = vmatprep.subr.mxu0 0.0
      %366 = vmatpush1.msra.mxu0 0.0
      %367 = vmatprep.subr.mxu0 0.0
      %368 = vmatpush1.msra.mxu0 0.0
      %369 = vmatprep.subr.mxu0 0.0
      %370 = vmatpush1.msra.mxu0 0.0
      %371 = vmatprep.subr.mxu0 0.0
      %372 = vmatpush1.msra.mxu0 0.0
      %373 = vmatprep.subr.mxu0 0.0
      %374 = vmatpush1.msra.mxu0 0.0
      %375 = vmatprep.subr.mxu0 0.0
      %376 = vmatpush1.msra.mxu0 0.0
      %377 = vmatprep.subr.mxu0 0.0
      %378 = vmatpush1.msra.mxu0 0.0
      %379 = vmatprep.subr.mxu0 0.0
      %380 = vmatpush1.msra.mxu0 0.0
      %381 = vmatprep.subr.mxu0 0.0
      %382 = vmatpush1.msra.mxu0 0.0
      %383 = vmatprep.subr.mxu0 0.0
      %384 = vmatpush1.msra.mxu0 0.0
      %385 = vmatprep.subr.mxu0 0.0
      %386 = vmatpush1.msra.mxu0 0.0
      %387 = vmatprep.subr.mxu0 0.0
      %388 = vmatpush1.msra.mxu0 0.0
      %389 = vmatprep.subr.mxu0 0.0
      %390 = vmatpush1.msra.mxu0 0.0
      %391 = vmatprep.subr.mxu0 0.0
      %392 = vmatpush1.msra.mxu0 0.0
      %393 = vmatprep.subr.mxu0 0.0
      %394 = vmatpush1.msra.mxu0 0.0
      %395 = vmatprep.subr.mxu0 0.0
      %396 = vmatpush1.msra.mxu0 0.0
      %397 = vmatprep.subr.mxu0 0.0
      %398 = vmatpush1.msra.mxu0 0.0
      %399 = vmatprep.subr.mxu0 0.0
      %400 = vmatpush1.msra.mxu0 0.0
      %401 = vmatprep.subr.mxu0 0.0
      %402 = vmatpush1.msra.mxu0 0.0
      %403 = vmatprep.subr.mxu0 0.0
      %404 = vmatpush1.msra.mxu0 0.0
      %405 = vmatprep.subr.mxu0 0.0
      %406 = vmatpush1.msra.mxu0 0.0
      %407 = vmatprep.subr.mxu0 0.0
      %408 = vmatpush1.msra.mxu0 0.0
      %409 = vmatprep.mubr.f32.mxu0 0.0
      %410 = vmatmul.mubr.f32.gmra.mrb[0].mxu0 %v334
      %v411 = vpop.f32.mrb[0].mxu0
      %v412 = vadd.f32 %v315, %v411
      %v413 = vpop.f32.mrb[0].mxu0
      %414 = vmatprep.mubr.f32.mxu0 0.0
      %415 = vmatmul.mubr.f32.gmra.mrb[0].mxu0 %v337
      %v416 = vpop.f32.mrb[0].mxu0
      %v417 = vadd.f32 %v320, %v416
      %v418 = vpop.f32.mrb[0].mxu0
      %419 = vmatprep.mubr.f32.mxu0 0.0
      %420 = vmatmul.mubr.f32.gmra.mrb[0].mxu0 %v340
      %v421 = vpop.f32.mrb[0].mxu0
      %v422 = vadd.f32 %v325, %v421
      %v423 = vpop.f32.mrb[0].mxu0
      %424 = vmatprep.mubr.f32.mxu0 0.0
      %425 = vmatmul.mubr.f32.gmra.mrb[0].mxu0 %v343
      %v426 = vpop.f32.mrb[0].mxu0
      %v427 = vadd.f32 %v330, %v426
      %v428 = vpop.f32.mrb[0].mxu0
      %429 = vdwg.mxu0
      %s430 = scalar_lea.vmem %s2, 64
      %v431 = vld [vmem:[%s430] sm:$0xff]
      %v432 = vld [vmem:[%s430 + $0x8] sm:$0xff]
      %v433 = vld [vmem:[%s430 + $0x10] sm:$0xff]
      %v434 = vld [vmem:[%s430 + $0x18] sm:$0xff]
      %439 = vrot.lane.b32.xlu0 %v218, 127
      %v440 = vpop.permute.xlu0 %439
      %441 = vrot.lane.b32.xlu0 %v219, 127
      %v442 = vpop.permute.xlu0 %441
      %443 = vrot.lane.b32.xlu0 %v220, 127
      %v444 = vpop.permute.xlu0 %443
      %445 = vrot.lane.b32.xlu0 %v221, 127
      %v446 = vpop.permute.xlu0 %445
      %v452 = vsel %vm235, %v431, 0
      %v455 = vsel %vm235, %v432, 0
      %v458 = vsel %vm235, %v433, 0
      %v461 = vsel %vm235, %v434, 0
      %463 = vmatprep.subr.mxu0 0.0
      %464 = vmatpush1.msra.mxu0 %v440
      %465 = vmatprep.subr.mxu0 0.0
      %466 = vmatpush1.msra.mxu0 %v442
      %467 = vmatprep.subr.mxu0 0.0
      %468 = vmatpush1.msra.mxu0 %v444
      %469 = vmatprep.subr.mxu0 0.0
      %470 = vmatpush1.msra.mxu0 %v446
      %471 = vmatprep.subr.mxu0 0.0
      %472 = vmatpush1.msra.mxu0 0.0
      %473 = vmatprep.subr.mxu0 0.0
      %474 = vmatpush1.msra.mxu0 0.0
      %475 = vmatprep.subr.mxu0 0.0
      %476 = vmatpush1.msra.mxu0 0.0
      %477 = vmatprep.subr.mxu0 0.0
      %478 = vmatpush1.msra.mxu0 0.0
      %479 = vmatprep.subr.mxu0 0.0
      %480 = vmatpush1.msra.mxu0 0.0
      %481 = vmatprep.subr.mxu0 0.0
      %482 = vmatpush1.msra.mxu0 0.0
      %483 = vmatprep.subr.mxu0 0.0
      %484 = vmatpush1.msra.mxu0 0.0
      %485 = vmatprep.subr.mxu0 0.0
      %486 = vmatpush1.msra.mxu0 0.0
      %487 = vmatprep.subr.mxu0 0.0
      %488 = vmatpush1.msra.mxu0 0.0
      %489 = vmatprep.subr.mxu0 0.0
      %490 = vmatpush1.msra.mxu0 0.0
      %491 = vmatprep.subr.mxu0 0.0
      %492 = vmatpush1.msra.mxu0 0.0
      %493 = vmatprep.subr.mxu0 0.0
      %494 = vmatpush1.msra.mxu0 0.0
      %495 = vmatprep.subr.mxu0 0.0
      %496 = vmatpush1.msra.mxu0 0.0
      %497 = vmatprep.subr.mxu0 0.0
      %498 = vmatpush1.msra.mxu0 0.0
      %499 = vmatprep.subr.mxu0 0.0
      %500 = vmatpush1.msra.mxu0 0.0
      %501 = vmatprep.subr.mxu0 0.0
      %502 = vmatpush1.msra.mxu0 0.0
      %503 = vmatprep.subr.mxu0 0.0
      %504 = vmatpush1.msra.mxu0 0.0
      %505 = vmatprep.subr.mxu0 0.0
      %506 = vmatpush1.msra.mxu0 0.0
      %507 = vmatprep.subr.mxu0 0.0
      %508 = vmatpush1.msra.mxu0 0.0
      %509 = vmatprep.subr.mxu0 0.0
      %510 = vmatpush1.msra.mxu0 0.0
      %511 = vmatprep.subr.mxu0 0.0
      %512 = vmatpush1.msra.mxu0 0.0
      %513 = vmatprep.subr.mxu0 0.0
      %514 = vmatpush1.msra.mxu0 0.0
      %515 = vmatprep.subr.mxu0 0.0
      %516 = vmatpush1.msra.mxu0 0.0
      %517 = vmatprep.subr.mxu0 0.0
      %518 = vmatpush1.msra.mxu0 0.0
      %519 = vmatprep.subr.mxu0 0.0
      %520 = vmatpush1.msra.mxu0 0.0
      %521 = vmatprep.subr.mxu0 0.0
      %522 = vmatpush1.msra.mxu0 0.0
      %523 = vmatprep.subr.mxu0 0.0
      %524 = vmatpush1.msra.mxu0 0.0
      %525 = vmatprep.subr.mxu0 0.0
      %526 = vmatpush1.msra.mxu0 0.0
      %527 = vmatprep.mubr.f32.mxu0 0.0
      %528 = vmatmul.mubr.f32.gmra.mrb[0].mxu0 %v452
      %v529 = vpop.f32.mrb[0].mxu0
      %v530 = vadd.f32 0.0, %v529
      %v531 = vpop.f32.mrb[0].mxu0
      %532 = vmatprep.mubr.f32.mxu0 0.0
      %533 = vmatmul.mubr.f32.gmra.mrb[0].mxu0 %v455
      %v534 = vpop.f32.mrb[0].mxu0
      %v535 = vadd.f32 0.0, %v534
      %v536 = vpop.f32.mrb[0].mxu0
      %537 = vmatprep.mubr.f32.mxu0 0.0
      %538 = vmatmul.mubr.f32.gmra.mrb[0].mxu0 %v458
      %v539 = vpop.f32.mrb[0].mxu0
      %v540 = vadd.f32 0.0, %v539
      %v541 = vpop.f32.mrb[0].mxu0
      %542 = vmatprep.mubr.f32.mxu0 0.0
      %543 = vmatmul.mubr.f32.gmra.mrb[0].mxu0 %v461
      %v544 = vpop.f32.mrb[0].mxu0
      %v545 = vadd.f32 0.0, %v544
      %v546 = vpop.f32.mrb[0].mxu0
      %547 = vdwg.mxu0
      %v548 = vadd.f32 %v412, %v530
      %v549 = vadd.f32 %v417, %v535
      %v550 = vadd.f32 %v422, %v540
      %v551 = vadd.f32 %v427, %v545
      %s552 = scalar_lea.vmem %s2, 96
      %v553 = vld [vmem:[%s552] sm:$0xff]
      %v554 = vld [vmem:[%s552 + $0x8] sm:$0xff]
      %v555 = vld [vmem:[%s552 + $0x10] sm:$0xff]
      %v556 = vld [vmem:[%s552 + $0x18] sm:$0xff]
      %561 = vrot.lane.b32.xlu0 %v222, 127
      %v562 = vpop.permute.xlu0 %561
      %563 = vrot.lane.b32.xlu0 %v223, 127
      %v564 = vpop.permute.xlu0 %563
      %565 = vrot.lane.b32.xlu0 %v224, 127
      %v566 = vpop.permute.xlu0 %565
      %567 = vrot.lane.b32.xlu0 %v225, 127
      %v568 = vpop.permute.xlu0 %567
      %v574 = vsel %vm235, %v553, 0
      %v577 = vsel %vm235, %v554, 0
      %v580 = vsel %vm235, %v555, 0
      %v583 = vsel %vm235, %v556, 0
      %585 = vmatprep.subr.mxu0 0.0
      %586 = vmatpush1.msra.mxu0 %v562
      %587 = vmatprep.subr.mxu0 0.0
      %588 = vmatpush1.msra.mxu0 %v564
      %589 = vmatprep.subr.mxu0 0.0
      %590 = vmatpush1.msra.mxu0 %v566
      %591 = vmatprep.subr.mxu0 0.0
      %592 = vmatpush1.msra.mxu0 %v568
      %593 = vmatprep.subr.mxu0 0.0
      %594 = vmatpush1.msra.mxu0 0.0
      %595 = vmatprep.subr.mxu0 0.0
      %596 = vmatpush1.msra.mxu0 0.0
      %597 = vmatprep.subr.mxu0 0.0
      %598 = vmatpush1.msra.mxu0 0.0
      %599 = vmatprep.subr.mxu0 0.0
      %600 = vmatpush1.msra.mxu0 0.0
      %601 = vmatprep.subr.mxu0 0.0
      %602 = vmatpush1.msra.mxu0 0.0
      %603 = vmatprep.subr.mxu0 0.0
      %604 = vmatpush1.msra.mxu0 0.0
      %605 = vmatprep.subr.mxu0 0.0
      %606 = vmatpush1.msra.mxu0 0.0
      %607 = vmatprep.subr.mxu0 0.0
      %608 = vmatpush1.msra.mxu0 0.0
      %609 = vmatprep.subr.mxu0 0.0
      %610 = vmatpush1.msra.mxu0 0.0
      %611 = vmatprep.subr.mxu0 0.0
      %612 = vmatpush1.msra.mxu0 0.0
      %613 = vmatprep.subr.mxu0 0.0
      %614 = vmatpush1.msra.mxu0 0.0
      %615 = vmatprep.subr.mxu0 0.0
      %616 = vmatpush1.msra.mxu0 0.0
      %617 = vmatprep.subr.mxu0 0.0
      %618 = vmatpush1.msra.mxu0 0.0
      %619 = vmatprep.subr.mxu0 0.0
      %620 = vmatpush1.msra.mxu0 0.0
      %621 = vmatprep.subr.mxu0 0.0
      %622 = vmatpush1.msra.mxu0 0.0
      %623 = vmatprep.subr.mxu0 0.0
      %624 = vmatpush1.msra.mxu0 0.0
      %625 = vmatprep.subr.mxu0 0.0
      %626 = vmatpush1.msra.mxu0 0.0
      %627 = vmatprep.subr.mxu0 0.0
      %628 = vmatpush1.msra.mxu0 0.0
      %629 = vmatprep.subr.mxu0 0.0
      %630 = vmatpush1.msra.mxu0 0.0
      %631 = vmatprep.subr.mxu0 0.0
      %632 = vmatpush1.msra.mxu0 0.0
      %633 = vmatprep.subr.mxu0 0.0
      %634 = vmatpush1.msra.mxu0 0.0
      %635 = vmatprep.subr.mxu0 0.0
      %636 = vmatpush1.msra.mxu0 0.0
      %637 = vmatprep.subr.mxu0 0.0
      %638 = vmatpush1.msra.mxu0 0.0
      %639 = vmatprep.subr.mxu0 0.0
      %640 = vmatpush1.msra.mxu0 0.0
      %641 = vmatprep.subr.mxu0 0.0
      %642 = vmatpush1.msra.mxu0 0.0
      %643 = vmatprep.subr.mxu0 0.0
      %644 = vmatpush1.msra.mxu0 0.0
      %645 = vmatprep.subr.mxu0 0.0
      %646 = vmatpush1.msra.mxu0 0.0
      %647 = vmatprep.subr.mxu0 0.0
      %648 = vmatpush1.msra.mxu0 0.0
      %649 = vmatprep.mubr.f32.mxu0 0.0
      %650 = vmatmul.mubr.f32.gmra.mrb[0].mxu0 %v574
      %v651 = vpop.f32.mrb[0].mxu0
      %v652 = vadd.f32 0.0, %v651
      %v653 = vpop.f32.mrb[0].mxu0
      %654 = vmatprep.mubr.f32.mxu0 0.0
      %655 = vmatmul.mubr.f32.gmra.mrb[0].mxu0 %v577
      %v656 = vpop.f32.mrb[0].mxu0
      %v657 = vadd.f32 0.0, %v656
      %v658 = vpop.f32.mrb[0].mxu0
      %659 = vmatprep.mubr.f32.mxu0 0.0
      %660 = vmatmul.mubr.f32.gmra.mrb[0].mxu0 %v580
      %v661 = vpop.f32.mrb[0].mxu0
      %v662 = vadd.f32 0.0, %v661
      %v663 = vpop.f32.mrb[0].mxu0
      %664 = vmatprep.mubr.f32.mxu0 0.0
      %665 = vmatmul.mubr.f32.gmra.mrb[0].mxu0 %v583
      %v666 = vpop.f32.mrb[0].mxu0
      %v667 = vadd.f32 0.0, %v666
      %v668 = vpop.f32.mrb[0].mxu0
      %669 = vdwg.mxu0
      %v670 = vadd.f32 %v548, %v652
      %v671 = vadd.f32 %v549, %v657
      %v672 = vadd.f32 %v550, %v662
      %v673 = vadd.f32 %v551, %v667
      %s674 = scalar_lea.vmem %s2, 128
      %v675 = vld [vmem:[%s674] sm:$0xff]
      %v676 = vld [vmem:[%s674 + $0x8] sm:$0xff]
      %v677 = vld [vmem:[%s674 + $0x10] sm:$0xff]
      %v678 = vld [vmem:[%s674 + $0x18] sm:$0xff]
      %679 = vrot.lane.b32.xlu0 %v218, 126
      %v680 = vpop.permute.xlu0 %679
      %681 = vrot.lane.b32.xlu0 %v219, 126
      %v682 = vpop.permute.xlu0 %681
      %683 = vrot.lane.b32.xlu0 %v220, 126
      %v684 = vpop.permute.xlu0 %683
      %685 = vrot.lane.b32.xlu0 %v221, 126
      %v686 = vpop.permute.xlu0 %685
      %v692 = vsel %vm235, %v675, 0
      %v695 = vsel %vm235, %v676, 0
      %v698 = vsel %vm235, %v677, 0
      %v701 = vsel %vm235, %v678, 0
      %703 = vmatprep.subr.mxu0 0.0
      %704 = vmatpush1.msra.mxu0 %v680
      %705 = vmatprep.subr.mxu0 0.0
      %706 = vmatpush1.msra.mxu0 %v682
      %707 = vmatprep.subr.mxu0 0.0
      %708 = vmatpush1.msra.mxu0 %v684
      %709 = vmatprep.subr.mxu0 0.0
      %710 = vmatpush1.msra.mxu0 %v686
      %711 = vmatprep.subr.mxu0 0.0
      %712 = vmatpush1.msra.mxu0 0.0
      %713 = vmatprep.subr.mxu0 0.0
      %714 = vmatpush1.msra.mxu0 0.0
      %715 = vmatprep.subr.mxu0 0.0
      %716 = vmatpush1.msra.mxu0 0.0
      %717 = vmatprep.subr.mxu0 0.0
      %718 = vmatpush1.msra.mxu0 0.0
      %719 = vmatprep.subr.mxu0 0.0
      %720 = vmatpush1.msra.mxu0 0.0
      %721 = vmatprep.subr.mxu0 0.0
      %722 = vmatpush1.msra.mxu0 0.0
      %723 = vmatprep.subr.mxu0 0.0
      %724 = vmatpush1.msra.mxu0 0.0
      %725 = vmatprep.subr.mxu0 0.0
      %726 = vmatpush1.msra.mxu0 0.0
      %727 = vmatprep.subr.mxu0 0.0
      %728 = vmatpush1.msra.mxu0 0.0
      %729 = vmatprep.subr.mxu0 0.0
      %730 = vmatpush1.msra.mxu0 0.0
      %731 = vmatprep.subr.mxu0 0.0
      %732 = vmatpush1.msra.mxu0 0.0
      %733 = vmatprep.subr.mxu0 0.0
      %734 = vmatpush1.msra.mxu0 0.0
      %735 = vmatprep.subr.mxu0 0.0
      %736 = vmatpush1.msra.mxu0 0.0
      %737 = vmatprep.subr.mxu0 0.0
      %738 = vmatpush1.msra.mxu0 0.0
      %739 = vmatprep.subr.mxu0 0.0
      %740 = vmatpush1.msra.mxu0 0.0
      %741 = vmatprep.subr.mxu0 0.0
      %742 = vmatpush1.msra.mxu0 0.0
      %743 = vmatprep.subr.mxu0 0.0
      %744 = vmatpush1.msra.mxu0 0.0
      %745 = vmatprep.subr.mxu0 0.0
      %746 = vmatpush1.msra.mxu0 0.0
      %747 = vmatprep.subr.mxu0 0.0
      %748 = vmatpush1.msra.mxu0 0.0
      %749 = vmatprep.subr.mxu0 0.0
      %750 = vmatpush1.msra.mxu0 0.0
      %751 = vmatprep.subr.mxu0 0.0
      %752 = vmatpush1.msra.mxu0 0.0
      %753 = vmatprep.subr.mxu0 0.0
      %754 = vmatpush1.msra.mxu0 0.0
      %755 = vmatprep.subr.mxu0 0.0
      %756 = vmatpush1.msra.mxu0 0.0
      %757 = vmatprep.subr.mxu0 0.0
      %758 = vmatpush1.msra.mxu0 0.0
      %759 = vmatprep.subr.mxu0 0.0
      %760 = vmatpush1.msra.mxu0 0.0
      %761 = vmatprep.subr.mxu0 0.0
      %762 = vmatpush1.msra.mxu0 0.0
      %763 = vmatprep.subr.mxu0 0.0
      %764 = vmatpush1.msra.mxu0 0.0
      %765 = vmatprep.subr.mxu0 0.0
      %766 = vmatpush1.msra.mxu0 0.0
      %767 = vmatprep.mubr.f32.mxu0 0.0
      %768 = vmatmul.mubr.f32.gmra.mrb[0].mxu0 %v692
      %v769 = vpop.f32.mrb[0].mxu0
      %v770 = vadd.f32 0.0, %v769
      %v771 = vpop.f32.mrb[0].mxu0
      %772 = vmatprep.mubr.f32.mxu0 0.0
      %773 = vmatmul.mubr.f32.gmra.mrb[0].mxu0 %v695
      %v774 = vpop.f32.mrb[0].mxu0
      %v775 = vadd.f32 0.0, %v774
      %v776 = vpop.f32.mrb[0].mxu0
      %777 = vmatprep.mubr.f32.mxu0 0.0
      %778 = vmatmul.mubr.f32.gmra.mrb[0].mxu0 %v698
      %v779 = vpop.f32.mrb[0].mxu0
      %v780 = vadd.f32 0.0, %v779
      %v781 = vpop.f32.mrb[0].mxu0
      %782 = vmatprep.mubr.f32.mxu0 0.0
      %783 = vmatmul.mubr.f32.gmra.mrb[0].mxu0 %v701
      %v784 = vpop.f32.mrb[0].mxu0
      %v785 = vadd.f32 0.0, %v784
      %v786 = vpop.f32.mrb[0].mxu0
      %787 = vdwg.mxu0
      %v788 = vadd.f32 %v670, %v770
      %v789 = vadd.f32 %v671, %v775
      %v790 = vadd.f32 %v672, %v780
      %v791 = vadd.f32 %v673, %v785
      %v792 = vld [vmem:[%s3] sm:$0xff]
      %v793 = vld [vmem:[%s3 + $0x8] sm:$0xff]
      %v794 = vld [vmem:[%s3 + $0x10] sm:$0xff]
      %v795 = vld [vmem:[%s3 + $0x18] sm:$0xff]
      %797 = vset.pattern.permute.xlu0 0
      %798 = vperm.xlu0 %797, %v792
      %v799 = vpop.permute.xlu0 %798
      %802 = vset.pattern.permute.xlu0 0
      %803 = vperm.xlu0 %802, %v793
      %v804 = vpop.permute.xlu0 %803
      %807 = vset.pattern.permute.xlu0 0
      %808 = vperm.xlu0 %807, %v794
      %v809 = vpop.permute.xlu0 %808
      %812 = vset.pattern.permute.xlu0 0
      %813 = vperm.xlu0 %812, %v795
      %v814 = vpop.permute.xlu0 %813
      %v816 = vadd.f32 %v788, %v799
      %v817 = vadd.f32 %v789, %v804
      %v818 = vadd.f32 %v790, %v809
      %v819 = vadd.f32 %v791, %v814
      %v820 = vmax.f32 %v816, 0.0
      %v821 = vmax.f32 %v817, 0.0
      %v822 = vmax.f32 %v818, 0.0
      %v823 = vmax.f32 %v819, 0.0
      %vm824 = vcmask 31744
      %825 = vst.msk [vmem:[%s217] sm:$0xff] %vm824, %v820
      %826 = vst.msk [vmem:[%s217 + $0x8] sm:$0xff] %vm824, %v821
      %827 = vst.msk [vmem:[%s217 + $0x10] sm:$0xff] %vm824, %v822
      %828 = vst.msk [vmem:[%s217 + $0x18] sm:$0xff] %vm824, %v823
      %p829 = scmp.lt.s32.totalorder %s15, 1
      %s830 = scalar_select %p829, %s15, 1
      %s831 = smul.addr %s830, 4
      %s832 = smul.addr %s831, 8
      %s833 = scalar_lea.vmem %s4, %s832
      // Predicated region
      $region37: #{unet_forward.16} parent=35 // pred_check
        %p834 = pneg %p127
      $region38: #{unet_forward.16} parent=35 // pred_check_branch
        %836 = sbr.rel (%p834) target = $region40
      $region39: #{unet_forward.16} parent=35 // pred_region
        _
      $region40: #{unet_forward.16} parent=35 // pred_fallthru
        _
    $region36: #{unet_forward.16} parent=5 // pred_fallthru
      _
    %p837 = scmp.le.s32.totalorder 2, %s10
    // Predicated region
    $region41: #{unet_forward.16} parent=5 // pred_check
      %p838 = pneg %p837
    $region42: #{unet_forward.16} parent=5 // pred_check_branch
      %840 = sbr.rel (%p838) target = $region44
    $region43: #{unet_forward.16} parent=5 // pred_region
      %s841 = ssub.s32 %s10, 2
      // Predicated region
      $region45: #{unet_forward.16} parent=43 // pred_check
        %p842 = pneg %p133
      $region46: #{unet_forward.16} parent=43 // pred_check_branch
        %844 = sbr.rel (%p842) target = $region48
      $region47: #{unet_forward.16} parent=43 // pred_region
        %p845 = scmp.lt.s32.totalorder %s16, 1
        %s846 = scalar_select %p845, %s16, 1
        %s847 = smul.addr %s846, 4
        %s848 = smul.addr %s847, 8
        %s849 = scalar_lea.vmem %s4, %s848
      $region48: #{unet_forward.16} parent=43 // pred_fallthru
        _
    $region44: #{unet_forward.16} parent=5 // pred_fallthru
      _
  $region6: #{unet_forward.16} parent=0 // loop_footer
    %s14 = sadd.s32 1, %s10
  $region7: #{unet_forward.16} parent=0 // loop_footer_branch
    %9 = sbr.rel target = $region3
  $region8: #{unet_forward.16} parent=0 // loop_exit
    _

// kernel: unet_forward.15
$region0: #{unet_forward.15}
  #allocation0 [shape = 'u32[]', space=smem, size = 0x4, offset = 0x4, fixed_abs, tag = 'smem constant byte address 0x4 - core index']
  #allocation1 [shape = 'u32[144,128]{1,0:T(1,128)}', space=vmem, size = 0x12000, scoped, tag = 'internal scratch']
  %s0 = inlined_call_operand.vmem [shape: f32[2,16,10], index: 0, kind: input, shape index: {}]
  %s1 = inlined_call_operand.vmem [shape: f32[2,16,10], index: 1, kind: input, shape index: {}]
  %s2 = inlined_call_operand.vmem [shape: f32[5,32,16], index: 2, kind: input, shape index: {}]
  %s3 = inlined_call_operand.vmem [shape: f32[32,1], index: 3, kind: input, shape index: {}]
  %s4 = inlined_call_operand.vmem [shape: f32[2,32,8], index: 4, kind: output, shape index: {}]
  %s5 = sld [smem:[#allocation0]]
  $region49: #{unet_forward.15} parent=0
    _
  %s7 = ssub.s32 1, %s5
  %s8 = scalar_select 0, %s7, %s5
  loop: start=0, step=1, limit=4
  $region2: #{unet_forward.15} parent=0 // loop_pre_header
    _
  $region3: #{unet_forward.15} parent=0 // loop_header
    %s10 = sphi 0, %s14
    %p11 = scmp.ge.s32.totalorder %s10, 4
    %s20 = sphi 0, %s22
    %s23 = sphi 0, %s20
    %s24 = sphi 0, %s23
    %s40 = sphi 0, %s24
    %s46 = sphi 0, %s48
    %s49 = sphi 0, %s46
    %s50 = sphi 0, %s49
    %s66 = sphi 0, %s50
    %s70 = sphi 0, %s70
    %s72 = sphi 0, %s70
    %s73 = sphi 0, %s72
    %s87 = sphi 0, %s73
    %s91 = sphi 0, %s91
    %s93 = sphi 0, %s91
    %s94 = sphi 0, %s93
    %s108 = sphi 0, %s94
    %s114 = sphi 0, %s116
    %s117 = sphi 0, %s114
    %s118 = sphi 0, %s117
    %s134 = sphi 0, %s118
  $region4: #{unet_forward.15} parent=0 // loop_header_branch
    %13 = sbr.rel (%p11) target = $region8
  $region5: #{unet_forward.15} parent=0 // loop_body
    %s15 = ssub.s32 %s10, 1
    %s16 = ssub.s32 %s10, 2
    %s17 = sadd.s32 %s10, 1
    %s18 = ssub.s32 %s10, %s17
    %p19 = scmp.eq.s32.totalorder %s18, 0
    %s21 = sadd.s32 %s20, 1
    %s22 = scalar_select %p19, %s20, %s21
    %p25 = pneg %p19
    %p26 = scmp.eq.s32.totalorder %s10, 1
    %p27 = por %p25, %p26
    %p28 = scmp.ne.s32.totalorder %s20, %s23
    %p29 = scmp.eq.s32.totalorder %s10, 0
    %p30 = por %p28, %p29
    %p31 = scmp.ne.s32.totalorder %s20, %s23
    %p32 = scmp.eq.s32.totalorder %s15, 1
    %p33 = por %p31, %p32
    %p34 = scmp.ne.s32.totalorder %s23, %s24
    %p35 = scmp.eq.s32.totalorder %s15, 0
    %p36 = por %p34, %p35
    %p37 = scmp.ne.s32.totalorder %s23, %s24
    %p38 = scmp.eq.s32.totalorder %s16, 1
    %p39 = por %p37, %p38
    %p41 = scmp.ne.s32.totalorder %s24, %s40
    %p42 = scmp.eq.s32.totalorder %s16, 0
    %p43 = por %p41, %p42
    %s44 = ssub.s32 %s10, %s17
    %p45 = scmp.eq.s32.totalorder %s44, 0
    %s47 = sadd.s32 %s46, 1
    %s48 = scalar_select %p45, %s46, %s47
    %p51 = pneg %p45
    %p52 = scmp.eq.s32.totalorder %s10, 1
    %p53 = por %p51, %p52
    %p54 = scmp.ne.s32.totalorder %s46, %s49
    %p55 = scmp.eq.s32.totalorder %s10, 0
    %p56 = por %p54, %p55
    %p57 = scmp.ne.s32.totalorder %s46, %s49
    %p58 = scmp.eq.s32.totalorder %s15, 1
    %p59 = por %p57, %p58
    %p60 = scmp.ne.s32.totalorder %s49, %s50
    %p61 = scmp.eq.s32.totalorder %s15, 0
    %p62 = por %p60, %p61
    %p63 = scmp.ne.s32.totalorder %s49, %s50
    %p64 = scmp.eq.s32.totalorder %s16, 1
    %p65 = por %p63, %p64
    %p67 = scmp.ne.s32.totalorder %s50, %s66
    %p68 = scmp.eq.s32.totalorder %s16, 0
    %p69 = por %p67, %p68
    %s71 = sadd.s32 %s70, 1
    %p74 = scmp.eq.s32.totalorder %s10, 1
    %p75 = scmp.ne.s32.totalorder %s70, %s72
    %p76 = scmp.eq.s32.totalorder %s10, 0
    %p77 = por %p75, %p76
    %p78 = scmp.ne.s32.totalorder %s70, %s72
    %p79 = scmp.eq.s32.totalorder %s15, 1
    %p80 = por %p78, %p79
    %p81 = scmp.ne.s32.totalorder %s72, %s73
    %p82 = scmp.eq.s32.totalorder %s15, 0
    %p83 = por %p81, %p82
    %p84 = scmp.ne.s32.totalorder %s72, %s73
    %p85 = scmp.eq.s32.totalorder %s16, 1
    %p86 = por %p84, %p85
    %p88 = scmp.ne.s32.totalorder %s73, %s87
    %p89 = scmp.eq.s32.totalorder %s16, 0
    %p90 = por %p88, %p89
    %s92 = sadd.s32 %s91, 1
    %p95 = scmp.eq.s32.totalorder %s10, 1
    %p96 = scmp.ne.s32.totalorder %s91, %s93
    %p97 = scmp.eq.s32.totalorder %s10, 0
    %p98 = por %p96, %p97
    %p99 = scmp.ne.s32.totalorder %s91, %s93
    %p100 = scmp.eq.s32.totalorder %s15, 1
    %p101 = por %p99, %p100
    %p102 = scmp.ne.s32.totalorder %s93, %s94
    %p103 = scmp.eq.s32.totalorder %s15, 0
    %p104 = por %p102, %p103
    %p105 = scmp.ne.s32.totalorder %s93, %s94
    %p106 = scmp.eq.s32.totalorder %s16, 1
    %p107 = por %p105, %p106
    %p109 = scmp.ne.s32.totalorder %s94, %s108
    %p110 = scmp.eq.s32.totalorder %s16, 0
    %p111 = por %p109, %p110
    %s112 = ssub.s32 %s10, %s17
    %p113 = scmp.eq.s32.totalorder %s112, 0
    %s115 = sadd.s32 %s114, 1
    %s116 = scalar_select %p113, %s114, %s115
    %p119 = pneg %p113
    %p120 = scmp.eq.s32.totalorder %s10, 1
    %p121 = por %p119, %p120
    %p122 = scmp.ne.s32.totalorder %s114, %s117
    %p123 = scmp.eq.s32.totalorder %s10, 0
    %p124 = por %p122, %p123
    %p125 = scmp.ne.s32.totalorder %s114, %s117
    %p126 = scmp.eq.s32.totalorder %s15, 1
    %p127 = por %p125, %p126
    %p128 = scmp.ne.s32.totalorder %s117, %s118
    %p129 = scmp.eq.s32.totalorder %s15, 0
    %p130 = por %p128, %p129
    %p131 = scmp.ne.s32.totalorder %s117, %s118
    %p132 = scmp.eq.s32.totalorder %s16, 1
    %p133 = por %p131, %p132
    %p135 = scmp.ne.s32.totalorder %s118, %s134
    %p136 = scmp.eq.s32.totalorder %s16, 0
    %p137 = por %p135, %p136
    %p138 = scmp.le.s32.totalorder 1, %s10
    %p139 = scmp.lt.s32.totalorder %s10, 3
    %p140 = pnand %p138, %p139
    %p141 = pneg %p140
    // Predicated region
    $region9: #{unet_forward.15} parent=5 // pred_check
      _
    $region10: #{unet_forward.15} parent=5 // pred_check_branch
      %143 = sbr.rel (%p140) target = $region12
    $region11: #{unet_forward.15} parent=5 // pred_region
      %s144 = ssub.s32 %s10, 1
      // Predicated region
      $region13: #{unet_forward.15} parent=11 // pred_check
        %p145 = pneg %p83
      $region14: #{unet_forward.15} parent=11 // pred_check_branch
        %147 = sbr.rel (%p145) target = $region16
      $region15: #{unet_forward.15} parent=11 // pred_region
        _
      $region16: #{unet_forward.15} parent=11 // pred_fallthru
        _
      // Predicated region
      $region17: #{unet_forward.15} parent=11 // pred_check
        %p148 = pneg %p104
      $region18: #{unet_forward.15} parent=11 // pred_check_branch
        %150 = sbr.rel (%p148) target = $region20
      $region19: #{unet_forward.15} parent=11 // pred_region
        _
      $region20: #{unet_forward.15} parent=11 // pred_fallthru
        _
    $region12: #{unet_forward.15} parent=5 // pred_fallthru
      _
    %p151 = scmp.lt.s32.totalorder %s10, 2
    // Predicated region
    $region21: #{unet_forward.15} parent=5 // pred_check
      %p152 = pneg %p151
    $region22: #{unet_forward.15} parent=5 // pred_check_branch
      %154 = sbr.rel (%p152) target = $region24
    $region23: #{unet_forward.15} parent=5 // pred_region
      // Predicated region
      $region25: #{unet_forward.15} parent=23 // pred_check
        %p155 = pneg %p30
      $region26: #{unet_forward.15} parent=23 // pred_check_branch
        %157 = sbr.rel (%p155) target = $region28
      $region27: #{unet_forward.15} parent=23 // pred_region
        %p158 = scmp.lt.s32.totalorder %s10, 1
        %s159 = scalar_select %p158, %s10, 1
        %s160 = smul.addr %s159, 2
        %s161 = smul.addr %s160, 8
        %s162 = scalar_lea.vmem %s0, %s161
      $region28: #{unet_forward.15} parent=23 // pred_fallthru
        _
      // Predicated region
      $region29: #{unet_forward.15} parent=23 // pred_check
        %p163 = pneg %p56
      $region30: #{unet_forward.15} parent=23 // pred_check_branch
        %165 = sbr.rel (%p163) target = $region32
      $region31: #{unet_forward.15} parent=23 // pred_region
        %p166 = scmp.lt.s32.totalorder %s10, 1
        %s167 = scalar_select %p166, %s10, 1
        %s168 = smul.addr %s167, 2
        %s169 = smul.addr %s168, 8
        %s170 = scalar_lea.vmem %s1, %s169
      $region32: #{unet_forward.15} parent=23 // pred_fallthru
        _
    $region24: #{unet_forward.15} parent=5 // pred_fallthru
      _
    %p171 = scmp.le.s32.totalorder 1, %s10
    %p172 = scmp.lt.s32.totalorder %s10, 3
    %p173 = pnand %p171, %p172
    %p174 = pneg %p173
    // Predicated region
    $region33: #{unet_forward.15} parent=5 // pred_check
      _
    $region34: #{unet_forward.15} parent=5 // pred_check_branch
      %176 = sbr.rel (%p173) target = $region36
    $region35: #{unet_forward.15} parent=5 // pred_region
      %s177 = ssub.s32 %s10, 1
      %p178 = scmp.lt.s32.totalorder %s15, 1
      %s179 = scalar_select %p178, %s15, 1
      %s180 = smul.addr %s179, 2
      %s181 = smul.addr %s180, 8
      %s182 = scalar_lea.vmem %s0, %s181
      %p183 = pneg %p36
      %p184 = pneg %p33
      %p185 = scmp.lt.s32.totalorder %s15, 1
      %s186 = scalar_select %p185, %s15, 1
      %s187 = smul.addr %s186, 2
      %s188 = smul.addr %s187, 8
      %s189 = scalar_lea.vmem %s1, %s188
      %p190 = pneg %p62
      %p191 = pneg %p59
      %p192 = pneg %p83
      %p193 = pneg %p80
      %p194 = pneg %p104
      %p195 = pneg %p101
      %p196 = pneg %p130
      %p197 = pneg %p127
      %p198 = scmp.lt.s32.totalorder %s15, 1
      %s199 = scalar_select %p198, %s15, 1
      %s200 = smul.addr %s199, 4
      %s201 = smul.addr %s200, 8
      %s202 = scalar_lea.vmem %s4, %s201
      %p203 = scmp.lt.s32.totalorder %s15, 1
      %s204 = scalar_select %p203, %s15, 1
      %s205 = smul.addr %s204, 2
      %s206 = smul.addr %s205, 8
      %s207 = scalar_lea.vmem %s0, %s206
      %p208 = scmp.lt.s32.totalorder %s15, 1
      %s209 = scalar_select %p208, %s15, 1
      %s210 = smul.addr %s209, 2
      %s211 = smul.addr %s210, 8
      %s212 = scalar_lea.vmem %s1, %s211
      %p213 = scmp.lt.s32.totalorder %s15, 1
      %s214 = scalar_select %p213, %s15, 1
      %s215 = smul.addr %s214, 4
      %s216 = smul.addr %s215, 8
      %s217 = scalar_lea.vmem %s4, %s216
      %v218 = vld [vmem:[%s207] sm:$0xff]
      %v219 = vld [vmem:[%s207 + $0x8] sm:$0xff]
      %v220 = vld [vmem:[%s212] sm:$0xff]
      %v221 = vld [vmem:[%s212 + $0x8] sm:$0xff]
      %v222 = vld [vmem:[%s2] sm:$0xff]
      %v223 = vld [vmem:[%s2 + $0x8] sm:$0xff]
      %v224 = vld [vmem:[%s2 + $0x10] sm:$0xff]
      %v225 = vld [vmem:[%s2 + $0x18] sm:$0xff]
      %s226 = scalar_lea.vmem %s2, 32
      %v227 = vld [vmem:[%s226] sm:$0xff]
      %v228 = vld [vmem:[%s226 + $0x8] sm:$0xff]
      %v229 = vld [vmem:[%s226 + $0x10] sm:$0xff]
      %v230 = vld [vmem:[%s226 + $0x18] sm:$0xff]
      %vm231 = vcmask 130048
      %v233 = vsel %vm231, %v227, 0
      %v236 = vsel %vm231, %v228, 0
      %v239 = vsel %vm231, %v229, 0
      %v242 = vsel %vm231, %v230, 0
      %244 = vmatprep.subr.mxu0 0.0
      %245 = vmatpush1.msra.mxu0 %v220
      %246 = vmatprep.subr.mxu0 0.0
      %247 = vmatpush1.msra.mxu0 %v221
      %248 = vmatprep.subr.mxu0 0.0
      %249 = vmatpush1.msra.mxu0 0.0
      %250 = vmatprep.subr.mxu0 0.0
      %251 = vmatpush1.msra.mxu0 0.0
      %252 = vmatprep.subr.mxu0 0.0
      %253 = vmatpush1.msra.mxu0 0.0
      %254 = vmatprep.subr.mxu0 0.0
      %255 = vmatpush1.msra.mxu0 0.0
      %256 = vmatprep.subr.mxu0 0.0
      %257 = vmatpush1.msra.mxu0 0.0
      %258 = vmatprep.subr.mxu0 0.0
      %259 = vmatpush1.msra.mxu0 0.0
      %260 = vmatprep.subr.mxu0 0.0
      %261 = vmatpush1.msra.mxu0 0.0
      %262 = vmatprep.subr.mxu0 0.0
      %263 = vmatpush1.msra.mxu0 0.0
      %264 = vmatprep.subr.mxu0 0.0
      %265 = vmatpush1.msra.mxu0 0.0
      %266 = vmatprep.subr.mxu0 0.0
      %267 = vmatpush1.msra.mxu0 0.0
      %268 = vmatprep.subr.mxu0 0.0
      %269 = vmatpush1.msra.mxu0 0.0
      %270 = vmatprep.subr.mxu0 0.0
      %271 = vmatpush1.msra.mxu0 0.0
      %272 = vmatprep.subr.mxu0 0.0
      %273 = vmatpush1.msra.mxu0 0.0
      %274 = vmatprep.subr.mxu0 0.0
      %275 = vmatpush1.msra.mxu0 0.0
      %276 = vmatprep.subr.mxu0 0.0
      %277 = vmatpush1.msra.mxu0 0.0
      %278 = vmatprep.subr.mxu0 0.0
      %279 = vmatpush1.msra.mxu0 0.0
      %280 = vmatprep.subr.mxu0 0.0
      %281 = vmatpush1.msra.mxu0 0.0
      %282 = vmatprep.subr.mxu0 0.0
      %283 = vmatpush1.msra.mxu0 0.0
      %284 = vmatprep.subr.mxu0 0.0
      %285 = vmatpush1.msra.mxu0 0.0
      %286 = vmatprep.subr.mxu0 0.0
      %287 = vmatpush1.msra.mxu0 0.0
      %288 = vmatprep.subr.mxu0 0.0
      %289 = vmatpush1.msra.mxu0 0.0
      %290 = vmatprep.subr.mxu0 0.0
      %291 = vmatpush1.msra.mxu0 0.0
      %292 = vmatprep.subr.mxu0 0.0
      %293 = vmatpush1.msra.mxu0 0.0
      %294 = vmatprep.subr.mxu0 0.0
      %295 = vmatpush1.msra.mxu0 0.0
      %296 = vmatprep.subr.mxu0 0.0
      %297 = vmatpush1.msra.mxu0 0.0
      %298 = vmatprep.subr.mxu0 0.0
      %299 = vmatpush1.msra.mxu0 0.0
      %300 = vmatprep.subr.mxu0 0.0
      %301 = vmatpush1.msra.mxu0 0.0
      %302 = vmatprep.subr.mxu0 0.0
      %303 = vmatpush1.msra.mxu0 0.0
      %304 = vmatprep.subr.mxu0 0.0
      %305 = vmatpush1.msra.mxu0 0.0
      %306 = vmatprep.subr.mxu0 0.0
      %307 = vmatpush1.msra.mxu0 0.0
      %308 = vmatprep.mubr.f32.mxu0 0.0
      %309 = vmatmul.mubr.f32.gmra.mrb[0].mxu0 %v233
      %v310 = vpop.f32.mrb[0].mxu0
      %v311 = vadd.f32 0.0, %v310
      %v312 = vpop.f32.mrb[0].mxu0
      %313 = vmatprep.mubr.f32.mxu0 0.0
      %314 = vmatmul.mubr.f32.gmra.mrb[0].mxu0 %v236
      %v315 = vpop.f32.mrb[0].mxu0
      %v316 = vadd.f32 0.0, %v315
      %v317 = vpop.f32.mrb[0].mxu0
      %318 = vmatprep.mubr.f32.mxu0 0.0
      %319 = vmatmul.mubr.f32.gmra.mrb[0].mxu0 %v239
      %v320 = vpop.f32.mrb[0].mxu0
      %v321 = vadd.f32 0.0, %v320
      %v322 = vpop.f32.mrb[0].mxu0
      %323 = vmatprep.mubr.f32.mxu0 0.0
      %324 = vmatmul.mubr.f32.gmra.mrb[0].mxu0 %v242
      %v325 = vpop.f32.mrb[0].mxu0
      %v326 = vadd.f32 0.0, %v325
      %v327 = vpop.f32.mrb[0].mxu0
      %328 = vdwg.mxu0
      %v330 = vsel %vm231, %v222, 0
      %v333 = vsel %vm231, %v223, 0
      %v336 = vsel %vm231, %v224, 0
      %v339 = vsel %vm231, %v225, 0
      %341 = vmatprep.subr.mxu0 0.0
      %342 = vmatpush1.msra.mxu0 %v218
      %343 = vmatprep.subr.mxu0 0.0
      %344 = vmatpush1.msra.mxu0 %v219
      %345 = vmatprep.subr.mxu0 0.0
      %346 = vmatpush1.msra.mxu0 0.0
      %347 = vmatprep.subr.mxu0 0.0
      %348 = vmatpush1.msra.mxu0 0.0
      %349 = vmatprep.subr.mxu0 0.0
      %350 = vmatpush1.msra.mxu0 0.0
      %351 = vmatprep.subr.mxu0 0.0
      %352 = vmatpush1.msra.mxu0 0.0
      %353 = vmatprep.subr.mxu0 0.0
      %354 = vmatpush1.msra.mxu0 0.0
      %355 = vmatprep.subr.mxu0 0.0
      %356 = vmatpush1.msra.mxu0 0.0
      %357 = vmatprep.subr.mxu0 0.0
      %358 = vmatpush1.msra.mxu0 0.0
      %359 = vmatprep.subr.mxu0 0.0
      %360 = vmatpush1.msra.mxu0 0.0
      %361 = vmatprep.subr.mxu0 0.0
      %362 = vmatpush1.msra.mxu0 0.0
      %363 = vmatprep.subr.mxu0 0.0
      %364 = vmatpush1.msra.mxu0 0.0
      %365 = vmatprep.subr.mxu0 0.0
      %366 = vmatpush1.msra.mxu0 0.0
      %367 = vmatprep.subr.mxu0 0.0
      %368 = vmatpush1.msra.mxu0 0.0
      %369 = vmatprep.subr.mxu0 0.0
      %370 = vmatpush1.msra.mxu0 0.0
      %371 = vmatprep.subr.mxu0 0.0
      %372 = vmatpush1.msra.mxu0 0.0
      %373 = vmatprep.subr.mxu0 0.0
      %374 = vmatpush1.msra.mxu0 0.0
      %375 = vmatprep.subr.mxu0 0.0
      %376 = vmatpush1.msra.mxu0 0.0
      %377 = vmatprep.subr.mxu0 0.0
      %378 = vmatpush1.msra.mxu0 0.0
      %379 = vmatprep.subr.mxu0 0.0
      %380 = vmatpush1.msra.mxu0 0.0
      %381 = vmatprep.subr.mxu0 0.0
      %382 = vmatpush1.msra.mxu0 0.0
      %383 = vmatprep.subr.mxu0 0.0
      %384 = vmatpush1.msra.mxu0 0.0
      %385 = vmatprep.subr.mxu0 0.0
      %386 = vmatpush1.msra.mxu0 0.0
      %387 = vmatprep.subr.mxu0 0.0
      %388 = vmatpush1.msra.mxu0 0.0
      %389 = vmatprep.subr.mxu0 0.0
      %390 = vmatpush1.msra.mxu0 0.0
      %391 = vmatprep.subr.mxu0 0.0
      %392 = vmatpush1.msra.mxu0 0.0
      %393 = vmatprep.subr.mxu0 0.0
      %394 = vmatpush1.msra.mxu0 0.0
      %395 = vmatprep.subr.mxu0 0.0
      %396 = vmatpush1.msra.mxu0 0.0
      %397 = vmatprep.subr.mxu0 0.0
      %398 = vmatpush1.msra.mxu0 0.0
      %399 = vmatprep.subr.mxu0 0.0
      %400 = vmatpush1.msra.mxu0 0.0
      %401 = vmatprep.subr.mxu0 0.0
      %402 = vmatpush1.msra.mxu0 0.0
      %403 = vmatprep.subr.mxu0 0.0
      %404 = vmatpush1.msra.mxu0 0.0
      %405 = vmatprep.mubr.f32.mxu0 0.0
      %406 = vmatmul.mubr.f32.gmra.mrb[0].mxu0 %v330
      %v407 = vpop.f32.mrb[0].mxu0
      %v408 = vadd.f32 %v311, %v407
      %v409 = vpop.f32.mrb[0].mxu0
      %410 = vmatprep.mubr.f32.mxu0 0.0
      %411 = vmatmul.mubr.f32.gmra.mrb[0].mxu0 %v333
      %v412 = vpop.f32.mrb[0].mxu0
      %v413 = vadd.f32 %v316, %v412
      %v414 = vpop.f32.mrb[0].mxu0
      %415 = vmatprep.mubr.f32.mxu0 0.0
      %416 = vmatmul.mubr.f32.gmra.mrb[0].mxu0 %v336
      %v417 = vpop.f32.mrb[0].mxu0
      %v418 = vadd.f32 %v321, %v417
      %v419 = vpop.f32.mrb[0].mxu0
      %420 = vmatprep.mubr.f32.mxu0 0.0
      %421 = vmatmul.mubr.f32.gmra.mrb[0].mxu0 %v339
      %v422 = vpop.f32.mrb[0].mxu0
      %v423 = vadd.f32 %v326, %v422
      %v424 = vpop.f32.mrb[0].mxu0
      %425 = vdwg.mxu0
      %s426 = scalar_lea.vmem %s2, 64
      %v427 = vld [vmem:[%s426] sm:$0xff]
      %v428 = vld [vmem:[%s426 + $0x8] sm:$0xff]
      %v429 = vld [vmem:[%s426 + $0x10] sm:$0xff]
      %v430 = vld [vmem:[%s426 + $0x18] sm:$0xff]
      %433 = vrot.lane.b32.xlu0 %v218, 127
      %v434 = vpop.permute.xlu0 %433
      %435 = vrot.lane.b32.xlu0 %v219, 127
      %v436 = vpop.permute.xlu0 %435
      %v440 = vsel %vm231, %v427, 0
      %v443 = vsel %vm231, %v428, 0
      %v446 = vsel %vm231, %v429, 0
      %v449 = vsel %vm231, %v430, 0
      %451 = vmatprep.subr.mxu0 0.0
      %452 = vmatpush1.msra.mxu0 %v434
      %453 = vmatprep.subr.mxu0 0.0
      %454 = vmatpush1.msra.mxu0 %v436
      %455 = vmatprep.subr.mxu0 0.0
      %456 = vmatpush1.msra.mxu0 0.0
      %457 = vmatprep.subr.mxu0 0.0
      %458 = vmatpush1.msra.mxu0 0.0
      %459 = vmatprep.subr.mxu0 0.0
      %460 = vmatpush1.msra.mxu0 0.0
      %461 = vmatprep.subr.mxu0 0.0
      %462 = vmatpush1.msra.mxu0 0.0
      %463 = vmatprep.subr.mxu0 0.0
      %464 = vmatpush1.msra.mxu0 0.0
      %465 = vmatprep.subr.mxu0 0.0
      %466 = vmatpush1.msra.mxu0 0.0
      %467 = vmatprep.subr.mxu0 0.0
      %468 = vmatpush1.msra.mxu0 0.0
      %469 = vmatprep.subr.mxu0 0.0
      %470 = vmatpush1.msra.mxu0 0.0
      %471 = vmatprep.subr.mxu0 0.0
      %472 = vmatpush1.msra.mxu0 0.0
      %473 = vmatprep.subr.mxu0 0.0
      %474 = vmatpush1.msra.mxu0 0.0
      %475 = vmatprep.subr.mxu0 0.0
      %476 = vmatpush1.msra.mxu0 0.0
      %477 = vmatprep.subr.mxu0 0.0
      %478 = vmatpush1.msra.mxu0 0.0
      %479 = vmatprep.subr.mxu0 0.0
      %480 = vmatpush1.msra.mxu0 0.0
      %481 = vmatprep.subr.mxu0 0.0
      %482 = vmatpush1.msra.mxu0 0.0
      %483 = vmatprep.subr.mxu0 0.0
      %484 = vmatpush1.msra.mxu0 0.0
      %485 = vmatprep.subr.mxu0 0.0
      %486 = vmatpush1.msra.mxu0 0.0
      %487 = vmatprep.subr.mxu0 0.0
      %488 = vmatpush1.msra.mxu0 0.0
      %489 = vmatprep.subr.mxu0 0.0
      %490 = vmatpush1.msra.mxu0 0.0
      %491 = vmatprep.subr.mxu0 0.0
      %492 = vmatpush1.msra.mxu0 0.0
      %493 = vmatprep.subr.mxu0 0.0
      %494 = vmatpush1.msra.mxu0 0.0
      %495 = vmatprep.subr.mxu0 0.0
      %496 = vmatpush1.msra.mxu0 0.0
      %497 = vmatprep.subr.mxu0 0.0
      %498 = vmatpush1.msra.mxu0 0.0
      %499 = vmatprep.subr.mxu0 0.0
      %500 = vmatpush1.msra.mxu0 0.0
      %501 = vmatprep.subr.mxu0 0.0
      %502 = vmatpush1.msra.mxu0 0.0
      %503 = vmatprep.subr.mxu0 0.0
      %504 = vmatpush1.msra.mxu0 0.0
      %505 = vmatprep.subr.mxu0 0.0
      %506 = vmatpush1.msra.mxu0 0.0
      %507 = vmatprep.subr.mxu0 0.0
      %508 = vmatpush1.msra.mxu0 0.0
      %509 = vmatprep.subr.mxu0 0.0
      %510 = vmatpush1.msra.mxu0 0.0
      %511 = vmatprep.subr.mxu0 0.0
      %512 = vmatpush1.msra.mxu0 0.0
      %513 = vmatprep.subr.mxu0 0.0
      %514 = vmatpush1.msra.mxu0 0.0
      %515 = vmatprep.mubr.f32.mxu0 0.0
      %516 = vmatmul.mubr.f32.gmra.mrb[0].mxu0 %v440
      %v517 = vpop.f32.mrb[0].mxu0
      %v518 = vadd.f32 0.0, %v517
      %v519 = vpop.f32.mrb[0].mxu0
      %520 = vmatprep.mubr.f32.mxu0 0.0
      %521 = vmatmul.mubr.f32.gmra.mrb[0].mxu0 %v443
      %v522 = vpop.f32.mrb[0].mxu0
      %v523 = vadd.f32 0.0, %v522
      %v524 = vpop.f32.mrb[0].mxu0
      %525 = vmatprep.mubr.f32.mxu0 0.0
      %526 = vmatmul.mubr.f32.gmra.mrb[0].mxu0 %v446
      %v527 = vpop.f32.mrb[0].mxu0
      %v528 = vadd.f32 0.0, %v527
      %v529 = vpop.f32.mrb[0].mxu0
      %530 = vmatprep.mubr.f32.mxu0 0.0
      %531 = vmatmul.mubr.f32.gmra.mrb[0].mxu0 %v449
      %v532 = vpop.f32.mrb[0].mxu0
      %v533 = vadd.f32 0.0, %v532
      %v534 = vpop.f32.mrb[0].mxu0
      %535 = vdwg.mxu0
      %v536 = vadd.f32 %v408, %v518
      %v537 = vadd.f32 %v413, %v523
      %v538 = vadd.f32 %v418, %v528
      %v539 = vadd.f32 %v423, %v533
      %s540 = scalar_lea.vmem %s2, 96
      %v541 = vld [vmem:[%s540] sm:$0xff]
      %v542 = vld [vmem:[%s540 + $0x8] sm:$0xff]
      %v543 = vld [vmem:[%s540 + $0x10] sm:$0xff]
      %v544 = vld [vmem:[%s540 + $0x18] sm:$0xff]
      %547 = vrot.lane.b32.xlu0 %v220, 127
      %v548 = vpop.permute.xlu0 %547
      %549 = vrot.lane.b32.xlu0 %v221, 127
      %v550 = vpop.permute.xlu0 %549
      %v554 = vsel %vm231, %v541, 0
      %v557 = vsel %vm231, %v542, 0
      %v560 = vsel %vm231, %v543, 0
      %v563 = vsel %vm231, %v544, 0
      %565 = vmatprep.subr.mxu0 0.0
      %566 = vmatpush1.msra.mxu0 %v548
      %567 = vmatprep.subr.mxu0 0.0
      %568 = vmatpush1.msra.mxu0 %v550
      %569 = vmatprep.subr.mxu0 0.0
      %570 = vmatpush1.msra.mxu0 0.0
      %571 = vmatprep.subr.mxu0 0.0
      %572 = vmatpush1.msra.mxu0 0.0
      %573 = vmatprep.subr.mxu0 0.0
      %574 = vmatpush1.msra.mxu0 0.0
      %575 = vmatprep.subr.mxu0 0.0
      %576 = vmatpush1.msra.mxu0 0.0
      %577 = vmatprep.subr.mxu0 0.0
      %578 = vmatpush1.msra.mxu0 0.0
      %579 = vmatprep.subr.mxu0 0.0
      %580 = vmatpush1.msra.mxu0 0.0
      %581 = vmatprep.subr.mxu0 0.0
      %582 = vmatpush1.msra.mxu0 0.0
      %583 = vmatprep.subr.mxu0 0.0
      %584 = vmatpush1.msra.mxu0 0.0
      %585 = vmatprep.subr.mxu0 0.0
      %586 = vmatpush1.msra.mxu0 0.0
      %587 = vmatprep.subr.mxu0 0.0
      %588 = vmatpush1.msra.mxu0 0.0
      %589 = vmatprep.subr.mxu0 0.0
      %590 = vmatpush1.msra.mxu0 0.0
      %591 = vmatprep.subr.mxu0 0.0
      %592 = vmatpush1.msra.mxu0 0.0
      %593 = vmatprep.subr.mxu0 0.0
      %594 = vmatpush1.msra.mxu0 0.0
      %595 = vmatprep.subr.mxu0 0.0
      %596 = vmatpush1.msra.mxu0 0.0
      %597 = vmatprep.subr.mxu0 0.0
      %598 = vmatpush1.msra.mxu0 0.0
      %599 = vmatprep.subr.mxu0 0.0
      %600 = vmatpush1.msra.mxu0 0.0
      %601 = vmatprep.subr.mxu0 0.0
      %602 = vmatpush1.msra.mxu0 0.0
      %603 = vmatprep.subr.mxu0 0.0
      %604 = vmatpush1.msra.mxu0 0.0
      %605 = vmatprep.subr.mxu0 0.0
      %606 = vmatpush1.msra.mxu0 0.0
      %607 = vmatprep.subr.mxu0 0.0
      %608 = vmatpush1.msra.mxu0 0.0
      %609 = vmatprep.subr.mxu0 0.0
      %610 = vmatpush1.msra.mxu0 0.0
      %611 = vmatprep.subr.mxu0 0.0
      %612 = vmatpush1.msra.mxu0 0.0
      %613 = vmatprep.subr.mxu0 0.0
      %614 = vmatpush1.msra.mxu0 0.0
      %615 = vmatprep.subr.mxu0 0.0
      %616 = vmatpush1.msra.mxu0 0.0
      %617 = vmatprep.subr.mxu0 0.0
      %618 = vmatpush1.msra.mxu0 0.0
      %619 = vmatprep.subr.mxu0 0.0
      %620 = vmatpush1.msra.mxu0 0.0
      %621 = vmatprep.subr.mxu0 0.0
      %622 = vmatpush1.msra.mxu0 0.0
      %623 = vmatprep.subr.mxu0 0.0
      %624 = vmatpush1.msra.mxu0 0.0
      %625 = vmatprep.subr.mxu0 0.0
      %626 = vmatpush1.msra.mxu0 0.0
      %627 = vmatprep.subr.mxu0 0.0
      %628 = vmatpush1.msra.mxu0 0.0
      %629 = vmatprep.mubr.f32.mxu0 0.0
      %630 = vmatmul.mubr.f32.gmra.mrb[0].mxu0 %v554
      %v631 = vpop.f32.mrb[0].mxu0
      %v632 = vadd.f32 0.0, %v631
      %v633 = vpop.f32.mrb[0].mxu0
      %634 = vmatprep.mubr.f32.mxu0 0.0
      %635 = vmatmul.mubr.f32.gmra.mrb[0].mxu0 %v557
      %v636 = vpop.f32.mrb[0].mxu0
      %v637 = vadd.f32 0.0, %v636
      %v638 = vpop.f32.mrb[0].mxu0
      %639 = vmatprep.mubr.f32.mxu0 0.0
      %640 = vmatmul.mubr.f32.gmra.mrb[0].mxu0 %v560
      %v641 = vpop.f32.mrb[0].mxu0
      %v642 = vadd.f32 0.0, %v641
      %v643 = vpop.f32.mrb[0].mxu0
      %644 = vmatprep.mubr.f32.mxu0 0.0
      %645 = vmatmul.mubr.f32.gmra.mrb[0].mxu0 %v563
      %v646 = vpop.f32.mrb[0].mxu0
      %v647 = vadd.f32 0.0, %v646
      %v648 = vpop.f32.mrb[0].mxu0
      %649 = vdwg.mxu0
      %v650 = vadd.f32 %v536, %v632
      %v651 = vadd.f32 %v537, %v637
      %v652 = vadd.f32 %v538, %v642
      %v653 = vadd.f32 %v539, %v647
      %s654 = scalar_lea.vmem %s2, 128
      %v655 = vld [vmem:[%s654] sm:$0xff]
      %v656 = vld [vmem:[%s654 + $0x8] sm:$0xff]
      %v657 = vld [vmem:[%s654 + $0x10] sm:$0xff]
      %v658 = vld [vmem:[%s654 + $0x18] sm:$0xff]
      %659 = vrot.lane.b32.xlu0 %v218, 126
      %v660 = vpop.permute.xlu0 %659
      %661 = vrot.lane.b32.xlu0 %v219, 126
      %v662 = vpop.permute.xlu0 %661
      %v666 = vsel %vm231, %v655, 0
      %v669 = vsel %vm231, %v656, 0
      %v672 = vsel %vm231, %v657, 0
      %v675 = vsel %vm231, %v658, 0
      %677 = vmatprep.subr.mxu0 0.0
      %678 = vmatpush1.msra.mxu0 %v660
      %679 = vmatprep.subr.mxu0 0.0
      %680 = vmatpush1.msra.mxu0 %v662
      %681 = vmatprep.subr.mxu0 0.0
      %682 = vmatpush1.msra.mxu0 0.0
      %683 = vmatprep.subr.mxu0 0.0
      %684 = vmatpush1.msra.mxu0 0.0
      %685 = vmatprep.subr.mxu0 0.0
      %686 = vmatpush1.msra.mxu0 0.0
      %687 = vmatprep.subr.mxu0 0.0
      %688 = vmatpush1.msra.mxu0 0.0
      %689 = vmatprep.subr.mxu0 0.0
      %690 = vmatpush1.msra.mxu0 0.0
      %691 = vmatprep.subr.mxu0 0.0
      %692 = vmatpush1.msra.mxu0 0.0
      %693 = vmatprep.subr.mxu0 0.0
      %694 = vmatpush1.msra.mxu0 0.0
      %695 = vmatprep.subr.mxu0 0.0
      %696 = vmatpush1.msra.mxu0 0.0
      %697 = vmatprep.subr.mxu0 0.0
      %698 = vmatpush1.msra.mxu0 0.0
      %699 = vmatprep.subr.mxu0 0.0
      %700 = vmatpush1.msra.mxu0 0.0
      %701 = vmatprep.subr.mxu0 0.0
      %702 = vmatpush1.msra.mxu0 0.0
      %703 = vmatprep.subr.mxu0 0.0
      %704 = vmatpush1.msra.mxu0 0.0
      %705 = vmatprep.subr.mxu0 0.0
      %706 = vmatpush1.msra.mxu0 0.0
      %707 = vmatprep.subr.mxu0 0.0
      %708 = vmatpush1.msra.mxu0 0.0
      %709 = vmatprep.subr.mxu0 0.0
      %710 = vmatpush1.msra.mxu0 0.0
      %711 = vmatprep.subr.mxu0 0.0
      %712 = vmatpush1.msra.mxu0 0.0
      %713 = vmatprep.subr.mxu0 0.0
      %714 = vmatpush1.msra.mxu0 0.0
      %715 = vmatprep.subr.mxu0 0.0
      %716 = vmatpush1.msra.mxu0 0.0
      %717 = vmatprep.subr.mxu0 0.0
      %718 = vmatpush1.msra.mxu0 0.0
      %719 = vmatprep.subr.mxu0 0.0
      %720 = vmatpush1.msra.mxu0 0.0
      %721 = vmatprep.subr.mxu0 0.0
      %722 = vmatpush1.msra.mxu0 0.0
      %723 = vmatprep.subr.mxu0 0.0
      %724 = vmatpush1.msra.mxu0 0.0
      %725 = vmatprep.subr.mxu0 0.0
      %726 = vmatpush1.msra.mxu0 0.0
      %727 = vmatprep.subr.mxu0 0.0
      %728 = vmatpush1.msra.mxu0 0.0
      %729 = vmatprep.subr.mxu0 0.0
      %730 = vmatpush1.msra.mxu0 0.0
      %731 = vmatprep.subr.mxu0 0.0
      %732 = vmatpush1.msra.mxu0 0.0
      %733 = vmatprep.subr.mxu0 0.0
      %734 = vmatpush1.msra.mxu0 0.0
      %735 = vmatprep.subr.mxu0 0.0
      %736 = vmatpush1.msra.mxu0 0.0
      %737 = vmatprep.subr.mxu0 0.0
      %738 = vmatpush1.msra.mxu0 0.0
      %739 = vmatprep.subr.mxu0 0.0
      %740 = vmatpush1.msra.mxu0 0.0
      %741 = vmatprep.mubr.f32.mxu0 0.0
      %742 = vmatmul.mubr.f32.gmra.mrb[0].mxu0 %v666
      %v743 = vpop.f32.mrb[0].mxu0
      %v744 = vadd.f32 0.0, %v743
      %v745 = vpop.f32.mrb[0].mxu0
      %746 = vmatprep.mubr.f32.mxu0 0.0
      %747 = vmatmul.mubr.f32.gmra.mrb[0].mxu0 %v669
      %v748 = vpop.f32.mrb[0].mxu0
      %v749 = vadd.f32 0.0, %v748
      %v750 = vpop.f32.mrb[0].mxu0
      %751 = vmatprep.mubr.f32.mxu0 0.0
      %752 = vmatmul.mubr.f32.gmra.mrb[0].mxu0 %v672
      %v753 = vpop.f32.mrb[0].mxu0
      %v754 = vadd.f32 0.0, %v753
      %v755 = vpop.f32.mrb[0].mxu0
      %756 = vmatprep.mubr.f32.mxu0 0.0
      %757 = vmatmul.mubr.f32.gmra.mrb[0].mxu0 %v675
      %v758 = vpop.f32.mrb[0].mxu0
      %v759 = vadd.f32 0.0, %v758
      %v760 = vpop.f32.mrb[0].mxu0
      %761 = vdwg.mxu0
      %v762 = vadd.f32 %v650, %v744
      %v763 = vadd.f32 %v651, %v749
      %v764 = vadd.f32 %v652, %v754
      %v765 = vadd.f32 %v653, %v759
      %v766 = vld [vmem:[%s3] sm:$0xff]
      %v767 = vld [vmem:[%s3 + $0x8] sm:$0xff]
      %v768 = vld [vmem:[%s3 + $0x10] sm:$0xff]
      %v769 = vld [vmem:[%s3 + $0x18] sm:$0xff]
      %771 = vset.pattern.permute.xlu0 0
      %772 = vperm.xlu0 %771, %v766
      %v773 = vpop.permute.xlu0 %772
      %776 = vset.pattern.permute.xlu0 0
      %777 = vperm.xlu0 %776, %v767
      %v778 = vpop.permute.xlu0 %777
      %781 = vset.pattern.permute.xlu0 0
      %782 = vperm.xlu0 %781, %v768
      %v783 = vpop.permute.xlu0 %782
      %786 = vset.pattern.permute.xlu0 0
      %787 = vperm.xlu0 %786, %v769
      %v788 = vpop.permute.xlu0 %787
      %v790 = vadd.f32 %v762, %v773
      %v791 = vadd.f32 %v763, %v778
      %v792 = vadd.f32 %v764, %v783
      %v793 = vadd.f32 %v765, %v788
      %v794 = vmax.f32 %v790, 0.0
      %v795 = vmax.f32 %v791, 0.0
      %v796 = vmax.f32 %v792, 0.0
      %v797 = vmax.f32 %v793, 0.0
      %vm798 = vcmask 64512
      %799 = vst.msk [vmem:[%s217] sm:$0xff] %vm798, %v794
      %800 = vst.msk [vmem:[%s217 + $0x8] sm:$0xff] %vm798, %v795
      %801 = vst.msk [vmem:[%s217 + $0x10] sm:$0xff] %vm798, %v796
      %802 = vst.msk [vmem:[%s217 + $0x18] sm:$0xff] %vm798, %v797
      %p803 = scmp.lt.s32.totalorder %s15, 1
      %s804 = scalar_select %p803, %s15, 1
      %s805 = smul.addr %s804, 4
      %s806 = smul.addr %s805, 8
      %s807 = scalar_lea.vmem %s4, %s806
      // Predicated region
      $region37: #{unet_forward.15} parent=35 // pred_check
        %p808 = pneg %p127
      $region38: #{unet_forward.15} parent=35 // pred_check_branch
        %810 = sbr.rel (%p808) target = $region40
      $region39: #{unet_forward.15} parent=35 // pred_region
        _
      $region40: #{unet_forward.15} parent=35 // pred_fallthru
        _
    $region36: #{unet_forward.15} parent=5 // pred_fallthru
      _
    %p811 = scmp.le.s32.totalorder 2, %s10
    // Predicated region
    $region41: #{unet_forward.15} parent=5 // pred_check
      %p812 = pneg %p811
    $region42: #{unet_forward.15} parent=5 // pred_check_branch
      %814 = sbr.rel (%p812) target = $region44
    $region43: #{unet_forward.15} parent=5 // pred_region
      %s815 = ssub.s32 %s10, 2
      // Predicated region
      $region45: #{unet_forward.15} parent=43 // pred_check
        %p816 = pneg %p133
      $region46: #{unet_forward.15} parent=43 // pred_check_branch
        %818 = sbr.rel (%p816) target = $region48
      $region47: #{unet_forward.15} parent=43 // pred_region
        %p819 = scmp.lt.s32.totalorder %s16, 1
        %s820 = scalar_select %p819, %s16, 1
        %s821 = smul.addr %s820, 4
        %s822 = smul.addr %s821, 8
        %s823 = scalar_lea.vmem %s4, %s822
      $region48: #{unet_forward.15} parent=43 // pred_fallthru
        _
    $region44: #{unet_forward.15} parent=5 // pred_fallthru
      _
  $region6: #{unet_forward.15} parent=0 // loop_footer
    %s14 = sadd.s32 1, %s10
  $region7: #{unet_forward.15} parent=0 // loop_footer_branch
    %9 = sbr.rel target = $region3
  $region8: #{unet_forward.15} parent=0 // loop_exit
    _

// kernel: unet_forward.18
$region0: #{unet_forward.18}
  #allocation0 [shape = 'u32[]', space=smem, size = 0x4, offset = 0x4, fixed_abs, tag = 'smem constant byte address 0x4 - core index']
  #allocation1 [shape = 'u32[144,128]{1,0:T(1,128)}', space=vmem, size = 0x12000, scoped, tag = 'internal scratch']
  %s0 = inlined_call_operand.vmem [shape: f32[2,64,4], index: 0, kind: input, shape index: {}]
  %s1 = inlined_call_operand.vmem [shape: f32[5,32,64], index: 1, kind: input, shape index: {}]
  %s2 = inlined_call_operand.vmem [shape: f32[32,1], index: 2, kind: input, shape index: {}]
  %s3 = inlined_call_operand.vmem [shape: f32[2,2,32,2], index: 3, kind: output, shape index: {}]
  %s4 = sld [smem:[#allocation0]]
  $region45: #{unet_forward.18} parent=0
    _
  %s6 = ssub.s32 1, %s4
  %s7 = scalar_select 0, %s6, %s4
  loop: start=0, step=1, limit=4
  $region2: #{unet_forward.18} parent=0 // loop_pre_header
    _
  $region3: #{unet_forward.18} parent=0 // loop_header
    %s9 = sphi 0, %s13
    %p10 = scmp.ge.s32.totalorder %s9, 4
    %s19 = sphi 0, %s21
    %s22 = sphi 0, %s19
    %s23 = sphi 0, %s22
    %s39 = sphi 0, %s23
    %s43 = sphi 0, %s43
    %s45 = sphi 0, %s43
    %s46 = sphi 0, %s45
    %s60 = sphi 0, %s46
    %s64 = sphi 0, %s64
    %s66 = sphi 0, %s64
    %s67 = sphi 0, %s66
    %s81 = sphi 0, %s67
    %s87 = sphi 0, %s89
    %s90 = sphi 0, %s87
    %s91 = sphi 0, %s90
    %s107 = sphi 0, %s91
  $region4: #{unet_forward.18} parent=0 // loop_header_branch
    %12 = sbr.rel (%p10) target = $region8
  $region5: #{unet_forward.18} parent=0 // loop_body
    %s14 = ssub.s32 %s9, 1
    %s15 = ssub.s32 %s9, 2
    %s16 = sadd.s32 %s9, 1
    %s17 = ssub.s32 %s9, %s16
    %p18 = scmp.eq.s32.totalorder %s17, 0
    %s20 = sadd.s32 %s19, 1
    %s21 = scalar_select %p18, %s19, %s20
    %p24 = pneg %p18
    %p25 = scmp.eq.s32.totalorder %s9, 1
    %p26 = por %p24, %p25
    %p27 = scmp.ne.s32.totalorder %s19, %s22
    %p28 = scmp.eq.s32.totalorder %s9, 0
    %p29 = por %p27, %p28
    %p30 = scmp.ne.s32.totalorder %s19, %s22
    %p31 = scmp.eq.s32.totalorder %s14, 1
    %p32 = por %p30, %p31
    %p33 = scmp.ne.s32.totalorder %s22, %s23
    %p34 = scmp.eq.s32.totalorder %s14, 0
    %p35 = por %p33, %p34
    %p36 = scmp.ne.s32.totalorder %s22, %s23
    %p37 = scmp.eq.s32.totalorder %s15, 1
    %p38 = por %p36, %p37
    %p40 = scmp.ne.s32.totalorder %s23, %s39
    %p41 = scmp.eq.s32.totalorder %s15, 0
    %p42 = por %p40, %p41
    %s44 = sadd.s32 %s43, 1
    %p47 = scmp.eq.s32.totalorder %s9, 1
    %p48 = scmp.ne.s32.totalorder %s43, %s45
    %p49 = scmp.eq.s32.totalorder %s9, 0
    %p50 = por %p48, %p49
    %p51 = scmp.ne.s32.totalorder %s43, %s45
    %p52 = scmp.eq.s32.totalorder %s14, 1
    %p53 = por %p51, %p52
    %p54 = scmp.ne.s32.totalorder %s45, %s46
    %p55 = scmp.eq.s32.totalorder %s14, 0
    %p56 = por %p54, %p55
    %p57 = scmp.ne.s32.totalorder %s45, %s46
    %p58 = scmp.eq.s32.totalorder %s15, 1
    %p59 = por %p57, %p58
    %p61 = scmp.ne.s32.totalorder %s46, %s60
    %p62 = scmp.eq.s32.totalorder %s15, 0
    %p63 = por %p61, %p62
    %s65 = sadd.s32 %s64, 1
    %p68 = scmp.eq.s32.totalorder %s9, 1
    %p69 = scmp.ne.s32.totalorder %s64, %s66
    %p70 = scmp.eq.s32.totalorder %s9, 0
    %p71 = por %p69, %p70
    %p72 = scmp.ne.s32.totalorder %s64, %s66
    %p73 = scmp.eq.s32.totalorder %s14, 1
    %p74 = por %p72, %p73
    %p75 = scmp.ne.s32.totalorder %s66, %s67
    %p76 = scmp.eq.s32.totalorder %s14, 0
    %p77 = por %p75, %p76
    %p78 = scmp.ne.s32.totalorder %s66, %s67
    %p79 = scmp.eq.s32.totalorder %s15, 1
    %p80 = por %p78, %p79
    %p82 = scmp.ne.s32.totalorder %s67, %s81
    %p83 = scmp.eq.s32.totalorder %s15, 0
    %p84 = por %p82, %p83
    %s85 = ssub.s32 %s9, %s16
    %p86 = scmp.eq.s32.totalorder %s85, 0
    %s88 = sadd.s32 %s87, 1
    %s89 = scalar_select %p86, %s87, %s88
    %p92 = pneg %p86
    %p93 = scmp.eq.s32.totalorder %s9, 1
    %p94 = por %p92, %p93
    %p95 = scmp.ne.s32.totalorder %s87, %s90
    %p96 = scmp.eq.s32.totalorder %s9, 0
    %p97 = por %p95, %p96
    %p98 = scmp.ne.s32.totalorder %s87, %s90
    %p99 = scmp.eq.s32.totalorder %s14, 1
    %p100 = por %p98, %p99
    %p101 = scmp.ne.s32.totalorder %s90, %s91
    %p102 = scmp.eq.s32.totalorder %s14, 0
    %p103 = por %p101, %p102
    %p104 = scmp.ne.s32.totalorder %s90, %s91
    %p105 = scmp.eq.s32.totalorder %s15, 1
    %p106 = por %p104, %p105
    %p108 = scmp.ne.s32.totalorder %s91, %s107
    %p109 = scmp.eq.s32.totalorder %s15, 0
    %p110 = por %p108, %p109
    %p111 = scmp.le.s32.totalorder 1, %s9
    %p112 = scmp.lt.s32.totalorder %s9, 3
    %p113 = pnand %p111, %p112
    %p114 = pneg %p113
    // Predicated region
    $region9: #{unet_forward.18} parent=5 // pred_check
      _
    $region10: #{unet_forward.18} parent=5 // pred_check_branch
      %116 = sbr.rel (%p113) target = $region12
    $region11: #{unet_forward.18} parent=5 // pred_region
      %s117 = ssub.s32 %s9, 1
      // Predicated region
      $region13: #{unet_forward.18} parent=11 // pred_check
        %p118 = pneg %p56
      $region14: #{unet_forward.18} parent=11 // pred_check_branch
        %120 = sbr.rel (%p118) target = $region16
      $region15: #{unet_forward.18} parent=11 // pred_region
        _
      $region16: #{unet_forward.18} parent=11 // pred_fallthru
        _
      // Predicated region
      $region17: #{unet_forward.18} parent=11 // pred_check
        %p121 = pneg %p77
      $region18: #{unet_forward.18} parent=11 // pred_check_branch
        %123 = sbr.rel (%p121) target = $region20
      $region19: #{unet_forward.18} parent=11 // pred_region
        _
      $region20: #{unet_forward.18} parent=11 // pred_fallthru
        _
    $region12: #{unet_forward.18} parent=5 // pred_fallthru
      _
    %p124 = scmp.lt.s32.totalorder %s9, 2
    // Predicated region
    $region21: #{unet_forward.18} parent=5 // pred_check
      %p125 = pneg %p124
    $region22: #{unet_forward.18} parent=5 // pred_check_branch
      %127 = sbr.rel (%p125) target = $region24
    $region23: #{unet_forward.18} parent=5 // pred_region
      // Predicated region
      $region25: #{unet_forward.18} parent=23 // pred_check
        %p128 = pneg %p29
      $region26: #{unet_forward.18} parent=23 // pred_check_branch
        %130 = sbr.rel (%p128) target = $region28
      $region27: #{unet_forward.18} parent=23 // pred_region
        %p131 = scmp.lt.s32.totalorder %s9, 1
        %s132 = scalar_select %p131, %s9, 1
        %s133 = smul.addr %s132, 8
        %s134 = smul.addr %s133, 8
        %s135 = scalar_lea.vmem %s0, %s134
      $region28: #{unet_forward.18} parent=23 // pred_fallthru
        _
    $region24: #{unet_forward.18} parent=5 // pred_fallthru
      _
    %p136 = scmp.le.s32.totalorder 1, %s9
    %p137 = scmp.lt.s32.totalorder %s9, 3
    %p138 = pnand %p136, %p137
    %p139 = pneg %p138
    // Predicated region
    $region29: #{unet_forward.18} parent=5 // pred_check
      _
    $region30: #{unet_forward.18} parent=5 // pred_check_branch
      %141 = sbr.rel (%p138) target = $region32
    $region31: #{unet_forward.18} parent=5 // pred_region
      %s142 = ssub.s32 %s9, 1
      %p143 = scmp.lt.s32.totalorder %s14, 1
      %s144 = scalar_select %p143, %s14, 1
      %s145 = smul.addr %s144, 8
      %s146 = smul.addr %s145, 8
      %s147 = scalar_lea.vmem %s0, %s146
      %p148 = pneg %p35
      %p149 = pneg %p32
      %p150 = pneg %p56
      %p151 = pneg %p53
      %p152 = pneg %p77
      %p153 = pneg %p74
      %p154 = pneg %p103
      %p155 = pneg %p100
      %p156 = scmp.lt.s32.totalorder %s14, 1
      %s157 = scalar_select %p156, %s14, 1
      %s158 = smul.addr %s157, 8
      %s159 = smul.addr %s158, 8
      %s160 = scalar_lea.vmem %s3, %s159
      %p161 = scmp.lt.s32.totalorder %s14, 1
      %s162 = scalar_select %p161, %s14, 1
      %s163 = smul.addr %s162, 8
      %s164 = smul.addr %s163, 8
      %s165 = scalar_lea.vmem %s0, %s164
      %p166 = scmp.lt.s32.totalorder %s14, 1
      %s167 = scalar_select %p166, %s14, 1
      %s168 = smul.addr %s167, 8
      %s169 = smul.addr %s168, 8
      %s170 = scalar_lea.vmem %s3, %s169
      %v171 = vld [vmem:[%s165] sm:$0xff]
      %v172 = vld [vmem:[%s165 + $0x8] sm:$0xff]
      %v173 = vld [vmem:[%s165 + $0x10] sm:$0xff]
      %v174 = vld [vmem:[%s165 + $0x18] sm:$0xff]
      %v175 = vld [vmem:[%s165 + $0x20] sm:$0xff]
      %v176 = vld [vmem:[%s165 + $0x28] sm:$0xff]
      %v177 = vld [vmem:[%s165 + $0x30] sm:$0xff]
      %v178 = vld [vmem:[%s165 + $0x38] sm:$0xff]
      %v179 = vld [vmem:[%s1] sm:$0xff]
      %v180 = vld [vmem:[%s1 + $0x8] sm:$0xff]
      %v181 = vld [vmem:[%s1 + $0x10] sm:$0xff]
      %v182 = vld [vmem:[%s1 + $0x18] sm:$0xff]
      %s183 = scalar_lea.vmem %s1, 64
      %v184 = vld [vmem:[%s183] sm:$0xff]
      %v185 = vld [vmem:[%s183 + $0x8] sm:$0xff]
      %v186 = vld [vmem:[%s183 + $0x10] sm:$0xff]
      %v187 = vld [vmem:[%s183 + $0x18] sm:$0xff]
      %196 = vrot.lane.b32.xlu0 %v171, 127
      %v197 = vpop.permute.xlu0 %196
      %198 = vrot.lane.b32.xlu0 %v172, 127
      %v199 = vpop.permute.xlu0 %198
      %200 = vrot.lane.b32.xlu0 %v173, 127
      %v201 = vpop.permute.xlu0 %200
      %202 = vrot.lane.b32.xlu0 %v174, 127
      %v203 = vpop.permute.xlu0 %202
      %204 = vrot.lane.b32.xlu0 %v175, 127
      %v205 = vpop.permute.xlu0 %204
      %206 = vrot.lane.b32.xlu0 %v176, 127
      %v207 = vpop.permute.xlu0 %206
      %208 = vrot.lane.b32.xlu0 %v177, 127
      %v209 = vpop.permute.xlu0 %208
      %210 = vrot.lane.b32.xlu0 %v178, 127
      %v211 = vpop.permute.xlu0 %210
      %vm220 = vcmask 523264
      %v222 = vsel %vm220, %v184, 0
      %v225 = vsel %vm220, %v185, 0
      %v228 = vsel %vm220, %v186, 0
      %v231 = vsel %vm220, %v187, 0
      %233 = vmatprep.subr.mxu0 0.0
      %234 = vmatpush1.msra.mxu0 %v197
      %235 = vmatprep.subr.mxu0 0.0
      %236 = vmatpush1.msra.mxu0 %v199
      %237 = vmatprep.subr.mxu0 0.0
      %238 = vmatpush1.msra.mxu0 %v201
      %239 = vmatprep.subr.mxu0 0.0
      %240 = vmatpush1.msra.mxu0 %v203
      %241 = vmatprep.subr.mxu0 0.0
      %242 = vmatpush1.msra.mxu0 %v205
      %243 = vmatprep.subr.mxu0 0.0
      %244 = vmatpush1.msra.mxu0 %v207
      %245 = vmatprep.subr.mxu0 0.0
      %246 = vmatpush1.msra.mxu0 %v209
      %247 = vmatprep.subr.mxu0 0.0
      %248 = vmatpush1.msra.mxu0 %v211
      %249 = vmatprep.subr.mxu0 0.0
      %250 = vmatpush1.msra.mxu0 0.0
      %251 = vmatprep.subr.mxu0 0.0
      %252 = vmatpush1.msra.mxu0 0.0
      %253 = vmatprep.subr.mxu0 0.0
      %254 = vmatpush1.msra.mxu0 0.0
      %255 = vmatprep.subr.mxu0 0.0
      %256 = vmatpush1.msra.mxu0 0.0
      %257 = vmatprep.subr.mxu0 0.0
      %258 = vmatpush1.msra.mxu0 0.0
      %259 = vmatprep.subr.mxu0 0.0
      %260 = vmatpush1.msra.mxu0 0.0
      %261 = vmatprep.subr.mxu0 0.0
      %262 = vmatpush1.msra.mxu0 0.0
      %263 = vmatprep.subr.mxu0 0.0
      %264 = vmatpush1.msra.mxu0 0.0
      %265 = vmatprep.subr.mxu0 0.0
      %266 = vmatpush1.msra.mxu0 0.0
      %267 = vmatprep.subr.mxu0 0.0
      %268 = vmatpush1.msra.mxu0 0.0
      %269 = vmatprep.subr.mxu0 0.0
      %270 = vmatpush1.msra.mxu0 0.0
      %271 = vmatprep.subr.mxu0 0.0
      %272 = vmatpush1.msra.mxu0 0.0
      %273 = vmatprep.subr.mxu0 0.0
      %274 = vmatpush1.msra.mxu0 0.0
      %275 = vmatprep.subr.mxu0 0.0
      %276 = vmatpush1.msra.mxu0 0.0
      %277 = vmatprep.subr.mxu0 0.0
      %278 = vmatpush1.msra.mxu0 0.0
      %279 = vmatprep.subr.mxu0 0.0
      %280 = vmatpush1.msra.mxu0 0.0
      %281 = vmatprep.subr.mxu0 0.0
      %282 = vmatpush1.msra.mxu0 0.0
      %283 = vmatprep.subr.mxu0 0.0
      %284 = vmatpush1.msra.mxu0 0.0
      %285 = vmatprep.subr.mxu0 0.0
      %286 = vmatpush1.msra.mxu0 0.0
      %287 = vmatprep.subr.mxu0 0.0
      %288 = vmatpush1.msra.mxu0 0.0
      %289 = vmatprep.subr.mxu0 0.0
      %290 = vmatpush1.msra.mxu0 0.0
      %291 = vmatprep.subr.mxu0 0.0
      %292 = vmatpush1.msra.mxu0 0.0
      %293 = vmatprep.subr.mxu0 0.0
      %294 = vmatpush1.msra.mxu0 0.0
      %295 = vmatprep.subr.mxu0 0.0
      %296 = vmatpush1.msra.mxu0 0.0
      %297 = vmatprep.mubr.f32.mxu0 0.0
      %298 = vmatmul.mubr.f32.gmra.mrb[0].mxu0 %v222
      %v299 = vpop.f32.mrb[0].mxu0
      %v300 = vadd.f32 0.0, %v299
      %v301 = vpop.f32.mrb[0].mxu0
      %302 = vmatprep.mubr.f32.mxu0 0.0
      %303 = vmatmul.mubr.f32.gmra.mrb[0].mxu0 %v225
      %v304 = vpop.f32.mrb[0].mxu0
      %v305 = vadd.f32 0.0, %v304
      %v306 = vpop.f32.mrb[0].mxu0
      %307 = vmatprep.mubr.f32.mxu0 0.0
      %308 = vmatmul.mubr.f32.gmra.mrb[0].mxu0 %v228
      %v309 = vpop.f32.mrb[0].mxu0
      %v310 = vadd.f32 0.0, %v309
      %v311 = vpop.f32.mrb[0].mxu0
      %312 = vmatprep.mubr.f32.mxu0 0.0
      %313 = vmatmul.mubr.f32.gmra.mrb[0].mxu0 %v231
      %v314 = vpop.f32.mrb[0].mxu0
      %v315 = vadd.f32 0.0, %v314
      %v316 = vpop.f32.mrb[0].mxu0
      %317 = vdwg.mxu0
      %318 = vrot.lane.b32.xlu0 %v171, 126
      %v319 = vpop.permute.xlu0 %318
      %320 = vrot.lane.b32.xlu0 %v172, 126
      %v321 = vpop.permute.xlu0 %320
      %322 = vrot.lane.b32.xlu0 %v173, 126
      %v323 = vpop.permute.xlu0 %322
      %324 = vrot.lane.b32.xlu0 %v174, 126
      %v325 = vpop.permute.xlu0 %324
      %326 = vrot.lane.b32.xlu0 %v175, 126
      %v327 = vpop.permute.xlu0 %326
      %328 = vrot.lane.b32.xlu0 %v176, 126
      %v329 = vpop.permute.xlu0 %328
      %330 = vrot.lane.b32.xlu0 %v177, 126
      %v331 = vpop.permute.xlu0 %330
      %332 = vrot.lane.b32.xlu0 %v178, 126
      %v333 = vpop.permute.xlu0 %332
      %v343 = vsel %vm220, %v179, 0
      %v346 = vsel %vm220, %v180, 0
      %v349 = vsel %vm220, %v181, 0
      %v352 = vsel %vm220, %v182, 0
      %354 = vmatprep.subr.mxu0 0.0
      %355 = vmatpush1.msra.mxu0 %v319
      %356 = vmatprep.subr.mxu0 0.0
      %357 = vmatpush1.msra.mxu0 %v321
      %358 = vmatprep.subr.mxu0 0.0
      %359 = vmatpush1.msra.mxu0 %v323
      %360 = vmatprep.subr.mxu0 0.0
      %361 = vmatpush1.msra.mxu0 %v325
      %362 = vmatprep.subr.mxu0 0.0
      %363 = vmatpush1.msra.mxu0 %v327
      %364 = vmatprep.subr.mxu0 0.0
      %365 = vmatpush1.msra.mxu0 %v329
      %366 = vmatprep.subr.mxu0 0.0
      %367 = vmatpush1.msra.mxu0 %v331
      %368 = vmatprep.subr.mxu0 0.0
      %369 = vmatpush1.msra.mxu0 %v333
      %370 = vmatprep.subr.mxu0 0.0
      %371 = vmatpush1.msra.mxu0 0.0
      %372 = vmatprep.subr.mxu0 0.0
      %373 = vmatpush1.msra.mxu0 0.0
      %374 = vmatprep.subr.mxu0 0.0
      %375 = vmatpush1.msra.mxu0 0.0
      %376 = vmatprep.subr.mxu0 0.0
      %377 = vmatpush1.msra.mxu0 0.0
      %378 = vmatprep.subr.mxu0 0.0
      %379 = vmatpush1.msra.mxu0 0.0
      %380 = vmatprep.subr.mxu0 0.0
      %381 = vmatpush1.msra.mxu0 0.0
      %382 = vmatprep.subr.mxu0 0.0
      %383 = vmatpush1.msra.mxu0 0.0
      %384 = vmatprep.subr.mxu0 0.0
      %385 = vmatpush1.msra.mxu0 0.0
      %386 = vmatprep.subr.mxu0 0.0
      %387 = vmatpush1.msra.mxu0 0.0
      %388 = vmatprep.subr.mxu0 0.0
      %389 = vmatpush1.msra.mxu0 0.0
      %390 = vmatprep.subr.mxu0 0.0
      %391 = vmatpush1.msra.mxu0 0.0
      %392 = vmatprep.subr.mxu0 0.0
      %393 = vmatpush1.msra.mxu0 0.0
      %394 = vmatprep.subr.mxu0 0.0
      %395 = vmatpush1.msra.mxu0 0.0
      %396 = vmatprep.subr.mxu0 0.0
      %397 = vmatpush1.msra.mxu0 0.0
      %398 = vmatprep.subr.mxu0 0.0
      %399 = vmatpush1.msra.mxu0 0.0
      %400 = vmatprep.subr.mxu0 0.0
      %401 = vmatpush1.msra.mxu0 0.0
      %402 = vmatprep.subr.mxu0 0.0
      %403 = vmatpush1.msra.mxu0 0.0
      %404 = vmatprep.subr.mxu0 0.0
      %405 = vmatpush1.msra.mxu0 0.0
      %406 = vmatprep.subr.mxu0 0.0
      %407 = vmatpush1.msra.mxu0 0.0
      %408 = vmatprep.subr.mxu0 0.0
      %409 = vmatpush1.msra.mxu0 0.0
      %410 = vmatprep.subr.mxu0 0.0
      %411 = vmatpush1.msra.mxu0 0.0
      %412 = vmatprep.subr.mxu0 0.0
      %413 = vmatpush1.msra.mxu0 0.0
      %414 = vmatprep.subr.mxu0 0.0
      %415 = vmatpush1.msra.mxu0 0.0
      %416 = vmatprep.subr.mxu0 0.0
      %417 = vmatpush1.msra.mxu0 0.0
      %418 = vmatprep.mubr.f32.mxu0 0.0
      %419 = vmatmul.mubr.f32.gmra.mrb[0].mxu0 %v343
      %v420 = vpop.f32.mrb[0].mxu0
      %v421 = vadd.f32 %v300, %v420
      %v422 = vpop.f32.mrb[0].mxu0
      %423 = vmatprep.mubr.f32.mxu0 0.0
      %424 = vmatmul.mubr.f32.gmra.mrb[0].mxu0 %v346
      %v425 = vpop.f32.mrb[0].mxu0
      %v426 = vadd.f32 %v305, %v425
      %v427 = vpop.f32.mrb[0].mxu0
      %428 = vmatprep.mubr.f32.mxu0 0.0
      %429 = vmatmul.mubr.f32.gmra.mrb[0].mxu0 %v349
      %v430 = vpop.f32.mrb[0].mxu0
      %v431 = vadd.f32 %v310, %v430
      %v432 = vpop.f32.mrb[0].mxu0
      %433 = vmatprep.mubr.f32.mxu0 0.0
      %434 = vmatmul.mubr.f32.gmra.mrb[0].mxu0 %v352
      %v435 = vpop.f32.mrb[0].mxu0
      %v436 = vadd.f32 %v315, %v435
      %v437 = vpop.f32.mrb[0].mxu0
      %438 = vdwg.mxu0
      %s439 = scalar_lea.vmem %s1, 128
      %v440 = vld [vmem:[%s439] sm:$0xff]
      %v441 = vld [vmem:[%s439 + $0x8] sm:$0xff]
      %v442 = vld [vmem:[%s439 + $0x10] sm:$0xff]
      %v443 = vld [vmem:[%s439 + $0x18] sm:$0xff]
      %v445 = vsel %vm220, %v440, 0
      %v448 = vsel %vm220, %v441, 0
      %v451 = vsel %vm220, %v442, 0
      %v454 = vsel %vm220, %v443, 0
      %456 = vmatprep.subr.mxu0 0.0
      %457 = vmatpush1.msra.mxu0 %v171
      %458 = vmatprep.subr.mxu0 0.0
      %459 = vmatpush1.msra.mxu0 %v172
      %460 = vmatprep.subr.mxu0 0.0
      %461 = vmatpush1.msra.mxu0 %v173
      %462 = vmatprep.subr.mxu0 0.0
      %463 = vmatpush1.msra.mxu0 %v174
      %464 = vmatprep.subr.mxu0 0.0
      %465 = vmatpush1.msra.mxu0 %v175
      %466 = vmatprep.subr.mxu0 0.0
      %467 = vmatpush1.msra.mxu0 %v176
      %468 = vmatprep.subr.mxu0 0.0
      %469 = vmatpush1.msra.mxu0 %v177
      %470 = vmatprep.subr.mxu0 0.0
      %471 = vmatpush1.msra.mxu0 %v178
      %472 = vmatprep.subr.mxu0 0.0
      %473 = vmatpush1.msra.mxu0 0.0
      %474 = vmatprep.subr.mxu0 0.0
      %475 = vmatpush1.msra.mxu0 0.0
      %476 = vmatprep.subr.mxu0 0.0
      %477 = vmatpush1.msra.mxu0 0.0
      %478 = vmatprep.subr.mxu0 0.0
      %479 = vmatpush1.msra.mxu0 0.0
      %480 = vmatprep.subr.mxu0 0.0
      %481 = vmatpush1.msra.mxu0 0.0
      %482 = vmatprep.subr.mxu0 0.0
      %483 = vmatpush1.msra.mxu0 0.0
      %484 = vmatprep.subr.mxu0 0.0
      %485 = vmatpush1.msra.mxu0 0.0
      %486 = vmatprep.subr.mxu0 0.0
      %487 = vmatpush1.msra.mxu0 0.0
      %488 = vmatprep.subr.mxu0 0.0
      %489 = vmatpush1.msra.mxu0 0.0
      %490 = vmatprep.subr.mxu0 0.0
      %491 = vmatpush1.msra.mxu0 0.0
      %492 = vmatprep.subr.mxu0 0.0
      %493 = vmatpush1.msra.mxu0 0.0
      %494 = vmatprep.subr.mxu0 0.0
      %495 = vmatpush1.msra.mxu0 0.0
      %496 = vmatprep.subr.mxu0 0.0
      %497 = vmatpush1.msra.mxu0 0.0
      %498 = vmatprep.subr.mxu0 0.0
      %499 = vmatpush1.msra.mxu0 0.0
      %500 = vmatprep.subr.mxu0 0.0
      %501 = vmatpush1.msra.mxu0 0.0
      %502 = vmatprep.subr.mxu0 0.0
      %503 = vmatpush1.msra.mxu0 0.0
      %504 = vmatprep.subr.mxu0 0.0
      %505 = vmatpush1.msra.mxu0 0.0
      %506 = vmatprep.subr.mxu0 0.0
      %507 = vmatpush1.msra.mxu0 0.0
      %508 = vmatprep.subr.mxu0 0.0
      %509 = vmatpush1.msra.mxu0 0.0
      %510 = vmatprep.subr.mxu0 0.0
      %511 = vmatpush1.msra.mxu0 0.0
      %512 = vmatprep.subr.mxu0 0.0
      %513 = vmatpush1.msra.mxu0 0.0
      %514 = vmatprep.subr.mxu0 0.0
      %515 = vmatpush1.msra.mxu0 0.0
      %516 = vmatprep.subr.mxu0 0.0
      %517 = vmatpush1.msra.mxu0 0.0
      %518 = vmatprep.subr.mxu0 0.0
      %519 = vmatpush1.msra.mxu0 0.0
      %520 = vmatprep.mubr.f32.mxu0 0.0
      %521 = vmatmul.mubr.f32.gmra.mrb[0].mxu0 %v445
      %v522 = vpop.f32.mrb[0].mxu0
      %v523 = vadd.f32 0.0, %v522
      %v524 = vpop.f32.mrb[0].mxu0
      %525 = vmatprep.mubr.f32.mxu0 0.0
      %526 = vmatmul.mubr.f32.gmra.mrb[0].mxu0 %v448
      %v527 = vpop.f32.mrb[0].mxu0
      %v528 = vadd.f32 0.0, %v527
      %v529 = vpop.f32.mrb[0].mxu0
      %530 = vmatprep.mubr.f32.mxu0 0.0
      %531 = vmatmul.mubr.f32.gmra.mrb[0].mxu0 %v451
      %v532 = vpop.f32.mrb[0].mxu0
      %v533 = vadd.f32 0.0, %v532
      %v534 = vpop.f32.mrb[0].mxu0
      %535 = vmatprep.mubr.f32.mxu0 0.0
      %536 = vmatmul.mubr.f32.gmra.mrb[0].mxu0 %v454
      %v537 = vpop.f32.mrb[0].mxu0
      %v538 = vadd.f32 0.0, %v537
      %v539 = vpop.f32.mrb[0].mxu0
      %540 = vdwg.mxu0
      %v541 = vadd.f32 %v421, %v523
      %v542 = vadd.f32 %v426, %v528
      %v543 = vadd.f32 %v431, %v533
      %v544 = vadd.f32 %v436, %v538
      %s545 = scalar_lea.vmem %s1, 32
      %v546 = vld [vmem:[%s545] sm:$0xff]
      %v547 = vld [vmem:[%s545 + $0x8] sm:$0xff]
      %v548 = vld [vmem:[%s545 + $0x10] sm:$0xff]
      %v549 = vld [vmem:[%s545 + $0x18] sm:$0xff]
      %s550 = scalar_lea.vmem %s1, 96
      %v551 = vld [vmem:[%s550] sm:$0xff]
      %v552 = vld [vmem:[%s550 + $0x8] sm:$0xff]
      %v553 = vld [vmem:[%s550 + $0x10] sm:$0xff]
      %v554 = vld [vmem:[%s550 + $0x18] sm:$0xff]
      %v556 = vsel %vm220, %v551, 0
      %v559 = vsel %vm220, %v552, 0
      %v562 = vsel %vm220, %v553, 0
      %v565 = vsel %vm220, %v554, 0
      %567 = vmatprep.subr.mxu0 0.0
      %568 = vmatpush1.msra.mxu0 %v197
      %569 = vmatprep.subr.mxu0 0.0
      %570 = vmatpush1.msra.mxu0 %v199
      %571 = vmatprep.subr.mxu0 0.0
      %572 = vmatpush1.msra.mxu0 %v201
      %573 = vmatprep.subr.mxu0 0.0
      %574 = vmatpush1.msra.mxu0 %v203
      %575 = vmatprep.subr.mxu0 0.0
      %576 = vmatpush1.msra.mxu0 %v205
      %577 = vmatprep.subr.mxu0 0.0
      %578 = vmatpush1.msra.mxu0 %v207
      %579 = vmatprep.subr.mxu0 0.0
      %580 = vmatpush1.msra.mxu0 %v209
      %581 = vmatprep.subr.mxu0 0.0
      %582 = vmatpush1.msra.mxu0 %v211
      %583 = vmatprep.subr.mxu0 0.0
      %584 = vmatpush1.msra.mxu0 0.0
      %585 = vmatprep.subr.mxu0 0.0
      %586 = vmatpush1.msra.mxu0 0.0
      %587 = vmatprep.subr.mxu0 0.0
      %588 = vmatpush1.msra.mxu0 0.0
      %589 = vmatprep.subr.mxu0 0.0
      %590 = vmatpush1.msra.mxu0 0.0
      %591 = vmatprep.subr.mxu0 0.0
      %592 = vmatpush1.msra.mxu0 0.0
      %593 = vmatprep.subr.mxu0 0.0
      %594 = vmatpush1.msra.mxu0 0.0
      %595 = vmatprep.subr.mxu0 0.0
      %596 = vmatpush1.msra.mxu0 0.0
      %597 = vmatprep.subr.mxu0 0.0
      %598 = vmatpush1.msra.mxu0 0.0
      %599 = vmatprep.subr.mxu0 0.0
      %600 = vmatpush1.msra.mxu0 0.0
      %601 = vmatprep.subr.mxu0 0.0
      %602 = vmatpush1.msra.mxu0 0.0
      %603 = vmatprep.subr.mxu0 0.0
      %604 = vmatpush1.msra.mxu0 0.0
      %605 = vmatprep.subr.mxu0 0.0
      %606 = vmatpush1.msra.mxu0 0.0
      %607 = vmatprep.subr.mxu0 0.0
      %608 = vmatpush1.msra.mxu0 0.0
      %609 = vmatprep.subr.mxu0 0.0
      %610 = vmatpush1.msra.mxu0 0.0
      %611 = vmatprep.subr.mxu0 0.0
      %612 = vmatpush1.msra.mxu0 0.0
      %613 = vmatprep.subr.mxu0 0.0
      %614 = vmatpush1.msra.mxu0 0.0
      %615 = vmatprep.subr.mxu0 0.0
      %616 = vmatpush1.msra.mxu0 0.0
      %617 = vmatprep.subr.mxu0 0.0
      %618 = vmatpush1.msra.mxu0 0.0
      %619 = vmatprep.subr.mxu0 0.0
      %620 = vmatpush1.msra.mxu0 0.0
      %621 = vmatprep.subr.mxu0 0.0
      %622 = vmatpush1.msra.mxu0 0.0
      %623 = vmatprep.subr.mxu0 0.0
      %624 = vmatpush1.msra.mxu0 0.0
      %625 = vmatprep.subr.mxu0 0.0
      %626 = vmatpush1.msra.mxu0 0.0
      %627 = vmatprep.subr.mxu0 0.0
      %628 = vmatpush1.msra.mxu0 0.0
      %629 = vmatprep.subr.mxu0 0.0
      %630 = vmatpush1.msra.mxu0 0.0
      %631 = vmatprep.mubr.f32.mxu0 0.0
      %632 = vmatmul.mubr.f32.gmra.mrb[0].mxu0 %v556
      %v633 = vpop.f32.mrb[0].mxu0
      %v634 = vadd.f32 0.0, %v633
      %v635 = vpop.f32.mrb[0].mxu0
      %636 = vmatprep.mubr.f32.mxu0 0.0
      %637 = vmatmul.mubr.f32.gmra.mrb[0].mxu0 %v559
      %v638 = vpop.f32.mrb[0].mxu0
      %v639 = vadd.f32 0.0, %v638
      %v640 = vpop.f32.mrb[0].mxu0
      %641 = vmatprep.mubr.f32.mxu0 0.0
      %642 = vmatmul.mubr.f32.gmra.mrb[0].mxu0 %v562
      %v643 = vpop.f32.mrb[0].mxu0
      %v644 = vadd.f32 0.0, %v643
      %v645 = vpop.f32.mrb[0].mxu0
      %646 = vmatprep.mubr.f32.mxu0 0.0
      %647 = vmatmul.mubr.f32.gmra.mrb[0].mxu0 %v565
      %v648 = vpop.f32.mrb[0].mxu0
      %v649 = vadd.f32 0.0, %v648
      %v650 = vpop.f32.mrb[0].mxu0
      %651 = vdwg.mxu0
      %v653 = vsel %vm220, %v546, 0
      %v656 = vsel %vm220, %v547, 0
      %v659 = vsel %vm220, %v548, 0
      %v662 = vsel %vm220, %v549, 0
      %664 = vmatprep.subr.mxu0 0.0
      %665 = vmatpush1.msra.mxu0 %v319
      %666 = vmatprep.subr.mxu0 0.0
      %667 = vmatpush1.msra.mxu0 %v321
      %668 = vmatprep.subr.mxu0 0.0
      %669 = vmatpush1.msra.mxu0 %v323
      %670 = vmatprep.subr.mxu0 0.0
      %671 = vmatpush1.msra.mxu0 %v325
      %672 = vmatprep.subr.mxu0 0.0
      %673 = vmatpush1.msra.mxu0 %v327
      %674 = vmatprep.subr.mxu0 0.0
      %675 = vmatpush1.msra.mxu0 %v329
      %676 = vmatprep.subr.mxu0 0.0
      %677 = vmatpush1.msra.mxu0 %v331
      %678 = vmatprep.subr.mxu0 0.0
      %679 = vmatpush1.msra.mxu0 %v333
      %680 = vmatprep.subr.mxu0 0.0
      %681 = vmatpush1.msra.mxu0 0.0
      %682 = vmatprep.subr.mxu0 0.0
      %683 = vmatpush1.msra.mxu0 0.0
      %684 = vmatprep.subr.mxu0 0.0
      %685 = vmatpush1.msra.mxu0 0.0
      %686 = vmatprep.subr.mxu0 0.0
      %687 = vmatpush1.msra.mxu0 0.0
      %688 = vmatprep.subr.mxu0 0.0
      %689 = vmatpush1.msra.mxu0 0.0
      %690 = vmatprep.subr.mxu0 0.0
      %691 = vmatpush1.msra.mxu0 0.0
      %692 = vmatprep.subr.mxu0 0.0
      %693 = vmatpush1.msra.mxu0 0.0
      %694 = vmatprep.subr.mxu0 0.0
      %695 = vmatpush1.msra.mxu0 0.0
      %696 = vmatprep.subr.mxu0 0.0
      %697 = vmatpush1.msra.mxu0 0.0
      %698 = vmatprep.subr.mxu0 0.0
      %699 = vmatpush1.msra.mxu0 0.0
      %700 = vmatprep.subr.mxu0 0.0
      %701 = vmatpush1.msra.mxu0 0.0
      %702 = vmatprep.subr.mxu0 0.0
      %703 = vmatpush1.msra.mxu0 0.0
      %704 = vmatprep.subr.mxu0 0.0
      %705 = vmatpush1.msra.mxu0 0.0
      %706 = vmatprep.subr.mxu0 0.0
      %707 = vmatpush1.msra.mxu0 0.0
      %708 = vmatprep.subr.mxu0 0.0
      %709 = vmatpush1.msra.mxu0 0.0
      %710 = vmatprep.subr.mxu0 0.0
      %711 = vmatpush1.msra.mxu0 0.0
      %712 = vmatprep.subr.mxu0 0.0
      %713 = vmatpush1.msra.mxu0 0.0
      %714 = vmatprep.subr.mxu0 0.0
      %715 = vmatpush1.msra.mxu0 0.0
      %716 = vmatprep.subr.mxu0 0.0
      %717 = vmatpush1.msra.mxu0 0.0
      %718 = vmatprep.subr.mxu0 0.0
      %719 = vmatpush1.msra.mxu0 0.0
      %720 = vmatprep.subr.mxu0 0.0
      %721 = vmatpush1.msra.mxu0 0.0
      %722 = vmatprep.subr.mxu0 0.0
      %723 = vmatpush1.msra.mxu0 0.0
      %724 = vmatprep.subr.mxu0 0.0
      %725 = vmatpush1.msra.mxu0 0.0
      %726 = vmatprep.subr.mxu0 0.0
      %727 = vmatpush1.msra.mxu0 0.0
      %728 = vmatprep.mubr.f32.mxu0 0.0
      %729 = vmatmul.mubr.f32.gmra.mrb[0].mxu0 %v653
      %v730 = vpop.f32.mrb[0].mxu0
      %v731 = vadd.f32 %v634, %v730
      %v732 = vpop.f32.mrb[0].mxu0
      %733 = vmatprep.mubr.f32.mxu0 0.0
      %734 = vmatmul.mubr.f32.gmra.mrb[0].mxu0 %v656
      %v735 = vpop.f32.mrb[0].mxu0
      %v736 = vadd.f32 %v639, %v735
      %v737 = vpop.f32.mrb[0].mxu0
      %738 = vmatprep.mubr.f32.mxu0 0.0
      %739 = vmatmul.mubr.f32.gmra.mrb[0].mxu0 %v659
      %v740 = vpop.f32.mrb[0].mxu0
      %v741 = vadd.f32 %v644, %v740
      %v742 = vpop.f32.mrb[0].mxu0
      %743 = vmatprep.mubr.f32.mxu0 0.0
      %744 = vmatmul.mubr.f32.gmra.mrb[0].mxu0 %v662
      %v745 = vpop.f32.mrb[0].mxu0
      %v746 = vadd.f32 %v649, %v745
      %v747 = vpop.f32.mrb[0].mxu0
      %748 = vdwg.mxu0
      %v749 = vld [vmem:[%s2] sm:$0xff]
      %v750 = vld [vmem:[%s2 + $0x8] sm:$0xff]
      %v751 = vld [vmem:[%s2 + $0x10] sm:$0xff]
      %v752 = vld [vmem:[%s2 + $0x18] sm:$0xff]
      %754 = vset.pattern.permute.xlu0 0
      %755 = vperm.xlu0 %754, %v749
      %v756 = vpop.permute.xlu0 %755
      %759 = vset.pattern.permute.xlu0 0
      %760 = vperm.xlu0 %759, %v750
      %v761 = vpop.permute.xlu0 %760
      %764 = vset.pattern.permute.xlu0 0
      %765 = vperm.xlu0 %764, %v751
      %v766 = vpop.permute.xlu0 %765
      %769 = vset.pattern.permute.xlu0 0
      %770 = vperm.xlu0 %769, %v752
      %v771 = vpop.permute.xlu0 %770
      %v773 = vadd.f32 %v541, %v756
      %v774 = vadd.f32 %v542, %v761
      %v775 = vadd.f32 %v543, %v766
      %v776 = vadd.f32 %v544, %v771
      %v777 = vmax.f32 %v773, 0.0
      %v778 = vmax.f32 %v774, 0.0
      %v779 = vmax.f32 %v775, 0.0
      %v780 = vmax.f32 %v776, 0.0
      %vm781 = vcmask 15360
      %782 = vst.msk [vmem:[%s170] sm:$0xff] %vm781, %v777
      %783 = vst.msk [vmem:[%s170 + $0x8] sm:$0xff] %vm781, %v778
      %784 = vst.msk [vmem:[%s170 + $0x10] sm:$0xff] %vm781, %v779
      %785 = vst.msk [vmem:[%s170 + $0x18] sm:$0xff] %vm781, %v780
      %v786 = vadd.f32 %v731, %v756
      %v787 = vadd.f32 %v736, %v761
      %v788 = vadd.f32 %v741, %v766
      %v789 = vadd.f32 %v746, %v771
      %v790 = vmax.f32 %v786, 0.0
      %v791 = vmax.f32 %v787, 0.0
      %v792 = vmax.f32 %v788, 0.0
      %v793 = vmax.f32 %v789, 0.0
      %s794 = scalar_lea.vmem %s170, 32
      %795 = vst.msk [vmem:[%s794] sm:$0xff] %vm781, %v790
      %796 = vst.msk [vmem:[%s794 + $0x8] sm:$0xff] %vm781, %v791
      %797 = vst.msk [vmem:[%s794 + $0x10] sm:$0xff] %vm781, %v792
      %798 = vst.msk [vmem:[%s794 + $0x18] sm:$0xff] %vm781, %v793
      %p799 = scmp.lt.s32.totalorder %s14, 1
      %s800 = scalar_select %p799, %s14, 1
      %s801 = smul.addr %s800, 8
      %s802 = smul.addr %s801, 8
      %s803 = scalar_lea.vmem %s3, %s802
      // Predicated region
      $region33: #{unet_forward.18} parent=31 // pred_check
        %p804 = pneg %p100
      $region34: #{unet_forward.18} parent=31 // pred_check_branch
        %806 = sbr.rel (%p804) target = $region36
      $region35: #{unet_forward.18} parent=31 // pred_region
        _
      $region36: #{unet_forward.18} parent=31 // pred_fallthru
        _
    $region32: #{unet_forward.18} parent=5 // pred_fallthru
      _
    %p807 = scmp.le.s32.totalorder 2, %s9
    // Predicated region
    $region37: #{unet_forward.18} parent=5 // pred_check
      %p808 = pneg %p807
    $region38: #{unet_forward.18} parent=5 // pred_check_branch
      %810 = sbr.rel (%p808) target = $region40
    $region39: #{unet_forward.18} parent=5 // pred_region
      %s811 = ssub.s32 %s9, 2
      // Predicated region
      $region41: #{unet_forward.18} parent=39 // pred_check
        %p812 = pneg %p106
      $region42: #{unet_forward.18} parent=39 // pred_check_branch
        %814 = sbr.rel (%p812) target = $region44
      $region43: #{unet_forward.18} parent=39 // pred_region
        %p815 = scmp.lt.s32.totalorder %s15, 1
        %s816 = scalar_select %p815, %s15, 1
        %s817 = smul.addr %s816, 8
        %s818 = smul.addr %s817, 8
        %s819 = scalar_lea.vmem %s3, %s818
      $region44: #{unet_forward.18} parent=39 // pred_fallthru
        _
    $region40: #{unet_forward.18} parent=5 // pred_fallthru
      _
  $region6: #{unet_forward.18} parent=0 // loop_footer
    %s13 = sadd.s32 1, %s9
  $region7: #{unet_forward.18} parent=0 // loop_footer_branch
    %8 = sbr.rel target = $region3
  $region8: #{unet_forward.18} parent=0 // loop_exit
    _

// kernel: unet_forward.17
$region0: #{unet_forward.17}
  #allocation0 [shape = 'u32[]', space=smem, size = 0x4, offset = 0x4, fixed_abs, tag = 'smem constant byte address 0x4 - core index']
  #allocation1 [shape = 'u32[144,128]{1,0:T(1,128)}', space=vmem, size = 0x12000, scoped, tag = 'internal scratch']
  %s0 = inlined_call_operand.vmem [shape: f32[2,32,4], index: 0, kind: input, shape index: {}]
  %s1 = inlined_call_operand.vmem [shape: f32[2,32,4], index: 1, kind: input, shape index: {}]
  %s2 = inlined_call_operand.vmem [shape: f32[5,64,32], index: 2, kind: input, shape index: {}]
  %s3 = inlined_call_operand.vmem [shape: f32[64,1], index: 3, kind: input, shape index: {}]
  %s4 = inlined_call_operand.vmem [shape: f32[2,64,2], index: 4, kind: output, shape index: {}]
  %s5 = sld [smem:[#allocation0]]
  $region49: #{unet_forward.17} parent=0
    _
  %s7 = ssub.s32 1, %s5
  %s8 = scalar_select 0, %s7, %s5
  loop: start=0, step=1, limit=4
  $region2: #{unet_forward.17} parent=0 // loop_pre_header
    _
  $region3: #{unet_forward.17} parent=0 // loop_header
    %s10 = sphi 0, %s14
    %p11 = scmp.ge.s32.totalorder %s10, 4
    %s20 = sphi 0, %s22
    %s23 = sphi 0, %s20
    %s24 = sphi 0, %s23
    %s40 = sphi 0, %s24
    %s46 = sphi 0, %s48
    %s49 = sphi 0, %s46
    %s50 = sphi 0, %s49
    %s66 = sphi 0, %s50
    %s70 = sphi 0, %s70
    %s72 = sphi 0, %s70
    %s73 = sphi 0, %s72
    %s87 = sphi 0, %s73
    %s91 = sphi 0, %s91
    %s93 = sphi 0, %s91
    %s94 = sphi 0, %s93
    %s108 = sphi 0, %s94
    %s114 = sphi 0, %s116
    %s117 = sphi 0, %s114
    %s118 = sphi 0, %s117
    %s134 = sphi 0, %s118
  $region4: #{unet_forward.17} parent=0 // loop_header_branch
    %13 = sbr.rel (%p11) target = $region8
  $region5: #{unet_forward.17} parent=0 // loop_body
    %s15 = ssub.s32 %s10, 1
    %s16 = ssub.s32 %s10, 2
    %s17 = sadd.s32 %s10, 1
    %s18 = ssub.s32 %s10, %s17
    %p19 = scmp.eq.s32.totalorder %s18, 0
    %s21 = sadd.s32 %s20, 1
    %s22 = scalar_select %p19, %s20, %s21
    %p25 = pneg %p19
    %p26 = scmp.eq.s32.totalorder %s10, 1
    %p27 = por %p25, %p26
    %p28 = scmp.ne.s32.totalorder %s20, %s23
    %p29 = scmp.eq.s32.totalorder %s10, 0
    %p30 = por %p28, %p29
    %p31 = scmp.ne.s32.totalorder %s20, %s23
    %p32 = scmp.eq.s32.totalorder %s15, 1
    %p33 = por %p31, %p32
    %p34 = scmp.ne.s32.totalorder %s23, %s24
    %p35 = scmp.eq.s32.totalorder %s15, 0
    %p36 = por %p34, %p35
    %p37 = scmp.ne.s32.totalorder %s23, %s24
    %p38 = scmp.eq.s32.totalorder %s16, 1
    %p39 = por %p37, %p38
    %p41 = scmp.ne.s32.totalorder %s24, %s40
    %p42 = scmp.eq.s32.totalorder %s16, 0
    %p43 = por %p41, %p42
    %s44 = ssub.s32 %s10, %s17
    %p45 = scmp.eq.s32.totalorder %s44, 0
    %s47 = sadd.s32 %s46, 1
    %s48 = scalar_select %p45, %s46, %s47
    %p51 = pneg %p45
    %p52 = scmp.eq.s32.totalorder %s10, 1
    %p53 = por %p51, %p52
    %p54 = scmp.ne.s32.totalorder %s46, %s49
    %p55 = scmp.eq.s32.totalorder %s10, 0
    %p56 = por %p54, %p55
    %p57 = scmp.ne.s32.totalorder %s46, %s49
    %p58 = scmp.eq.s32.totalorder %s15, 1
    %p59 = por %p57, %p58
    %p60 = scmp.ne.s32.totalorder %s49, %s50
    %p61 = scmp.eq.s32.totalorder %s15, 0
    %p62 = por %p60, %p61
    %p63 = scmp.ne.s32.totalorder %s49, %s50
    %p64 = scmp.eq.s32.totalorder %s16, 1
    %p65 = por %p63, %p64
    %p67 = scmp.ne.s32.totalorder %s50, %s66
    %p68 = scmp.eq.s32.totalorder %s16, 0
    %p69 = por %p67, %p68
    %s71 = sadd.s32 %s70, 1
    %p74 = scmp.eq.s32.totalorder %s10, 1
    %p75 = scmp.ne.s32.totalorder %s70, %s72
    %p76 = scmp.eq.s32.totalorder %s10, 0
    %p77 = por %p75, %p76
    %p78 = scmp.ne.s32.totalorder %s70, %s72
    %p79 = scmp.eq.s32.totalorder %s15, 1
    %p80 = por %p78, %p79
    %p81 = scmp.ne.s32.totalorder %s72, %s73
    %p82 = scmp.eq.s32.totalorder %s15, 0
    %p83 = por %p81, %p82
    %p84 = scmp.ne.s32.totalorder %s72, %s73
    %p85 = scmp.eq.s32.totalorder %s16, 1
    %p86 = por %p84, %p85
    %p88 = scmp.ne.s32.totalorder %s73, %s87
    %p89 = scmp.eq.s32.totalorder %s16, 0
    %p90 = por %p88, %p89
    %s92 = sadd.s32 %s91, 1
    %p95 = scmp.eq.s32.totalorder %s10, 1
    %p96 = scmp.ne.s32.totalorder %s91, %s93
    %p97 = scmp.eq.s32.totalorder %s10, 0
    %p98 = por %p96, %p97
    %p99 = scmp.ne.s32.totalorder %s91, %s93
    %p100 = scmp.eq.s32.totalorder %s15, 1
    %p101 = por %p99, %p100
    %p102 = scmp.ne.s32.totalorder %s93, %s94
    %p103 = scmp.eq.s32.totalorder %s15, 0
    %p104 = por %p102, %p103
    %p105 = scmp.ne.s32.totalorder %s93, %s94
    %p106 = scmp.eq.s32.totalorder %s16, 1
    %p107 = por %p105, %p106
    %p109 = scmp.ne.s32.totalorder %s94, %s108
    %p110 = scmp.eq.s32.totalorder %s16, 0
    %p111 = por %p109, %p110
    %s112 = ssub.s32 %s10, %s17
    %p113 = scmp.eq.s32.totalorder %s112, 0
    %s115 = sadd.s32 %s114, 1
    %s116 = scalar_select %p113, %s114, %s115
    %p119 = pneg %p113
    %p120 = scmp.eq.s32.totalorder %s10, 1
    %p121 = por %p119, %p120
    %p122 = scmp.ne.s32.totalorder %s114, %s117
    %p123 = scmp.eq.s32.totalorder %s10, 0
    %p124 = por %p122, %p123
    %p125 = scmp.ne.s32.totalorder %s114, %s117
    %p126 = scmp.eq.s32.totalorder %s15, 1
    %p127 = por %p125, %p126
    %p128 = scmp.ne.s32.totalorder %s117, %s118
    %p129 = scmp.eq.s32.totalorder %s15, 0
    %p130 = por %p128, %p129
    %p131 = scmp.ne.s32.totalorder %s117, %s118
    %p132 = scmp.eq.s32.totalorder %s16, 1
    %p133 = por %p131, %p132
    %p135 = scmp.ne.s32.totalorder %s118, %s134
    %p136 = scmp.eq.s32.totalorder %s16, 0
    %p137 = por %p135, %p136
    %p138 = scmp.le.s32.totalorder 1, %s10
    %p139 = scmp.lt.s32.totalorder %s10, 3
    %p140 = pnand %p138, %p139
    %p141 = pneg %p140
    // Predicated region
    $region9: #{unet_forward.17} parent=5 // pred_check
      _
    $region10: #{unet_forward.17} parent=5 // pred_check_branch
      %143 = sbr.rel (%p140) target = $region12
    $region11: #{unet_forward.17} parent=5 // pred_region
      %s144 = ssub.s32 %s10, 1
      // Predicated region
      $region13: #{unet_forward.17} parent=11 // pred_check
        %p145 = pneg %p83
      $region14: #{unet_forward.17} parent=11 // pred_check_branch
        %147 = sbr.rel (%p145) target = $region16
      $region15: #{unet_forward.17} parent=11 // pred_region
        _
      $region16: #{unet_forward.17} parent=11 // pred_fallthru
        _
      // Predicated region
      $region17: #{unet_forward.17} parent=11 // pred_check
        %p148 = pneg %p104
      $region18: #{unet_forward.17} parent=11 // pred_check_branch
        %150 = sbr.rel (%p148) target = $region20
      $region19: #{unet_forward.17} parent=11 // pred_region
        _
      $region20: #{unet_forward.17} parent=11 // pred_fallthru
        _
    $region12: #{unet_forward.17} parent=5 // pred_fallthru
      _
    %p151 = scmp.lt.s32.totalorder %s10, 2
    // Predicated region
    $region21: #{unet_forward.17} parent=5 // pred_check
      %p152 = pneg %p151
    $region22: #{unet_forward.17} parent=5 // pred_check_branch
      %154 = sbr.rel (%p152) target = $region24
    $region23: #{unet_forward.17} parent=5 // pred_region
      // Predicated region
      $region25: #{unet_forward.17} parent=23 // pred_check
        %p155 = pneg %p30
      $region26: #{unet_forward.17} parent=23 // pred_check_branch
        %157 = sbr.rel (%p155) target = $region28
      $region27: #{unet_forward.17} parent=23 // pred_region
        %p158 = scmp.lt.s32.totalorder %s10, 1
        %s159 = scalar_select %p158, %s10, 1
        %s160 = smul.addr %s159, 4
        %s161 = smul.addr %s160, 8
        %s162 = scalar_lea.vmem %s0, %s161
      $region28: #{unet_forward.17} parent=23 // pred_fallthru
        _
      // Predicated region
      $region29: #{unet_forward.17} parent=23 // pred_check
        %p163 = pneg %p56
      $region30: #{unet_forward.17} parent=23 // pred_check_branch
        %165 = sbr.rel (%p163) target = $region32
      $region31: #{unet_forward.17} parent=23 // pred_region
        %p166 = scmp.lt.s32.totalorder %s10, 1
        %s167 = scalar_select %p166, %s10, 1
        %s168 = smul.addr %s167, 4
        %s169 = smul.addr %s168, 8
        %s170 = scalar_lea.vmem %s1, %s169
      $region32: #{unet_forward.17} parent=23 // pred_fallthru
        _
    $region24: #{unet_forward.17} parent=5 // pred_fallthru
      _
    %p171 = scmp.le.s32.totalorder 1, %s10
    %p172 = scmp.lt.s32.totalorder %s10, 3
    %p173 = pnand %p171, %p172
    %p174 = pneg %p173
    // Predicated region
    $region33: #{unet_forward.17} parent=5 // pred_check
      _
    $region34: #{unet_forward.17} parent=5 // pred_check_branch
      %176 = sbr.rel (%p173) target = $region36
    $region35: #{unet_forward.17} parent=5 // pred_region
      %s177 = ssub.s32 %s10, 1
      %p178 = scmp.lt.s32.totalorder %s15, 1
      %s179 = scalar_select %p178, %s15, 1
      %s180 = smul.addr %s179, 4
      %s181 = smul.addr %s180, 8
      %s182 = scalar_lea.vmem %s0, %s181
      %p183 = pneg %p36
      %p184 = pneg %p33
      %p185 = scmp.lt.s32.totalorder %s15, 1
      %s186 = scalar_select %p185, %s15, 1
      %s187 = smul.addr %s186, 4
      %s188 = smul.addr %s187, 8
      %s189 = scalar_lea.vmem %s1, %s188
      %p190 = pneg %p62
      %p191 = pneg %p59
      %p192 = pneg %p83
      %p193 = pneg %p80
      %p194 = pneg %p104
      %p195 = pneg %p101
      %p196 = pneg %p130
      %p197 = pneg %p127
      %p198 = scmp.lt.s32.totalorder %s15, 1
      %s199 = scalar_select %p198, %s15, 1
      %s200 = smul.addr %s199, 8
      %s201 = smul.addr %s200, 8
      %s202 = scalar_lea.vmem %s4, %s201
      %p203 = scmp.lt.s32.totalorder %s15, 1
      %s204 = scalar_select %p203, %s15, 1
      %s205 = smul.addr %s204, 4
      %s206 = smul.addr %s205, 8
      %s207 = scalar_lea.vmem %s0, %s206
      %p208 = scmp.lt.s32.totalorder %s15, 1
      %s209 = scalar_select %p208, %s15, 1
      %s210 = smul.addr %s209, 4
      %s211 = smul.addr %s210, 8
      %s212 = scalar_lea.vmem %s1, %s211
      %p213 = scmp.lt.s32.totalorder %s15, 1
      %s214 = scalar_select %p213, %s15, 1
      %s215 = smul.addr %s214, 8
      %s216 = smul.addr %s215, 8
      %s217 = scalar_lea.vmem %s4, %s216
      %v218 = vld [vmem:[%s207] sm:$0xff]
      %v219 = vld [vmem:[%s207 + $0x8] sm:$0xff]
      %v220 = vld [vmem:[%s207 + $0x10] sm:$0xff]
      %v221 = vld [vmem:[%s207 + $0x18] sm:$0xff]
      %v222 = vld [vmem:[%s212] sm:$0xff]
      %v223 = vld [vmem:[%s212 + $0x8] sm:$0xff]
      %v224 = vld [vmem:[%s212 + $0x10] sm:$0xff]
      %v225 = vld [vmem:[%s212 + $0x18] sm:$0xff]
      %v226 = vld [vmem:[%s2] sm:$0xff]
      %v227 = vld [vmem:[%s2 + $0x8] sm:$0xff]
      %v228 = vld [vmem:[%s2 + $0x10] sm:$0xff]
      %v229 = vld [vmem:[%s2 + $0x18] sm:$0xff]
      %v230 = vld [vmem:[%s2 + $0x20] sm:$0xff]
      %v231 = vld [vmem:[%s2 + $0x28] sm:$0xff]
      %v232 = vld [vmem:[%s2 + $0x30] sm:$0xff]
      %v233 = vld [vmem:[%s2 + $0x38] sm:$0xff]
      %s234 = scalar_lea.vmem %s2, 64
      %v235 = vld [vmem:[%s234] sm:$0xff]
      %v236 = vld [vmem:[%s234 + $0x8] sm:$0xff]
      %v237 = vld [vmem:[%s234 + $0x10] sm:$0xff]
      %v238 = vld [vmem:[%s234 + $0x18] sm:$0xff]
      %v239 = vld [vmem:[%s234 + $0x20] sm:$0xff]
      %v240 = vld [vmem:[%s234 + $0x28] sm:$0xff]
      %v241 = vld [vmem:[%s234 + $0x30] sm:$0xff]
      %v242 = vld [vmem:[%s234 + $0x38] sm:$0xff]
      %vm243 = vcmask 261120
      %v245 = vsel %vm243, %v235, 0
      %v248 = vsel %vm243, %v236, 0
      %v251 = vsel %vm243, %v237, 0
      %v254 = vsel %vm243, %v238, 0
      %v257 = vsel %vm243, %v239, 0
      %v260 = vsel %vm243, %v240, 0
      %v263 = vsel %vm243, %v241, 0
      %v266 = vsel %vm243, %v242, 0
      %268 = vmatprep.subr.mxu0 0.0
      %269 = vmatpush1.msra.mxu0 %v222
      %270 = vmatprep.subr.mxu0 0.0
      %271 = vmatpush1.msra.mxu0 %v223
      %272 = vmatprep.subr.mxu0 0.0
      %273 = vmatpush1.msra.mxu0 %v224
      %274 = vmatprep.subr.mxu0 0.0
      %275 = vmatpush1.msra.mxu0 %v225
      %276 = vmatprep.subr.mxu0 0.0
      %277 = vmatpush1.msra.mxu0 0.0
      %278 = vmatprep.subr.mxu0 0.0
      %279 = vmatpush1.msra.mxu0 0.0
      %280 = vmatprep.subr.mxu0 0.0
      %281 = vmatpush1.msra.mxu0 0.0
      %282 = vmatprep.subr.mxu0 0.0
      %283 = vmatpush1.msra.mxu0 0.0
      %284 = vmatprep.subr.mxu0 0.0
      %285 = vmatpush1.msra.mxu0 0.0
      %286 = vmatprep.subr.mxu0 0.0
      %287 = vmatpush1.msra.mxu0 0.0
      %288 = vmatprep.subr.mxu0 0.0
      %289 = vmatpush1.msra.mxu0 0.0
      %290 = vmatprep.subr.mxu0 0.0
      %291 = vmatpush1.msra.mxu0 0.0
      %292 = vmatprep.subr.mxu0 0.0
      %293 = vmatpush1.msra.mxu0 0.0
      %294 = vmatprep.subr.mxu0 0.0
      %295 = vmatpush1.msra.mxu0 0.0
      %296 = vmatprep.subr.mxu0 0.0
      %297 = vmatpush1.msra.mxu0 0.0
      %298 = vmatprep.subr.mxu0 0.0
      %299 = vmatpush1.msra.mxu0 0.0
      %300 = vmatprep.subr.mxu0 0.0
      %301 = vmatpush1.msra.mxu0 0.0
      %302 = vmatprep.subr.mxu0 0.0
      %303 = vmatpush1.msra.mxu0 0.0
      %304 = vmatprep.subr.mxu0 0.0
      %305 = vmatpush1.msra.mxu0 0.0
      %306 = vmatprep.subr.mxu0 0.0
      %307 = vmatpush1.msra.mxu0 0.0
      %308 = vmatprep.subr.mxu0 0.0
      %309 = vmatpush1.msra.mxu0 0.0
      %310 = vmatprep.subr.mxu0 0.0
      %311 = vmatpush1.msra.mxu0 0.0
      %312 = vmatprep.subr.mxu0 0.0
      %313 = vmatpush1.msra.mxu0 0.0
      %314 = vmatprep.subr.mxu0 0.0
      %315 = vmatpush1.msra.mxu0 0.0
      %316 = vmatprep.subr.mxu0 0.0
      %317 = vmatpush1.msra.mxu0 0.0
      %318 = vmatprep.subr.mxu0 0.0
      %319 = vmatpush1.msra.mxu0 0.0
      %320 = vmatprep.subr.mxu0 0.0
      %321 = vmatpush1.msra.mxu0 0.0
      %322 = vmatprep.subr.mxu0 0.0
      %323 = vmatpush1.msra.mxu0 0.0
      %324 = vmatprep.subr.mxu0 0.0
      %325 = vmatpush1.msra.mxu0 0.0
      %326 = vmatprep.subr.mxu0 0.0
      %327 = vmatpush1.msra.mxu0 0.0
      %328 = vmatprep.subr.mxu0 0.0
      %329 = vmatpush1.msra.mxu0 0.0
      %330 = vmatprep.subr.mxu0 0.0
      %331 = vmatpush1.msra.mxu0 0.0
      %332 = vmatprep.mubr.f32.mxu0 0.0
      %333 = vmatmul.mubr.f32.gmra.mrb[0].mxu0 %v245
      %v334 = vpop.f32.mrb[0].mxu0
      %v335 = vadd.f32 0.0, %v334
      %v336 = vpop.f32.mrb[0].mxu0
      %337 = vmatprep.mubr.f32.mxu0 0.0
      %338 = vmatmul.mubr.f32.gmra.mrb[0].mxu0 %v248
      %v339 = vpop.f32.mrb[0].mxu0
      %v340 = vadd.f32 0.0, %v339
      %v341 = vpop.f32.mrb[0].mxu0
      %342 = vmatprep.mubr.f32.mxu0 0.0
      %343 = vmatmul.mubr.f32.gmra.mrb[0].mxu0 %v251
      %v344 = vpop.f32.mrb[0].mxu0
      %v345 = vadd.f32 0.0, %v344
      %v346 = vpop.f32.mrb[0].mxu0
      %347 = vmatprep.mubr.f32.mxu0 0.0
      %348 = vmatmul.mubr.f32.gmra.mrb[0].mxu0 %v254
      %v349 = vpop.f32.mrb[0].mxu0
      %v350 = vadd.f32 0.0, %v349
      %v351 = vpop.f32.mrb[0].mxu0
      %352 = vmatprep.mubr.f32.mxu0 0.0
      %353 = vmatmul.mubr.f32.gmra.mrb[0].mxu0 %v257
      %v354 = vpop.f32.mrb[0].mxu0
      %v355 = vadd.f32 0.0, %v354
      %v356 = vpop.f32.mrb[0].mxu0
      %357 = vmatprep.mubr.f32.mxu0 0.0
      %358 = vmatmul.mubr.f32.gmra.mrb[0].mxu0 %v260
      %v359 = vpop.f32.mrb[0].mxu0
      %v360 = vadd.f32 0.0, %v359
      %v361 = vpop.f32.mrb[0].mxu0
      %362 = vmatprep.mubr.f32.mxu0 0.0
      %363 = vmatmul.mubr.f32.gmra.mrb[0].mxu0 %v263
      %v364 = vpop.f32.mrb[0].mxu0
      %v365 = vadd.f32 0.0, %v364
      %v366 = vpop.f32.mrb[0].mxu0
      %367 = vmatprep.mubr.f32.mxu0 0.0
      %368 = vmatmul.mubr.f32.gmra.mrb[0].mxu0 %v266
      %v369 = vpop.f32.mrb[0].mxu0
      %v370 = vadd.f32 0.0, %v369
      %v371 = vpop.f32.mrb[0].mxu0
      %372 = vdwg.mxu0
      %v374 = vsel %vm243, %v226, 0
      %v377 = vsel %vm243, %v227, 0
      %v380 = vsel %vm243, %v228, 0
      %v383 = vsel %vm243, %v229, 0
      %v386 = vsel %vm243, %v230, 0
      %v389 = vsel %vm243, %v231, 0
      %v392 = vsel %vm243, %v232, 0
      %v395 = vsel %vm243, %v233, 0
      %397 = vmatprep.subr.mxu0 0.0
      %398 = vmatpush1.msra.mxu0 %v218
      %399 = vmatprep.subr.mxu0 0.0
      %400 = vmatpush1.msra.mxu0 %v219
      %401 = vmatprep.subr.mxu0 0.0
      %402 = vmatpush1.msra.mxu0 %v220
      %403 = vmatprep.subr.mxu0 0.0
      %404 = vmatpush1.msra.mxu0 %v221
      %405 = vmatprep.subr.mxu0 0.0
      %406 = vmatpush1.msra.mxu0 0.0
      %407 = vmatprep.subr.mxu0 0.0
      %408 = vmatpush1.msra.mxu0 0.0
      %409 = vmatprep.subr.mxu0 0.0
      %410 = vmatpush1.msra.mxu0 0.0
      %411 = vmatprep.subr.mxu0 0.0
      %412 = vmatpush1.msra.mxu0 0.0
      %413 = vmatprep.subr.mxu0 0.0
      %414 = vmatpush1.msra.mxu0 0.0
      %415 = vmatprep.subr.mxu0 0.0
      %416 = vmatpush1.msra.mxu0 0.0
      %417 = vmatprep.subr.mxu0 0.0
      %418 = vmatpush1.msra.mxu0 0.0
      %419 = vmatprep.subr.mxu0 0.0
      %420 = vmatpush1.msra.mxu0 0.0
      %421 = vmatprep.subr.mxu0 0.0
      %422 = vmatpush1.msra.mxu0 0.0
      %423 = vmatprep.subr.mxu0 0.0
      %424 = vmatpush1.msra.mxu0 0.0
      %425 = vmatprep.subr.mxu0 0.0
      %426 = vmatpush1.msra.mxu0 0.0
      %427 = vmatprep.subr.mxu0 0.0
      %428 = vmatpush1.msra.mxu0 0.0
      %429 = vmatprep.subr.mxu0 0.0
      %430 = vmatpush1.msra.mxu0 0.0
      %431 = vmatprep.subr.mxu0 0.0
      %432 = vmatpush1.msra.mxu0 0.0
      %433 = vmatprep.subr.mxu0 0.0
      %434 = vmatpush1.msra.mxu0 0.0
      %435 = vmatprep.subr.mxu0 0.0
      %436 = vmatpush1.msra.mxu0 0.0
      %437 = vmatprep.subr.mxu0 0.0
      %438 = vmatpush1.msra.mxu0 0.0
      %439 = vmatprep.subr.mxu0 0.0
      %440 = vmatpush1.msra.mxu0 0.0
      %441 = vmatprep.subr.mxu0 0.0
      %442 = vmatpush1.msra.mxu0 0.0
      %443 = vmatprep.subr.mxu0 0.0
      %444 = vmatpush1.msra.mxu0 0.0
      %445 = vmatprep.subr.mxu0 0.0
      %446 = vmatpush1.msra.mxu0 0.0
      %447 = vmatprep.subr.mxu0 0.0
      %448 = vmatpush1.msra.mxu0 0.0
      %449 = vmatprep.subr.mxu0 0.0
      %450 = vmatpush1.msra.mxu0 0.0
      %451 = vmatprep.subr.mxu0 0.0
      %452 = vmatpush1.msra.mxu0 0.0
      %453 = vmatprep.subr.mxu0 0.0
      %454 = vmatpush1.msra.mxu0 0.0
      %455 = vmatprep.subr.mxu0 0.0
      %456 = vmatpush1.msra.mxu0 0.0
      %457 = vmatprep.subr.mxu0 0.0
      %458 = vmatpush1.msra.mxu0 0.0
      %459 = vmatprep.subr.mxu0 0.0
      %460 = vmatpush1.msra.mxu0 0.0
      %461 = vmatprep.mubr.f32.mxu0 0.0
      %462 = vmatmul.mubr.f32.gmra.mrb[0].mxu0 %v374
      %v463 = vpop.f32.mrb[0].mxu0
      %v464 = vadd.f32 %v335, %v463
      %v465 = vpop.f32.mrb[0].mxu0
      %466 = vmatprep.mubr.f32.mxu0 0.0
      %467 = vmatmul.mubr.f32.gmra.mrb[0].mxu0 %v377
      %v468 = vpop.f32.mrb[0].mxu0
      %v469 = vadd.f32 %v340, %v468
      %v470 = vpop.f32.mrb[0].mxu0
      %471 = vmatprep.mubr.f32.mxu0 0.0
      %472 = vmatmul.mubr.f32.gmra.mrb[0].mxu0 %v380
      %v473 = vpop.f32.mrb[0].mxu0
      %v474 = vadd.f32 %v345, %v473
      %v475 = vpop.f32.mrb[0].mxu0
      %476 = vmatprep.mubr.f32.mxu0 0.0
      %477 = vmatmul.mubr.f32.gmra.mrb[0].mxu0 %v383
      %v478 = vpop.f32.mrb[0].mxu0
      %v479 = vadd.f32 %v350, %v478
      %v480 = vpop.f32.mrb[0].mxu0
      %481 = vmatprep.mubr.f32.mxu0 0.0
      %482 = vmatmul.mubr.f32.gmra.mrb[0].mxu0 %v386
      %v483 = vpop.f32.mrb[0].mxu0
      %v484 = vadd.f32 %v355, %v483
      %v485 = vpop.f32.mrb[0].mxu0
      %486 = vmatprep.mubr.f32.mxu0 0.0
      %487 = vmatmul.mubr.f32.gmra.mrb[0].mxu0 %v389
      %v488 = vpop.f32.mrb[0].mxu0
      %v489 = vadd.f32 %v360, %v488
      %v490 = vpop.f32.mrb[0].mxu0
      %491 = vmatprep.mubr.f32.mxu0 0.0
      %492 = vmatmul.mubr.f32.gmra.mrb[0].mxu0 %v392
      %v493 = vpop.f32.mrb[0].mxu0
      %v494 = vadd.f32 %v365, %v493
      %v495 = vpop.f32.mrb[0].mxu0
      %496 = vmatprep.mubr.f32.mxu0 0.0
      %497 = vmatmul.mubr.f32.gmra.mrb[0].mxu0 %v395
      %v498 = vpop.f32.mrb[0].mxu0
      %v499 = vadd.f32 %v370, %v498
      %v500 = vpop.f32.mrb[0].mxu0
      %501 = vdwg.mxu0
      %s502 = scalar_lea.vmem %s2, 128
      %v503 = vld [vmem:[%s502] sm:$0xff]
      %v504 = vld [vmem:[%s502 + $0x8] sm:$0xff]
      %v505 = vld [vmem:[%s502 + $0x10] sm:$0xff]
      %v506 = vld [vmem:[%s502 + $0x18] sm:$0xff]
      %v507 = vld [vmem:[%s502 + $0x20] sm:$0xff]
      %v508 = vld [vmem:[%s502 + $0x28] sm:$0xff]
      %v509 = vld [vmem:[%s502 + $0x30] sm:$0xff]
      %v510 = vld [vmem:[%s502 + $0x38] sm:$0xff]
      %515 = vrot.lane.b32.xlu0 %v218, 127
      %v516 = vpop.permute.xlu0 %515
      %517 = vrot.lane.b32.xlu0 %v219, 127
      %v518 = vpop.permute.xlu0 %517
      %519 = vrot.lane.b32.xlu0 %v220, 127
      %v520 = vpop.permute.xlu0 %519
      %521 = vrot.lane.b32.xlu0 %v221, 127
      %v522 = vpop.permute.xlu0 %521
      %v528 = vsel %vm243, %v503, 0
      %v531 = vsel %vm243, %v504, 0
      %v534 = vsel %vm243, %v505, 0
      %v537 = vsel %vm243, %v506, 0
      %v540 = vsel %vm243, %v507, 0
      %v543 = vsel %vm243, %v508, 0
      %v546 = vsel %vm243, %v509, 0
      %v549 = vsel %vm243, %v510, 0
      %551 = vmatprep.subr.mxu0 0.0
      %552 = vmatpush1.msra.mxu0 %v516
      %553 = vmatprep.subr.mxu0 0.0
      %554 = vmatpush1.msra.mxu0 %v518
      %555 = vmatprep.subr.mxu0 0.0
      %556 = vmatpush1.msra.mxu0 %v520
      %557 = vmatprep.subr.mxu0 0.0
      %558 = vmatpush1.msra.mxu0 %v522
      %559 = vmatprep.subr.mxu0 0.0
      %560 = vmatpush1.msra.mxu0 0.0
      %561 = vmatprep.subr.mxu0 0.0
      %562 = vmatpush1.msra.mxu0 0.0
      %563 = vmatprep.subr.mxu0 0.0
      %564 = vmatpush1.msra.mxu0 0.0
      %565 = vmatprep.subr.mxu0 0.0
      %566 = vmatpush1.msra.mxu0 0.0
      %567 = vmatprep.subr.mxu0 0.0
      %568 = vmatpush1.msra.mxu0 0.0
      %569 = vmatprep.subr.mxu0 0.0
      %570 = vmatpush1.msra.mxu0 0.0
      %571 = vmatprep.subr.mxu0 0.0
      %572 = vmatpush1.msra.mxu0 0.0
      %573 = vmatprep.subr.mxu0 0.0
      %574 = vmatpush1.msra.mxu0 0.0
      %575 = vmatprep.subr.mxu0 0.0
      %576 = vmatpush1.msra.mxu0 0.0
      %577 = vmatprep.subr.mxu0 0.0
      %578 = vmatpush1.msra.mxu0 0.0
      %579 = vmatprep.subr.mxu0 0.0
      %580 = vmatpush1.msra.mxu0 0.0
      %581 = vmatprep.subr.mxu0 0.0
      %582 = vmatpush1.msra.mxu0 0.0
      %583 = vmatprep.subr.mxu0 0.0
      %584 = vmatpush1.msra.mxu0 0.0
      %585 = vmatprep.subr.mxu0 0.0
      %586 = vmatpush1.msra.mxu0 0.0
      %587 = vmatprep.subr.mxu0 0.0
      %588 = vmatpush1.msra.mxu0 0.0
      %589 = vmatprep.subr.mxu0 0.0
      %590 = vmatpush1.msra.mxu0 0.0
      %591 = vmatprep.subr.mxu0 0.0
      %592 = vmatpush1.msra.mxu0 0.0
      %593 = vmatprep.subr.mxu0 0.0
      %594 = vmatpush1.msra.mxu0 0.0
      %595 = vmatprep.subr.mxu0 0.0
      %596 = vmatpush1.msra.mxu0 0.0
      %597 = vmatprep.subr.mxu0 0.0
      %598 = vmatpush1.msra.mxu0 0.0
      %599 = vmatprep.subr.mxu0 0.0
      %600 = vmatpush1.msra.mxu0 0.0
      %601 = vmatprep.subr.mxu0 0.0
      %602 = vmatpush1.msra.mxu0 0.0
      %603 = vmatprep.subr.mxu0 0.0
      %604 = vmatpush1.msra.mxu0 0.0
      %605 = vmatprep.subr.mxu0 0.0
      %606 = vmatpush1.msra.mxu0 0.0
      %607 = vmatprep.subr.mxu0 0.0
      %608 = vmatpush1.msra.mxu0 0.0
      %609 = vmatprep.subr.mxu0 0.0
      %610 = vmatpush1.msra.mxu0 0.0
      %611 = vmatprep.subr.mxu0 0.0
      %612 = vmatpush1.msra.mxu0 0.0
      %613 = vmatprep.subr.mxu0 0.0
      %614 = vmatpush1.msra.mxu0 0.0
      %615 = vmatprep.mubr.f32.mxu0 0.0
      %616 = vmatmul.mubr.f32.gmra.mrb[0].mxu0 %v528
      %v617 = vpop.f32.mrb[0].mxu0
      %v618 = vadd.f32 0.0, %v617
      %v619 = vpop.f32.mrb[0].mxu0
      %620 = vmatprep.mubr.f32.mxu0 0.0
      %621 = vmatmul.mubr.f32.gmra.mrb[0].mxu0 %v531
      %v622 = vpop.f32.mrb[0].mxu0
      %v623 = vadd.f32 0.0, %v622
      %v624 = vpop.f32.mrb[0].mxu0
      %625 = vmatprep.mubr.f32.mxu0 0.0
      %626 = vmatmul.mubr.f32.gmra.mrb[0].mxu0 %v534
      %v627 = vpop.f32.mrb[0].mxu0
      %v628 = vadd.f32 0.0, %v627
      %v629 = vpop.f32.mrb[0].mxu0
      %630 = vmatprep.mubr.f32.mxu0 0.0
      %631 = vmatmul.mubr.f32.gmra.mrb[0].mxu0 %v537
      %v632 = vpop.f32.mrb[0].mxu0
      %v633 = vadd.f32 0.0, %v632
      %v634 = vpop.f32.mrb[0].mxu0
      %635 = vmatprep.mubr.f32.mxu0 0.0
      %636 = vmatmul.mubr.f32.gmra.mrb[0].mxu0 %v540
      %v637 = vpop.f32.mrb[0].mxu0
      %v638 = vadd.f32 0.0, %v637
      %v639 = vpop.f32.mrb[0].mxu0
      %640 = vmatprep.mubr.f32.mxu0 0.0
      %641 = vmatmul.mubr.f32.gmra.mrb[0].mxu0 %v543
      %v642 = vpop.f32.mrb[0].mxu0
      %v643 = vadd.f32 0.0, %v642
      %v644 = vpop.f32.mrb[0].mxu0
      %645 = vmatprep.mubr.f32.mxu0 0.0
      %646 = vmatmul.mubr.f32.gmra.mrb[0].mxu0 %v546
      %v647 = vpop.f32.mrb[0].mxu0
      %v648 = vadd.f32 0.0, %v647
      %v649 = vpop.f32.mrb[0].mxu0
      %650 = vmatprep.mubr.f32.mxu0 0.0
      %651 = vmatmul.mubr.f32.gmra.mrb[0].mxu0 %v549
      %v652 = vpop.f32.mrb[0].mxu0
      %v653 = vadd.f32 0.0, %v652
      %v654 = vpop.f32.mrb[0].mxu0
      %655 = vdwg.mxu0
      %v656 = vadd.f32 %v464, %v618
      %v657 = vadd.f32 %v469, %v623
      %v658 = vadd.f32 %v474, %v628
      %v659 = vadd.f32 %v479, %v633
      %v660 = vadd.f32 %v484, %v638
      %v661 = vadd.f32 %v489, %v643
      %v662 = vadd.f32 %v494, %v648
      %v663 = vadd.f32 %v499, %v653
      %s664 = scalar_lea.vmem %s2, 192
      %v665 = vld [vmem:[%s664] sm:$0xff]
      %v666 = vld [vmem:[%s664 + $0x8] sm:$0xff]
      %v667 = vld [vmem:[%s664 + $0x10] sm:$0xff]
      %v668 = vld [vmem:[%s664 + $0x18] sm:$0xff]
      %v669 = vld [vmem:[%s664 + $0x20] sm:$0xff]
      %v670 = vld [vmem:[%s664 + $0x28] sm:$0xff]
      %v671 = vld [vmem:[%s664 + $0x30] sm:$0xff]
      %v672 = vld [vmem:[%s664 + $0x38] sm:$0xff]
      %677 = vrot.lane.b32.xlu0 %v222, 127
      %v678 = vpop.permute.xlu0 %677
      %679 = vrot.lane.b32.xlu0 %v223, 127
      %v680 = vpop.permute.xlu0 %679
      %681 = vrot.lane.b32.xlu0 %v224, 127
      %v682 = vpop.permute.xlu0 %681
      %683 = vrot.lane.b32.xlu0 %v225, 127
      %v684 = vpop.permute.xlu0 %683
      %v690 = vsel %vm243, %v665, 0
      %v693 = vsel %vm243, %v666, 0
      %v696 = vsel %vm243, %v667, 0
      %v699 = vsel %vm243, %v668, 0
      %v702 = vsel %vm243, %v669, 0
      %v705 = vsel %vm243, %v670, 0
      %v708 = vsel %vm243, %v671, 0
      %v711 = vsel %vm243, %v672, 0
      %713 = vmatprep.subr.mxu0 0.0
      %714 = vmatpush1.msra.mxu0 %v678
      %715 = vmatprep.subr.mxu0 0.0
      %716 = vmatpush1.msra.mxu0 %v680
      %717 = vmatprep.subr.mxu0 0.0
      %718 = vmatpush1.msra.mxu0 %v682
      %719 = vmatprep.subr.mxu0 0.0
      %720 = vmatpush1.msra.mxu0 %v684
      %721 = vmatprep.subr.mxu0 0.0
      %722 = vmatpush1.msra.mxu0 0.0
      %723 = vmatprep.subr.mxu0 0.0
      %724 = vmatpush1.msra.mxu0 0.0
      %725 = vmatprep.subr.mxu0 0.0
      %726 = vmatpush1.msra.mxu0 0.0
      %727 = vmatprep.subr.mxu0 0.0
      %728 = vmatpush1.msra.mxu0 0.0
      %729 = vmatprep.subr.mxu0 0.0
      %730 = vmatpush1.msra.mxu0 0.0
      %731 = vmatprep.subr.mxu0 0.0
      %732 = vmatpush1.msra.mxu0 0.0
      %733 = vmatprep.subr.mxu0 0.0
      %734 = vmatpush1.msra.mxu0 0.0
      %735 = vmatprep.subr.mxu0 0.0
      %736 = vmatpush1.msra.mxu0 0.0
      %737 = vmatprep.subr.mxu0 0.0
      %738 = vmatpush1.msra.mxu0 0.0
      %739 = vmatprep.subr.mxu0 0.0
      %740 = vmatpush1.msra.mxu0 0.0
      %741 = vmatprep.subr.mxu0 0.0
      %742 = vmatpush1.msra.mxu0 0.0
      %743 = vmatprep.subr.mxu0 0.0
      %744 = vmatpush1.msra.mxu0 0.0
      %745 = vmatprep.subr.mxu0 0.0
      %746 = vmatpush1.msra.mxu0 0.0
      %747 = vmatprep.subr.mxu0 0.0
      %748 = vmatpush1.msra.mxu0 0.0
      %749 = vmatprep.subr.mxu0 0.0
      %750 = vmatpush1.msra.mxu0 0.0
      %751 = vmatprep.subr.mxu0 0.0
      %752 = vmatpush1.msra.mxu0 0.0
      %753 = vmatprep.subr.mxu0 0.0
      %754 = vmatpush1.msra.mxu0 0.0
      %755 = vmatprep.subr.mxu0 0.0
      %756 = vmatpush1.msra.mxu0 0.0
      %757 = vmatprep.subr.mxu0 0.0
      %758 = vmatpush1.msra.mxu0 0.0
      %759 = vmatprep.subr.mxu0 0.0
      %760 = vmatpush1.msra.mxu0 0.0
      %761 = vmatprep.subr.mxu0 0.0
      %762 = vmatpush1.msra.mxu0 0.0
      %763 = vmatprep.subr.mxu0 0.0
      %764 = vmatpush1.msra.mxu0 0.0
      %765 = vmatprep.subr.mxu0 0.0
      %766 = vmatpush1.msra.mxu0 0.0
      %767 = vmatprep.subr.mxu0 0.0
      %768 = vmatpush1.msra.mxu0 0.0
      %769 = vmatprep.subr.mxu0 0.0
      %770 = vmatpush1.msra.mxu0 0.0
      %771 = vmatprep.subr.mxu0 0.0
      %772 = vmatpush1.msra.mxu0 0.0
      %773 = vmatprep.subr.mxu0 0.0
      %774 = vmatpush1.msra.mxu0 0.0
      %775 = vmatprep.subr.mxu0 0.0
      %776 = vmatpush1.msra.mxu0 0.0
      %777 = vmatprep.mubr.f32.mxu0 0.0
      %778 = vmatmul.mubr.f32.gmra.mrb[0].mxu0 %v690
      %v779 = vpop.f32.mrb[0].mxu0
      %v780 = vadd.f32 0.0, %v779
      %v781 = vpop.f32.mrb[0].mxu0
      %782 = vmatprep.mubr.f32.mxu0 0.0
      %783 = vmatmul.mubr.f32.gmra.mrb[0].mxu0 %v693
      %v784 = vpop.f32.mrb[0].mxu0
      %v785 = vadd.f32 0.0, %v784
      %v786 = vpop.f32.mrb[0].mxu0
      %787 = vmatprep.mubr.f32.mxu0 0.0
      %788 = vmatmul.mubr.f32.gmra.mrb[0].mxu0 %v696
      %v789 = vpop.f32.mrb[0].mxu0
      %v790 = vadd.f32 0.0, %v789
      %v791 = vpop.f32.mrb[0].mxu0
      %792 = vmatprep.mubr.f32.mxu0 0.0
      %793 = vmatmul.mubr.f32.gmra.mrb[0].mxu0 %v699
      %v794 = vpop.f32.mrb[0].mxu0
      %v795 = vadd.f32 0.0, %v794
      %v796 = vpop.f32.mrb[0].mxu0
      %797 = vmatprep.mubr.f32.mxu0 0.0
      %798 = vmatmul.mubr.f32.gmra.mrb[0].mxu0 %v702
      %v799 = vpop.f32.mrb[0].mxu0
      %v800 = vadd.f32 0.0, %v799
      %v801 = vpop.f32.mrb[0].mxu0
      %802 = vmatprep.mubr.f32.mxu0 0.0
      %803 = vmatmul.mubr.f32.gmra.mrb[0].mxu0 %v705
      %v804 = vpop.f32.mrb[0].mxu0
      %v805 = vadd.f32 0.0, %v804
      %v806 = vpop.f32.mrb[0].mxu0
      %807 = vmatprep.mubr.f32.mxu0 0.0
      %808 = vmatmul.mubr.f32.gmra.mrb[0].mxu0 %v708
      %v809 = vpop.f32.mrb[0].mxu0
      %v810 = vadd.f32 0.0, %v809
      %v811 = vpop.f32.mrb[0].mxu0
      %812 = vmatprep.mubr.f32.mxu0 0.0
      %813 = vmatmul.mubr.f32.gmra.mrb[0].mxu0 %v711
      %v814 = vpop.f32.mrb[0].mxu0
      %v815 = vadd.f32 0.0, %v814
      %v816 = vpop.f32.mrb[0].mxu0
      %817 = vdwg.mxu0
      %v818 = vadd.f32 %v656, %v780
      %v819 = vadd.f32 %v657, %v785
      %v820 = vadd.f32 %v658, %v790
      %v821 = vadd.f32 %v659, %v795
      %v822 = vadd.f32 %v660, %v800
      %v823 = vadd.f32 %v661, %v805
      %v824 = vadd.f32 %v662, %v810
      %v825 = vadd.f32 %v663, %v815
      %s826 = scalar_lea.vmem %s2, 256
      %v827 = vld [vmem:[%s826] sm:$0xff]
      %v828 = vld [vmem:[%s826 + $0x8] sm:$0xff]
      %v829 = vld [vmem:[%s826 + $0x10] sm:$0xff]
      %v830 = vld [vmem:[%s826 + $0x18] sm:$0xff]
      %v831 = vld [vmem:[%s826 + $0x20] sm:$0xff]
      %v832 = vld [vmem:[%s826 + $0x28] sm:$0xff]
      %v833 = vld [vmem:[%s826 + $0x30] sm:$0xff]
      %v834 = vld [vmem:[%s826 + $0x38] sm:$0xff]
      %835 = vrot.lane.b32.xlu0 %v218, 126
      %v836 = vpop.permute.xlu0 %835
      %837 = vrot.lane.b32.xlu0 %v219, 126
      %v838 = vpop.permute.xlu0 %837
      %839 = vrot.lane.b32.xlu0 %v220, 126
      %v840 = vpop.permute.xlu0 %839
      %841 = vrot.lane.b32.xlu0 %v221, 126
      %v842 = vpop.permute.xlu0 %841
      %v848 = vsel %vm243, %v827, 0
      %v851 = vsel %vm243, %v828, 0
      %v854 = vsel %vm243, %v829, 0
      %v857 = vsel %vm243, %v830, 0
      %v860 = vsel %vm243, %v831, 0
      %v863 = vsel %vm243, %v832, 0
      %v866 = vsel %vm243, %v833, 0
      %v869 = vsel %vm243, %v834, 0
      %871 = vmatprep.subr.mxu0 0.0
      %872 = vmatpush1.msra.mxu0 %v836
      %873 = vmatprep.subr.mxu0 0.0
      %874 = vmatpush1.msra.mxu0 %v838
      %875 = vmatprep.subr.mxu0 0.0
      %876 = vmatpush1.msra.mxu0 %v840
      %877 = vmatprep.subr.mxu0 0.0
      %878 = vmatpush1.msra.mxu0 %v842
      %879 = vmatprep.subr.mxu0 0.0
      %880 = vmatpush1.msra.mxu0 0.0
      %881 = vmatprep.subr.mxu0 0.0
      %882 = vmatpush1.msra.mxu0 0.0
      %883 = vmatprep.subr.mxu0 0.0
      %884 = vmatpush1.msra.mxu0 0.0
      %885 = vmatprep.subr.mxu0 0.0
      %886 = vmatpush1.msra.mxu0 0.0
      %887 = vmatprep.subr.mxu0 0.0
      %888 = vmatpush1.msra.mxu0 0.0
      %889 = vmatprep.subr.mxu0 0.0
      %890 = vmatpush1.msra.mxu0 0.0
      %891 = vmatprep.subr.mxu0 0.0
      %892 = vmatpush1.msra.mxu0 0.0
      %893 = vmatprep.subr.mxu0 0.0
      %894 = vmatpush1.msra.mxu0 0.0
      %895 = vmatprep.subr.mxu0 0.0
      %896 = vmatpush1.msra.mxu0 0.0
      %897 = vmatprep.subr.mxu0 0.0
      %898 = vmatpush1.msra.mxu0 0.0
      %899 = vmatprep.subr.mxu0 0.0
      %900 = vmatpush1.msra.mxu0 0.0
      %901 = vmatprep.subr.mxu0 0.0
      %902 = vmatpush1.msra.mxu0 0.0
      %903 = vmatprep.subr.mxu0 0.0
      %904 = vmatpush1.msra.mxu0 0.0
      %905 = vmatprep.subr.mxu0 0.0
      %906 = vmatpush1.msra.mxu0 0.0
      %907 = vmatprep.subr.mxu0 0.0
      %908 = vmatpush1.msra.mxu0 0.0
      %909 = vmatprep.subr.mxu0 0.0
      %910 = vmatpush1.msra.mxu0 0.0
      %911 = vmatprep.subr.mxu0 0.0
      %912 = vmatpush1.msra.mxu0 0.0
      %913 = vmatprep.subr.mxu0 0.0
      %914 = vmatpush1.msra.mxu0 0.0
      %915 = vmatprep.subr.mxu0 0.0
      %916 = vmatpush1.msra.mxu0 0.0
      %917 = vmatprep.subr.mxu0 0.0
      %918 = vmatpush1.msra.mxu0 0.0
      %919 = vmatprep.subr.mxu0 0.0
      %920 = vmatpush1.msra.mxu0 0.0
      %921 = vmatprep.subr.mxu0 0.0
      %922 = vmatpush1.msra.mxu0 0.0
      %923 = vmatprep.subr.mxu0 0.0
      %924 = vmatpush1.msra.mxu0 0.0
      %925 = vmatprep.subr.mxu0 0.0
      %926 = vmatpush1.msra.mxu0 0.0
      %927 = vmatprep.subr.mxu0 0.0
      %928 = vmatpush1.msra.mxu0 0.0
      %929 = vmatprep.subr.mxu0 0.0
      %930 = vmatpush1.msra.mxu0 0.0
      %931 = vmatprep.subr.mxu0 0.0
      %932 = vmatpush1.msra.mxu0 0.0
      %933 = vmatprep.subr.mxu0 0.0
      %934 = vmatpush1.msra.mxu0 0.0
      %935 = vmatprep.mubr.f32.mxu0 0.0
      %936 = vmatmul.mubr.f32.gmra.mrb[0].mxu0 %v848
      %v937 = vpop.f32.mrb[0].mxu0
      %v938 = vadd.f32 0.0, %v937
      %v939 = vpop.f32.mrb[0].mxu0
      %940 = vmatprep.mubr.f32.mxu0 0.0
      %941 = vmatmul.mubr.f32.gmra.mrb[0].mxu0 %v851
      %v942 = vpop.f32.mrb[0].mxu0
      %v943 = vadd.f32 0.0, %v942
      %v944 = vpop.f32.mrb[0].mxu0
      %945 = vmatprep.mubr.f32.mxu0 0.0
      %946 = vmatmul.mubr.f32.gmra.mrb[0].mxu0 %v854
      %v947 = vpop.f32.mrb[0].mxu0
      %v948 = vadd.f32 0.0, %v947
      %v949 = vpop.f32.mrb[0].mxu0
      %950 = vmatprep.mubr.f32.mxu0 0.0
      %951 = vmatmul.mubr.f32.gmra.mrb[0].mxu0 %v857
      %v952 = vpop.f32.mrb[0].mxu0
      %v953 = vadd.f32 0.0, %v952
      %v954 = vpop.f32.mrb[0].mxu0
      %955 = vmatprep.mubr.f32.mxu0 0.0
      %956 = vmatmul.mubr.f32.gmra.mrb[0].mxu0 %v860
      %v957 = vpop.f32.mrb[0].mxu0
      %v958 = vadd.f32 0.0, %v957
      %v959 = vpop.f32.mrb[0].mxu0
      %960 = vmatprep.mubr.f32.mxu0 0.0
      %961 = vmatmul.mubr.f32.gmra.mrb[0].mxu0 %v863
      %v962 = vpop.f32.mrb[0].mxu0
      %v963 = vadd.f32 0.0, %v962
      %v964 = vpop.f32.mrb[0].mxu0
      %965 = vmatprep.mubr.f32.mxu0 0.0
      %966 = vmatmul.mubr.f32.gmra.mrb[0].mxu0 %v866
      %v967 = vpop.f32.mrb[0].mxu0
      %v968 = vadd.f32 0.0, %v967
      %v969 = vpop.f32.mrb[0].mxu0
      %970 = vmatprep.mubr.f32.mxu0 0.0
      %971 = vmatmul.mubr.f32.gmra.mrb[0].mxu0 %v869
      %v972 = vpop.f32.mrb[0].mxu0
      %v973 = vadd.f32 0.0, %v972
      %v974 = vpop.f32.mrb[0].mxu0
      %975 = vdwg.mxu0
      %v976 = vadd.f32 %v818, %v938
      %v977 = vadd.f32 %v819, %v943
      %v978 = vadd.f32 %v820, %v948
      %v979 = vadd.f32 %v821, %v953
      %v980 = vadd.f32 %v822, %v958
      %v981 = vadd.f32 %v823, %v963
      %v982 = vadd.f32 %v824, %v968
      %v983 = vadd.f32 %v825, %v973
      %v984 = vld [vmem:[%s3] sm:$0xff]
      %v985 = vld [vmem:[%s3 + $0x8] sm:$0xff]
      %v986 = vld [vmem:[%s3 + $0x10] sm:$0xff]
      %v987 = vld [vmem:[%s3 + $0x18] sm:$0xff]
      %v988 = vld [vmem:[%s3 + $0x20] sm:$0xff]
      %v989 = vld [vmem:[%s3 + $0x28] sm:$0xff]
      %v990 = vld [vmem:[%s3 + $0x30] sm:$0xff]
      %v991 = vld [vmem:[%s3 + $0x38] sm:$0xff]
      %993 = vset.pattern.permute.xlu0 0
      %994 = vperm.xlu0 %993, %v984
      %v995 = vpop.permute.xlu0 %994
      %998 = vset.pattern.permute.xlu0 0
      %999 = vperm.xlu0 %998, %v985
      %v1000 = vpop.permute.xlu0 %999
      %1003 = vset.pattern.permute.xlu0 0
      %1004 = vperm.xlu0 %1003, %v986
      %v1005 = vpop.permute.xlu0 %1004
      %1008 = vset.pattern.permute.xlu0 0
      %1009 = vperm.xlu0 %1008, %v987
      %v1010 = vpop.permute.xlu0 %1009
      %1013 = vset.pattern.permute.xlu0 0
      %1014 = vperm.xlu0 %1013, %v988
      %v1015 = vpop.permute.xlu0 %1014
      %1018 = vset.pattern.permute.xlu0 0
      %1019 = vperm.xlu0 %1018, %v989
      %v1020 = vpop.permute.xlu0 %1019
      %1023 = vset.pattern.permute.xlu0 0
      %1024 = vperm.xlu0 %1023, %v990
      %v1025 = vpop.permute.xlu0 %1024
      %1028 = vset.pattern.permute.xlu0 0
      %1029 = vperm.xlu0 %1028, %v991
      %v1030 = vpop.permute.xlu0 %1029
      %v1032 = vadd.f32 %v976, %v995
      %v1033 = vadd.f32 %v977, %v1000
      %v1034 = vadd.f32 %v978, %v1005
      %v1035 = vadd.f32 %v979, %v1010
      %v1036 = vadd.f32 %v980, %v1015
      %v1037 = vadd.f32 %v981, %v1020
      %v1038 = vadd.f32 %v982, %v1025
      %v1039 = vadd.f32 %v983, %v1030
      %v1040 = vmax.f32 %v1032, 0.0
      %v1041 = vmax.f32 %v1033, 0.0
      %v1042 = vmax.f32 %v1034, 0.0
      %v1043 = vmax.f32 %v1035, 0.0
      %v1044 = vmax.f32 %v1036, 0.0
      %v1045 = vmax.f32 %v1037, 0.0
      %v1046 = vmax.f32 %v1038, 0.0
      %v1047 = vmax.f32 %v1039, 0.0
      %vm1048 = vcmask 15360
      %1049 = vst.msk [vmem:[%s217] sm:$0xff] %vm1048, %v1040
      %1050 = vst.msk [vmem:[%s217 + $0x8] sm:$0xff] %vm1048, %v1041
      %1051 = vst.msk [vmem:[%s217 + $0x10] sm:$0xff] %vm1048, %v1042
      %1052 = vst.msk [vmem:[%s217 + $0x18] sm:$0xff] %vm1048, %v1043
      %1053 = vst.msk [vmem:[%s217 + $0x20] sm:$0xff] %vm1048, %v1044
      %1054 = vst.msk [vmem:[%s217 + $0x28] sm:$0xff] %vm1048, %v1045
      %1055 = vst.msk [vmem:[%s217 + $0x30] sm:$0xff] %vm1048, %v1046
      %1056 = vst.msk [vmem:[%s217 + $0x38] sm:$0xff] %vm1048, %v1047
      %p1057 = scmp.lt.s32.totalorder %s15, 1
      %s1058 = scalar_select %p1057, %s15, 1
      %s1059 = smul.addr %s1058, 8
      %s1060 = smul.addr %s1059, 8
      %s1061 = scalar_lea.vmem %s4, %s1060
      // Predicated region
      $region37: #{unet_forward.17} parent=35 // pred_check
        %p1062 = pneg %p127
      $region38: #{unet_forward.17} parent=35 // pred_check_branch
        %1064 = sbr.rel (%p1062) target = $region40
      $region39: #{unet_forward.17} parent=35 // pred_region
        _
      $region40: #{unet_forward.17} parent=35 // pred_fallthru
        _
    $region36: #{unet_forward.17} parent=5 // pred_fallthru
      _
    %p1065 = scmp.le.s32.totalorder 2, %s10
    // Predicated region
    $region41: #{unet_forward.17} parent=5 // pred_check
      %p1066 = pneg %p1065
    $region42: #{unet_forward.17} parent=5 // pred_check_branch
      %1068 = sbr.rel (%p1066) target = $region44
    $region43: #{unet_forward.17} parent=5 // pred_region
      %s1069 = ssub.s32 %s10, 2
      // Predicated region
      $region45: #{unet_forward.17} parent=43 // pred_check
        %p1070 = pneg %p133
      $region46: #{unet_forward.17} parent=43 // pred_check_branch
        %1072 = sbr.rel (%p1070) target = $region48
      $region47: #{unet_forward.17} parent=43 // pred_region
        %p1073 = scmp.lt.s32.totalorder %s16, 1
        %s1074 = scalar_select %p1073, %s16, 1
        %s1075 = smul.addr %s1074, 8
        %s1076 = smul.addr %s1075, 8
        %s1077 = scalar_lea.vmem %s4, %s1076
      $region48: #{unet_forward.17} parent=43 // pred_fallthru
        _
    $region44: #{unet_forward.17} parent=5 // pred_fallthru
      _
  $region6: #{unet_forward.17} parent=0 // loop_footer
    %s14 = sadd.s32 1, %s10
  $region7: #{unet_forward.17} parent=0 // loop_footer_branch
    %9 = sbr.rel target = $region3
  $region8: #{unet_forward.17} parent=0 // loop_exit
    _

// kernel: unet_forward.19
$region0: #{unet_forward.19}
  #allocation0 [shape = 'u32[]', space=smem, size = 0x4, offset = 0x4, fixed_abs, tag = 'smem constant byte address 0x4 - core index']
  #allocation1 [shape = 'u32[144,128]{1,0:T(1,128)}', space=vmem, size = 0x12000, scoped, tag = 'internal scratch']
  %s0 = inlined_call_operand.vmem [shape: f32[2,64,6], index: 0, kind: input, shape index: {}]
  %s1 = inlined_call_operand.vmem [shape: f32[5,32,64], index: 1, kind: input, shape index: {}]
  %s2 = inlined_call_operand.vmem [shape: f32[32,1], index: 2, kind: input, shape index: {}]
  %s3 = inlined_call_operand.vmem [shape: f32[2,2,32,4], index: 3, kind: output, shape index: {}]
  %s4 = sld [smem:[#allocation0]]
  $region45: #{unet_forward.19} parent=0
    _
  %s6 = ssub.s32 1, %s4
  %s7 = scalar_select 0, %s6, %s4
  loop: start=0, step=1, limit=4
  $region2: #{unet_forward.19} parent=0 // loop_pre_header
    _
  $region3: #{unet_forward.19} parent=0 // loop_header
    %s9 = sphi 0, %s13
    %p10 = scmp.ge.s32.totalorder %s9, 4
    %s19 = sphi 0, %s21
    %s22 = sphi 0, %s19
    %s23 = sphi 0, %s22
    %s39 = sphi 0, %s23
    %s43 = sphi 0, %s43
    %s45 = sphi 0, %s43
    %s46 = sphi 0, %s45
    %s60 = sphi 0, %s46
    %s64 = sphi 0, %s64
    %s66 = sphi 0, %s64
    %s67 = sphi 0, %s66
    %s81 = sphi 0, %s67
    %s87 = sphi 0, %s89
    %s90 = sphi 0, %s87
    %s91 = sphi 0, %s90
    %s107 = sphi 0, %s91
  $region4: #{unet_forward.19} parent=0 // loop_header_branch
    %12 = sbr.rel (%p10) target = $region8
  $region5: #{unet_forward.19} parent=0 // loop_body
    %s14 = ssub.s32 %s9, 1
    %s15 = ssub.s32 %s9, 2
    %s16 = sadd.s32 %s9, 1
    %s17 = ssub.s32 %s9, %s16
    %p18 = scmp.eq.s32.totalorder %s17, 0
    %s20 = sadd.s32 %s19, 1
    %s21 = scalar_select %p18, %s19, %s20
    %p24 = pneg %p18
    %p25 = scmp.eq.s32.totalorder %s9, 1
    %p26 = por %p24, %p25
    %p27 = scmp.ne.s32.totalorder %s19, %s22
    %p28 = scmp.eq.s32.totalorder %s9, 0
    %p29 = por %p27, %p28
    %p30 = scmp.ne.s32.totalorder %s19, %s22
    %p31 = scmp.eq.s32.totalorder %s14, 1
    %p32 = por %p30, %p31
    %p33 = scmp.ne.s32.totalorder %s22, %s23
    %p34 = scmp.eq.s32.totalorder %s14, 0
    %p35 = por %p33, %p34
    %p36 = scmp.ne.s32.totalorder %s22, %s23
    %p37 = scmp.eq.s32.totalorder %s15, 1
    %p38 = por %p36, %p37
    %p40 = scmp.ne.s32.totalorder %s23, %s39
    %p41 = scmp.eq.s32.totalorder %s15, 0
    %p42 = por %p40, %p41
    %s44 = sadd.s32 %s43, 1
    %p47 = scmp.eq.s32.totalorder %s9, 1
    %p48 = scmp.ne.s32.totalorder %s43, %s45
    %p49 = scmp.eq.s32.totalorder %s9, 0
    %p50 = por %p48, %p49
    %p51 = scmp.ne.s32.totalorder %s43, %s45
    %p52 = scmp.eq.s32.totalorder %s14, 1
    %p53 = por %p51, %p52
    %p54 = scmp.ne.s32.totalorder %s45, %s46
    %p55 = scmp.eq.s32.totalorder %s14, 0
    %p56 = por %p54, %p55
    %p57 = scmp.ne.s32.totalorder %s45, %s46
    %p58 = scmp.eq.s32.totalorder %s15, 1
    %p59 = por %p57, %p58
    %p61 = scmp.ne.s32.totalorder %s46, %s60
    %p62 = scmp.eq.s32.totalorder %s15, 0
    %p63 = por %p61, %p62
    %s65 = sadd.s32 %s64, 1
    %p68 = scmp.eq.s32.totalorder %s9, 1
    %p69 = scmp.ne.s32.totalorder %s64, %s66
    %p70 = scmp.eq.s32.totalorder %s9, 0
    %p71 = por %p69, %p70
    %p72 = scmp.ne.s32.totalorder %s64, %s66
    %p73 = scmp.eq.s32.totalorder %s14, 1
    %p74 = por %p72, %p73
    %p75 = scmp.ne.s32.totalorder %s66, %s67
    %p76 = scmp.eq.s32.totalorder %s14, 0
    %p77 = por %p75, %p76
    %p78 = scmp.ne.s32.totalorder %s66, %s67
    %p79 = scmp.eq.s32.totalorder %s15, 1
    %p80 = por %p78, %p79
    %p82 = scmp.ne.s32.totalorder %s67, %s81
    %p83 = scmp.eq.s32.totalorder %s15, 0
    %p84 = por %p82, %p83
    %s85 = ssub.s32 %s9, %s16
    %p86 = scmp.eq.s32.totalorder %s85, 0
    %s88 = sadd.s32 %s87, 1
    %s89 = scalar_select %p86, %s87, %s88
    %p92 = pneg %p86
    %p93 = scmp.eq.s32.totalorder %s9, 1
    %p94 = por %p92, %p93
    %p95 = scmp.ne.s32.totalorder %s87, %s90
    %p96 = scmp.eq.s32.totalorder %s9, 0
    %p97 = por %p95, %p96
    %p98 = scmp.ne.s32.totalorder %s87, %s90
    %p99 = scmp.eq.s32.totalorder %s14, 1
    %p100 = por %p98, %p99
    %p101 = scmp.ne.s32.totalorder %s90, %s91
    %p102 = scmp.eq.s32.totalorder %s14, 0
    %p103 = por %p101, %p102
    %p104 = scmp.ne.s32.totalorder %s90, %s91
    %p105 = scmp.eq.s32.totalorder %s15, 1
    %p106 = por %p104, %p105
    %p108 = scmp.ne.s32.totalorder %s91, %s107
    %p109 = scmp.eq.s32.totalorder %s15, 0
    %p110 = por %p108, %p109
    %p111 = scmp.le.s32.totalorder 1, %s9
    %p112 = scmp.lt.s32.totalorder %s9, 3
    %p113 = pnand %p111, %p112
    %p114 = pneg %p113
    // Predicated region
    $region9: #{unet_forward.19} parent=5 // pred_check
      _
    $region10: #{unet_forward.19} parent=5 // pred_check_branch
      %116 = sbr.rel (%p113) target = $region12
    $region11: #{unet_forward.19} parent=5 // pred_region
      %s117 = ssub.s32 %s9, 1
      // Predicated region
      $region13: #{unet_forward.19} parent=11 // pred_check
        %p118 = pneg %p56
      $region14: #{unet_forward.19} parent=11 // pred_check_branch
        %120 = sbr.rel (%p118) target = $region16
      $region15: #{unet_forward.19} parent=11 // pred_region
        _
      $region16: #{unet_forward.19} parent=11 // pred_fallthru
        _
      // Predicated region
      $region17: #{unet_forward.19} parent=11 // pred_check
        %p121 = pneg %p77
      $region18: #{unet_forward.19} parent=11 // pred_check_branch
        %123 = sbr.rel (%p121) target = $region20
      $region19: #{unet_forward.19} parent=11 // pred_region
        _
      $region20: #{unet_forward.19} parent=11 // pred_fallthru
        _
    $region12: #{unet_forward.19} parent=5 // pred_fallthru
      _
    %p124 = scmp.lt.s32.totalorder %s9, 2
    // Predicated region
    $region21: #{unet_forward.19} parent=5 // pred_check
      %p125 = pneg %p124
    $region22: #{unet_forward.19} parent=5 // pred_check_branch
      %127 = sbr.rel (%p125) target = $region24
    $region23: #{unet_forward.19} parent=5 // pred_region
      // Predicated region
      $region25: #{unet_forward.19} parent=23 // pred_check
        %p128 = pneg %p29
      $region26: #{unet_forward.19} parent=23 // pred_check_branch
        %130 = sbr.rel (%p128) target = $region28
      $region27: #{unet_forward.19} parent=23 // pred_region
        %p131 = scmp.lt.s32.totalorder %s9, 1
        %s132 = scalar_select %p131, %s9, 1
        %s133 = smul.addr %s132, 8
        %s134 = smul.addr %s133, 8
        %s135 = scalar_lea.vmem %s0, %s134
      $region28: #{unet_forward.19} parent=23 // pred_fallthru
        _
    $region24: #{unet_forward.19} parent=5 // pred_fallthru
      _
    %p136 = scmp.le.s32.totalorder 1, %s9
    %p137 = scmp.lt.s32.totalorder %s9, 3
    %p138 = pnand %p136, %p137
    %p139 = pneg %p138
    // Predicated region
    $region29: #{unet_forward.19} parent=5 // pred_check
      _
    $region30: #{unet_forward.19} parent=5 // pred_check_branch
      %141 = sbr.rel (%p138) target = $region32
    $region31: #{unet_forward.19} parent=5 // pred_region
      %s142 = ssub.s32 %s9, 1
      %p143 = scmp.lt.s32.totalorder %s14, 1
      %s144 = scalar_select %p143, %s14, 1
      %s145 = smul.addr %s144, 8
      %s146 = smul.addr %s145, 8
      %s147 = scalar_lea.vmem %s0, %s146
      %p148 = pneg %p35
      %p149 = pneg %p32
      %p150 = pneg %p56
      %p151 = pneg %p53
      %p152 = pneg %p77
      %p153 = pneg %p74
      %p154 = pneg %p103
      %p155 = pneg %p100
      %p156 = scmp.lt.s32.totalorder %s14, 1
      %s157 = scalar_select %p156, %s14, 1
      %s158 = smul.addr %s157, 8
      %s159 = smul.addr %s158, 8
      %s160 = scalar_lea.vmem %s3, %s159
      %p161 = scmp.lt.s32.totalorder %s14, 1
      %s162 = scalar_select %p161, %s14, 1
      %s163 = smul.addr %s162, 8
      %s164 = smul.addr %s163, 8
      %s165 = scalar_lea.vmem %s0, %s164
      %p166 = scmp.lt.s32.totalorder %s14, 1
      %s167 = scalar_select %p166, %s14, 1
      %s168 = smul.addr %s167, 8
      %s169 = smul.addr %s168, 8
      %s170 = scalar_lea.vmem %s3, %s169
      %v171 = vld [vmem:[%s165] sm:$0xff]
      %v172 = vld [vmem:[%s165 + $0x8] sm:$0xff]
      %v173 = vld [vmem:[%s165 + $0x10] sm:$0xff]
      %v174 = vld [vmem:[%s165 + $0x18] sm:$0xff]
      %v175 = vld [vmem:[%s165 + $0x20] sm:$0xff]
      %v176 = vld [vmem:[%s165 + $0x28] sm:$0xff]
      %v177 = vld [vmem:[%s165 + $0x30] sm:$0xff]
      %v178 = vld [vmem:[%s165 + $0x38] sm:$0xff]
      %v179 = vld [vmem:[%s1] sm:$0xff]
      %v180 = vld [vmem:[%s1 + $0x8] sm:$0xff]
      %v181 = vld [vmem:[%s1 + $0x10] sm:$0xff]
      %v182 = vld [vmem:[%s1 + $0x18] sm:$0xff]
      %s183 = scalar_lea.vmem %s1, 64
      %v184 = vld [vmem:[%s183] sm:$0xff]
      %v185 = vld [vmem:[%s183 + $0x8] sm:$0xff]
      %v186 = vld [vmem:[%s183 + $0x10] sm:$0xff]
      %v187 = vld [vmem:[%s183 + $0x18] sm:$0xff]
      %196 = vrot.lane.b32.xlu0 %v171, 127
      %v197 = vpop.permute.xlu0 %196
      %198 = vrot.lane.b32.xlu0 %v172, 127
      %v199 = vpop.permute.xlu0 %198
      %200 = vrot.lane.b32.xlu0 %v173, 127
      %v201 = vpop.permute.xlu0 %200
      %202 = vrot.lane.b32.xlu0 %v174, 127
      %v203 = vpop.permute.xlu0 %202
      %204 = vrot.lane.b32.xlu0 %v175, 127
      %v205 = vpop.permute.xlu0 %204
      %206 = vrot.lane.b32.xlu0 %v176, 127
      %v207 = vpop.permute.xlu0 %206
      %208 = vrot.lane.b32.xlu0 %v177, 127
      %v209 = vpop.permute.xlu0 %208
      %210 = vrot.lane.b32.xlu0 %v178, 127
      %v211 = vpop.permute.xlu0 %210
      %vm220 = vcmask 523264
      %v222 = vsel %vm220, %v184, 0
      %v225 = vsel %vm220, %v185, 0
      %v228 = vsel %vm220, %v186, 0
      %v231 = vsel %vm220, %v187, 0
      %233 = vmatprep.subr.mxu0 0.0
      %234 = vmatpush1.msra.mxu0 %v197
      %235 = vmatprep.subr.mxu0 0.0
      %236 = vmatpush1.msra.mxu0 %v199
      %237 = vmatprep.subr.mxu0 0.0
      %238 = vmatpush1.msra.mxu0 %v201
      %239 = vmatprep.subr.mxu0 0.0
      %240 = vmatpush1.msra.mxu0 %v203
      %241 = vmatprep.subr.mxu0 0.0
      %242 = vmatpush1.msra.mxu0 %v205
      %243 = vmatprep.subr.mxu0 0.0
      %244 = vmatpush1.msra.mxu0 %v207
      %245 = vmatprep.subr.mxu0 0.0
      %246 = vmatpush1.msra.mxu0 %v209
      %247 = vmatprep.subr.mxu0 0.0
      %248 = vmatpush1.msra.mxu0 %v211
      %249 = vmatprep.subr.mxu0 0.0
      %250 = vmatpush1.msra.mxu0 0.0
      %251 = vmatprep.subr.mxu0 0.0
      %252 = vmatpush1.msra.mxu0 0.0
      %253 = vmatprep.subr.mxu0 0.0
      %254 = vmatpush1.msra.mxu0 0.0
      %255 = vmatprep.subr.mxu0 0.0
      %256 = vmatpush1.msra.mxu0 0.0
      %257 = vmatprep.subr.mxu0 0.0
      %258 = vmatpush1.msra.mxu0 0.0
      %259 = vmatprep.subr.mxu0 0.0
      %260 = vmatpush1.msra.mxu0 0.0
      %261 = vmatprep.subr.mxu0 0.0
      %262 = vmatpush1.msra.mxu0 0.0
      %263 = vmatprep.subr.mxu0 0.0
      %264 = vmatpush1.msra.mxu0 0.0
      %265 = vmatprep.subr.mxu0 0.0
      %266 = vmatpush1.msra.mxu0 0.0
      %267 = vmatprep.subr.mxu0 0.0
      %268 = vmatpush1.msra.mxu0 0.0
      %269 = vmatprep.subr.mxu0 0.0
      %270 = vmatpush1.msra.mxu0 0.0
      %271 = vmatprep.subr.mxu0 0.0
      %272 = vmatpush1.msra.mxu0 0.0
      %273 = vmatprep.subr.mxu0 0.0
      %274 = vmatpush1.msra.mxu0 0.0
      %275 = vmatprep.subr.mxu0 0.0
      %276 = vmatpush1.msra.mxu0 0.0
      %277 = vmatprep.subr.mxu0 0.0
      %278 = vmatpush1.msra.mxu0 0.0
      %279 = vmatprep.subr.mxu0 0.0
      %280 = vmatpush1.msra.mxu0 0.0
      %281 = vmatprep.subr.mxu0 0.0
      %282 = vmatpush1.msra.mxu0 0.0
      %283 = vmatprep.subr.mxu0 0.0
      %284 = vmatpush1.msra.mxu0 0.0
      %285 = vmatprep.subr.mxu0 0.0
      %286 = vmatpush1.msra.mxu0 0.0
      %287 = vmatprep.subr.mxu0 0.0
      %288 = vmatpush1.msra.mxu0 0.0
      %289 = vmatprep.subr.mxu0 0.0
      %290 = vmatpush1.msra.mxu0 0.0
      %291 = vmatprep.subr.mxu0 0.0
      %292 = vmatpush1.msra.mxu0 0.0
      %293 = vmatprep.subr.mxu0 0.0
      %294 = vmatpush1.msra.mxu0 0.0
      %295 = vmatprep.subr.mxu0 0.0
      %296 = vmatpush1.msra.mxu0 0.0
      %297 = vmatprep.mubr.f32.mxu0 0.0
      %298 = vmatmul.mubr.f32.gmra.mrb[0].mxu0 %v222
      %v299 = vpop.f32.mrb[0].mxu0
      %v300 = vadd.f32 0.0, %v299
      %v301 = vpop.f32.mrb[0].mxu0
      %302 = vmatprep.mubr.f32.mxu0 0.0
      %303 = vmatmul.mubr.f32.gmra.mrb[0].mxu0 %v225
      %v304 = vpop.f32.mrb[0].mxu0
      %v305 = vadd.f32 0.0, %v304
      %v306 = vpop.f32.mrb[0].mxu0
      %307 = vmatprep.mubr.f32.mxu0 0.0
      %308 = vmatmul.mubr.f32.gmra.mrb[0].mxu0 %v228
      %v309 = vpop.f32.mrb[0].mxu0
      %v310 = vadd.f32 0.0, %v309
      %v311 = vpop.f32.mrb[0].mxu0
      %312 = vmatprep.mubr.f32.mxu0 0.0
      %313 = vmatmul.mubr.f32.gmra.mrb[0].mxu0 %v231
      %v314 = vpop.f32.mrb[0].mxu0
      %v315 = vadd.f32 0.0, %v314
      %v316 = vpop.f32.mrb[0].mxu0
      %317 = vdwg.mxu0
      %318 = vrot.lane.b32.xlu0 %v171, 126
      %v319 = vpop.permute.xlu0 %318
      %320 = vrot.lane.b32.xlu0 %v172, 126
      %v321 = vpop.permute.xlu0 %320
      %322 = vrot.lane.b32.xlu0 %v173, 126
      %v323 = vpop.permute.xlu0 %322
      %324 = vrot.lane.b32.xlu0 %v174, 126
      %v325 = vpop.permute.xlu0 %324
      %326 = vrot.lane.b32.xlu0 %v175, 126
      %v327 = vpop.permute.xlu0 %326
      %328 = vrot.lane.b32.xlu0 %v176, 126
      %v329 = vpop.permute.xlu0 %328
      %330 = vrot.lane.b32.xlu0 %v177, 126
      %v331 = vpop.permute.xlu0 %330
      %332 = vrot.lane.b32.xlu0 %v178, 126
      %v333 = vpop.permute.xlu0 %332
      %v343 = vsel %vm220, %v179, 0
      %v346 = vsel %vm220, %v180, 0
      %v349 = vsel %vm220, %v181, 0
      %v352 = vsel %vm220, %v182, 0
      %354 = vmatprep.subr.mxu0 0.0
      %355 = vmatpush1.msra.mxu0 %v319
      %356 = vmatprep.subr.mxu0 0.0
      %357 = vmatpush1.msra.mxu0 %v321
      %358 = vmatprep.subr.mxu0 0.0
      %359 = vmatpush1.msra.mxu0 %v323
      %360 = vmatprep.subr.mxu0 0.0
      %361 = vmatpush1.msra.mxu0 %v325
      %362 = vmatprep.subr.mxu0 0.0
      %363 = vmatpush1.msra.mxu0 %v327
      %364 = vmatprep.subr.mxu0 0.0
      %365 = vmatpush1.msra.mxu0 %v329
      %366 = vmatprep.subr.mxu0 0.0
      %367 = vmatpush1.msra.mxu0 %v331
      %368 = vmatprep.subr.mxu0 0.0
      %369 = vmatpush1.msra.mxu0 %v333
      %370 = vmatprep.subr.mxu0 0.0
      %371 = vmatpush1.msra.mxu0 0.0
      %372 = vmatprep.subr.mxu0 0.0
      %373 = vmatpush1.msra.mxu0 0.0
      %374 = vmatprep.subr.mxu0 0.0
      %375 = vmatpush1.msra.mxu0 0.0
      %376 = vmatprep.subr.mxu0 0.0
      %377 = vmatpush1.msra.mxu0 0.0
      %378 = vmatprep.subr.mxu0 0.0
      %379 = vmatpush1.msra.mxu0 0.0
      %380 = vmatprep.subr.mxu0 0.0
      %381 = vmatpush1.msra.mxu0 0.0
      %382 = vmatprep.subr.mxu0 0.0
      %383 = vmatpush1.msra.mxu0 0.0
      %384 = vmatprep.subr.mxu0 0.0
      %385 = vmatpush1.msra.mxu0 0.0
      %386 = vmatprep.subr.mxu0 0.0
      %387 = vmatpush1.msra.mxu0 0.0
      %388 = vmatprep.subr.mxu0 0.0
      %389 = vmatpush1.msra.mxu0 0.0
      %390 = vmatprep.subr.mxu0 0.0
      %391 = vmatpush1.msra.mxu0 0.0
      %392 = vmatprep.subr.mxu0 0.0
      %393 = vmatpush1.msra.mxu0 0.0
      %394 = vmatprep.subr.mxu0 0.0
      %395 = vmatpush1.msra.mxu0 0.0
      %396 = vmatprep.subr.mxu0 0.0
      %397 = vmatpush1.msra.mxu0 0.0
      %398 = vmatprep.subr.mxu0 0.0
      %399 = vmatpush1.msra.mxu0 0.0
      %400 = vmatprep.subr.mxu0 0.0
      %401 = vmatpush1.msra.mxu0 0.0
      %402 = vmatprep.subr.mxu0 0.0
      %403 = vmatpush1.msra.mxu0 0.0
      %404 = vmatprep.subr.mxu0 0.0
      %405 = vmatpush1.msra.mxu0 0.0
      %406 = vmatprep.subr.mxu0 0.0
      %407 = vmatpush1.msra.mxu0 0.0
      %408 = vmatprep.subr.mxu0 0.0
      %409 = vmatpush1.msra.mxu0 0.0
      %410 = vmatprep.subr.mxu0 0.0
      %411 = vmatpush1.msra.mxu0 0.0
      %412 = vmatprep.subr.mxu0 0.0
      %413 = vmatpush1.msra.mxu0 0.0
      %414 = vmatprep.subr.mxu0 0.0
      %415 = vmatpush1.msra.mxu0 0.0
      %416 = vmatprep.subr.mxu0 0.0
      %417 = vmatpush1.msra.mxu0 0.0
      %418 = vmatprep.mubr.f32.mxu0 0.0
      %419 = vmatmul.mubr.f32.gmra.mrb[0].mxu0 %v343
      %v420 = vpop.f32.mrb[0].mxu0
      %v421 = vadd.f32 %v300, %v420
      %v422 = vpop.f32.mrb[0].mxu0
      %423 = vmatprep.mubr.f32.mxu0 0.0
      %424 = vmatmul.mubr.f32.gmra.mrb[0].mxu0 %v346
      %v425 = vpop.f32.mrb[0].mxu0
      %v426 = vadd.f32 %v305, %v425
      %v427 = vpop.f32.mrb[0].mxu0
      %428 = vmatprep.mubr.f32.mxu0 0.0
      %429 = vmatmul.mubr.f32.gmra.mrb[0].mxu0 %v349
      %v430 = vpop.f32.mrb[0].mxu0
      %v431 = vadd.f32 %v310, %v430
      %v432 = vpop.f32.mrb[0].mxu0
      %433 = vmatprep.mubr.f32.mxu0 0.0
      %434 = vmatmul.mubr.f32.gmra.mrb[0].mxu0 %v352
      %v435 = vpop.f32.mrb[0].mxu0
      %v436 = vadd.f32 %v315, %v435
      %v437 = vpop.f32.mrb[0].mxu0
      %438 = vdwg.mxu0
      %s439 = scalar_lea.vmem %s1, 128
      %v440 = vld [vmem:[%s439] sm:$0xff]
      %v441 = vld [vmem:[%s439 + $0x8] sm:$0xff]
      %v442 = vld [vmem:[%s439 + $0x10] sm:$0xff]
      %v443 = vld [vmem:[%s439 + $0x18] sm:$0xff]
      %v445 = vsel %vm220, %v440, 0
      %v448 = vsel %vm220, %v441, 0
      %v451 = vsel %vm220, %v442, 0
      %v454 = vsel %vm220, %v443, 0
      %456 = vmatprep.subr.mxu0 0.0
      %457 = vmatpush1.msra.mxu0 %v171
      %458 = vmatprep.subr.mxu0 0.0
      %459 = vmatpush1.msra.mxu0 %v172
      %460 = vmatprep.subr.mxu0 0.0
      %461 = vmatpush1.msra.mxu0 %v173
      %462 = vmatprep.subr.mxu0 0.0
      %463 = vmatpush1.msra.mxu0 %v174
      %464 = vmatprep.subr.mxu0 0.0
      %465 = vmatpush1.msra.mxu0 %v175
      %466 = vmatprep.subr.mxu0 0.0
      %467 = vmatpush1.msra.mxu0 %v176
      %468 = vmatprep.subr.mxu0 0.0
      %469 = vmatpush1.msra.mxu0 %v177
      %470 = vmatprep.subr.mxu0 0.0
      %471 = vmatpush1.msra.mxu0 %v178
      %472 = vmatprep.subr.mxu0 0.0
      %473 = vmatpush1.msra.mxu0 0.0
      %474 = vmatprep.subr.mxu0 0.0
      %475 = vmatpush1.msra.mxu0 0.0
      %476 = vmatprep.subr.mxu0 0.0
      %477 = vmatpush1.msra.mxu0 0.0
      %478 = vmatprep.subr.mxu0 0.0
      %479 = vmatpush1.msra.mxu0 0.0
      %480 = vmatprep.subr.mxu0 0.0
      %481 = vmatpush1.msra.mxu0 0.0
      %482 = vmatprep.subr.mxu0 0.0
      %483 = vmatpush1.msra.mxu0 0.0
      %484 = vmatprep.subr.mxu0 0.0
      %485 = vmatpush1.msra.mxu0 0.0
      %486 = vmatprep.subr.mxu0 0.0
      %487 = vmatpush1.msra.mxu0 0.0
      %488 = vmatprep.subr.mxu0 0.0
      %489 = vmatpush1.msra.mxu0 0.0
      %490 = vmatprep.subr.mxu0 0.0
      %491 = vmatpush1.msra.mxu0 0.0
      %492 = vmatprep.subr.mxu0 0.0
      %493 = vmatpush1.msra.mxu0 0.0
      %494 = vmatprep.subr.mxu0 0.0
      %495 = vmatpush1.msra.mxu0 0.0
      %496 = vmatprep.subr.mxu0 0.0
      %497 = vmatpush1.msra.mxu0 0.0
      %498 = vmatprep.subr.mxu0 0.0
      %499 = vmatpush1.msra.mxu0 0.0
      %500 = vmatprep.subr.mxu0 0.0
      %501 = vmatpush1.msra.mxu0 0.0
      %502 = vmatprep.subr.mxu0 0.0
      %503 = vmatpush1.msra.mxu0 0.0
      %504 = vmatprep.subr.mxu0 0.0
      %505 = vmatpush1.msra.mxu0 0.0
      %506 = vmatprep.subr.mxu0 0.0
      %507 = vmatpush1.msra.mxu0 0.0
      %508 = vmatprep.subr.mxu0 0.0
      %509 = vmatpush1.msra.mxu0 0.0
      %510 = vmatprep.subr.mxu0 0.0
      %511 = vmatpush1.msra.mxu0 0.0
      %512 = vmatprep.subr.mxu0 0.0
      %513 = vmatpush1.msra.mxu0 0.0
      %514 = vmatprep.subr.mxu0 0.0
      %515 = vmatpush1.msra.mxu0 0.0
      %516 = vmatprep.subr.mxu0 0.0
      %517 = vmatpush1.msra.mxu0 0.0
      %518 = vmatprep.subr.mxu0 0.0
      %519 = vmatpush1.msra.mxu0 0.0
      %520 = vmatprep.mubr.f32.mxu0 0.0
      %521 = vmatmul.mubr.f32.gmra.mrb[0].mxu0 %v445
      %v522 = vpop.f32.mrb[0].mxu0
      %v523 = vadd.f32 0.0, %v522
      %v524 = vpop.f32.mrb[0].mxu0
      %525 = vmatprep.mubr.f32.mxu0 0.0
      %526 = vmatmul.mubr.f32.gmra.mrb[0].mxu0 %v448
      %v527 = vpop.f32.mrb[0].mxu0
      %v528 = vadd.f32 0.0, %v527
      %v529 = vpop.f32.mrb[0].mxu0
      %530 = vmatprep.mubr.f32.mxu0 0.0
      %531 = vmatmul.mubr.f32.gmra.mrb[0].mxu0 %v451
      %v532 = vpop.f32.mrb[0].mxu0
      %v533 = vadd.f32 0.0, %v532
      %v534 = vpop.f32.mrb[0].mxu0
      %535 = vmatprep.mubr.f32.mxu0 0.0
      %536 = vmatmul.mubr.f32.gmra.mrb[0].mxu0 %v454
      %v537 = vpop.f32.mrb[0].mxu0
      %v538 = vadd.f32 0.0, %v537
      %v539 = vpop.f32.mrb[0].mxu0
      %540 = vdwg.mxu0
      %v541 = vadd.f32 %v421, %v523
      %v542 = vadd.f32 %v426, %v528
      %v543 = vadd.f32 %v431, %v533
      %v544 = vadd.f32 %v436, %v538
      %s545 = scalar_lea.vmem %s1, 32
      %v546 = vld [vmem:[%s545] sm:$0xff]
      %v547 = vld [vmem:[%s545 + $0x8] sm:$0xff]
      %v548 = vld [vmem:[%s545 + $0x10] sm:$0xff]
      %v549 = vld [vmem:[%s545 + $0x18] sm:$0xff]
      %s550 = scalar_lea.vmem %s1, 96
      %v551 = vld [vmem:[%s550] sm:$0xff]
      %v552 = vld [vmem:[%s550 + $0x8] sm:$0xff]
      %v553 = vld [vmem:[%s550 + $0x10] sm:$0xff]
      %v554 = vld [vmem:[%s550 + $0x18] sm:$0xff]
      %v556 = vsel %vm220, %v551, 0
      %v559 = vsel %vm220, %v552, 0
      %v562 = vsel %vm220, %v553, 0
      %v565 = vsel %vm220, %v554, 0
      %567 = vmatprep.subr.mxu0 0.0
      %568 = vmatpush1.msra.mxu0 %v197
      %569 = vmatprep.subr.mxu0 0.0
      %570 = vmatpush1.msra.mxu0 %v199
      %571 = vmatprep.subr.mxu0 0.0
      %572 = vmatpush1.msra.mxu0 %v201
      %573 = vmatprep.subr.mxu0 0.0
      %574 = vmatpush1.msra.mxu0 %v203
      %575 = vmatprep.subr.mxu0 0.0
      %576 = vmatpush1.msra.mxu0 %v205
      %577 = vmatprep.subr.mxu0 0.0
      %578 = vmatpush1.msra.mxu0 %v207
      %579 = vmatprep.subr.mxu0 0.0
      %580 = vmatpush1.msra.mxu0 %v209
      %581 = vmatprep.subr.mxu0 0.0
      %582 = vmatpush1.msra.mxu0 %v211
      %583 = vmatprep.subr.mxu0 0.0
      %584 = vmatpush1.msra.mxu0 0.0
      %585 = vmatprep.subr.mxu0 0.0
      %586 = vmatpush1.msra.mxu0 0.0
      %587 = vmatprep.subr.mxu0 0.0
      %588 = vmatpush1.msra.mxu0 0.0
      %589 = vmatprep.subr.mxu0 0.0
      %590 = vmatpush1.msra.mxu0 0.0
      %591 = vmatprep.subr.mxu0 0.0
      %592 = vmatpush1.msra.mxu0 0.0
      %593 = vmatprep.subr.mxu0 0.0
      %594 = vmatpush1.msra.mxu0 0.0
      %595 = vmatprep.subr.mxu0 0.0
      %596 = vmatpush1.msra.mxu0 0.0
      %597 = vmatprep.subr.mxu0 0.0
      %598 = vmatpush1.msra.mxu0 0.0
      %599 = vmatprep.subr.mxu0 0.0
      %600 = vmatpush1.msra.mxu0 0.0
      %601 = vmatprep.subr.mxu0 0.0
      %602 = vmatpush1.msra.mxu0 0.0
      %603 = vmatprep.subr.mxu0 0.0
      %604 = vmatpush1.msra.mxu0 0.0
      %605 = vmatprep.subr.mxu0 0.0
      %606 = vmatpush1.msra.mxu0 0.0
      %607 = vmatprep.subr.mxu0 0.0
      %608 = vmatpush1.msra.mxu0 0.0
      %609 = vmatprep.subr.mxu0 0.0
      %610 = vmatpush1.msra.mxu0 0.0
      %611 = vmatprep.subr.mxu0 0.0
      %612 = vmatpush1.msra.mxu0 0.0
      %613 = vmatprep.subr.mxu0 0.0
      %614 = vmatpush1.msra.mxu0 0.0
      %615 = vmatprep.subr.mxu0 0.0
      %616 = vmatpush1.msra.mxu0 0.0
      %617 = vmatprep.subr.mxu0 0.0
      %618 = vmatpush1.msra.mxu0 0.0
      %619 = vmatprep.subr.mxu0 0.0
      %620 = vmatpush1.msra.mxu0 0.0
      %621 = vmatprep.subr.mxu0 0.0
      %622 = vmatpush1.msra.mxu0 0.0
      %623 = vmatprep.subr.mxu0 0.0
      %624 = vmatpush1.msra.mxu0 0.0
      %625 = vmatprep.subr.mxu0 0.0
      %626 = vmatpush1.msra.mxu0 0.0
      %627 = vmatprep.subr.mxu0 0.0
      %628 = vmatpush1.msra.mxu0 0.0
      %629 = vmatprep.subr.mxu0 0.0
      %630 = vmatpush1.msra.mxu0 0.0
      %631 = vmatprep.mubr.f32.mxu0 0.0
      %632 = vmatmul.mubr.f32.gmra.mrb[0].mxu0 %v556
      %v633 = vpop.f32.mrb[0].mxu0
      %v634 = vadd.f32 0.0, %v633
      %v635 = vpop.f32.mrb[0].mxu0
      %636 = vmatprep.mubr.f32.mxu0 0.0
      %637 = vmatmul.mubr.f32.gmra.mrb[0].mxu0 %v559
      %v638 = vpop.f32.mrb[0].mxu0
      %v639 = vadd.f32 0.0, %v638
      %v640 = vpop.f32.mrb[0].mxu0
      %641 = vmatprep.mubr.f32.mxu0 0.0
      %642 = vmatmul.mubr.f32.gmra.mrb[0].mxu0 %v562
      %v643 = vpop.f32.mrb[0].mxu0
      %v644 = vadd.f32 0.0, %v643
      %v645 = vpop.f32.mrb[0].mxu0
      %646 = vmatprep.mubr.f32.mxu0 0.0
      %647 = vmatmul.mubr.f32.gmra.mrb[0].mxu0 %v565
      %v648 = vpop.f32.mrb[0].mxu0
      %v649 = vadd.f32 0.0, %v648
      %v650 = vpop.f32.mrb[0].mxu0
      %651 = vdwg.mxu0
      %v653 = vsel %vm220, %v546, 0
      %v656 = vsel %vm220, %v547, 0
      %v659 = vsel %vm220, %v548, 0
      %v662 = vsel %vm220, %v549, 0
      %664 = vmatprep.subr.mxu0 0.0
      %665 = vmatpush1.msra.mxu0 %v319
      %666 = vmatprep.subr.mxu0 0.0
      %667 = vmatpush1.msra.mxu0 %v321
      %668 = vmatprep.subr.mxu0 0.0
      %669 = vmatpush1.msra.mxu0 %v323
      %670 = vmatprep.subr.mxu0 0.0
      %671 = vmatpush1.msra.mxu0 %v325
      %672 = vmatprep.subr.mxu0 0.0
      %673 = vmatpush1.msra.mxu0 %v327
      %674 = vmatprep.subr.mxu0 0.0
      %675 = vmatpush1.msra.mxu0 %v329
      %676 = vmatprep.subr.mxu0 0.0
      %677 = vmatpush1.msra.mxu0 %v331
      %678 = vmatprep.subr.mxu0 0.0
      %679 = vmatpush1.msra.mxu0 %v333
      %680 = vmatprep.subr.mxu0 0.0
      %681 = vmatpush1.msra.mxu0 0.0
      %682 = vmatprep.subr.mxu0 0.0
      %683 = vmatpush1.msra.mxu0 0.0
      %684 = vmatprep.subr.mxu0 0.0
      %685 = vmatpush1.msra.mxu0 0.0
      %686 = vmatprep.subr.mxu0 0.0
      %687 = vmatpush1.msra.mxu0 0.0
      %688 = vmatprep.subr.mxu0 0.0
      %689 = vmatpush1.msra.mxu0 0.0
      %690 = vmatprep.subr.mxu0 0.0
      %691 = vmatpush1.msra.mxu0 0.0
      %692 = vmatprep.subr.mxu0 0.0
      %693 = vmatpush1.msra.mxu0 0.0
      %694 = vmatprep.subr.mxu0 0.0
      %695 = vmatpush1.msra.mxu0 0.0
      %696 = vmatprep.subr.mxu0 0.0
      %697 = vmatpush1.msra.mxu0 0.0
      %698 = vmatprep.subr.mxu0 0.0
      %699 = vmatpush1.msra.mxu0 0.0
      %700 = vmatprep.subr.mxu0 0.0
      %701 = vmatpush1.msra.mxu0 0.0
      %702 = vmatprep.subr.mxu0 0.0
      %703 = vmatpush1.msra.mxu0 0.0
      %704 = vmatprep.subr.mxu0 0.0
      %705 = vmatpush1.msra.mxu0 0.0
      %706 = vmatprep.subr.mxu0 0.0
      %707 = vmatpush1.msra.mxu0 0.0
      %708 = vmatprep.subr.mxu0 0.0
      %709 = vmatpush1.msra.mxu0 0.0
      %710 = vmatprep.subr.mxu0 0.0
      %711 = vmatpush1.msra.mxu0 0.0
      %712 = vmatprep.subr.mxu0 0.0
      %713 = vmatpush1.msra.mxu0 0.0
      %714 = vmatprep.subr.mxu0 0.0
      %715 = vmatpush1.msra.mxu0 0.0
      %716 = vmatprep.subr.mxu0 0.0
      %717 = vmatpush1.msra.mxu0 0.0
      %718 = vmatprep.subr.mxu0 0.0
      %719 = vmatpush1.msra.mxu0 0.0
      %720 = vmatprep.subr.mxu0 0.0
      %721 = vmatpush1.msra.mxu0 0.0
      %722 = vmatprep.subr.mxu0 0.0
      %723 = vmatpush1.msra.mxu0 0.0
      %724 = vmatprep.subr.mxu0 0.0
      %725 = vmatpush1.msra.mxu0 0.0
      %726 = vmatprep.subr.mxu0 0.0
      %727 = vmatpush1.msra.mxu0 0.0
      %728 = vmatprep.mubr.f32.mxu0 0.0
      %729 = vmatmul.mubr.f32.gmra.mrb[0].mxu0 %v653
      %v730 = vpop.f32.mrb[0].mxu0
      %v731 = vadd.f32 %v634, %v730
      %v732 = vpop.f32.mrb[0].mxu0
      %733 = vmatprep.mubr.f32.mxu0 0.0
      %734 = vmatmul.mubr.f32.gmra.mrb[0].mxu0 %v656
      %v735 = vpop.f32.mrb[0].mxu0
      %v736 = vadd.f32 %v639, %v735
      %v737 = vpop.f32.mrb[0].mxu0
      %738 = vmatprep.mubr.f32.mxu0 0.0
      %739 = vmatmul.mubr.f32.gmra.mrb[0].mxu0 %v659
      %v740 = vpop.f32.mrb[0].mxu0
      %v741 = vadd.f32 %v644, %v740
      %v742 = vpop.f32.mrb[0].mxu0
      %743 = vmatprep.mubr.f32.mxu0 0.0
      %744 = vmatmul.mubr.f32.gmra.mrb[0].mxu0 %v662
      %v745 = vpop.f32.mrb[0].mxu0
      %v746 = vadd.f32 %v649, %v745
      %v747 = vpop.f32.mrb[0].mxu0
      %748 = vdwg.mxu0
      %v749 = vld [vmem:[%s2] sm:$0xff]
      %v750 = vld [vmem:[%s2 + $0x8] sm:$0xff]
      %v751 = vld [vmem:[%s2 + $0x10] sm:$0xff]
      %v752 = vld [vmem:[%s2 + $0x18] sm:$0xff]
      %754 = vset.pattern.permute.xlu0 0
      %755 = vperm.xlu0 %754, %v749
      %v756 = vpop.permute.xlu0 %755
      %759 = vset.pattern.permute.xlu0 0
      %760 = vperm.xlu0 %759, %v750
      %v761 = vpop.permute.xlu0 %760
      %764 = vset.pattern.permute.xlu0 0
      %765 = vperm.xlu0 %764, %v751
      %v766 = vpop.permute.xlu0 %765
      %769 = vset.pattern.permute.xlu0 0
      %770 = vperm.xlu0 %769, %v752
      %v771 = vpop.permute.xlu0 %770
      %v773 = vadd.f32 %v541, %v756
      %v774 = vadd.f32 %v542, %v761
      %v775 = vadd.f32 %v543, %v766
      %v776 = vadd.f32 %v544, %v771
      %v777 = vmax.f32 %v773, 0.0
      %v778 = vmax.f32 %v774, 0.0
      %v779 = vmax.f32 %v775, 0.0
      %v780 = vmax.f32 %v776, 0.0
      %vm781 = vcmask 31744
      %782 = vst.msk [vmem:[%s170] sm:$0xff] %vm781, %v777
      %783 = vst.msk [vmem:[%s170 + $0x8] sm:$0xff] %vm781, %v778
      %784 = vst.msk [vmem:[%s170 + $0x10] sm:$0xff] %vm781, %v779
      %785 = vst.msk [vmem:[%s170 + $0x18] sm:$0xff] %vm781, %v780
      %v786 = vadd.f32 %v731, %v756
      %v787 = vadd.f32 %v736, %v761
      %v788 = vadd.f32 %v741, %v766
      %v789 = vadd.f32 %v746, %v771
      %v790 = vmax.f32 %v786, 0.0
      %v791 = vmax.f32 %v787, 0.0
      %v792 = vmax.f32 %v788, 0.0
      %v793 = vmax.f32 %v789, 0.0
      %s794 = scalar_lea.vmem %s170, 32
      %795 = vst.msk [vmem:[%s794] sm:$0xff] %vm781, %v790
      %796 = vst.msk [vmem:[%s794 + $0x8] sm:$0xff] %vm781, %v791
      %797 = vst.msk [vmem:[%s794 + $0x10] sm:$0xff] %vm781, %v792
      %798 = vst.msk [vmem:[%s794 + $0x18] sm:$0xff] %vm781, %v793
      %p799 = scmp.lt.s32.totalorder %s14, 1
      %s800 = scalar_select %p799, %s14, 1
      %s801 = smul.addr %s800, 8
      %s802 = smul.addr %s801, 8
      %s803 = scalar_lea.vmem %s3, %s802
      // Predicated region
      $region33: #{unet_forward.19} parent=31 // pred_check
        %p804 = pneg %p100
      $region34: #{unet_forward.19} parent=31 // pred_check_branch
        %806 = sbr.rel (%p804) target = $region36
      $region35: #{unet_forward.19} parent=31 // pred_region
        _
      $region36: #{unet_forward.19} parent=31 // pred_fallthru
        _
    $region32: #{unet_forward.19} parent=5 // pred_fallthru
      _
    %p807 = scmp.le.s32.totalorder 2, %s9
    // Predicated region
    $region37: #{unet_forward.19} parent=5 // pred_check
      %p808 = pneg %p807
    $region38: #{unet_forward.19} parent=5 // pred_check_branch
      %810 = sbr.rel (%p808) target = $region40
    $region39: #{unet_forward.19} parent=5 // pred_region
      %s811 = ssub.s32 %s9, 2
      // Predicated region
      $region41: #{unet_forward.19} parent=39 // pred_check
        %p812 = pneg %p106
      $region42: #{unet_forward.19} parent=39 // pred_check_branch
        %814 = sbr.rel (%p812) target = $region44
      $region43: #{unet_forward.19} parent=39 // pred_region
        %p815 = scmp.lt.s32.totalorder %s15, 1
        %s816 = scalar_select %p815, %s15, 1
        %s817 = smul.addr %s816, 8
        %s818 = smul.addr %s817, 8
        %s819 = scalar_lea.vmem %s3, %s818
      $region44: #{unet_forward.19} parent=39 // pred_fallthru
        _
    $region40: #{unet_forward.19} parent=5 // pred_fallthru
      _
  $region6: #{unet_forward.19} parent=0 // loop_footer
    %s13 = sadd.s32 1, %s9
  $region7: #{unet_forward.19} parent=0 // loop_footer_branch
    %8 = sbr.rel target = $region3
  $region8: #{unet_forward.19} parent=0 // loop_exit
    _

// kernel: unet_forward.20
$region0: #{unet_forward.20}
  #allocation0 [shape = 'u32[]', space=smem, size = 0x4, offset = 0x4, fixed_abs, tag = 'smem constant byte address 0x4 - core index']
  #allocation1 [shape = 'u32[144,128]{1,0:T(1,128)}', space=vmem, size = 0x12000, scoped, tag = 'internal scratch']
  %s0 = inlined_call_operand.vmem [shape: f32[2,64,10], index: 0, kind: input, shape index: {}]
  %s1 = inlined_call_operand.vmem [shape: f32[5,16,64], index: 1, kind: input, shape index: {}]
  %s2 = inlined_call_operand.vmem [shape: f32[16,1], index: 2, kind: input, shape index: {}]
  %s3 = inlined_call_operand.vmem [shape: f32[2,2,16,8], index: 3, kind: output, shape index: {}]
  %s4 = sld [smem:[#allocation0]]
  $region45: #{unet_forward.20} parent=0
    _
  %s6 = ssub.s32 1, %s4
  %s7 = scalar_select 0, %s6, %s4
  loop: start=0, step=1, limit=4
  $region2: #{unet_forward.20} parent=0 // loop_pre_header
    _
  $region3: #{unet_forward.20} parent=0 // loop_header
    %s9 = sphi 0, %s13
    %p10 = scmp.ge.s32.totalorder %s9, 4
    %s19 = sphi 0, %s21
    %s22 = sphi 0, %s19
    %s23 = sphi 0, %s22
    %s39 = sphi 0, %s23
    %s43 = sphi 0, %s43
    %s45 = sphi 0, %s43
    %s46 = sphi 0, %s45
    %s60 = sphi 0, %s46
    %s64 = sphi 0, %s64
    %s66 = sphi 0, %s64
    %s67 = sphi 0, %s66
    %s81 = sphi 0, %s67
    %s87 = sphi 0, %s89
    %s90 = sphi 0, %s87
    %s91 = sphi 0, %s90
    %s107 = sphi 0, %s91
  $region4: #{unet_forward.20} parent=0 // loop_header_branch
    %12 = sbr.rel (%p10) target = $region8
  $region5: #{unet_forward.20} parent=0 // loop_body
    %s14 = ssub.s32 %s9, 1
    %s15 = ssub.s32 %s9, 2
    %s16 = sadd.s32 %s9, 1
    %s17 = ssub.s32 %s9, %s16
    %p18 = scmp.eq.s32.totalorder %s17, 0
    %s20 = sadd.s32 %s19, 1
    %s21 = scalar_select %p18, %s19, %s20
    %p24 = pneg %p18
    %p25 = scmp.eq.s32.totalorder %s9, 1
    %p26 = por %p24, %p25
    %p27 = scmp.ne.s32.totalorder %s19, %s22
    %p28 = scmp.eq.s32.totalorder %s9, 0
    %p29 = por %p27, %p28
    %p30 = scmp.ne.s32.totalorder %s19, %s22
    %p31 = scmp.eq.s32.totalorder %s14, 1
    %p32 = por %p30, %p31
    %p33 = scmp.ne.s32.totalorder %s22, %s23
    %p34 = scmp.eq.s32.totalorder %s14, 0
    %p35 = por %p33, %p34
    %p36 = scmp.ne.s32.totalorder %s22, %s23
    %p37 = scmp.eq.s32.totalorder %s15, 1
    %p38 = por %p36, %p37
    %p40 = scmp.ne.s32.totalorder %s23, %s39
    %p41 = scmp.eq.s32.totalorder %s15, 0
    %p42 = por %p40, %p41
    %s44 = sadd.s32 %s43, 1
    %p47 = scmp.eq.s32.totalorder %s9, 1
    %p48 = scmp.ne.s32.totalorder %s43, %s45
    %p49 = scmp.eq.s32.totalorder %s9, 0
    %p50 = por %p48, %p49
    %p51 = scmp.ne.s32.totalorder %s43, %s45
    %p52 = scmp.eq.s32.totalorder %s14, 1
    %p53 = por %p51, %p52
    %p54 = scmp.ne.s32.totalorder %s45, %s46
    %p55 = scmp.eq.s32.totalorder %s14, 0
    %p56 = por %p54, %p55
    %p57 = scmp.ne.s32.totalorder %s45, %s46
    %p58 = scmp.eq.s32.totalorder %s15, 1
    %p59 = por %p57, %p58
    %p61 = scmp.ne.s32.totalorder %s46, %s60
    %p62 = scmp.eq.s32.totalorder %s15, 0
    %p63 = por %p61, %p62
    %s65 = sadd.s32 %s64, 1
    %p68 = scmp.eq.s32.totalorder %s9, 1
    %p69 = scmp.ne.s32.totalorder %s64, %s66
    %p70 = scmp.eq.s32.totalorder %s9, 0
    %p71 = por %p69, %p70
    %p72 = scmp.ne.s32.totalorder %s64, %s66
    %p73 = scmp.eq.s32.totalorder %s14, 1
    %p74 = por %p72, %p73
    %p75 = scmp.ne.s32.totalorder %s66, %s67
    %p76 = scmp.eq.s32.totalorder %s14, 0
    %p77 = por %p75, %p76
    %p78 = scmp.ne.s32.totalorder %s66, %s67
    %p79 = scmp.eq.s32.totalorder %s15, 1
    %p80 = por %p78, %p79
    %p82 = scmp.ne.s32.totalorder %s67, %s81
    %p83 = scmp.eq.s32.totalorder %s15, 0
    %p84 = por %p82, %p83
    %s85 = ssub.s32 %s9, %s16
    %p86 = scmp.eq.s32.totalorder %s85, 0
    %s88 = sadd.s32 %s87, 1
    %s89 = scalar_select %p86, %s87, %s88
    %p92 = pneg %p86
    %p93 = scmp.eq.s32.totalorder %s9, 1
    %p94 = por %p92, %p93
    %p95 = scmp.ne.s32.totalorder %s87, %s90
    %p96 = scmp.eq.s32.totalorder %s9, 0
    %p97 = por %p95, %p96
    %p98 = scmp.ne.s32.totalorder %s87, %s90
    %p99 = scmp.eq.s32.totalorder %s14, 1
    %p100 = por %p98, %p99
    %p101 = scmp.ne.s32.totalorder %s90, %s91
    %p102 = scmp.eq.s32.totalorder %s14, 0
    %p103 = por %p101, %p102
    %p104 = scmp.ne.s32.totalorder %s90, %s91
    %p105 = scmp.eq.s32.totalorder %s15, 1
    %p106 = por %p104, %p105
    %p108 = scmp.ne.s32.totalorder %s91, %s107
    %p109 = scmp.eq.s32.totalorder %s15, 0
    %p110 = por %p108, %p109
    %p111 = scmp.le.s32.totalorder 1, %s9
    %p112 = scmp.lt.s32.totalorder %s9, 3
    %p113 = pnand %p111, %p112
    %p114 = pneg %p113
    // Predicated region
    $region9: #{unet_forward.20} parent=5 // pred_check
      _
    $region10: #{unet_forward.20} parent=5 // pred_check_branch
      %116 = sbr.rel (%p113) target = $region12
    $region11: #{unet_forward.20} parent=5 // pred_region
      %s117 = ssub.s32 %s9, 1
      // Predicated region
      $region13: #{unet_forward.20} parent=11 // pred_check
        %p118 = pneg %p56
      $region14: #{unet_forward.20} parent=11 // pred_check_branch
        %120 = sbr.rel (%p118) target = $region16
      $region15: #{unet_forward.20} parent=11 // pred_region
        _
      $region16: #{unet_forward.20} parent=11 // pred_fallthru
        _
      // Predicated region
      $region17: #{unet_forward.20} parent=11 // pred_check
        %p121 = pneg %p77
      $region18: #{unet_forward.20} parent=11 // pred_check_branch
        %123 = sbr.rel (%p121) target = $region20
      $region19: #{unet_forward.20} parent=11 // pred_region
        _
      $region20: #{unet_forward.20} parent=11 // pred_fallthru
        _
    $region12: #{unet_forward.20} parent=5 // pred_fallthru
      _
    %p124 = scmp.lt.s32.totalorder %s9, 2
    // Predicated region
    $region21: #{unet_forward.20} parent=5 // pred_check
      %p125 = pneg %p124
    $region22: #{unet_forward.20} parent=5 // pred_check_branch
      %127 = sbr.rel (%p125) target = $region24
    $region23: #{unet_forward.20} parent=5 // pred_region
      // Predicated region
      $region25: #{unet_forward.20} parent=23 // pred_check
        %p128 = pneg %p29
      $region26: #{unet_forward.20} parent=23 // pred_check_branch
        %130 = sbr.rel (%p128) target = $region28
      $region27: #{unet_forward.20} parent=23 // pred_region
        %p131 = scmp.lt.s32.totalorder %s9, 1
        %s132 = scalar_select %p131, %s9, 1
        %s133 = smul.addr %s132, 8
        %s134 = smul.addr %s133, 8
        %s135 = scalar_lea.vmem %s0, %s134
      $region28: #{unet_forward.20} parent=23 // pred_fallthru
        _
    $region24: #{unet_forward.20} parent=5 // pred_fallthru
      _
    %p136 = scmp.le.s32.totalorder 1, %s9
    %p137 = scmp.lt.s32.totalorder %s9, 3
    %p138 = pnand %p136, %p137
    %p139 = pneg %p138
    // Predicated region
    $region29: #{unet_forward.20} parent=5 // pred_check
      _
    $region30: #{unet_forward.20} parent=5 // pred_check_branch
      %141 = sbr.rel (%p138) target = $region32
    $region31: #{unet_forward.20} parent=5 // pred_region
      %s142 = ssub.s32 %s9, 1
      %p143 = scmp.lt.s32.totalorder %s14, 1
      %s144 = scalar_select %p143, %s14, 1
      %s145 = smul.addr %s144, 8
      %s146 = smul.addr %s145, 8
      %s147 = scalar_lea.vmem %s0, %s146
      %p148 = pneg %p35
      %p149 = pneg %p32
      %p150 = pneg %p56
      %p151 = pneg %p53
      %p152 = pneg %p77
      %p153 = pneg %p74
      %p154 = pneg %p103
      %p155 = pneg %p100
      %p156 = scmp.lt.s32.totalorder %s14, 1
      %s157 = scalar_select %p156, %s14, 1
      %s158 = smul.addr %s157, 4
      %s159 = smul.addr %s158, 8
      %s160 = scalar_lea.vmem %s3, %s159
      %p161 = scmp.lt.s32.totalorder %s14, 1
      %s162 = scalar_select %p161, %s14, 1
      %s163 = smul.addr %s162, 8
      %s164 = smul.addr %s163, 8
      %s165 = scalar_lea.vmem %s0, %s164
      %p166 = scmp.lt.s32.totalorder %s14, 1
      %s167 = scalar_select %p166, %s14, 1
      %s168 = smul.addr %s167, 4
      %s169 = smul.addr %s168, 8
      %s170 = scalar_lea.vmem %s3, %s169
      %v171 = vld [vmem:[%s165] sm:$0xff]
      %v172 = vld [vmem:[%s165 + $0x8] sm:$0xff]
      %v173 = vld [vmem:[%s165 + $0x10] sm:$0xff]
      %v174 = vld [vmem:[%s165 + $0x18] sm:$0xff]
      %v175 = vld [vmem:[%s165 + $0x20] sm:$0xff]
      %v176 = vld [vmem:[%s165 + $0x28] sm:$0xff]
      %v177 = vld [vmem:[%s165 + $0x30] sm:$0xff]
      %v178 = vld [vmem:[%s165 + $0x38] sm:$0xff]
      %v179 = vld [vmem:[%s1] sm:$0xff]
      %v180 = vld [vmem:[%s1 + $0x8] sm:$0xff]
      %s181 = scalar_lea.vmem %s1, 32
      %v182 = vld [vmem:[%s181] sm:$0xff]
      %v183 = vld [vmem:[%s181 + $0x8] sm:$0xff]
      %192 = vrot.lane.b32.xlu0 %v171, 127
      %v193 = vpop.permute.xlu0 %192
      %194 = vrot.lane.b32.xlu0 %v172, 127
      %v195 = vpop.permute.xlu0 %194
      %196 = vrot.lane.b32.xlu0 %v173, 127
      %v197 = vpop.permute.xlu0 %196
      %198 = vrot.lane.b32.xlu0 %v174, 127
      %v199 = vpop.permute.xlu0 %198
      %200 = vrot.lane.b32.xlu0 %v175, 127
      %v201 = vpop.permute.xlu0 %200
      %202 = vrot.lane.b32.xlu0 %v176, 127
      %v203 = vpop.permute.xlu0 %202
      %204 = vrot.lane.b32.xlu0 %v177, 127
      %v205 = vpop.permute.xlu0 %204
      %206 = vrot.lane.b32.xlu0 %v178, 127
      %v207 = vpop.permute.xlu0 %206
      %vm216 = vcmask 523264
      %v218 = vsel %vm216, %v182, 0
      %v221 = vsel %vm216, %v183, 0
      %223 = vmatprep.subr.mxu0 0.0
      %224 = vmatpush1.msra.mxu0 %v193
      %225 = vmatprep.subr.mxu0 0.0
      %226 = vmatpush1.msra.mxu0 %v195
      %227 = vmatprep.subr.mxu0 0.0
      %228 = vmatpush1.msra.mxu0 %v197
      %229 = vmatprep.subr.mxu0 0.0
      %230 = vmatpush1.msra.mxu0 %v199
      %231 = vmatprep.subr.mxu0 0.0
      %232 = vmatpush1.msra.mxu0 %v201
      %233 = vmatprep.subr.mxu0 0.0
      %234 = vmatpush1.msra.mxu0 %v203
      %235 = vmatprep.subr.mxu0 0.0
      %236 = vmatpush1.msra.mxu0 %v205
      %237 = vmatprep.subr.mxu0 0.0
      %238 = vmatpush1.msra.mxu0 %v207
      %239 = vmatprep.subr.mxu0 0.0
      %240 = vmatpush1.msra.mxu0 0.0
      %241 = vmatprep.subr.mxu0 0.0
      %242 = vmatpush1.msra.mxu0 0.0
      %243 = vmatprep.subr.mxu0 0.0
      %244 = vmatpush1.msra.mxu0 0.0
      %245 = vmatprep.subr.mxu0 0.0
      %246 = vmatpush1.msra.mxu0 0.0
      %247 = vmatprep.subr.mxu0 0.0
      %248 = vmatpush1.msra.mxu0 0.0
      %249 = vmatprep.subr.mxu0 0.0
      %250 = vmatpush1.msra.mxu0 0.0
      %251 = vmatprep.subr.mxu0 0.0
      %252 = vmatpush1.msra.mxu0 0.0
      %253 = vmatprep.subr.mxu0 0.0
      %254 = vmatpush1.msra.mxu0 0.0
      %255 = vmatprep.subr.mxu0 0.0
      %256 = vmatpush1.msra.mxu0 0.0
      %257 = vmatprep.subr.mxu0 0.0
      %258 = vmatpush1.msra.mxu0 0.0
      %259 = vmatprep.subr.mxu0 0.0
      %260 = vmatpush1.msra.mxu0 0.0
      %261 = vmatprep.subr.mxu0 0.0
      %262 = vmatpush1.msra.mxu0 0.0
      %263 = vmatprep.subr.mxu0 0.0
      %264 = vmatpush1.msra.mxu0 0.0
      %265 = vmatprep.subr.mxu0 0.0
      %266 = vmatpush1.msra.mxu0 0.0
      %267 = vmatprep.subr.mxu0 0.0
      %268 = vmatpush1.msra.mxu0 0.0
      %269 = vmatprep.subr.mxu0 0.0
      %270 = vmatpush1.msra.mxu0 0.0
      %271 = vmatprep.subr.mxu0 0.0
      %272 = vmatpush1.msra.mxu0 0.0
      %273 = vmatprep.subr.mxu0 0.0
      %274 = vmatpush1.msra.mxu0 0.0
      %275 = vmatprep.subr.mxu0 0.0
      %276 = vmatpush1.msra.mxu0 0.0
      %277 = vmatprep.subr.mxu0 0.0
      %278 = vmatpush1.msra.mxu0 0.0
      %279 = vmatprep.subr.mxu0 0.0
      %280 = vmatpush1.msra.mxu0 0.0
      %281 = vmatprep.subr.mxu0 0.0
      %282 = vmatpush1.msra.mxu0 0.0
      %283 = vmatprep.subr.mxu0 0.0
      %284 = vmatpush1.msra.mxu0 0.0
      %285 = vmatprep.subr.mxu0 0.0
      %286 = vmatpush1.msra.mxu0 0.0
      %287 = vmatprep.mubr.f32.mxu0 0.0
      %288 = vmatmul.mubr.f32.gmra.mrb[0].mxu0 %v218
      %v289 = vpop.f32.mrb[0].mxu0
      %v290 = vadd.f32 0.0, %v289
      %v291 = vpop.f32.mrb[0].mxu0
      %292 = vmatprep.mubr.f32.mxu0 0.0
      %293 = vmatmul.mubr.f32.gmra.mrb[0].mxu0 %v221
      %v294 = vpop.f32.mrb[0].mxu0
      %v295 = vadd.f32 0.0, %v294
      %v296 = vpop.f32.mrb[0].mxu0
      %297 = vdwg.mxu0
      %298 = vrot.lane.b32.xlu0 %v171, 126
      %v299 = vpop.permute.xlu0 %298
      %300 = vrot.lane.b32.xlu0 %v172, 126
      %v301 = vpop.permute.xlu0 %300
      %302 = vrot.lane.b32.xlu0 %v173, 126
      %v303 = vpop.permute.xlu0 %302
      %304 = vrot.lane.b32.xlu0 %v174, 126
      %v305 = vpop.permute.xlu0 %304
      %306 = vrot.lane.b32.xlu0 %v175, 126
      %v307 = vpop.permute.xlu0 %306
      %308 = vrot.lane.b32.xlu0 %v176, 126
      %v309 = vpop.permute.xlu0 %308
      %310 = vrot.lane.b32.xlu0 %v177, 126
      %v311 = vpop.permute.xlu0 %310
      %312 = vrot.lane.b32.xlu0 %v178, 126
      %v313 = vpop.permute.xlu0 %312
      %v323 = vsel %vm216, %v179, 0
      %v326 = vsel %vm216, %v180, 0
      %328 = vmatprep.subr.mxu0 0.0
      %329 = vmatpush1.msra.mxu0 %v299
      %330 = vmatprep.subr.mxu0 0.0
      %331 = vmatpush1.msra.mxu0 %v301
      %332 = vmatprep.subr.mxu0 0.0
      %333 = vmatpush1.msra.mxu0 %v303
      %334 = vmatprep.subr.mxu0 0.0
      %335 = vmatpush1.msra.mxu0 %v305
      %336 = vmatprep.subr.mxu0 0.0
      %337 = vmatpush1.msra.mxu0 %v307
      %338 = vmatprep.subr.mxu0 0.0
      %339 = vmatpush1.msra.mxu0 %v309
      %340 = vmatprep.subr.mxu0 0.0
      %341 = vmatpush1.msra.mxu0 %v311
      %342 = vmatprep.subr.mxu0 0.0
      %343 = vmatpush1.msra.mxu0 %v313
      %344 = vmatprep.subr.mxu0 0.0
      %345 = vmatpush1.msra.mxu0 0.0
      %346 = vmatprep.subr.mxu0 0.0
      %347 = vmatpush1.msra.mxu0 0.0
      %348 = vmatprep.subr.mxu0 0.0
      %349 = vmatpush1.msra.mxu0 0.0
      %350 = vmatprep.subr.mxu0 0.0
      %351 = vmatpush1.msra.mxu0 0.0
      %352 = vmatprep.subr.mxu0 0.0
      %353 = vmatpush1.msra.mxu0 0.0
      %354 = vmatprep.subr.mxu0 0.0
      %355 = vmatpush1.msra.mxu0 0.0
      %356 = vmatprep.subr.mxu0 0.0
      %357 = vmatpush1.msra.mxu0 0.0
      %358 = vmatprep.subr.mxu0 0.0
      %359 = vmatpush1.msra.mxu0 0.0
      %360 = vmatprep.subr.mxu0 0.0
      %361 = vmatpush1.msra.mxu0 0.0
      %362 = vmatprep.subr.mxu0 0.0
      %363 = vmatpush1.msra.mxu0 0.0
      %364 = vmatprep.subr.mxu0 0.0
      %365 = vmatpush1.msra.mxu0 0.0
      %366 = vmatprep.subr.mxu0 0.0
      %367 = vmatpush1.msra.mxu0 0.0
      %368 = vmatprep.subr.mxu0 0.0
      %369 = vmatpush1.msra.mxu0 0.0
      %370 = vmatprep.subr.mxu0 0.0
      %371 = vmatpush1.msra.mxu0 0.0
      %372 = vmatprep.subr.mxu0 0.0
      %373 = vmatpush1.msra.mxu0 0.0
      %374 = vmatprep.subr.mxu0 0.0
      %375 = vmatpush1.msra.mxu0 0.0
      %376 = vmatprep.subr.mxu0 0.0
      %377 = vmatpush1.msra.mxu0 0.0
      %378 = vmatprep.subr.mxu0 0.0
      %379 = vmatpush1.msra.mxu0 0.0
      %380 = vmatprep.subr.mxu0 0.0
      %381 = vmatpush1.msra.mxu0 0.0
      %382 = vmatprep.subr.mxu0 0.0
      %383 = vmatpush1.msra.mxu0 0.0
      %384 = vmatprep.subr.mxu0 0.0
      %385 = vmatpush1.msra.mxu0 0.0
      %386 = vmatprep.subr.mxu0 0.0
      %387 = vmatpush1.msra.mxu0 0.0
      %388 = vmatprep.subr.mxu0 0.0
      %389 = vmatpush1.msra.mxu0 0.0
      %390 = vmatprep.subr.mxu0 0.0
      %391 = vmatpush1.msra.mxu0 0.0
      %392 = vmatprep.mubr.f32.mxu0 0.0
      %393 = vmatmul.mubr.f32.gmra.mrb[0].mxu0 %v323
      %v394 = vpop.f32.mrb[0].mxu0
      %v395 = vadd.f32 %v290, %v394
      %v396 = vpop.f32.mrb[0].mxu0
      %397 = vmatprep.mubr.f32.mxu0 0.0
      %398 = vmatmul.mubr.f32.gmra.mrb[0].mxu0 %v326
      %v399 = vpop.f32.mrb[0].mxu0
      %v400 = vadd.f32 %v295, %v399
      %v401 = vpop.f32.mrb[0].mxu0
      %402 = vdwg.mxu0
      %s403 = scalar_lea.vmem %s1, 64
      %v404 = vld [vmem:[%s403] sm:$0xff]
      %v405 = vld [vmem:[%s403 + $0x8] sm:$0xff]
      %v407 = vsel %vm216, %v404, 0
      %v410 = vsel %vm216, %v405, 0
      %412 = vmatprep.subr.mxu0 0.0
      %413 = vmatpush1.msra.mxu0 %v171
      %414 = vmatprep.subr.mxu0 0.0
      %415 = vmatpush1.msra.mxu0 %v172
      %416 = vmatprep.subr.mxu0 0.0
      %417 = vmatpush1.msra.mxu0 %v173
      %418 = vmatprep.subr.mxu0 0.0
      %419 = vmatpush1.msra.mxu0 %v174
      %420 = vmatprep.subr.mxu0 0.0
      %421 = vmatpush1.msra.mxu0 %v175
      %422 = vmatprep.subr.mxu0 0.0
      %423 = vmatpush1.msra.mxu0 %v176
      %424 = vmatprep.subr.mxu0 0.0
      %425 = vmatpush1.msra.mxu0 %v177
      %426 = vmatprep.subr.mxu0 0.0
      %427 = vmatpush1.msra.mxu0 %v178
      %428 = vmatprep.subr.mxu0 0.0
      %429 = vmatpush1.msra.mxu0 0.0
      %430 = vmatprep.subr.mxu0 0.0
      %431 = vmatpush1.msra.mxu0 0.0
      %432 = vmatprep.subr.mxu0 0.0
      %433 = vmatpush1.msra.mxu0 0.0
      %434 = vmatprep.subr.mxu0 0.0
      %435 = vmatpush1.msra.mxu0 0.0
      %436 = vmatprep.subr.mxu0 0.0
      %437 = vmatpush1.msra.mxu0 0.0
      %438 = vmatprep.subr.mxu0 0.0
      %439 = vmatpush1.msra.mxu0 0.0
      %440 = vmatprep.subr.mxu0 0.0
      %441 = vmatpush1.msra.mxu0 0.0
      %442 = vmatprep.subr.mxu0 0.0
      %443 = vmatpush1.msra.mxu0 0.0
      %444 = vmatprep.subr.mxu0 0.0
      %445 = vmatpush1.msra.mxu0 0.0
      %446 = vmatprep.subr.mxu0 0.0
      %447 = vmatpush1.msra.mxu0 0.0
      %448 = vmatprep.subr.mxu0 0.0
      %449 = vmatpush1.msra.mxu0 0.0
      %450 = vmatprep.subr.mxu0 0.0
      %451 = vmatpush1.msra.mxu0 0.0
      %452 = vmatprep.subr.mxu0 0.0
      %453 = vmatpush1.msra.mxu0 0.0
      %454 = vmatprep.subr.mxu0 0.0
      %455 = vmatpush1.msra.mxu0 0.0
      %456 = vmatprep.subr.mxu0 0.0
      %457 = vmatpush1.msra.mxu0 0.0
      %458 = vmatprep.subr.mxu0 0.0
      %459 = vmatpush1.msra.mxu0 0.0
      %460 = vmatprep.subr.mxu0 0.0
      %461 = vmatpush1.msra.mxu0 0.0
      %462 = vmatprep.subr.mxu0 0.0
      %463 = vmatpush1.msra.mxu0 0.0
      %464 = vmatprep.subr.mxu0 0.0
      %465 = vmatpush1.msra.mxu0 0.0
      %466 = vmatprep.subr.mxu0 0.0
      %467 = vmatpush1.msra.mxu0 0.0
      %468 = vmatprep.subr.mxu0 0.0
      %469 = vmatpush1.msra.mxu0 0.0
      %470 = vmatprep.subr.mxu0 0.0
      %471 = vmatpush1.msra.mxu0 0.0
      %472 = vmatprep.subr.mxu0 0.0
      %473 = vmatpush1.msra.mxu0 0.0
      %474 = vmatprep.subr.mxu0 0.0
      %475 = vmatpush1.msra.mxu0 0.0
      %476 = vmatprep.mubr.f32.mxu0 0.0
      %477 = vmatmul.mubr.f32.gmra.mrb[0].mxu0 %v407
      %v478 = vpop.f32.mrb[0].mxu0
      %v479 = vadd.f32 0.0, %v478
      %v480 = vpop.f32.mrb[0].mxu0
      %481 = vmatprep.mubr.f32.mxu0 0.0
      %482 = vmatmul.mubr.f32.gmra.mrb[0].mxu0 %v410
      %v483 = vpop.f32.mrb[0].mxu0
      %v484 = vadd.f32 0.0, %v483
      %v485 = vpop.f32.mrb[0].mxu0
      %486 = vdwg.mxu0
      %v487 = vadd.f32 %v395, %v479
      %v488 = vadd.f32 %v400, %v484
      %s489 = scalar_lea.vmem %s1, 16
      %v490 = vld [vmem:[%s489] sm:$0xff]
      %v491 = vld [vmem:[%s489 + $0x8] sm:$0xff]
      %s492 = scalar_lea.vmem %s1, 48
      %v493 = vld [vmem:[%s492] sm:$0xff]
      %v494 = vld [vmem:[%s492 + $0x8] sm:$0xff]
      %v496 = vsel %vm216, %v493, 0
      %v499 = vsel %vm216, %v494, 0
      %501 = vmatprep.subr.mxu0 0.0
      %502 = vmatpush1.msra.mxu0 %v193
      %503 = vmatprep.subr.mxu0 0.0
      %504 = vmatpush1.msra.mxu0 %v195
      %505 = vmatprep.subr.mxu0 0.0
      %506 = vmatpush1.msra.mxu0 %v197
      %507 = vmatprep.subr.mxu0 0.0
      %508 = vmatpush1.msra.mxu0 %v199
      %509 = vmatprep.subr.mxu0 0.0
      %510 = vmatpush1.msra.mxu0 %v201
      %511 = vmatprep.subr.mxu0 0.0
      %512 = vmatpush1.msra.mxu0 %v203
      %513 = vmatprep.subr.mxu0 0.0
      %514 = vmatpush1.msra.mxu0 %v205
      %515 = vmatprep.subr.mxu0 0.0
      %516 = vmatpush1.msra.mxu0 %v207
      %517 = vmatprep.subr.mxu0 0.0
      %518 = vmatpush1.msra.mxu0 0.0
      %519 = vmatprep.subr.mxu0 0.0
      %520 = vmatpush1.msra.mxu0 0.0
      %521 = vmatprep.subr.mxu0 0.0
      %522 = vmatpush1.msra.mxu0 0.0
      %523 = vmatprep.subr.mxu0 0.0
      %524 = vmatpush1.msra.mxu0 0.0
      %525 = vmatprep.subr.mxu0 0.0
      %526 = vmatpush1.msra.mxu0 0.0
      %527 = vmatprep.subr.mxu0 0.0
      %528 = vmatpush1.msra.mxu0 0.0
      %529 = vmatprep.subr.mxu0 0.0
      %530 = vmatpush1.msra.mxu0 0.0
      %531 = vmatprep.subr.mxu0 0.0
      %532 = vmatpush1.msra.mxu0 0.0
      %533 = vmatprep.subr.mxu0 0.0
      %534 = vmatpush1.msra.mxu0 0.0
      %535 = vmatprep.subr.mxu0 0.0
      %536 = vmatpush1.msra.mxu0 0.0
      %537 = vmatprep.subr.mxu0 0.0
      %538 = vmatpush1.msra.mxu0 0.0
      %539 = vmatprep.subr.mxu0 0.0
      %540 = vmatpush1.msra.mxu0 0.0
      %541 = vmatprep.subr.mxu0 0.0
      %542 = vmatpush1.msra.mxu0 0.0
      %543 = vmatprep.subr.mxu0 0.0
      %544 = vmatpush1.msra.mxu0 0.0
      %545 = vmatprep.subr.mxu0 0.0
      %546 = vmatpush1.msra.mxu0 0.0
      %547 = vmatprep.subr.mxu0 0.0
      %548 = vmatpush1.msra.mxu0 0.0
      %549 = vmatprep.subr.mxu0 0.0
      %550 = vmatpush1.msra.mxu0 0.0
      %551 = vmatprep.subr.mxu0 0.0
      %552 = vmatpush1.msra.mxu0 0.0
      %553 = vmatprep.subr.mxu0 0.0
      %554 = vmatpush1.msra.mxu0 0.0
      %555 = vmatprep.subr.mxu0 0.0
      %556 = vmatpush1.msra.mxu0 0.0
      %557 = vmatprep.subr.mxu0 0.0
      %558 = vmatpush1.msra.mxu0 0.0
      %559 = vmatprep.subr.mxu0 0.0
      %560 = vmatpush1.msra.mxu0 0.0
      %561 = vmatprep.subr.mxu0 0.0
      %562 = vmatpush1.msra.mxu0 0.0
      %563 = vmatprep.subr.mxu0 0.0
      %564 = vmatpush1.msra.mxu0 0.0
      %565 = vmatprep.mubr.f32.mxu0 0.0
      %566 = vmatmul.mubr.f32.gmra.mrb[0].mxu0 %v496
      %v567 = vpop.f32.mrb[0].mxu0
      %v568 = vadd.f32 0.0, %v567
      %v569 = vpop.f32.mrb[0].mxu0
      %570 = vmatprep.mubr.f32.mxu0 0.0
      %571 = vmatmul.mubr.f32.gmra.mrb[0].mxu0 %v499
      %v572 = vpop.f32.mrb[0].mxu0
      %v573 = vadd.f32 0.0, %v572
      %v574 = vpop.f32.mrb[0].mxu0
      %575 = vdwg.mxu0
      %v577 = vsel %vm216, %v490, 0
      %v580 = vsel %vm216, %v491, 0
      %582 = vmatprep.subr.mxu0 0.0
      %583 = vmatpush1.msra.mxu0 %v299
      %584 = vmatprep.subr.mxu0 0.0
      %585 = vmatpush1.msra.mxu0 %v301
      %586 = vmatprep.subr.mxu0 0.0
      %587 = vmatpush1.msra.mxu0 %v303
      %588 = vmatprep.subr.mxu0 0.0
      %589 = vmatpush1.msra.mxu0 %v305
      %590 = vmatprep.subr.mxu0 0.0
      %591 = vmatpush1.msra.mxu0 %v307
      %592 = vmatprep.subr.mxu0 0.0
      %593 = vmatpush1.msra.mxu0 %v309
      %594 = vmatprep.subr.mxu0 0.0
      %595 = vmatpush1.msra.mxu0 %v311
      %596 = vmatprep.subr.mxu0 0.0
      %597 = vmatpush1.msra.mxu0 %v313
      %598 = vmatprep.subr.mxu0 0.0
      %599 = vmatpush1.msra.mxu0 0.0
      %600 = vmatprep.subr.mxu0 0.0
      %601 = vmatpush1.msra.mxu0 0.0
      %602 = vmatprep.subr.mxu0 0.0
      %603 = vmatpush1.msra.mxu0 0.0
      %604 = vmatprep.subr.mxu0 0.0
      %605 = vmatpush1.msra.mxu0 0.0
      %606 = vmatprep.subr.mxu0 0.0
      %607 = vmatpush1.msra.mxu0 0.0
      %608 = vmatprep.subr.mxu0 0.0
      %609 = vmatpush1.msra.mxu0 0.0
      %610 = vmatprep.subr.mxu0 0.0
      %611 = vmatpush1.msra.mxu0 0.0
      %612 = vmatprep.subr.mxu0 0.0
      %613 = vmatpush1.msra.mxu0 0.0
      %614 = vmatprep.subr.mxu0 0.0
      %615 = vmatpush1.msra.mxu0 0.0
      %616 = vmatprep.subr.mxu0 0.0
      %617 = vmatpush1.msra.mxu0 0.0
      %618 = vmatprep.subr.mxu0 0.0
      %619 = vmatpush1.msra.mxu0 0.0
      %620 = vmatprep.subr.mxu0 0.0
      %621 = vmatpush1.msra.mxu0 0.0
      %622 = vmatprep.subr.mxu0 0.0
      %623 = vmatpush1.msra.mxu0 0.0
      %624 = vmatprep.subr.mxu0 0.0
      %625 = vmatpush1.msra.mxu0 0.0
      %626 = vmatprep.subr.mxu0 0.0
      %627 = vmatpush1.msra.mxu0 0.0
      %628 = vmatprep.subr.mxu0 0.0
      %629 = vmatpush1.msra.mxu0 0.0
      %630 = vmatprep.subr.mxu0 0.0
      %631 = vmatpush1.msra.mxu0 0.0
      %632 = vmatprep.subr.mxu0 0.0
      %633 = vmatpush1.msra.mxu0 0.0
      %634 = vmatprep.subr.mxu0 0.0
      %635 = vmatpush1.msra.mxu0 0.0
      %636 = vmatprep.subr.mxu0 0.0
      %637 = vmatpush1.msra.mxu0 0.0
      %638 = vmatprep.subr.mxu0 0.0
      %639 = vmatpush1.msra.mxu0 0.0
      %640 = vmatprep.subr.mxu0 0.0
      %641 = vmatpush1.msra.mxu0 0.0
      %642 = vmatprep.subr.mxu0 0.0
      %643 = vmatpush1.msra.mxu0 0.0
      %644 = vmatprep.subr.mxu0 0.0
      %645 = vmatpush1.msra.mxu0 0.0
      %646 = vmatprep.mubr.f32.mxu0 0.0
      %647 = vmatmul.mubr.f32.gmra.mrb[0].mxu0 %v577
      %v648 = vpop.f32.mrb[0].mxu0
      %v649 = vadd.f32 %v568, %v648
      %v650 = vpop.f32.mrb[0].mxu0
      %651 = vmatprep.mubr.f32.mxu0 0.0
      %652 = vmatmul.mubr.f32.gmra.mrb[0].mxu0 %v580
      %v653 = vpop.f32.mrb[0].mxu0
      %v654 = vadd.f32 %v573, %v653
      %v655 = vpop.f32.mrb[0].mxu0
      %656 = vdwg.mxu0
      %v657 = vld [vmem:[%s2] sm:$0xff]
      %v658 = vld [vmem:[%s2 + $0x8] sm:$0xff]
      %660 = vset.pattern.permute.xlu0 0
      %661 = vperm.xlu0 %660, %v657
      %v662 = vpop.permute.xlu0 %661
      %665 = vset.pattern.permute.xlu0 0
      %666 = vperm.xlu0 %665, %v658
      %v667 = vpop.permute.xlu0 %666
      %v669 = vadd.f32 %v487, %v662
      %v670 = vadd.f32 %v488, %v667
      %v671 = vmax.f32 %v669, 0.0
      %v672 = vmax.f32 %v670, 0.0
      %vm673 = vcmask 64512
      %674 = vst.msk [vmem:[%s170] sm:$0xff] %vm673, %v671
      %675 = vst.msk [vmem:[%s170 + $0x8] sm:$0xff] %vm673, %v672
      %v676 = vadd.f32 %v649, %v662
      %v677 = vadd.f32 %v654, %v667
      %v678 = vmax.f32 %v676, 0.0
      %v679 = vmax.f32 %v677, 0.0
      %s680 = scalar_lea.vmem %s170, 16
      %681 = vst.msk [vmem:[%s680] sm:$0xff] %vm673, %v678
      %682 = vst.msk [vmem:[%s680 + $0x8] sm:$0xff] %vm673, %v679
      %p683 = scmp.lt.s32.totalorder %s14, 1
      %s684 = scalar_select %p683, %s14, 1
      %s685 = smul.addr %s684, 4
      %s686 = smul.addr %s685, 8
      %s687 = scalar_lea.vmem %s3, %s686
      // Predicated region
      $region33: #{unet_forward.20} parent=31 // pred_check
        %p688 = pneg %p100
      $region34: #{unet_forward.20} parent=31 // pred_check_branch
        %690 = sbr.rel (%p688) target = $region36
      $region35: #{unet_forward.20} parent=31 // pred_region
        _
      $region36: #{unet_forward.20} parent=31 // pred_fallthru
        _
    $region32: #{unet_forward.20} parent=5 // pred_fallthru
      _
    %p691 = scmp.le.s32.totalorder 2, %s9
    // Predicated region
    $region37: #{unet_forward.20} parent=5 // pred_check
      %p692 = pneg %p691
    $region38: #{unet_forward.20} parent=5 // pred_check_branch
      %694 = sbr.rel (%p692) target = $region40
    $region39: #{unet_forward.20} parent=5 // pred_region
      %s695 = ssub.s32 %s9, 2
      // Predicated region
      $region41: #{unet_forward.20} parent=39 // pred_check
        %p696 = pneg %p106
      $region42: #{unet_forward.20} parent=39 // pred_check_branch
        %698 = sbr.rel (%p696) target = $region44
      $region43: #{unet_forward.20} parent=39 // pred_region
        %p699 = scmp.lt.s32.totalorder %s15, 1
        %s700 = scalar_select %p699, %s15, 1
        %s701 = smul.addr %s700, 4
        %s702 = smul.addr %s701, 8
        %s703 = scalar_lea.vmem %s3, %s702
      $region44: #{unet_forward.20} parent=39 // pred_fallthru
        _
    $region40: #{unet_forward.20} parent=5 // pred_fallthru
      _
  $region6: #{unet_forward.20} parent=0 // loop_footer
    %s13 = sadd.s32 1, %s9
  $region7: #{unet_forward.20} parent=0 // loop_footer_branch
    %8 = sbr.rel target = $region3
  $region8: #{unet_forward.20} parent=0 // loop_exit
    _

// kernel: unet_forward.21
$region0: #{unet_forward.21}
  #allocation0 [shape = 'u32[]', space=smem, size = 0x4, offset = 0x4, fixed_abs, tag = 'smem constant byte address 0x4 - core index']
  #allocation1 [shape = 'u32[144,128]{1,0:T(1,128)}', space=vmem, size = 0x12000, scoped, tag = 'internal scratch']
  %s0 = inlined_call_operand.vmem [shape: f32[2,32,18], index: 0, kind: input, shape index: {}]
  %s1 = inlined_call_operand.vmem [shape: f32[5,16,32], index: 1, kind: input, shape index: {}]
  %s2 = inlined_call_operand.vmem [shape: f32[16,1], index: 2, kind: input, shape index: {}]
  %s3 = inlined_call_operand.vmem [shape: f32[2,2,16,16], index: 3, kind: output, shape index: {}]
  %s4 = sld [smem:[#allocation0]]
  $region45: #{unet_forward.21} parent=0
    _
  %s6 = ssub.s32 1, %s4
  %s7 = scalar_select 0, %s6, %s4
  loop: start=0, step=1, limit=4
  $region2: #{unet_forward.21} parent=0 // loop_pre_header
    _
  $region3: #{unet_forward.21} parent=0 // loop_header
    %s9 = sphi 0, %s13
    %p10 = scmp.ge.s32.totalorder %s9, 4
    %s19 = sphi 0, %s21
    %s22 = sphi 0, %s19
    %s23 = sphi 0, %s22
    %s39 = sphi 0, %s23
    %s43 = sphi 0, %s43
    %s45 = sphi 0, %s43
    %s46 = sphi 0, %s45
    %s60 = sphi 0, %s46
    %s64 = sphi 0, %s64
    %s66 = sphi 0, %s64
    %s67 = sphi 0, %s66
    %s81 = sphi 0, %s67
    %s87 = sphi 0, %s89
    %s90 = sphi 0, %s87
    %s91 = sphi 0, %s90
    %s107 = sphi 0, %s91
  $region4: #{unet_forward.21} parent=0 // loop_header_branch
    %12 = sbr.rel (%p10) target = $region8
  $region5: #{unet_forward.21} parent=0 // loop_body
    %s14 = ssub.s32 %s9, 1
    %s15 = ssub.s32 %s9, 2
    %s16 = sadd.s32 %s9, 1
    %s17 = ssub.s32 %s9, %s16
    %p18 = scmp.eq.s32.totalorder %s17, 0
    %s20 = sadd.s32 %s19, 1
    %s21 = scalar_select %p18, %s19, %s20
    %p24 = pneg %p18
    %p25 = scmp.eq.s32.totalorder %s9, 1
    %p26 = por %p24, %p25
    %p27 = scmp.ne.s32.totalorder %s19, %s22
    %p28 = scmp.eq.s32.totalorder %s9, 0
    %p29 = por %p27, %p28
    %p30 = scmp.ne.s32.totalorder %s19, %s22
    %p31 = scmp.eq.s32.totalorder %s14, 1
    %p32 = por %p30, %p31
    %p33 = scmp.ne.s32.totalorder %s22, %s23
    %p34 = scmp.eq.s32.totalorder %s14, 0
    %p35 = por %p33, %p34
    %p36 = scmp.ne.s32.totalorder %s22, %s23
    %p37 = scmp.eq.s32.totalorder %s15, 1
    %p38 = por %p36, %p37
    %p40 = scmp.ne.s32.totalorder %s23, %s39
    %p41 = scmp.eq.s32.totalorder %s15, 0
    %p42 = por %p40, %p41
    %s44 = sadd.s32 %s43, 1
    %p47 = scmp.eq.s32.totalorder %s9, 1
    %p48 = scmp.ne.s32.totalorder %s43, %s45
    %p49 = scmp.eq.s32.totalorder %s9, 0
    %p50 = por %p48, %p49
    %p51 = scmp.ne.s32.totalorder %s43, %s45
    %p52 = scmp.eq.s32.totalorder %s14, 1
    %p53 = por %p51, %p52
    %p54 = scmp.ne.s32.totalorder %s45, %s46
    %p55 = scmp.eq.s32.totalorder %s14, 0
    %p56 = por %p54, %p55
    %p57 = scmp.ne.s32.totalorder %s45, %s46
    %p58 = scmp.eq.s32.totalorder %s15, 1
    %p59 = por %p57, %p58
    %p61 = scmp.ne.s32.totalorder %s46, %s60
    %p62 = scmp.eq.s32.totalorder %s15, 0
    %p63 = por %p61, %p62
    %s65 = sadd.s32 %s64, 1
    %p68 = scmp.eq.s32.totalorder %s9, 1
    %p69 = scmp.ne.s32.totalorder %s64, %s66
    %p70 = scmp.eq.s32.totalorder %s9, 0
    %p71 = por %p69, %p70
    %p72 = scmp.ne.s32.totalorder %s64, %s66
    %p73 = scmp.eq.s32.totalorder %s14, 1
    %p74 = por %p72, %p73
    %p75 = scmp.ne.s32.totalorder %s66, %s67
    %p76 = scmp.eq.s32.totalorder %s14, 0
    %p77 = por %p75, %p76
    %p78 = scmp.ne.s32.totalorder %s66, %s67
    %p79 = scmp.eq.s32.totalorder %s15, 1
    %p80 = por %p78, %p79
    %p82 = scmp.ne.s32.totalorder %s67, %s81
    %p83 = scmp.eq.s32.totalorder %s15, 0
    %p84 = por %p82, %p83
    %s85 = ssub.s32 %s9, %s16
    %p86 = scmp.eq.s32.totalorder %s85, 0
    %s88 = sadd.s32 %s87, 1
    %s89 = scalar_select %p86, %s87, %s88
    %p92 = pneg %p86
    %p93 = scmp.eq.s32.totalorder %s9, 1
    %p94 = por %p92, %p93
    %p95 = scmp.ne.s32.totalorder %s87, %s90
    %p96 = scmp.eq.s32.totalorder %s9, 0
    %p97 = por %p95, %p96
    %p98 = scmp.ne.s32.totalorder %s87, %s90
    %p99 = scmp.eq.s32.totalorder %s14, 1
    %p100 = por %p98, %p99
    %p101 = scmp.ne.s32.totalorder %s90, %s91
    %p102 = scmp.eq.s32.totalorder %s14, 0
    %p103 = por %p101, %p102
    %p104 = scmp.ne.s32.totalorder %s90, %s91
    %p105 = scmp.eq.s32.totalorder %s15, 1
    %p106 = por %p104, %p105
    %p108 = scmp.ne.s32.totalorder %s91, %s107
    %p109 = scmp.eq.s32.totalorder %s15, 0
    %p110 = por %p108, %p109
    %p111 = scmp.le.s32.totalorder 1, %s9
    %p112 = scmp.lt.s32.totalorder %s9, 3
    %p113 = pnand %p111, %p112
    %p114 = pneg %p113
    // Predicated region
    $region9: #{unet_forward.21} parent=5 // pred_check
      _
    $region10: #{unet_forward.21} parent=5 // pred_check_branch
      %116 = sbr.rel (%p113) target = $region12
    $region11: #{unet_forward.21} parent=5 // pred_region
      %s117 = ssub.s32 %s9, 1
      // Predicated region
      $region13: #{unet_forward.21} parent=11 // pred_check
        %p118 = pneg %p56
      $region14: #{unet_forward.21} parent=11 // pred_check_branch
        %120 = sbr.rel (%p118) target = $region16
      $region15: #{unet_forward.21} parent=11 // pred_region
        _
      $region16: #{unet_forward.21} parent=11 // pred_fallthru
        _
      // Predicated region
      $region17: #{unet_forward.21} parent=11 // pred_check
        %p121 = pneg %p77
      $region18: #{unet_forward.21} parent=11 // pred_check_branch
        %123 = sbr.rel (%p121) target = $region20
      $region19: #{unet_forward.21} parent=11 // pred_region
        _
      $region20: #{unet_forward.21} parent=11 // pred_fallthru
        _
    $region12: #{unet_forward.21} parent=5 // pred_fallthru
      _
    %p124 = scmp.lt.s32.totalorder %s9, 2
    // Predicated region
    $region21: #{unet_forward.21} parent=5 // pred_check
      %p125 = pneg %p124
    $region22: #{unet_forward.21} parent=5 // pred_check_branch
      %127 = sbr.rel (%p125) target = $region24
    $region23: #{unet_forward.21} parent=5 // pred_region
      // Predicated region
      $region25: #{unet_forward.21} parent=23 // pred_check
        %p128 = pneg %p29
      $region26: #{unet_forward.21} parent=23 // pred_check_branch
        %130 = sbr.rel (%p128) target = $region28
      $region27: #{unet_forward.21} parent=23 // pred_region
        %p131 = scmp.lt.s32.totalorder %s9, 1
        %s132 = scalar_select %p131, %s9, 1
        %s133 = smul.addr %s132, 4
        %s134 = smul.addr %s133, 8
        %s135 = scalar_lea.vmem %s0, %s134
      $region28: #{unet_forward.21} parent=23 // pred_fallthru
        _
    $region24: #{unet_forward.21} parent=5 // pred_fallthru
      _
    %p136 = scmp.le.s32.totalorder 1, %s9
    %p137 = scmp.lt.s32.totalorder %s9, 3
    %p138 = pnand %p136, %p137
    %p139 = pneg %p138
    // Predicated region
    $region29: #{unet_forward.21} parent=5 // pred_check
      _
    $region30: #{unet_forward.21} parent=5 // pred_check_branch
      %141 = sbr.rel (%p138) target = $region32
    $region31: #{unet_forward.21} parent=5 // pred_region
      %s142 = ssub.s32 %s9, 1
      %p143 = scmp.lt.s32.totalorder %s14, 1
      %s144 = scalar_select %p143, %s14, 1
      %s145 = smul.addr %s144, 4
      %s146 = smul.addr %s145, 8
      %s147 = scalar_lea.vmem %s0, %s146
      %p148 = pneg %p35
      %p149 = pneg %p32
      %p150 = pneg %p56
      %p151 = pneg %p53
      %p152 = pneg %p77
      %p153 = pneg %p74
      %p154 = pneg %p103
      %p155 = pneg %p100
      %p156 = scmp.lt.s32.totalorder %s14, 1
      %s157 = scalar_select %p156, %s14, 1
      %s158 = smul.addr %s157, 4
      %s159 = smul.addr %s158, 8
      %s160 = scalar_lea.vmem %s3, %s159
      %p161 = scmp.lt.s32.totalorder %s14, 1
      %s162 = scalar_select %p161, %s14, 1
      %s163 = smul.addr %s162, 4
      %s164 = smul.addr %s163, 8
      %s165 = scalar_lea.vmem %s0, %s164
      %p166 = scmp.lt.s32.totalorder %s14, 1
      %s167 = scalar_select %p166, %s14, 1
      %s168 = smul.addr %s167, 4
      %s169 = smul.addr %s168, 8
      %s170 = scalar_lea.vmem %s3, %s169
      %v171 = vld [vmem:[%s165] sm:$0xff]
      %v172 = vld [vmem:[%s165 + $0x8] sm:$0xff]
      %v173 = vld [vmem:[%s165 + $0x10] sm:$0xff]
      %v174 = vld [vmem:[%s165 + $0x18] sm:$0xff]
      %v175 = vld [vmem:[%s1] sm:$0xff]
      %v176 = vld [vmem:[%s1 + $0x8] sm:$0xff]
      %s177 = scalar_lea.vmem %s1, 32
      %v178 = vld [vmem:[%s177] sm:$0xff]
      %v179 = vld [vmem:[%s177 + $0x8] sm:$0xff]
      %184 = vrot.lane.b32.xlu0 %v171, 127
      %v185 = vpop.permute.xlu0 %184
      %186 = vrot.lane.b32.xlu0 %v172, 127
      %v187 = vpop.permute.xlu0 %186
      %188 = vrot.lane.b32.xlu0 %v173, 127
      %v189 = vpop.permute.xlu0 %188
      %190 = vrot.lane.b32.xlu0 %v174, 127
      %v191 = vpop.permute.xlu0 %190
      %vm196 = vcmask 261120
      %v198 = vsel %vm196, %v178, 0
      %v201 = vsel %vm196, %v179, 0
      %203 = vmatprep.subr.mxu0 0.0
      %204 = vmatpush1.msra.mxu0 %v185
      %205 = vmatprep.subr.mxu0 0.0
      %206 = vmatpush1.msra.mxu0 %v187
      %207 = vmatprep.subr.mxu0 0.0
      %208 = vmatpush1.msra.mxu0 %v189
      %209 = vmatprep.subr.mxu0 0.0
      %210 = vmatpush1.msra.mxu0 %v191
      %211 = vmatprep.subr.mxu0 0.0
      %212 = vmatpush1.msra.mxu0 0.0
      %213 = vmatprep.subr.mxu0 0.0
      %214 = vmatpush1.msra.mxu0 0.0
      %215 = vmatprep.subr.mxu0 0.0
      %216 = vmatpush1.msra.mxu0 0.0
      %217 = vmatprep.subr.mxu0 0.0
      %218 = vmatpush1.msra.mxu0 0.0
      %219 = vmatprep.subr.mxu0 0.0
      %220 = vmatpush1.msra.mxu0 0.0
      %221 = vmatprep.subr.mxu0 0.0
      %222 = vmatpush1.msra.mxu0 0.0
      %223 = vmatprep.subr.mxu0 0.0
      %224 = vmatpush1.msra.mxu0 0.0
      %225 = vmatprep.subr.mxu0 0.0
      %226 = vmatpush1.msra.mxu0 0.0
      %227 = vmatprep.subr.mxu0 0.0
      %228 = vmatpush1.msra.mxu0 0.0
      %229 = vmatprep.subr.mxu0 0.0
      %230 = vmatpush1.msra.mxu0 0.0
      %231 = vmatprep.subr.mxu0 0.0
      %232 = vmatpush1.msra.mxu0 0.0
      %233 = vmatprep.subr.mxu0 0.0
      %234 = vmatpush1.msra.mxu0 0.0
      %235 = vmatprep.subr.mxu0 0.0
      %236 = vmatpush1.msra.mxu0 0.0
      %237 = vmatprep.subr.mxu0 0.0
      %238 = vmatpush1.msra.mxu0 0.0
      %239 = vmatprep.subr.mxu0 0.0
      %240 = vmatpush1.msra.mxu0 0.0
      %241 = vmatprep.subr.mxu0 0.0
      %242 = vmatpush1.msra.mxu0 0.0
      %243 = vmatprep.subr.mxu0 0.0
      %244 = vmatpush1.msra.mxu0 0.0
      %245 = vmatprep.subr.mxu0 0.0
      %246 = vmatpush1.msra.mxu0 0.0
      %247 = vmatprep.subr.mxu0 0.0
      %248 = vmatpush1.msra.mxu0 0.0
      %249 = vmatprep.subr.mxu0 0.0
      %250 = vmatpush1.msra.mxu0 0.0
      %251 = vmatprep.subr.mxu0 0.0
      %252 = vmatpush1.msra.mxu0 0.0
      %253 = vmatprep.subr.mxu0 0.0
      %254 = vmatpush1.msra.mxu0 0.0
      %255 = vmatprep.subr.mxu0 0.0
      %256 = vmatpush1.msra.mxu0 0.0
      %257 = vmatprep.subr.mxu0 0.0
      %258 = vmatpush1.msra.mxu0 0.0
      %259 = vmatprep.subr.mxu0 0.0
      %260 = vmatpush1.msra.mxu0 0.0
      %261 = vmatprep.subr.mxu0 0.0
      %262 = vmatpush1.msra.mxu0 0.0
      %263 = vmatprep.subr.mxu0 0.0
      %264 = vmatpush1.msra.mxu0 0.0
      %265 = vmatprep.subr.mxu0 0.0
      %266 = vmatpush1.msra.mxu0 0.0
      %267 = vmatprep.mubr.f32.mxu0 0.0
      %268 = vmatmul.mubr.f32.gmra.mrb[0].mxu0 %v198
      %v269 = vpop.f32.mrb[0].mxu0
      %v270 = vadd.f32 0.0, %v269
      %v271 = vpop.f32.mrb[0].mxu0
      %272 = vmatprep.mubr.f32.mxu0 0.0
      %273 = vmatmul.mubr.f32.gmra.mrb[0].mxu0 %v201
      %v274 = vpop.f32.mrb[0].mxu0
      %v275 = vadd.f32 0.0, %v274
      %v276 = vpop.f32.mrb[0].mxu0
      %277 = vdwg.mxu0
      %278 = vrot.lane.b32.xlu0 %v171, 126
      %v279 = vpop.permute.xlu0 %278
      %280 = vrot.lane.b32.xlu0 %v172, 126
      %v281 = vpop.permute.xlu0 %280
      %282 = vrot.lane.b32.xlu0 %v173, 126
      %v283 = vpop.permute.xlu0 %282
      %284 = vrot.lane.b32.xlu0 %v174, 126
      %v285 = vpop.permute.xlu0 %284
      %v291 = vsel %vm196, %v175, 0
      %v294 = vsel %vm196, %v176, 0
      %296 = vmatprep.subr.mxu0 0.0
      %297 = vmatpush1.msra.mxu0 %v279
      %298 = vmatprep.subr.mxu0 0.0
      %299 = vmatpush1.msra.mxu0 %v281
      %300 = vmatprep.subr.mxu0 0.0
      %301 = vmatpush1.msra.mxu0 %v283
      %302 = vmatprep.subr.mxu0 0.0
      %303 = vmatpush1.msra.mxu0 %v285
      %304 = vmatprep.subr.mxu0 0.0
      %305 = vmatpush1.msra.mxu0 0.0
      %306 = vmatprep.subr.mxu0 0.0
      %307 = vmatpush1.msra.mxu0 0.0
      %308 = vmatprep.subr.mxu0 0.0
      %309 = vmatpush1.msra.mxu0 0.0
      %310 = vmatprep.subr.mxu0 0.0
      %311 = vmatpush1.msra.mxu0 0.0
      %312 = vmatprep.subr.mxu0 0.0
      %313 = vmatpush1.msra.mxu0 0.0
      %314 = vmatprep.subr.mxu0 0.0
      %315 = vmatpush1.msra.mxu0 0.0
      %316 = vmatprep.subr.mxu0 0.0
      %317 = vmatpush1.msra.mxu0 0.0
      %318 = vmatprep.subr.mxu0 0.0
      %319 = vmatpush1.msra.mxu0 0.0
      %320 = vmatprep.subr.mxu0 0.0
      %321 = vmatpush1.msra.mxu0 0.0
      %322 = vmatprep.subr.mxu0 0.0
      %323 = vmatpush1.msra.mxu0 0.0
      %324 = vmatprep.subr.mxu0 0.0
      %325 = vmatpush1.msra.mxu0 0.0
      %326 = vmatprep.subr.mxu0 0.0
      %327 = vmatpush1.msra.mxu0 0.0
      %328 = vmatprep.subr.mxu0 0.0
      %329 = vmatpush1.msra.mxu0 0.0
      %330 = vmatprep.subr.mxu0 0.0
      %331 = vmatpush1.msra.mxu0 0.0
      %332 = vmatprep.subr.mxu0 0.0
      %333 = vmatpush1.msra.mxu0 0.0
      %334 = vmatprep.subr.mxu0 0.0
      %335 = vmatpush1.msra.mxu0 0.0
      %336 = vmatprep.subr.mxu0 0.0
      %337 = vmatpush1.msra.mxu0 0.0
      %338 = vmatprep.subr.mxu0 0.0
      %339 = vmatpush1.msra.mxu0 0.0
      %340 = vmatprep.subr.mxu0 0.0
      %341 = vmatpush1.msra.mxu0 0.0
      %342 = vmatprep.subr.mxu0 0.0
      %343 = vmatpush1.msra.mxu0 0.0
      %344 = vmatprep.subr.mxu0 0.0
      %345 = vmatpush1.msra.mxu0 0.0
      %346 = vmatprep.subr.mxu0 0.0
      %347 = vmatpush1.msra.mxu0 0.0
      %348 = vmatprep.subr.mxu0 0.0
      %349 = vmatpush1.msra.mxu0 0.0
      %350 = vmatprep.subr.mxu0 0.0
      %351 = vmatpush1.msra.mxu0 0.0
      %352 = vmatprep.subr.mxu0 0.0
      %353 = vmatpush1.msra.mxu0 0.0
      %354 = vmatprep.subr.mxu0 0.0
      %355 = vmatpush1.msra.mxu0 0.0
      %356 = vmatprep.subr.mxu0 0.0
      %357 = vmatpush1.msra.mxu0 0.0
      %358 = vmatprep.subr.mxu0 0.0
      %359 = vmatpush1.msra.mxu0 0.0
      %360 = vmatprep.mubr.f32.mxu0 0.0
      %361 = vmatmul.mubr.f32.gmra.mrb[0].mxu0 %v291
      %v362 = vpop.f32.mrb[0].mxu0
      %v363 = vadd.f32 %v270, %v362
      %v364 = vpop.f32.mrb[0].mxu0
      %365 = vmatprep.mubr.f32.mxu0 0.0
      %366 = vmatmul.mubr.f32.gmra.mrb[0].mxu0 %v294
      %v367 = vpop.f32.mrb[0].mxu0
      %v368 = vadd.f32 %v275, %v367
      %v369 = vpop.f32.mrb[0].mxu0
      %370 = vdwg.mxu0
      %s371 = scalar_lea.vmem %s1, 64
      %v372 = vld [vmem:[%s371] sm:$0xff]
      %v373 = vld [vmem:[%s371 + $0x8] sm:$0xff]
      %v375 = vsel %vm196, %v372, 0
      %v378 = vsel %vm196, %v373, 0
      %380 = vmatprep.subr.mxu0 0.0
      %381 = vmatpush1.msra.mxu0 %v171
      %382 = vmatprep.subr.mxu0 0.0
      %383 = vmatpush1.msra.mxu0 %v172
      %384 = vmatprep.subr.mxu0 0.0
      %385 = vmatpush1.msra.mxu0 %v173
      %386 = vmatprep.subr.mxu0 0.0
      %387 = vmatpush1.msra.mxu0 %v174
      %388 = vmatprep.subr.mxu0 0.0
      %389 = vmatpush1.msra.mxu0 0.0
      %390 = vmatprep.subr.mxu0 0.0
      %391 = vmatpush1.msra.mxu0 0.0
      %392 = vmatprep.subr.mxu0 0.0
      %393 = vmatpush1.msra.mxu0 0.0
      %394 = vmatprep.subr.mxu0 0.0
      %395 = vmatpush1.msra.mxu0 0.0
      %396 = vmatprep.subr.mxu0 0.0
      %397 = vmatpush1.msra.mxu0 0.0
      %398 = vmatprep.subr.mxu0 0.0
      %399 = vmatpush1.msra.mxu0 0.0
      %400 = vmatprep.subr.mxu0 0.0
      %401 = vmatpush1.msra.mxu0 0.0
      %402 = vmatprep.subr.mxu0 0.0
      %403 = vmatpush1.msra.mxu0 0.0
      %404 = vmatprep.subr.mxu0 0.0
      %405 = vmatpush1.msra.mxu0 0.0
      %406 = vmatprep.subr.mxu0 0.0
      %407 = vmatpush1.msra.mxu0 0.0
      %408 = vmatprep.subr.mxu0 0.0
      %409 = vmatpush1.msra.mxu0 0.0
      %410 = vmatprep.subr.mxu0 0.0
      %411 = vmatpush1.msra.mxu0 0.0
      %412 = vmatprep.subr.mxu0 0.0
      %413 = vmatpush1.msra.mxu0 0.0
      %414 = vmatprep.subr.mxu0 0.0
      %415 = vmatpush1.msra.mxu0 0.0
      %416 = vmatprep.subr.mxu0 0.0
      %417 = vmatpush1.msra.mxu0 0.0
      %418 = vmatprep.subr.mxu0 0.0
      %419 = vmatpush1.msra.mxu0 0.0
      %420 = vmatprep.subr.mxu0 0.0
      %421 = vmatpush1.msra.mxu0 0.0
      %422 = vmatprep.subr.mxu0 0.0
      %423 = vmatpush1.msra.mxu0 0.0
      %424 = vmatprep.subr.mxu0 0.0
      %425 = vmatpush1.msra.mxu0 0.0
      %426 = vmatprep.subr.mxu0 0.0
      %427 = vmatpush1.msra.mxu0 0.0
      %428 = vmatprep.subr.mxu0 0.0
      %429 = vmatpush1.msra.mxu0 0.0
      %430 = vmatprep.subr.mxu0 0.0
      %431 = vmatpush1.msra.mxu0 0.0
      %432 = vmatprep.subr.mxu0 0.0
      %433 = vmatpush1.msra.mxu0 0.0
      %434 = vmatprep.subr.mxu0 0.0
      %435 = vmatpush1.msra.mxu0 0.0
      %436 = vmatprep.subr.mxu0 0.0
      %437 = vmatpush1.msra.mxu0 0.0
      %438 = vmatprep.subr.mxu0 0.0
      %439 = vmatpush1.msra.mxu0 0.0
      %440 = vmatprep.subr.mxu0 0.0
      %441 = vmatpush1.msra.mxu0 0.0
      %442 = vmatprep.subr.mxu0 0.0
      %443 = vmatpush1.msra.mxu0 0.0
      %444 = vmatprep.mubr.f32.mxu0 0.0
      %445 = vmatmul.mubr.f32.gmra.mrb[0].mxu0 %v375
      %v446 = vpop.f32.mrb[0].mxu0
      %v447 = vadd.f32 0.0, %v446
      %v448 = vpop.f32.mrb[0].mxu0
      %449 = vmatprep.mubr.f32.mxu0 0.0
      %450 = vmatmul.mubr.f32.gmra.mrb[0].mxu0 %v378
      %v451 = vpop.f32.mrb[0].mxu0
      %v452 = vadd.f32 0.0, %v451
      %v453 = vpop.f32.mrb[0].mxu0
      %454 = vdwg.mxu0
      %v455 = vadd.f32 %v363, %v447
      %v456 = vadd.f32 %v368, %v452
      %s457 = scalar_lea.vmem %s1, 16
      %v458 = vld [vmem:[%s457] sm:$0xff]
      %v459 = vld [vmem:[%s457 + $0x8] sm:$0xff]
      %s460 = scalar_lea.vmem %s1, 48
      %v461 = vld [vmem:[%s460] sm:$0xff]
      %v462 = vld [vmem:[%s460 + $0x8] sm:$0xff]
      %v464 = vsel %vm196, %v461, 0
      %v467 = vsel %vm196, %v462, 0
      %469 = vmatprep.subr.mxu0 0.0
      %470 = vmatpush1.msra.mxu0 %v185
      %471 = vmatprep.subr.mxu0 0.0
      %472 = vmatpush1.msra.mxu0 %v187
      %473 = vmatprep.subr.mxu0 0.0
      %474 = vmatpush1.msra.mxu0 %v189
      %475 = vmatprep.subr.mxu0 0.0
      %476 = vmatpush1.msra.mxu0 %v191
      %477 = vmatprep.subr.mxu0 0.0
      %478 = vmatpush1.msra.mxu0 0.0
      %479 = vmatprep.subr.mxu0 0.0
      %480 = vmatpush1.msra.mxu0 0.0
      %481 = vmatprep.subr.mxu0 0.0
      %482 = vmatpush1.msra.mxu0 0.0
      %483 = vmatprep.subr.mxu0 0.0
      %484 = vmatpush1.msra.mxu0 0.0
      %485 = vmatprep.subr.mxu0 0.0
      %486 = vmatpush1.msra.mxu0 0.0
      %487 = vmatprep.subr.mxu0 0.0
      %488 = vmatpush1.msra.mxu0 0.0
      %489 = vmatprep.subr.mxu0 0.0
      %490 = vmatpush1.msra.mxu0 0.0
      %491 = vmatprep.subr.mxu0 0.0
      %492 = vmatpush1.msra.mxu0 0.0
      %493 = vmatprep.subr.mxu0 0.0
      %494 = vmatpush1.msra.mxu0 0.0
      %495 = vmatprep.subr.mxu0 0.0
      %496 = vmatpush1.msra.mxu0 0.0
      %497 = vmatprep.subr.mxu0 0.0
      %498 = vmatpush1.msra.mxu0 0.0
      %499 = vmatprep.subr.mxu0 0.0
      %500 = vmatpush1.msra.mxu0 0.0
      %501 = vmatprep.subr.mxu0 0.0
      %502 = vmatpush1.msra.mxu0 0.0
      %503 = vmatprep.subr.mxu0 0.0
      %504 = vmatpush1.msra.mxu0 0.0
      %505 = vmatprep.subr.mxu0 0.0
      %506 = vmatpush1.msra.mxu0 0.0
      %507 = vmatprep.subr.mxu0 0.0
      %508 = vmatpush1.msra.mxu0 0.0
      %509 = vmatprep.subr.mxu0 0.0
      %510 = vmatpush1.msra.mxu0 0.0
      %511 = vmatprep.subr.mxu0 0.0
      %512 = vmatpush1.msra.mxu0 0.0
      %513 = vmatprep.subr.mxu0 0.0
      %514 = vmatpush1.msra.mxu0 0.0
      %515 = vmatprep.subr.mxu0 0.0
      %516 = vmatpush1.msra.mxu0 0.0
      %517 = vmatprep.subr.mxu0 0.0
      %518 = vmatpush1.msra.mxu0 0.0
      %519 = vmatprep.subr.mxu0 0.0
      %520 = vmatpush1.msra.mxu0 0.0
      %521 = vmatprep.subr.mxu0 0.0
      %522 = vmatpush1.msra.mxu0 0.0
      %523 = vmatprep.subr.mxu0 0.0
      %524 = vmatpush1.msra.mxu0 0.0
      %525 = vmatprep.subr.mxu0 0.0
      %526 = vmatpush1.msra.mxu0 0.0
      %527 = vmatprep.subr.mxu0 0.0
      %528 = vmatpush1.msra.mxu0 0.0
      %529 = vmatprep.subr.mxu0 0.0
      %530 = vmatpush1.msra.mxu0 0.0
      %531 = vmatprep.subr.mxu0 0.0
      %532 = vmatpush1.msra.mxu0 0.0
      %533 = vmatprep.mubr.f32.mxu0 0.0
      %534 = vmatmul.mubr.f32.gmra.mrb[0].mxu0 %v464
      %v535 = vpop.f32.mrb[0].mxu0
      %v536 = vadd.f32 0.0, %v535
      %v537 = vpop.f32.mrb[0].mxu0
      %538 = vmatprep.mubr.f32.mxu0 0.0
      %539 = vmatmul.mubr.f32.gmra.mrb[0].mxu0 %v467
      %v540 = vpop.f32.mrb[0].mxu0
      %v541 = vadd.f32 0.0, %v540
      %v542 = vpop.f32.mrb[0].mxu0
      %543 = vdwg.mxu0
      %v545 = vsel %vm196, %v458, 0
      %v548 = vsel %vm196, %v459, 0
      %550 = vmatprep.subr.mxu0 0.0
      %551 = vmatpush1.msra.mxu0 %v279
      %552 = vmatprep.subr.mxu0 0.0
      %553 = vmatpush1.msra.mxu0 %v281
      %554 = vmatprep.subr.mxu0 0.0
      %555 = vmatpush1.msra.mxu0 %v283
      %556 = vmatprep.subr.mxu0 0.0
      %557 = vmatpush1.msra.mxu0 %v285
      %558 = vmatprep.subr.mxu0 0.0
      %559 = vmatpush1.msra.mxu0 0.0
      %560 = vmatprep.subr.mxu0 0.0
      %561 = vmatpush1.msra.mxu0 0.0
      %562 = vmatprep.subr.mxu0 0.0
      %563 = vmatpush1.msra.mxu0 0.0
      %564 = vmatprep.subr.mxu0 0.0
      %565 = vmatpush1.msra.mxu0 0.0
      %566 = vmatprep.subr.mxu0 0.0
      %567 = vmatpush1.msra.mxu0 0.0
      %568 = vmatprep.subr.mxu0 0.0
      %569 = vmatpush1.msra.mxu0 0.0
      %570 = vmatprep.subr.mxu0 0.0
      %571 = vmatpush1.msra.mxu0 0.0
      %572 = vmatprep.subr.mxu0 0.0
      %573 = vmatpush1.msra.mxu0 0.0
      %574 = vmatprep.subr.mxu0 0.0
      %575 = vmatpush1.msra.mxu0 0.0
      %576 = vmatprep.subr.mxu0 0.0
      %577 = vmatpush1.msra.mxu0 0.0
      %578 = vmatprep.subr.mxu0 0.0
      %579 = vmatpush1.msra.mxu0 0.0
      %580 = vmatprep.subr.mxu0 0.0
      %581 = vmatpush1.msra.mxu0 0.0
      %582 = vmatprep.subr.mxu0 0.0
      %583 = vmatpush1.msra.mxu0 0.0
      %584 = vmatprep.subr.mxu0 0.0
      %585 = vmatpush1.msra.mxu0 0.0
      %586 = vmatprep.subr.mxu0 0.0
      %587 = vmatpush1.msra.mxu0 0.0
      %588 = vmatprep.subr.mxu0 0.0
      %589 = vmatpush1.msra.mxu0 0.0
      %590 = vmatprep.subr.mxu0 0.0
      %591 = vmatpush1.msra.mxu0 0.0
      %592 = vmatprep.subr.mxu0 0.0
      %593 = vmatpush1.msra.mxu0 0.0
      %594 = vmatprep.subr.mxu0 0.0
      %595 = vmatpush1.msra.mxu0 0.0
      %596 = vmatprep.subr.mxu0 0.0
      %597 = vmatpush1.msra.mxu0 0.0
      %598 = vmatprep.subr.mxu0 0.0
      %599 = vmatpush1.msra.mxu0 0.0
      %600 = vmatprep.subr.mxu0 0.0
      %601 = vmatpush1.msra.mxu0 0.0
      %602 = vmatprep.subr.mxu0 0.0
      %603 = vmatpush1.msra.mxu0 0.0
      %604 = vmatprep.subr.mxu0 0.0
      %605 = vmatpush1.msra.mxu0 0.0
      %606 = vmatprep.subr.mxu0 0.0
      %607 = vmatpush1.msra.mxu0 0.0
      %608 = vmatprep.subr.mxu0 0.0
      %609 = vmatpush1.msra.mxu0 0.0
      %610 = vmatprep.subr.mxu0 0.0
      %611 = vmatpush1.msra.mxu0 0.0
      %612 = vmatprep.subr.mxu0 0.0
      %613 = vmatpush1.msra.mxu0 0.0
      %614 = vmatprep.mubr.f32.mxu0 0.0
      %615 = vmatmul.mubr.f32.gmra.mrb[0].mxu0 %v545
      %v616 = vpop.f32.mrb[0].mxu0
      %v617 = vadd.f32 %v536, %v616
      %v618 = vpop.f32.mrb[0].mxu0
      %619 = vmatprep.mubr.f32.mxu0 0.0
      %620 = vmatmul.mubr.f32.gmra.mrb[0].mxu0 %v548
      %v621 = vpop.f32.mrb[0].mxu0
      %v622 = vadd.f32 %v541, %v621
      %v623 = vpop.f32.mrb[0].mxu0
      %624 = vdwg.mxu0
      %v625 = vld [vmem:[%s2] sm:$0xff]
      %v626 = vld [vmem:[%s2 + $0x8] sm:$0xff]
      %628 = vset.pattern.permute.xlu0 0
      %629 = vperm.xlu0 %628, %v625
      %v630 = vpop.permute.xlu0 %629
      %633 = vset.pattern.permute.xlu0 0
      %634 = vperm.xlu0 %633, %v626
      %v635 = vpop.permute.xlu0 %634
      %v637 = vadd.f32 %v455, %v630
      %v638 = vadd.f32 %v456, %v635
      %v639 = vmax.f32 %v637, 0.0
      %v640 = vmax.f32 %v638, 0.0
      %vm641 = vcmask 130048
      %642 = vst.msk [vmem:[%s170] sm:$0xff] %vm641, %v639
      %643 = vst.msk [vmem:[%s170 + $0x8] sm:$0xff] %vm641, %v640
      %v644 = vadd.f32 %v617, %v630
      %v645 = vadd.f32 %v622, %v635
      %v646 = vmax.f32 %v644, 0.0
      %v647 = vmax.f32 %v645, 0.0
      %s648 = scalar_lea.vmem %s170, 16
      %649 = vst.msk [vmem:[%s648] sm:$0xff] %vm641, %v646
      %650 = vst.msk [vmem:[%s648 + $0x8] sm:$0xff] %vm641, %v647
      %p651 = scmp.lt.s32.totalorder %s14, 1
      %s652 = scalar_select %p651, %s14, 1
      %s653 = smul.addr %s652, 4
      %s654 = smul.addr %s653, 8
      %s655 = scalar_lea.vmem %s3, %s654
      // Predicated region
      $region33: #{unet_forward.21} parent=31 // pred_check
        %p656 = pneg %p100
      $region34: #{unet_forward.21} parent=31 // pred_check_branch
        %658 = sbr.rel (%p656) target = $region36
      $region35: #{unet_forward.21} parent=31 // pred_region
        _
      $region36: #{unet_forward.21} parent=31 // pred_fallthru
        _
    $region32: #{unet_forward.21} parent=5 // pred_fallthru
      _
    %p659 = scmp.le.s32.totalorder 2, %s9
    // Predicated region
    $region37: #{unet_forward.21} parent=5 // pred_check
      %p660 = pneg %p659
    $region38: #{unet_forward.21} parent=5 // pred_check_branch
      %662 = sbr.rel (%p660) target = $region40
    $region39: #{unet_forward.21} parent=5 // pred_region
      %s663 = ssub.s32 %s9, 2
      // Predicated region
      $region41: #{unet_forward.21} parent=39 // pred_check
        %p664 = pneg %p106
      $region42: #{unet_forward.21} parent=39 // pred_check_branch
        %666 = sbr.rel (%p664) target = $region44
      $region43: #{unet_forward.21} parent=39 // pred_region
        %p667 = scmp.lt.s32.totalorder %s15, 1
        %s668 = scalar_select %p667, %s15, 1
        %s669 = smul.addr %s668, 4
        %s670 = smul.addr %s669, 8
        %s671 = scalar_lea.vmem %s3, %s670
      $region44: #{unet_forward.21} parent=39 // pred_fallthru
        _
    $region40: #{unet_forward.21} parent=5 // pred_fallthru
      _
  $region6: #{unet_forward.21} parent=0 // loop_footer
    %s13 = sadd.s32 1, %s9
  $region7: #{unet_forward.21} parent=0 // loop_footer_branch
    %8 = sbr.rel target = $region3
  $region8: #{unet_forward.21} parent=0 // loop_exit
    _

// kernel: unet_forward.22
$region0: #{unet_forward.22}
  #allocation0 [shape = 'u32[]', space=smem, size = 0x4, offset = 0x4, fixed_abs, tag = 'smem constant byte address 0x4 - core index']
  #allocation1 [shape = 'u32[144,128]{1,0:T(1,128)}', space=vmem, size = 0x12000, scoped, tag = 'internal scratch']
  %s0 = inlined_call_operand.vmem [shape: f32[2,32,34], index: 0, kind: input, shape index: {}]
  %s1 = inlined_call_operand.vmem [shape: f32[5,8,32], index: 1, kind: input, shape index: {}]
  %s2 = inlined_call_operand.vmem [shape: f32[8,1], index: 2, kind: input, shape index: {}]
  %s3 = inlined_call_operand.vmem [shape: f32[2,2,8,32], index: 3, kind: output, shape index: {}]
  %s4 = sld [smem:[#allocation0]]
  $region45: #{unet_forward.22} parent=0
    _
  %s6 = ssub.s32 1, %s4
  %s7 = scalar_select 0, %s6, %s4
  loop: start=0, step=1, limit=4
  $region2: #{unet_forward.22} parent=0 // loop_pre_header
    _
  $region3: #{unet_forward.22} parent=0 // loop_header
    %s9 = sphi 0, %s13
    %p10 = scmp.ge.s32.totalorder %s9, 4
    %s19 = sphi 0, %s21
    %s22 = sphi 0, %s19
    %s23 = sphi 0, %s22
    %s39 = sphi 0, %s23
    %s43 = sphi 0, %s43
    %s45 = sphi 0, %s43
    %s46 = sphi 0, %s45
    %s60 = sphi 0, %s46
    %s64 = sphi 0, %s64
    %s66 = sphi 0, %s64
    %s67 = sphi 0, %s66
    %s81 = sphi 0, %s67
    %s87 = sphi 0, %s89
    %s90 = sphi 0, %s87
    %s91 = sphi 0, %s90
    %s107 = sphi 0, %s91
  $region4: #{unet_forward.22} parent=0 // loop_header_branch
    %12 = sbr.rel (%p10) target = $region8
  $region5: #{unet_forward.22} parent=0 // loop_body
    %s14 = ssub.s32 %s9, 1
    %s15 = ssub.s32 %s9, 2
    %s16 = sadd.s32 %s9, 1
    %s17 = ssub.s32 %s9, %s16
    %p18 = scmp.eq.s32.totalorder %s17, 0
    %s20 = sadd.s32 %s19, 1
    %s21 = scalar_select %p18, %s19, %s20
    %p24 = pneg %p18
    %p25 = scmp.eq.s32.totalorder %s9, 1
    %p26 = por %p24, %p25
    %p27 = scmp.ne.s32.totalorder %s19, %s22
    %p28 = scmp.eq.s32.totalorder %s9, 0
    %p29 = por %p27, %p28
    %p30 = scmp.ne.s32.totalorder %s19, %s22
    %p31 = scmp.eq.s32.totalorder %s14, 1
    %p32 = por %p30, %p31
    %p33 = scmp.ne.s32.totalorder %s22, %s23
    %p34 = scmp.eq.s32.totalorder %s14, 0
    %p35 = por %p33, %p34
    %p36 = scmp.ne.s32.totalorder %s22, %s23
    %p37 = scmp.eq.s32.totalorder %s15, 1
    %p38 = por %p36, %p37
    %p40 = scmp.ne.s32.totalorder %s23, %s39
    %p41 = scmp.eq.s32.totalorder %s15, 0
    %p42 = por %p40, %p41
    %s44 = sadd.s32 %s43, 1
    %p47 = scmp.eq.s32.totalorder %s9, 1
    %p48 = scmp.ne.s32.totalorder %s43, %s45
    %p49 = scmp.eq.s32.totalorder %s9, 0
    %p50 = por %p48, %p49
    %p51 = scmp.ne.s32.totalorder %s43, %s45
    %p52 = scmp.eq.s32.totalorder %s14, 1
    %p53 = por %p51, %p52
    %p54 = scmp.ne.s32.totalorder %s45, %s46
    %p55 = scmp.eq.s32.totalorder %s14, 0
    %p56 = por %p54, %p55
    %p57 = scmp.ne.s32.totalorder %s45, %s46
    %p58 = scmp.eq.s32.totalorder %s15, 1
    %p59 = por %p57, %p58
    %p61 = scmp.ne.s32.totalorder %s46, %s60
    %p62 = scmp.eq.s32.totalorder %s15, 0
    %p63 = por %p61, %p62
    %s65 = sadd.s32 %s64, 1
    %p68 = scmp.eq.s32.totalorder %s9, 1
    %p69 = scmp.ne.s32.totalorder %s64, %s66
    %p70 = scmp.eq.s32.totalorder %s9, 0
    %p71 = por %p69, %p70
    %p72 = scmp.ne.s32.totalorder %s64, %s66
    %p73 = scmp.eq.s32.totalorder %s14, 1
    %p74 = por %p72, %p73
    %p75 = scmp.ne.s32.totalorder %s66, %s67
    %p76 = scmp.eq.s32.totalorder %s14, 0
    %p77 = por %p75, %p76
    %p78 = scmp.ne.s32.totalorder %s66, %s67
    %p79 = scmp.eq.s32.totalorder %s15, 1
    %p80 = por %p78, %p79
    %p82 = scmp.ne.s32.totalorder %s67, %s81
    %p83 = scmp.eq.s32.totalorder %s15, 0
    %p84 = por %p82, %p83
    %s85 = ssub.s32 %s9, %s16
    %p86 = scmp.eq.s32.totalorder %s85, 0
    %s88 = sadd.s32 %s87, 1
    %s89 = scalar_select %p86, %s87, %s88
    %p92 = pneg %p86
    %p93 = scmp.eq.s32.totalorder %s9, 1
    %p94 = por %p92, %p93
    %p95 = scmp.ne.s32.totalorder %s87, %s90
    %p96 = scmp.eq.s32.totalorder %s9, 0
    %p97 = por %p95, %p96
    %p98 = scmp.ne.s32.totalorder %s87, %s90
    %p99 = scmp.eq.s32.totalorder %s14, 1
    %p100 = por %p98, %p99
    %p101 = scmp.ne.s32.totalorder %s90, %s91
    %p102 = scmp.eq.s32.totalorder %s14, 0
    %p103 = por %p101, %p102
    %p104 = scmp.ne.s32.totalorder %s90, %s91
    %p105 = scmp.eq.s32.totalorder %s15, 1
    %p106 = por %p104, %p105
    %p108 = scmp.ne.s32.totalorder %s91, %s107
    %p109 = scmp.eq.s32.totalorder %s15, 0
    %p110 = por %p108, %p109
    %p111 = scmp.le.s32.totalorder 1, %s9
    %p112 = scmp.lt.s32.totalorder %s9, 3
    %p113 = pnand %p111, %p112
    %p114 = pneg %p113
    // Predicated region
    $region9: #{unet_forward.22} parent=5 // pred_check
      _
    $region10: #{unet_forward.22} parent=5 // pred_check_branch
      %116 = sbr.rel (%p113) target = $region12
    $region11: #{unet_forward.22} parent=5 // pred_region
      %s117 = ssub.s32 %s9, 1
      // Predicated region
      $region13: #{unet_forward.22} parent=11 // pred_check
        %p118 = pneg %p56
      $region14: #{unet_forward.22} parent=11 // pred_check_branch
        %120 = sbr.rel (%p118) target = $region16
      $region15: #{unet_forward.22} parent=11 // pred_region
        _
      $region16: #{unet_forward.22} parent=11 // pred_fallthru
        _
      // Predicated region
      $region17: #{unet_forward.22} parent=11 // pred_check
        %p121 = pneg %p77
      $region18: #{unet_forward.22} parent=11 // pred_check_branch
        %123 = sbr.rel (%p121) target = $region20
      $region19: #{unet_forward.22} parent=11 // pred_region
        _
      $region20: #{unet_forward.22} parent=11 // pred_fallthru
        _
    $region12: #{unet_forward.22} parent=5 // pred_fallthru
      _
    %p124 = scmp.lt.s32.totalorder %s9, 2
    // Predicated region
    $region21: #{unet_forward.22} parent=5 // pred_check
      %p125 = pneg %p124
    $region22: #{unet_forward.22} parent=5 // pred_check_branch
      %127 = sbr.rel (%p125) target = $region24
    $region23: #{unet_forward.22} parent=5 // pred_region
      // Predicated region
      $region25: #{unet_forward.22} parent=23 // pred_check
        %p128 = pneg %p29
      $region26: #{unet_forward.22} parent=23 // pred_check_branch
        %130 = sbr.rel (%p128) target = $region28
      $region27: #{unet_forward.22} parent=23 // pred_region
        %p131 = scmp.lt.s32.totalorder %s9, 1
        %s132 = scalar_select %p131, %s9, 1
        %s133 = smul.addr %s132, 4
        %s134 = smul.addr %s133, 8
        %s135 = scalar_lea.vmem %s0, %s134
      $region28: #{unet_forward.22} parent=23 // pred_fallthru
        _
    $region24: #{unet_forward.22} parent=5 // pred_fallthru
      _
    %p136 = scmp.le.s32.totalorder 1, %s9
    %p137 = scmp.lt.s32.totalorder %s9, 3
    %p138 = pnand %p136, %p137
    %p139 = pneg %p138
    // Predicated region
    $region29: #{unet_forward.22} parent=5 // pred_check
      _
    $region30: #{unet_forward.22} parent=5 // pred_check_branch
      %141 = sbr.rel (%p138) target = $region32
    $region31: #{unet_forward.22} parent=5 // pred_region
      %s142 = ssub.s32 %s9, 1
      %p143 = scmp.lt.s32.totalorder %s14, 1
      %s144 = scalar_select %p143, %s14, 1
      %s145 = smul.addr %s144, 4
      %s146 = smul.addr %s145, 8
      %s147 = scalar_lea.vmem %s0, %s146
      %p148 = pneg %p35
      %p149 = pneg %p32
      %p150 = pneg %p56
      %p151 = pneg %p53
      %p152 = pneg %p77
      %p153 = pneg %p74
      %p154 = pneg %p103
      %p155 = pneg %p100
      %p156 = scmp.lt.s32.totalorder %s14, 1
      %s157 = scalar_select %p156, %s14, 1
      %s158 = smul.addr %s157, 2
      %s159 = smul.addr %s158, 8
      %s160 = scalar_lea.vmem %s3, %s159
      %p161 = scmp.lt.s32.totalorder %s14, 1
      %s162 = scalar_select %p161, %s14, 1
      %s163 = smul.addr %s162, 4
      %s164 = smul.addr %s163, 8
      %s165 = scalar_lea.vmem %s0, %s164
      %p166 = scmp.lt.s32.totalorder %s14, 1
      %s167 = scalar_select %p166, %s14, 1
      %s168 = smul.addr %s167, 2
      %s169 = smul.addr %s168, 8
      %s170 = scalar_lea.vmem %s3, %s169
      %v171 = vld [vmem:[%s165] sm:$0xff]
      %v172 = vld [vmem:[%s165 + $0x8] sm:$0xff]
      %v173 = vld [vmem:[%s165 + $0x10] sm:$0xff]
      %v174 = vld [vmem:[%s165 + $0x18] sm:$0xff]
      %v175 = vld [vmem:[%s1] sm:$0xff]
      %s176 = scalar_lea.vmem %s1, 16
      %v177 = vld [vmem:[%s176] sm:$0xff]
      %182 = vrot.lane.b32.xlu0 %v171, 127
      %v183 = vpop.permute.xlu0 %182
      %184 = vrot.lane.b32.xlu0 %v172, 127
      %v185 = vpop.permute.xlu0 %184
      %186 = vrot.lane.b32.xlu0 %v173, 127
      %v187 = vpop.permute.xlu0 %186
      %188 = vrot.lane.b32.xlu0 %v174, 127
      %v189 = vpop.permute.xlu0 %188
      %vm194 = vcmask 261120
      %v196 = vsel %vm194, %v177, 0
      %198 = vmatprep.subr.mxu0 0.0
      %199 = vmatpush1.msra.mxu0 %v183
      %200 = vmatprep.subr.mxu0 0.0
      %201 = vmatpush1.msra.mxu0 %v185
      %202 = vmatprep.subr.mxu0 0.0
      %203 = vmatpush1.msra.mxu0 %v187
      %204 = vmatprep.subr.mxu0 0.0
      %205 = vmatpush1.msra.mxu0 %v189
      %206 = vmatprep.subr.mxu0 0.0
      %207 = vmatpush1.msra.mxu0 0.0
      %208 = vmatprep.subr.mxu0 0.0
      %209 = vmatpush1.msra.mxu0 0.0
      %210 = vmatprep.subr.mxu0 0.0
      %211 = vmatpush1.msra.mxu0 0.0
      %212 = vmatprep.subr.mxu0 0.0
      %213 = vmatpush1.msra.mxu0 0.0
      %214 = vmatprep.subr.mxu0 0.0
      %215 = vmatpush1.msra.mxu0 0.0
      %216 = vmatprep.subr.mxu0 0.0
      %217 = vmatpush1.msra.mxu0 0.0
      %218 = vmatprep.subr.mxu0 0.0
      %219 = vmatpush1.msra.mxu0 0.0
      %220 = vmatprep.subr.mxu0 0.0
      %221 = vmatpush1.msra.mxu0 0.0
      %222 = vmatprep.subr.mxu0 0.0
      %223 = vmatpush1.msra.mxu0 0.0
      %224 = vmatprep.subr.mxu0 0.0
      %225 = vmatpush1.msra.mxu0 0.0
      %226 = vmatprep.subr.mxu0 0.0
      %227 = vmatpush1.msra.mxu0 0.0
      %228 = vmatprep.subr.mxu0 0.0
      %229 = vmatpush1.msra.mxu0 0.0
      %230 = vmatprep.subr.mxu0 0.0
      %231 = vmatpush1.msra.mxu0 0.0
      %232 = vmatprep.subr.mxu0 0.0
      %233 = vmatpush1.msra.mxu0 0.0
      %234 = vmatprep.subr.mxu0 0.0
      %235 = vmatpush1.msra.mxu0 0.0
      %236 = vmatprep.subr.mxu0 0.0
      %237 = vmatpush1.msra.mxu0 0.0
      %238 = vmatprep.subr.mxu0 0.0
      %239 = vmatpush1.msra.mxu0 0.0
      %240 = vmatprep.subr.mxu0 0.0
      %241 = vmatpush1.msra.mxu0 0.0
      %242 = vmatprep.subr.mxu0 0.0
      %243 = vmatpush1.msra.mxu0 0.0
      %244 = vmatprep.subr.mxu0 0.0
      %245 = vmatpush1.msra.mxu0 0.0
      %246 = vmatprep.subr.mxu0 0.0
      %247 = vmatpush1.msra.mxu0 0.0
      %248 = vmatprep.subr.mxu0 0.0
      %249 = vmatpush1.msra.mxu0 0.0
      %250 = vmatprep.subr.mxu0 0.0
      %251 = vmatpush1.msra.mxu0 0.0
      %252 = vmatprep.subr.mxu0 0.0
      %253 = vmatpush1.msra.mxu0 0.0
      %254 = vmatprep.subr.mxu0 0.0
      %255 = vmatpush1.msra.mxu0 0.0
      %256 = vmatprep.subr.mxu0 0.0
      %257 = vmatpush1.msra.mxu0 0.0
      %258 = vmatprep.subr.mxu0 0.0
      %259 = vmatpush1.msra.mxu0 0.0
      %260 = vmatprep.subr.mxu0 0.0
      %261 = vmatpush1.msra.mxu0 0.0
      %262 = vmatprep.mubr.f32.mxu0 0.0
      %263 = vmatmul.mubr.f32.gmra.mrb[0].mxu0 %v196
      %v264 = vpop.f32.mrb[0].mxu0
      %v265 = vadd.f32 0.0, %v264
      %v266 = vpop.f32.mrb[0].mxu0
      %267 = vdwg.mxu0
      %268 = vrot.lane.b32.xlu0 %v171, 126
      %v269 = vpop.permute.xlu0 %268
      %270 = vrot.lane.b32.xlu0 %v172, 126
      %v271 = vpop.permute.xlu0 %270
      %272 = vrot.lane.b32.xlu0 %v173, 126
      %v273 = vpop.permute.xlu0 %272
      %274 = vrot.lane.b32.xlu0 %v174, 126
      %v275 = vpop.permute.xlu0 %274
      %v281 = vsel %vm194, %v175, 0
      %283 = vmatprep.subr.mxu0 0.0
      %284 = vmatpush1.msra.mxu0 %v269
      %285 = vmatprep.subr.mxu0 0.0
      %286 = vmatpush1.msra.mxu0 %v271
      %287 = vmatprep.subr.mxu0 0.0
      %288 = vmatpush1.msra.mxu0 %v273
      %289 = vmatprep.subr.mxu0 0.0
      %290 = vmatpush1.msra.mxu0 %v275
      %291 = vmatprep.subr.mxu0 0.0
      %292 = vmatpush1.msra.mxu0 0.0
      %293 = vmatprep.subr.mxu0 0.0
      %294 = vmatpush1.msra.mxu0 0.0
      %295 = vmatprep.subr.mxu0 0.0
      %296 = vmatpush1.msra.mxu0 0.0
      %297 = vmatprep.subr.mxu0 0.0
      %298 = vmatpush1.msra.mxu0 0.0
      %299 = vmatprep.subr.mxu0 0.0
      %300 = vmatpush1.msra.mxu0 0.0
      %301 = vmatprep.subr.mxu0 0.0
      %302 = vmatpush1.msra.mxu0 0.0
      %303 = vmatprep.subr.mxu0 0.0
      %304 = vmatpush1.msra.mxu0 0.0
      %305 = vmatprep.subr.mxu0 0.0
      %306 = vmatpush1.msra.mxu0 0.0
      %307 = vmatprep.subr.mxu0 0.0
      %308 = vmatpush1.msra.mxu0 0.0
      %309 = vmatprep.subr.mxu0 0.0
      %310 = vmatpush1.msra.mxu0 0.0
      %311 = vmatprep.subr.mxu0 0.0
      %312 = vmatpush1.msra.mxu0 0.0
      %313 = vmatprep.subr.mxu0 0.0
      %314 = vmatpush1.msra.mxu0 0.0
      %315 = vmatprep.subr.mxu0 0.0
      %316 = vmatpush1.msra.mxu0 0.0
      %317 = vmatprep.subr.mxu0 0.0
      %318 = vmatpush1.msra.mxu0 0.0
      %319 = vmatprep.subr.mxu0 0.0
      %320 = vmatpush1.msra.mxu0 0.0
      %321 = vmatprep.subr.mxu0 0.0
      %322 = vmatpush1.msra.mxu0 0.0
      %323 = vmatprep.subr.mxu0 0.0
      %324 = vmatpush1.msra.mxu0 0.0
      %325 = vmatprep.subr.mxu0 0.0
      %326 = vmatpush1.msra.mxu0 0.0
      %327 = vmatprep.subr.mxu0 0.0
      %328 = vmatpush1.msra.mxu0 0.0
      %329 = vmatprep.subr.mxu0 0.0
      %330 = vmatpush1.msra.mxu0 0.0
      %331 = vmatprep.subr.mxu0 0.0
      %332 = vmatpush1.msra.mxu0 0.0
      %333 = vmatprep.subr.mxu0 0.0
      %334 = vmatpush1.msra.mxu0 0.0
      %335 = vmatprep.subr.mxu0 0.0
      %336 = vmatpush1.msra.mxu0 0.0
      %337 = vmatprep.subr.mxu0 0.0
      %338 = vmatpush1.msra.mxu0 0.0
      %339 = vmatprep.subr.mxu0 0.0
      %340 = vmatpush1.msra.mxu0 0.0
      %341 = vmatprep.subr.mxu0 0.0
      %342 = vmatpush1.msra.mxu0 0.0
      %343 = vmatprep.subr.mxu0 0.0
      %344 = vmatpush1.msra.mxu0 0.0
      %345 = vmatprep.subr.mxu0 0.0
      %346 = vmatpush1.msra.mxu0 0.0
      %347 = vmatprep.mubr.f32.mxu0 0.0
      %348 = vmatmul.mubr.f32.gmra.mrb[0].mxu0 %v281
      %v349 = vpop.f32.mrb[0].mxu0
      %v350 = vadd.f32 %v265, %v349
      %v351 = vpop.f32.mrb[0].mxu0
      %352 = vdwg.mxu0
      %s353 = scalar_lea.vmem %s1, 32
      %v354 = vld [vmem:[%s353] sm:$0xff]
      %v356 = vsel %vm194, %v354, 0
      %358 = vmatprep.subr.mxu0 0.0
      %359 = vmatpush1.msra.mxu0 %v171
      %360 = vmatprep.subr.mxu0 0.0
      %361 = vmatpush1.msra.mxu0 %v172
      %362 = vmatprep.subr.mxu0 0.0
      %363 = vmatpush1.msra.mxu0 %v173
      %364 = vmatprep.subr.mxu0 0.0
      %365 = vmatpush1.msra.mxu0 %v174
      %366 = vmatprep.subr.mxu0 0.0
      %367 = vmatpush1.msra.mxu0 0.0
      %368 = vmatprep.subr.mxu0 0.0
      %369 = vmatpush1.msra.mxu0 0.0
      %370 = vmatprep.subr.mxu0 0.0
      %371 = vmatpush1.msra.mxu0 0.0
      %372 = vmatprep.subr.mxu0 0.0
      %373 = vmatpush1.msra.mxu0 0.0
      %374 = vmatprep.subr.mxu0 0.0
      %375 = vmatpush1.msra.mxu0 0.0
      %376 = vmatprep.subr.mxu0 0.0
      %377 = vmatpush1.msra.mxu0 0.0
      %378 = vmatprep.subr.mxu0 0.0
      %379 = vmatpush1.msra.mxu0 0.0
      %380 = vmatprep.subr.mxu0 0.0
      %381 = vmatpush1.msra.mxu0 0.0
      %382 = vmatprep.subr.mxu0 0.0
      %383 = vmatpush1.msra.mxu0 0.0
      %384 = vmatprep.subr.mxu0 0.0
      %385 = vmatpush1.msra.mxu0 0.0
      %386 = vmatprep.subr.mxu0 0.0
      %387 = vmatpush1.msra.mxu0 0.0
      %388 = vmatprep.subr.mxu0 0.0
      %389 = vmatpush1.msra.mxu0 0.0
      %390 = vmatprep.subr.mxu0 0.0
      %391 = vmatpush1.msra.mxu0 0.0
      %392 = vmatprep.subr.mxu0 0.0
      %393 = vmatpush1.msra.mxu0 0.0
      %394 = vmatprep.subr.mxu0 0.0
      %395 = vmatpush1.msra.mxu0 0.0
      %396 = vmatprep.subr.mxu0 0.0
      %397 = vmatpush1.msra.mxu0 0.0
      %398 = vmatprep.subr.mxu0 0.0
      %399 = vmatpush1.msra.mxu0 0.0
      %400 = vmatprep.subr.mxu0 0.0
      %401 = vmatpush1.msra.mxu0 0.0
      %402 = vmatprep.subr.mxu0 0.0
      %403 = vmatpush1.msra.mxu0 0.0
      %404 = vmatprep.subr.mxu0 0.0
      %405 = vmatpush1.msra.mxu0 0.0
      %406 = vmatprep.subr.mxu0 0.0
      %407 = vmatpush1.msra.mxu0 0.0
      %408 = vmatprep.subr.mxu0 0.0
      %409 = vmatpush1.msra.mxu0 0.0
      %410 = vmatprep.subr.mxu0 0.0
      %411 = vmatpush1.msra.mxu0 0.0
      %412 = vmatprep.subr.mxu0 0.0
      %413 = vmatpush1.msra.mxu0 0.0
      %414 = vmatprep.subr.mxu0 0.0
      %415 = vmatpush1.msra.mxu0 0.0
      %416 = vmatprep.subr.mxu0 0.0
      %417 = vmatpush1.msra.mxu0 0.0
      %418 = vmatprep.subr.mxu0 0.0
      %419 = vmatpush1.msra.mxu0 0.0
      %420 = vmatprep.subr.mxu0 0.0
      %421 = vmatpush1.msra.mxu0 0.0
      %422 = vmatprep.mubr.f32.mxu0 0.0
      %423 = vmatmul.mubr.f32.gmra.mrb[0].mxu0 %v356
      %v424 = vpop.f32.mrb[0].mxu0
      %v425 = vadd.f32 0.0, %v424
      %v426 = vpop.f32.mrb[0].mxu0
      %427 = vdwg.mxu0
      %v428 = vadd.f32 %v350, %v425
      %s429 = scalar_lea.vmem %s1, 8
      %v430 = vld [vmem:[%s429] sm:$0xff]
      %s431 = scalar_lea.vmem %s1, 24
      %v432 = vld [vmem:[%s431] sm:$0xff]
      %v434 = vsel %vm194, %v432, 0
      %436 = vmatprep.subr.mxu0 0.0
      %437 = vmatpush1.msra.mxu0 %v183
      %438 = vmatprep.subr.mxu0 0.0
      %439 = vmatpush1.msra.mxu0 %v185
      %440 = vmatprep.subr.mxu0 0.0
      %441 = vmatpush1.msra.mxu0 %v187
      %442 = vmatprep.subr.mxu0 0.0
      %443 = vmatpush1.msra.mxu0 %v189
      %444 = vmatprep.subr.mxu0 0.0
      %445 = vmatpush1.msra.mxu0 0.0
      %446 = vmatprep.subr.mxu0 0.0
      %447 = vmatpush1.msra.mxu0 0.0
      %448 = vmatprep.subr.mxu0 0.0
      %449 = vmatpush1.msra.mxu0 0.0
      %450 = vmatprep.subr.mxu0 0.0
      %451 = vmatpush1.msra.mxu0 0.0
      %452 = vmatprep.subr.mxu0 0.0
      %453 = vmatpush1.msra.mxu0 0.0
      %454 = vmatprep.subr.mxu0 0.0
      %455 = vmatpush1.msra.mxu0 0.0
      %456 = vmatprep.subr.mxu0 0.0
      %457 = vmatpush1.msra.mxu0 0.0
      %458 = vmatprep.subr.mxu0 0.0
      %459 = vmatpush1.msra.mxu0 0.0
      %460 = vmatprep.subr.mxu0 0.0
      %461 = vmatpush1.msra.mxu0 0.0
      %462 = vmatprep.subr.mxu0 0.0
      %463 = vmatpush1.msra.mxu0 0.0
      %464 = vmatprep.subr.mxu0 0.0
      %465 = vmatpush1.msra.mxu0 0.0
      %466 = vmatprep.subr.mxu0 0.0
      %467 = vmatpush1.msra.mxu0 0.0
      %468 = vmatprep.subr.mxu0 0.0
      %469 = vmatpush1.msra.mxu0 0.0
      %470 = vmatprep.subr.mxu0 0.0
      %471 = vmatpush1.msra.mxu0 0.0
      %472 = vmatprep.subr.mxu0 0.0
      %473 = vmatpush1.msra.mxu0 0.0
      %474 = vmatprep.subr.mxu0 0.0
      %475 = vmatpush1.msra.mxu0 0.0
      %476 = vmatprep.subr.mxu0 0.0
      %477 = vmatpush1.msra.mxu0 0.0
      %478 = vmatprep.subr.mxu0 0.0
      %479 = vmatpush1.msra.mxu0 0.0
      %480 = vmatprep.subr.mxu0 0.0
      %481 = vmatpush1.msra.mxu0 0.0
      %482 = vmatprep.subr.mxu0 0.0
      %483 = vmatpush1.msra.mxu0 0.0
      %484 = vmatprep.subr.mxu0 0.0
      %485 = vmatpush1.msra.mxu0 0.0
      %486 = vmatprep.subr.mxu0 0.0
      %487 = vmatpush1.msra.mxu0 0.0
      %488 = vmatprep.subr.mxu0 0.0
      %489 = vmatpush1.msra.mxu0 0.0
      %490 = vmatprep.subr.mxu0 0.0
      %491 = vmatpush1.msra.mxu0 0.0
      %492 = vmatprep.subr.mxu0 0.0
      %493 = vmatpush1.msra.mxu0 0.0
      %494 = vmatprep.subr.mxu0 0.0
      %495 = vmatpush1.msra.mxu0 0.0
      %496 = vmatprep.subr.mxu0 0.0
      %497 = vmatpush1.msra.mxu0 0.0
      %498 = vmatprep.subr.mxu0 0.0
      %499 = vmatpush1.msra.mxu0 0.0
      %500 = vmatprep.mubr.f32.mxu0 0.0
      %501 = vmatmul.mubr.f32.gmra.mrb[0].mxu0 %v434
      %v502 = vpop.f32.mrb[0].mxu0
      %v503 = vadd.f32 0.0, %v502
      %v504 = vpop.f32.mrb[0].mxu0
      %505 = vdwg.mxu0
      %v507 = vsel %vm194, %v430, 0
      %509 = vmatprep.subr.mxu0 0.0
      %510 = vmatpush1.msra.mxu0 %v269
      %511 = vmatprep.subr.mxu0 0.0
      %512 = vmatpush1.msra.mxu0 %v271
      %513 = vmatprep.subr.mxu0 0.0
      %514 = vmatpush1.msra.mxu0 %v273
      %515 = vmatprep.subr.mxu0 0.0
      %516 = vmatpush1.msra.mxu0 %v275
      %517 = vmatprep.subr.mxu0 0.0
      %518 = vmatpush1.msra.mxu0 0.0
      %519 = vmatprep.subr.mxu0 0.0
      %520 = vmatpush1.msra.mxu0 0.0
      %521 = vmatprep.subr.mxu0 0.0
      %522 = vmatpush1.msra.mxu0 0.0
      %523 = vmatprep.subr.mxu0 0.0
      %524 = vmatpush1.msra.mxu0 0.0
      %525 = vmatprep.subr.mxu0 0.0
      %526 = vmatpush1.msra.mxu0 0.0
      %527 = vmatprep.subr.mxu0 0.0
      %528 = vmatpush1.msra.mxu0 0.0
      %529 = vmatprep.subr.mxu0 0.0
      %530 = vmatpush1.msra.mxu0 0.0
      %531 = vmatprep.subr.mxu0 0.0
      %532 = vmatpush1.msra.mxu0 0.0
      %533 = vmatprep.subr.mxu0 0.0
      %534 = vmatpush1.msra.mxu0 0.0
      %535 = vmatprep.subr.mxu0 0.0
      %536 = vmatpush1.msra.mxu0 0.0
      %537 = vmatprep.subr.mxu0 0.0
      %538 = vmatpush1.msra.mxu0 0.0
      %539 = vmatprep.subr.mxu0 0.0
      %540 = vmatpush1.msra.mxu0 0.0
      %541 = vmatprep.subr.mxu0 0.0
      %542 = vmatpush1.msra.mxu0 0.0
      %543 = vmatprep.subr.mxu0 0.0
      %544 = vmatpush1.msra.mxu0 0.0
      %545 = vmatprep.subr.mxu0 0.0
      %546 = vmatpush1.msra.mxu0 0.0
      %547 = vmatprep.subr.mxu0 0.0
      %548 = vmatpush1.msra.mxu0 0.0
      %549 = vmatprep.subr.mxu0 0.0
      %550 = vmatpush1.msra.mxu0 0.0
      %551 = vmatprep.subr.mxu0 0.0
      %552 = vmatpush1.msra.mxu0 0.0
      %553 = vmatprep.subr.mxu0 0.0
      %554 = vmatpush1.msra.mxu0 0.0
      %555 = vmatprep.subr.mxu0 0.0
      %556 = vmatpush1.msra.mxu0 0.0
      %557 = vmatprep.subr.mxu0 0.0
      %558 = vmatpush1.msra.mxu0 0.0
      %559 = vmatprep.subr.mxu0 0.0
      %560 = vmatpush1.msra.mxu0 0.0
      %561 = vmatprep.subr.mxu0 0.0
      %562 = vmatpush1.msra.mxu0 0.0
      %563 = vmatprep.subr.mxu0 0.0
      %564 = vmatpush1.msra.mxu0 0.0
      %565 = vmatprep.subr.mxu0 0.0
      %566 = vmatpush1.msra.mxu0 0.0
      %567 = vmatprep.subr.mxu0 0.0
      %568 = vmatpush1.msra.mxu0 0.0
      %569 = vmatprep.subr.mxu0 0.0
      %570 = vmatpush1.msra.mxu0 0.0
      %571 = vmatprep.subr.mxu0 0.0
      %572 = vmatpush1.msra.mxu0 0.0
      %573 = vmatprep.mubr.f32.mxu0 0.0
      %574 = vmatmul.mubr.f32.gmra.mrb[0].mxu0 %v507
      %v575 = vpop.f32.mrb[0].mxu0
      %v576 = vadd.f32 %v503, %v575
      %v577 = vpop.f32.mrb[0].mxu0
      %578 = vdwg.mxu0
      %v579 = vld [vmem:[%s2] sm:$0xff]
      %581 = vset.pattern.permute.xlu0 0
      %582 = vperm.xlu0 %581, %v579
      %v583 = vpop.permute.xlu0 %582
      %v585 = vadd.f32 %v428, %v583
      %v586 = vmax.f32 %v585, 0.0
      %587 = vst.msk [vmem:[%s170] sm:$0xff] %vm194, %v586
      %v588 = vadd.f32 %v576, %v583
      %v589 = vmax.f32 %v588, 0.0
      %s590 = scalar_lea.vmem %s170, 8
      %591 = vst.msk [vmem:[%s590] sm:$0xff] %vm194, %v589
      %p592 = scmp.lt.s32.totalorder %s14, 1
      %s593 = scalar_select %p592, %s14, 1
      %s594 = smul.addr %s593, 2
      %s595 = smul.addr %s594, 8
      %s596 = scalar_lea.vmem %s3, %s595
      // Predicated region
      $region33: #{unet_forward.22} parent=31 // pred_check
        %p597 = pneg %p100
      $region34: #{unet_forward.22} parent=31 // pred_check_branch
        %599 = sbr.rel (%p597) target = $region36
      $region35: #{unet_forward.22} parent=31 // pred_region
        _
      $region36: #{unet_forward.22} parent=31 // pred_fallthru
        _
    $region32: #{unet_forward.22} parent=5 // pred_fallthru
      _
    %p600 = scmp.le.s32.totalorder 2, %s9
    // Predicated region
    $region37: #{unet_forward.22} parent=5 // pred_check
      %p601 = pneg %p600
    $region38: #{unet_forward.22} parent=5 // pred_check_branch
      %603 = sbr.rel (%p601) target = $region40
    $region39: #{unet_forward.22} parent=5 // pred_region
      %s604 = ssub.s32 %s9, 2
      // Predicated region
      $region41: #{unet_forward.22} parent=39 // pred_check
        %p605 = pneg %p106
      $region42: #{unet_forward.22} parent=39 // pred_check_branch
        %607 = sbr.rel (%p605) target = $region44
      $region43: #{unet_forward.22} parent=39 // pred_region
        %p608 = scmp.lt.s32.totalorder %s15, 1
        %s609 = scalar_select %p608, %s15, 1
        %s610 = smul.addr %s609, 2
        %s611 = smul.addr %s610, 8
        %s612 = scalar_lea.vmem %s3, %s611
      $region44: #{unet_forward.22} parent=39 // pred_fallthru
        _
    $region40: #{unet_forward.22} parent=5 // pred_fallthru
      _
  $region6: #{unet_forward.22} parent=0 // loop_footer
    %s13 = sadd.s32 1, %s9
  $region7: #{unet_forward.22} parent=0 // loop_footer_branch
    %8 = sbr.rel target = $region3
  $region8: #{unet_forward.22} parent=0 // loop_exit
    _

// kernel: unet_forward.23
$region0: #{unet_forward.23}
  #allocation0 [shape = 'u32[]', space=smem, size = 0x4, offset = 0x4, fixed_abs, tag = 'smem constant byte address 0x4 - core index']
  #allocation1 [shape = 'u32[144,128]{1,0:T(1,128)}', space=vmem, size = 0x12000, scoped, tag = 'internal scratch']
  %s0 = inlined_call_operand.vmem [shape: f32[2,16,66], index: 0, kind: input, shape index: {}]
  %s1 = inlined_call_operand.vmem [shape: f32[5,8,16], index: 1, kind: input, shape index: {}]
  %s2 = inlined_call_operand.vmem [shape: f32[8,1], index: 2, kind: input, shape index: {}]
  %s3 = inlined_call_operand.vmem [shape: f32[2,2,8,64], index: 3, kind: output, shape index: {}]
  %s4 = sld [smem:[#allocation0]]
  $region45: #{unet_forward.23} parent=0
    _
  %s6 = ssub.s32 1, %s4
  %s7 = scalar_select 0, %s6, %s4
  loop: start=0, step=1, limit=4
  $region2: #{unet_forward.23} parent=0 // loop_pre_header
    _
  $region3: #{unet_forward.23} parent=0 // loop_header
    %s9 = sphi 0, %s13
    %p10 = scmp.ge.s32.totalorder %s9, 4
    %s19 = sphi 0, %s21
    %s22 = sphi 0, %s19
    %s23 = sphi 0, %s22
    %s39 = sphi 0, %s23
    %s43 = sphi 0, %s43
    %s45 = sphi 0, %s43
    %s46 = sphi 0, %s45
    %s60 = sphi 0, %s46
    %s64 = sphi 0, %s64
    %s66 = sphi 0, %s64
    %s67 = sphi 0, %s66
    %s81 = sphi 0, %s67
    %s87 = sphi 0, %s89
    %s90 = sphi 0, %s87
    %s91 = sphi 0, %s90
    %s107 = sphi 0, %s91
  $region4: #{unet_forward.23} parent=0 // loop_header_branch
    %12 = sbr.rel (%p10) target = $region8
  $region5: #{unet_forward.23} parent=0 // loop_body
    %s14 = ssub.s32 %s9, 1
    %s15 = ssub.s32 %s9, 2
    %s16 = sadd.s32 %s9, 1
    %s17 = ssub.s32 %s9, %s16
    %p18 = scmp.eq.s32.totalorder %s17, 0
    %s20 = sadd.s32 %s19, 1
    %s21 = scalar_select %p18, %s19, %s20
    %p24 = pneg %p18
    %p25 = scmp.eq.s32.totalorder %s9, 1
    %p26 = por %p24, %p25
    %p27 = scmp.ne.s32.totalorder %s19, %s22
    %p28 = scmp.eq.s32.totalorder %s9, 0
    %p29 = por %p27, %p28
    %p30 = scmp.ne.s32.totalorder %s19, %s22
    %p31 = scmp.eq.s32.totalorder %s14, 1
    %p32 = por %p30, %p31
    %p33 = scmp.ne.s32.totalorder %s22, %s23
    %p34 = scmp.eq.s32.totalorder %s14, 0
    %p35 = por %p33, %p34
    %p36 = scmp.ne.s32.totalorder %s22, %s23
    %p37 = scmp.eq.s32.totalorder %s15, 1
    %p38 = por %p36, %p37
    %p40 = scmp.ne.s32.totalorder %s23, %s39
    %p41 = scmp.eq.s32.totalorder %s15, 0
    %p42 = por %p40, %p41
    %s44 = sadd.s32 %s43, 1
    %p47 = scmp.eq.s32.totalorder %s9, 1
    %p48 = scmp.ne.s32.totalorder %s43, %s45
    %p49 = scmp.eq.s32.totalorder %s9, 0
    %p50 = por %p48, %p49
    %p51 = scmp.ne.s32.totalorder %s43, %s45
    %p52 = scmp.eq.s32.totalorder %s14, 1
    %p53 = por %p51, %p52
    %p54 = scmp.ne.s32.totalorder %s45, %s46
    %p55 = scmp.eq.s32.totalorder %s14, 0
    %p56 = por %p54, %p55
    %p57 = scmp.ne.s32.totalorder %s45, %s46
    %p58 = scmp.eq.s32.totalorder %s15, 1
    %p59 = por %p57, %p58
    %p61 = scmp.ne.s32.totalorder %s46, %s60
    %p62 = scmp.eq.s32.totalorder %s15, 0
    %p63 = por %p61, %p62
    %s65 = sadd.s32 %s64, 1
    %p68 = scmp.eq.s32.totalorder %s9, 1
    %p69 = scmp.ne.s32.totalorder %s64, %s66
    %p70 = scmp.eq.s32.totalorder %s9, 0
    %p71 = por %p69, %p70
    %p72 = scmp.ne.s32.totalorder %s64, %s66
    %p73 = scmp.eq.s32.totalorder %s14, 1
    %p74 = por %p72, %p73
    %p75 = scmp.ne.s32.totalorder %s66, %s67
    %p76 = scmp.eq.s32.totalorder %s14, 0
    %p77 = por %p75, %p76
    %p78 = scmp.ne.s32.totalorder %s66, %s67
    %p79 = scmp.eq.s32.totalorder %s15, 1
    %p80 = por %p78, %p79
    %p82 = scmp.ne.s32.totalorder %s67, %s81
    %p83 = scmp.eq.s32.totalorder %s15, 0
    %p84 = por %p82, %p83
    %s85 = ssub.s32 %s9, %s16
    %p86 = scmp.eq.s32.totalorder %s85, 0
    %s88 = sadd.s32 %s87, 1
    %s89 = scalar_select %p86, %s87, %s88
    %p92 = pneg %p86
    %p93 = scmp.eq.s32.totalorder %s9, 1
    %p94 = por %p92, %p93
    %p95 = scmp.ne.s32.totalorder %s87, %s90
    %p96 = scmp.eq.s32.totalorder %s9, 0
    %p97 = por %p95, %p96
    %p98 = scmp.ne.s32.totalorder %s87, %s90
    %p99 = scmp.eq.s32.totalorder %s14, 1
    %p100 = por %p98, %p99
    %p101 = scmp.ne.s32.totalorder %s90, %s91
    %p102 = scmp.eq.s32.totalorder %s14, 0
    %p103 = por %p101, %p102
    %p104 = scmp.ne.s32.totalorder %s90, %s91
    %p105 = scmp.eq.s32.totalorder %s15, 1
    %p106 = por %p104, %p105
    %p108 = scmp.ne.s32.totalorder %s91, %s107
    %p109 = scmp.eq.s32.totalorder %s15, 0
    %p110 = por %p108, %p109
    %p111 = scmp.le.s32.totalorder 1, %s9
    %p112 = scmp.lt.s32.totalorder %s9, 3
    %p113 = pnand %p111, %p112
    %p114 = pneg %p113
    // Predicated region
    $region9: #{unet_forward.23} parent=5 // pred_check
      _
    $region10: #{unet_forward.23} parent=5 // pred_check_branch
      %116 = sbr.rel (%p113) target = $region12
    $region11: #{unet_forward.23} parent=5 // pred_region
      %s117 = ssub.s32 %s9, 1
      // Predicated region
      $region13: #{unet_forward.23} parent=11 // pred_check
        %p118 = pneg %p56
      $region14: #{unet_forward.23} parent=11 // pred_check_branch
        %120 = sbr.rel (%p118) target = $region16
      $region15: #{unet_forward.23} parent=11 // pred_region
        _
      $region16: #{unet_forward.23} parent=11 // pred_fallthru
        _
      // Predicated region
      $region17: #{unet_forward.23} parent=11 // pred_check
        %p121 = pneg %p77
      $region18: #{unet_forward.23} parent=11 // pred_check_branch
        %123 = sbr.rel (%p121) target = $region20
      $region19: #{unet_forward.23} parent=11 // pred_region
        _
      $region20: #{unet_forward.23} parent=11 // pred_fallthru
        _
    $region12: #{unet_forward.23} parent=5 // pred_fallthru
      _
    %p124 = scmp.lt.s32.totalorder %s9, 2
    // Predicated region
    $region21: #{unet_forward.23} parent=5 // pred_check
      %p125 = pneg %p124
    $region22: #{unet_forward.23} parent=5 // pred_check_branch
      %127 = sbr.rel (%p125) target = $region24
    $region23: #{unet_forward.23} parent=5 // pred_region
      // Predicated region
      $region25: #{unet_forward.23} parent=23 // pred_check
        %p128 = pneg %p29
      $region26: #{unet_forward.23} parent=23 // pred_check_branch
        %130 = sbr.rel (%p128) target = $region28
      $region27: #{unet_forward.23} parent=23 // pred_region
        %p131 = scmp.lt.s32.totalorder %s9, 1
        %s132 = scalar_select %p131, %s9, 1
        %s133 = smul.addr %s132, 2
        %s134 = smul.addr %s133, 8
        %s135 = scalar_lea.vmem %s0, %s134
      $region28: #{unet_forward.23} parent=23 // pred_fallthru
        _
    $region24: #{unet_forward.23} parent=5 // pred_fallthru
      _
    %p136 = scmp.le.s32.totalorder 1, %s9
    %p137 = scmp.lt.s32.totalorder %s9, 3
    %p138 = pnand %p136, %p137
    %p139 = pneg %p138
    // Predicated region
    $region29: #{unet_forward.23} parent=5 // pred_check
      _
    $region30: #{unet_forward.23} parent=5 // pred_check_branch
      %141 = sbr.rel (%p138) target = $region32
    $region31: #{unet_forward.23} parent=5 // pred_region
      %s142 = ssub.s32 %s9, 1
      %p143 = scmp.lt.s32.totalorder %s14, 1
      %s144 = scalar_select %p143, %s14, 1
      %s145 = smul.addr %s144, 2
      %s146 = smul.addr %s145, 8
      %s147 = scalar_lea.vmem %s0, %s146
      %p148 = pneg %p35
      %p149 = pneg %p32
      %p150 = pneg %p56
      %p151 = pneg %p53
      %p152 = pneg %p77
      %p153 = pneg %p74
      %p154 = pneg %p103
      %p155 = pneg %p100
      %p156 = scmp.lt.s32.totalorder %s14, 1
      %s157 = scalar_select %p156, %s14, 1
      %s158 = smul.addr %s157, 2
      %s159 = smul.addr %s158, 8
      %s160 = scalar_lea.vmem %s3, %s159
      %p161 = scmp.lt.s32.totalorder %s14, 1
      %s162 = scalar_select %p161, %s14, 1
      %s163 = smul.addr %s162, 2
      %s164 = smul.addr %s163, 8
      %s165 = scalar_lea.vmem %s0, %s164
      %p166 = scmp.lt.s32.totalorder %s14, 1
      %s167 = scalar_select %p166, %s14, 1
      %s168 = smul.addr %s167, 2
      %s169 = smul.addr %s168, 8
      %s170 = scalar_lea.vmem %s3, %s169
      %v171 = vld [vmem:[%s165] sm:$0xff]
      %v172 = vld [vmem:[%s165 + $0x8] sm:$0xff]
      %v173 = vld [vmem:[%s1] sm:$0xff]
      %s174 = scalar_lea.vmem %s1, 16
      %v175 = vld [vmem:[%s174] sm:$0xff]
      %178 = vrot.lane.b32.xlu0 %v171, 127
      %v179 = vpop.permute.xlu0 %178
      %180 = vrot.lane.b32.xlu0 %v172, 127
      %v181 = vpop.permute.xlu0 %180
      %vm184 = vcmask 130048
      %v186 = vsel %vm184, %v175, 0
      %188 = vmatprep.subr.mxu0 0.0
      %189 = vmatpush1.msra.mxu0 %v179
      %190 = vmatprep.subr.mxu0 0.0
      %191 = vmatpush1.msra.mxu0 %v181
      %192 = vmatprep.subr.mxu0 0.0
      %193 = vmatpush1.msra.mxu0 0.0
      %194 = vmatprep.subr.mxu0 0.0
      %195 = vmatpush1.msra.mxu0 0.0
      %196 = vmatprep.subr.mxu0 0.0
      %197 = vmatpush1.msra.mxu0 0.0
      %198 = vmatprep.subr.mxu0 0.0
      %199 = vmatpush1.msra.mxu0 0.0
      %200 = vmatprep.subr.mxu0 0.0
      %201 = vmatpush1.msra.mxu0 0.0
      %202 = vmatprep.subr.mxu0 0.0
      %203 = vmatpush1.msra.mxu0 0.0
      %204 = vmatprep.subr.mxu0 0.0
      %205 = vmatpush1.msra.mxu0 0.0
      %206 = vmatprep.subr.mxu0 0.0
      %207 = vmatpush1.msra.mxu0 0.0
      %208 = vmatprep.subr.mxu0 0.0
      %209 = vmatpush1.msra.mxu0 0.0
      %210 = vmatprep.subr.mxu0 0.0
      %211 = vmatpush1.msra.mxu0 0.0
      %212 = vmatprep.subr.mxu0 0.0
      %213 = vmatpush1.msra.mxu0 0.0
      %214 = vmatprep.subr.mxu0 0.0
      %215 = vmatpush1.msra.mxu0 0.0
      %216 = vmatprep.subr.mxu0 0.0
      %217 = vmatpush1.msra.mxu0 0.0
      %218 = vmatprep.subr.mxu0 0.0
      %219 = vmatpush1.msra.mxu0 0.0
      %220 = vmatprep.subr.mxu0 0.0
      %221 = vmatpush1.msra.mxu0 0.0
      %222 = vmatprep.subr.mxu0 0.0
      %223 = vmatpush1.msra.mxu0 0.0
      %224 = vmatprep.subr.mxu0 0.0
      %225 = vmatpush1.msra.mxu0 0.0
      %226 = vmatprep.subr.mxu0 0.0
      %227 = vmatpush1.msra.mxu0 0.0
      %228 = vmatprep.subr.mxu0 0.0
      %229 = vmatpush1.msra.mxu0 0.0
      %230 = vmatprep.subr.mxu0 0.0
      %231 = vmatpush1.msra.mxu0 0.0
      %232 = vmatprep.subr.mxu0 0.0
      %233 = vmatpush1.msra.mxu0 0.0
      %234 = vmatprep.subr.mxu0 0.0
      %235 = vmatpush1.msra.mxu0 0.0
      %236 = vmatprep.subr.mxu0 0.0
      %237 = vmatpush1.msra.mxu0 0.0
      %238 = vmatprep.subr.mxu0 0.0
      %239 = vmatpush1.msra.mxu0 0.0
      %240 = vmatprep.subr.mxu0 0.0
      %241 = vmatpush1.msra.mxu0 0.0
      %242 = vmatprep.subr.mxu0 0.0
      %243 = vmatpush1.msra.mxu0 0.0
      %244 = vmatprep.subr.mxu0 0.0
      %245 = vmatpush1.msra.mxu0 0.0
      %246 = vmatprep.subr.mxu0 0.0
      %247 = vmatpush1.msra.mxu0 0.0
      %248 = vmatprep.subr.mxu0 0.0
      %249 = vmatpush1.msra.mxu0 0.0
      %250 = vmatprep.subr.mxu0 0.0
      %251 = vmatpush1.msra.mxu0 0.0
      %252 = vmatprep.mubr.f32.mxu0 0.0
      %253 = vmatmul.mubr.f32.gmra.mrb[0].mxu0 %v186
      %v254 = vpop.f32.mrb[0].mxu0
      %v255 = vadd.f32 0.0, %v254
      %v256 = vpop.f32.mrb[0].mxu0
      %257 = vdwg.mxu0
      %258 = vrot.lane.b32.xlu0 %v171, 126
      %v259 = vpop.permute.xlu0 %258
      %260 = vrot.lane.b32.xlu0 %v172, 126
      %v261 = vpop.permute.xlu0 %260
      %v265 = vsel %vm184, %v173, 0
      %267 = vmatprep.subr.mxu0 0.0
      %268 = vmatpush1.msra.mxu0 %v259
      %269 = vmatprep.subr.mxu0 0.0
      %270 = vmatpush1.msra.mxu0 %v261
      %271 = vmatprep.subr.mxu0 0.0
      %272 = vmatpush1.msra.mxu0 0.0
      %273 = vmatprep.subr.mxu0 0.0
      %274 = vmatpush1.msra.mxu0 0.0
      %275 = vmatprep.subr.mxu0 0.0
      %276 = vmatpush1.msra.mxu0 0.0
      %277 = vmatprep.subr.mxu0 0.0
      %278 = vmatpush1.msra.mxu0 0.0
      %279 = vmatprep.subr.mxu0 0.0
      %280 = vmatpush1.msra.mxu0 0.0
      %281 = vmatprep.subr.mxu0 0.0
      %282 = vmatpush1.msra.mxu0 0.0
      %283 = vmatprep.subr.mxu0 0.0
      %284 = vmatpush1.msra.mxu0 0.0
      %285 = vmatprep.subr.mxu0 0.0
      %286 = vmatpush1.msra.mxu0 0.0
      %287 = vmatprep.subr.mxu0 0.0
      %288 = vmatpush1.msra.mxu0 0.0
      %289 = vmatprep.subr.mxu0 0.0
      %290 = vmatpush1.msra.mxu0 0.0
      %291 = vmatprep.subr.mxu0 0.0
      %292 = vmatpush1.msra.mxu0 0.0
      %293 = vmatprep.subr.mxu0 0.0
      %294 = vmatpush1.msra.mxu0 0.0
      %295 = vmatprep.subr.mxu0 0.0
      %296 = vmatpush1.msra.mxu0 0.0
      %297 = vmatprep.subr.mxu0 0.0
      %298 = vmatpush1.msra.mxu0 0.0
      %299 = vmatprep.subr.mxu0 0.0
      %300 = vmatpush1.msra.mxu0 0.0
      %301 = vmatprep.subr.mxu0 0.0
      %302 = vmatpush1.msra.mxu0 0.0
      %303 = vmatprep.subr.mxu0 0.0
      %304 = vmatpush1.msra.mxu0 0.0
      %305 = vmatprep.subr.mxu0 0.0
      %306 = vmatpush1.msra.mxu0 0.0
      %307 = vmatprep.subr.mxu0 0.0
      %308 = vmatpush1.msra.mxu0 0.0
      %309 = vmatprep.subr.mxu0 0.0
      %310 = vmatpush1.msra.mxu0 0.0
      %311 = vmatprep.subr.mxu0 0.0
      %312 = vmatpush1.msra.mxu0 0.0
      %313 = vmatprep.subr.mxu0 0.0
      %314 = vmatpush1.msra.mxu0 0.0
      %315 = vmatprep.subr.mxu0 0.0
      %316 = vmatpush1.msra.mxu0 0.0
      %317 = vmatprep.subr.mxu0 0.0
      %318 = vmatpush1.msra.mxu0 0.0
      %319 = vmatprep.subr.mxu0 0.0
      %320 = vmatpush1.msra.mxu0 0.0
      %321 = vmatprep.subr.mxu0 0.0
      %322 = vmatpush1.msra.mxu0 0.0
      %323 = vmatprep.subr.mxu0 0.0
      %324 = vmatpush1.msra.mxu0 0.0
      %325 = vmatprep.subr.mxu0 0.0
      %326 = vmatpush1.msra.mxu0 0.0
      %327 = vmatprep.subr.mxu0 0.0
      %328 = vmatpush1.msra.mxu0 0.0
      %329 = vmatprep.subr.mxu0 0.0
      %330 = vmatpush1.msra.mxu0 0.0
      %331 = vmatprep.mubr.f32.mxu0 0.0
      %332 = vmatmul.mubr.f32.gmra.mrb[0].mxu0 %v265
      %v333 = vpop.f32.mrb[0].mxu0
      %v334 = vadd.f32 %v255, %v333
      %v335 = vpop.f32.mrb[0].mxu0
      %336 = vdwg.mxu0
      %s337 = scalar_lea.vmem %s1, 32
      %v338 = vld [vmem:[%s337] sm:$0xff]
      %v340 = vsel %vm184, %v338, 0
      %342 = vmatprep.subr.mxu0 0.0
      %343 = vmatpush1.msra.mxu0 %v171
      %344 = vmatprep.subr.mxu0 0.0
      %345 = vmatpush1.msra.mxu0 %v172
      %346 = vmatprep.subr.mxu0 0.0
      %347 = vmatpush1.msra.mxu0 0.0
      %348 = vmatprep.subr.mxu0 0.0
      %349 = vmatpush1.msra.mxu0 0.0
      %350 = vmatprep.subr.mxu0 0.0
      %351 = vmatpush1.msra.mxu0 0.0
      %352 = vmatprep.subr.mxu0 0.0
      %353 = vmatpush1.msra.mxu0 0.0
      %354 = vmatprep.subr.mxu0 0.0
      %355 = vmatpush1.msra.mxu0 0.0
      %356 = vmatprep.subr.mxu0 0.0
      %357 = vmatpush1.msra.mxu0 0.0
      %358 = vmatprep.subr.mxu0 0.0
      %359 = vmatpush1.msra.mxu0 0.0
      %360 = vmatprep.subr.mxu0 0.0
      %361 = vmatpush1.msra.mxu0 0.0
      %362 = vmatprep.subr.mxu0 0.0
      %363 = vmatpush1.msra.mxu0 0.0
      %364 = vmatprep.subr.mxu0 0.0
      %365 = vmatpush1.msra.mxu0 0.0
      %366 = vmatprep.subr.mxu0 0.0
      %367 = vmatpush1.msra.mxu0 0.0
      %368 = vmatprep.subr.mxu0 0.0
      %369 = vmatpush1.msra.mxu0 0.0
      %370 = vmatprep.subr.mxu0 0.0
      %371 = vmatpush1.msra.mxu0 0.0
      %372 = vmatprep.subr.mxu0 0.0
      %373 = vmatpush1.msra.mxu0 0.0
      %374 = vmatprep.subr.mxu0 0.0
      %375 = vmatpush1.msra.mxu0 0.0
      %376 = vmatprep.subr.mxu0 0.0
      %377 = vmatpush1.msra.mxu0 0.0
      %378 = vmatprep.subr.mxu0 0.0
      %379 = vmatpush1.msra.mxu0 0.0
      %380 = vmatprep.subr.mxu0 0.0
      %381 = vmatpush1.msra.mxu0 0.0
      %382 = vmatprep.subr.mxu0 0.0
      %383 = vmatpush1.msra.mxu0 0.0
      %384 = vmatprep.subr.mxu0 0.0
      %385 = vmatpush1.msra.mxu0 0.0
      %386 = vmatprep.subr.mxu0 0.0
      %387 = vmatpush1.msra.mxu0 0.0
      %388 = vmatprep.subr.mxu0 0.0
      %389 = vmatpush1.msra.mxu0 0.0
      %390 = vmatprep.subr.mxu0 0.0
      %391 = vmatpush1.msra.mxu0 0.0
      %392 = vmatprep.subr.mxu0 0.0
      %393 = vmatpush1.msra.mxu0 0.0
      %394 = vmatprep.subr.mxu0 0.0
      %395 = vmatpush1.msra.mxu0 0.0
      %396 = vmatprep.subr.mxu0 0.0
      %397 = vmatpush1.msra.mxu0 0.0
      %398 = vmatprep.subr.mxu0 0.0
      %399 = vmatpush1.msra.mxu0 0.0
      %400 = vmatprep.subr.mxu0 0.0
      %401 = vmatpush1.msra.mxu0 0.0
      %402 = vmatprep.subr.mxu0 0.0
      %403 = vmatpush1.msra.mxu0 0.0
      %404 = vmatprep.subr.mxu0 0.0
      %405 = vmatpush1.msra.mxu0 0.0
      %406 = vmatprep.mubr.f32.mxu0 0.0
      %407 = vmatmul.mubr.f32.gmra.mrb[0].mxu0 %v340
      %v408 = vpop.f32.mrb[0].mxu0
      %v409 = vadd.f32 0.0, %v408
      %v410 = vpop.f32.mrb[0].mxu0
      %411 = vdwg.mxu0
      %v412 = vadd.f32 %v334, %v409
      %s413 = scalar_lea.vmem %s1, 8
      %v414 = vld [vmem:[%s413] sm:$0xff]
      %s415 = scalar_lea.vmem %s1, 24
      %v416 = vld [vmem:[%s415] sm:$0xff]
      %v418 = vsel %vm184, %v416, 0
      %420 = vmatprep.subr.mxu0 0.0
      %421 = vmatpush1.msra.mxu0 %v179
      %422 = vmatprep.subr.mxu0 0.0
      %423 = vmatpush1.msra.mxu0 %v181
      %424 = vmatprep.subr.mxu0 0.0
      %425 = vmatpush1.msra.mxu0 0.0
      %426 = vmatprep.subr.mxu0 0.0
      %427 = vmatpush1.msra.mxu0 0.0
      %428 = vmatprep.subr.mxu0 0.0
      %429 = vmatpush1.msra.mxu0 0.0
      %430 = vmatprep.subr.mxu0 0.0
      %431 = vmatpush1.msra.mxu0 0.0
      %432 = vmatprep.subr.mxu0 0.0
      %433 = vmatpush1.msra.mxu0 0.0
      %434 = vmatprep.subr.mxu0 0.0
      %435 = vmatpush1.msra.mxu0 0.0
      %436 = vmatprep.subr.mxu0 0.0
      %437 = vmatpush1.msra.mxu0 0.0
      %438 = vmatprep.subr.mxu0 0.0
      %439 = vmatpush1.msra.mxu0 0.0
      %440 = vmatprep.subr.mxu0 0.0
      %441 = vmatpush1.msra.mxu0 0.0
      %442 = vmatprep.subr.mxu0 0.0
      %443 = vmatpush1.msra.mxu0 0.0
      %444 = vmatprep.subr.mxu0 0.0
      %445 = vmatpush1.msra.mxu0 0.0
      %446 = vmatprep.subr.mxu0 0.0
      %447 = vmatpush1.msra.mxu0 0.0
      %448 = vmatprep.subr.mxu0 0.0
      %449 = vmatpush1.msra.mxu0 0.0
      %450 = vmatprep.subr.mxu0 0.0
      %451 = vmatpush1.msra.mxu0 0.0
      %452 = vmatprep.subr.mxu0 0.0
      %453 = vmatpush1.msra.mxu0 0.0
      %454 = vmatprep.subr.mxu0 0.0
      %455 = vmatpush1.msra.mxu0 0.0
      %456 = vmatprep.subr.mxu0 0.0
      %457 = vmatpush1.msra.mxu0 0.0
      %458 = vmatprep.subr.mxu0 0.0
      %459 = vmatpush1.msra.mxu0 0.0
      %460 = vmatprep.subr.mxu0 0.0
      %461 = vmatpush1.msra.mxu0 0.0
      %462 = vmatprep.subr.mxu0 0.0
      %463 = vmatpush1.msra.mxu0 0.0
      %464 = vmatprep.subr.mxu0 0.0
      %465 = vmatpush1.msra.mxu0 0.0
      %466 = vmatprep.subr.mxu0 0.0
      %467 = vmatpush1.msra.mxu0 0.0
      %468 = vmatprep.subr.mxu0 0.0
      %469 = vmatpush1.msra.mxu0 0.0
      %470 = vmatprep.subr.mxu0 0.0
      %471 = vmatpush1.msra.mxu0 0.0
      %472 = vmatprep.subr.mxu0 0.0
      %473 = vmatpush1.msra.mxu0 0.0
      %474 = vmatprep.subr.mxu0 0.0
      %475 = vmatpush1.msra.mxu0 0.0
      %476 = vmatprep.subr.mxu0 0.0
      %477 = vmatpush1.msra.mxu0 0.0
      %478 = vmatprep.subr.mxu0 0.0
      %479 = vmatpush1.msra.mxu0 0.0
      %480 = vmatprep.subr.mxu0 0.0
      %481 = vmatpush1.msra.mxu0 0.0
      %482 = vmatprep.subr.mxu0 0.0
      %483 = vmatpush1.msra.mxu0 0.0
      %484 = vmatprep.mubr.f32.mxu0 0.0
      %485 = vmatmul.mubr.f32.gmra.mrb[0].mxu0 %v418
      %v486 = vpop.f32.mrb[0].mxu0
      %v487 = vadd.f32 0.0, %v486
      %v488 = vpop.f32.mrb[0].mxu0
      %489 = vdwg.mxu0
      %v491 = vsel %vm184, %v414, 0
      %493 = vmatprep.subr.mxu0 0.0
      %494 = vmatpush1.msra.mxu0 %v259
      %495 = vmatprep.subr.mxu0 0.0
      %496 = vmatpush1.msra.mxu0 %v261
      %497 = vmatprep.subr.mxu0 0.0
      %498 = vmatpush1.msra.mxu0 0.0
      %499 = vmatprep.subr.mxu0 0.0
      %500 = vmatpush1.msra.mxu0 0.0
      %501 = vmatprep.subr.mxu0 0.0
      %502 = vmatpush1.msra.mxu0 0.0
      %503 = vmatprep.subr.mxu0 0.0
      %504 = vmatpush1.msra.mxu0 0.0
      %505 = vmatprep.subr.mxu0 0.0
      %506 = vmatpush1.msra.mxu0 0.0
      %507 = vmatprep.subr.mxu0 0.0
      %508 = vmatpush1.msra.mxu0 0.0
      %509 = vmatprep.subr.mxu0 0.0
      %510 = vmatpush1.msra.mxu0 0.0
      %511 = vmatprep.subr.mxu0 0.0
      %512 = vmatpush1.msra.mxu0 0.0
      %513 = vmatprep.subr.mxu0 0.0
      %514 = vmatpush1.msra.mxu0 0.0
      %515 = vmatprep.subr.mxu0 0.0
      %516 = vmatpush1.msra.mxu0 0.0
      %517 = vmatprep.subr.mxu0 0.0
      %518 = vmatpush1.msra.mxu0 0.0
      %519 = vmatprep.subr.mxu0 0.0
      %520 = vmatpush1.msra.mxu0 0.0
      %521 = vmatprep.subr.mxu0 0.0
      %522 = vmatpush1.msra.mxu0 0.0
      %523 = vmatprep.subr.mxu0 0.0
      %524 = vmatpush1.msra.mxu0 0.0
      %525 = vmatprep.subr.mxu0 0.0
      %526 = vmatpush1.msra.mxu0 0.0
      %527 = vmatprep.subr.mxu0 0.0
      %528 = vmatpush1.msra.mxu0 0.0
      %529 = vmatprep.subr.mxu0 0.0
      %530 = vmatpush1.msra.mxu0 0.0
      %531 = vmatprep.subr.mxu0 0.0
      %532 = vmatpush1.msra.mxu0 0.0
      %533 = vmatprep.subr.mxu0 0.0
      %534 = vmatpush1.msra.mxu0 0.0
      %535 = vmatprep.subr.mxu0 0.0
      %536 = vmatpush1.msra.mxu0 0.0
      %537 = vmatprep.subr.mxu0 0.0
      %538 = vmatpush1.msra.mxu0 0.0
      %539 = vmatprep.subr.mxu0 0.0
      %540 = vmatpush1.msra.mxu0 0.0
      %541 = vmatprep.subr.mxu0 0.0
      %542 = vmatpush1.msra.mxu0 0.0
      %543 = vmatprep.subr.mxu0 0.0
      %544 = vmatpush1.msra.mxu0 0.0
      %545 = vmatprep.subr.mxu0 0.0
      %546 = vmatpush1.msra.mxu0 0.0
      %547 = vmatprep.subr.mxu0 0.0
      %548 = vmatpush1.msra.mxu0 0.0
      %549 = vmatprep.subr.mxu0 0.0
      %550 = vmatpush1.msra.mxu0 0.0
      %551 = vmatprep.subr.mxu0 0.0
      %552 = vmatpush1.msra.mxu0 0.0
      %553 = vmatprep.subr.mxu0 0.0
      %554 = vmatpush1.msra.mxu0 0.0
      %555 = vmatprep.subr.mxu0 0.0
      %556 = vmatpush1.msra.mxu0 0.0
      %557 = vmatprep.mubr.f32.mxu0 0.0
      %558 = vmatmul.mubr.f32.gmra.mrb[0].mxu0 %v491
      %v559 = vpop.f32.mrb[0].mxu0
      %v560 = vadd.f32 %v487, %v559
      %v561 = vpop.f32.mrb[0].mxu0
      %562 = vdwg.mxu0
      %v563 = vld [vmem:[%s2] sm:$0xff]
      %565 = vset.pattern.permute.xlu0 0
      %566 = vperm.xlu0 %565, %v563
      %v567 = vpop.permute.xlu0 %566
      %v569 = vadd.f32 %v412, %v567
      %v570 = vmax.f32 %v569, 0.0
      %vm571 = vcmask 523264
      %572 = vst.msk [vmem:[%s170] sm:$0xff] %vm571, %v570
      %v573 = vadd.f32 %v560, %v567
      %v574 = vmax.f32 %v573, 0.0
      %s575 = scalar_lea.vmem %s170, 8
      %576 = vst.msk [vmem:[%s575] sm:$0xff] %vm571, %v574
      %p577 = scmp.lt.s32.totalorder %s14, 1
      %s578 = scalar_select %p577, %s14, 1
      %s579 = smul.addr %s578, 2
      %s580 = smul.addr %s579, 8
      %s581 = scalar_lea.vmem %s3, %s580
      // Predicated region
      $region33: #{unet_forward.23} parent=31 // pred_check
        %p582 = pneg %p100
      $region34: #{unet_forward.23} parent=31 // pred_check_branch
        %584 = sbr.rel (%p582) target = $region36
      $region35: #{unet_forward.23} parent=31 // pred_region
        _
      $region36: #{unet_forward.23} parent=31 // pred_fallthru
        _
    $region32: #{unet_forward.23} parent=5 // pred_fallthru
      _
    %p585 = scmp.le.s32.totalorder 2, %s9
    // Predicated region
    $region37: #{unet_forward.23} parent=5 // pred_check
      %p586 = pneg %p585
    $region38: #{unet_forward.23} parent=5 // pred_check_branch
      %588 = sbr.rel (%p586) target = $region40
    $region39: #{unet_forward.23} parent=5 // pred_region
      %s589 = ssub.s32 %s9, 2
      // Predicated region
      $region41: #{unet_forward.23} parent=39 // pred_check
        %p590 = pneg %p106
      $region42: #{unet_forward.23} parent=39 // pred_check_branch
        %592 = sbr.rel (%p590) target = $region44
      $region43: #{unet_forward.23} parent=39 // pred_region
        %p593 = scmp.lt.s32.totalorder %s15, 1
        %s594 = scalar_select %p593, %s15, 1
        %s595 = smul.addr %s594, 2
        %s596 = smul.addr %s595, 8
        %s597 = scalar_lea.vmem %s3, %s596
      $region44: #{unet_forward.23} parent=39 // pred_fallthru
        _
    $region40: #{unet_forward.23} parent=5 // pred_fallthru
      _
  $region6: #{unet_forward.23} parent=0 // loop_footer
    %s13 = sadd.s32 1, %s9
  $region7: #{unet_forward.23} parent=0 // loop_footer_branch
    %8 = sbr.rel target = $region3
  $region8: #{unet_forward.23} parent=0 // loop_exit
    _

</llo_original>
